<compile_context>
chip_gen: v7x
topology: tpu7x:2x2x1
jax: 0.10.0
libtpu: 0.0.40
codegen_flags: <defaults>
</compile_context>

<pallas_src>
import math

import jax
import jax.numpy as jnp
from jax.experimental import pallas as pl
from jax.experimental.pallas import tpu as pltpu

# ----------------------------- configuration (small but structurally faithful) -----------------
HIDDEN = 32          # d_model / hidden_dim
NHEADS = 4           # nheads
HEAD_DIM = HIDDEN // NHEADS
NUM_QUERIES = 3      # num_queries (module default)
Q_PAD = 8            # sublane-aligned query tile; rows >= NUM_QUERIES are padding
DIM_FF = 64          # dim_feedforward
DEC_LAYERS = 2       # num_decoder_layers (kept small)
MASK_DIM = 32        # mask_dim (== hidden_dim, as in the module defaults 192 == 192)
IN_CH = HIDDEN       # in_channels == hidden_dim -> identity input_proj
LN_EPS = 1e-5
NEG_INF = -1e30

WEIGHT_NAMES = (
    "attn_w_in", "attn_b_in", "attn_w_out", "attn_b_out",
    "ffn_w1", "ffn_b1", "ffn_w2", "ffn_b2",
    "ln_w", "ln_b", "head_w", "head_b",
)


# ----------------------------- in-kernel building blocks ---------------------------------------
def _dot_nt(x, w):
    # x: (N, K), w: (M, K) [PyTorch Linear weight layout] -> x @ w.T : (N, M); no transpose op.
    return jax.lax.dot_general(x, w, (((1,), (1,)), ((), ())),
                               preferred_element_type=jnp.float32)


def _layer_norm(x, w, b):
    mu = jnp.mean(x, axis=-1, keepdims=True)
    var = jnp.mean(jnp.square(x - mu), axis=-1, keepdims=True)   # biased var, like nn.LayerNorm
    return (x - mu) * jax.lax.rsqrt(var + LN_EPS) * w + b


def _attend(q, k, v, w_out, b_out, key_bias):
    """Shared multi-head attention core (q/k/v already projected, q pre-scaled).

    Per-head score tiles are stacked along the sublane axis so the softmax runs once on a
    (NHEADS*Lq, Lk) tile; per-head contexts are concatenated on lanes and pushed through a
    single output projection.
    """
    D = HEAD_DIM
    lq = q.shape[0]
    s = jnp.concatenate(
        [_dot_nt(q[:, h * D:(h + 1) * D], k[:, h * D:(h + 1) * D]) for h in range(NHEADS)],
        axis=0)                                                   # (NHEADS*lq, lk)
    if key_bias is not None:
        s = s + key_bias                                          # mask padded key columns
    s = s - jnp.max(s, axis=-1, keepdims=True)
    p = jnp.exp(s)
    p = p * pl.reciprocal(jnp.sum(p, axis=-1, keepdims=True))     # exact (approx=False)
    o = jnp.concatenate(
        [jnp.dot(p[h * lq:(h + 1) * lq], v[:, h * D:(h + 1) * D],
                 preferred_element_type=jnp.float32) for h in range(NHEADS)],
        axis=-1)                                                  # (lq, E)
    return _dot_nt(o, w_out) + b_out


def _self_attention(tgt, qpos, w_in, b_in, w_out, b_out, key_bias):
    """nn.MultiheadAttention, q = k = tgt + query_pos, v = tgt (one batch element)."""
    E, D = HIDDEN, HEAD_DIM
    x = tgt + qpos
    qk = _dot_nt(x, w_in[:2 * E]) + b_in[:, :2 * E]               # fused Q,K projection
    v = _dot_nt(tgt, w_in[2 * E:]) + b_in[:, 2 * E:]
    q = qk[:, :E] * (1.0 / math.sqrt(D))
    k = qk[:, E:]
    return _attend(q, k, v, w_out, b_out, key_bias)


def _cross_attention(q_in, kmem, mem, w_in, b_in, w_out, b_out):
    """nn.MultiheadAttention, q = tgt + query_pos, k = memory + pos, v = memory."""
    E, D = HIDDEN, HEAD_DIM
    q = (_dot_nt(q_in, w_in[:E]) + b_in[:, :E]) * (1.0 / math.sqrt(D))
    k = _dot_nt(kmem, w_in[E:2 * E]) + b_in[:, E:2 * E]
    v = _dot_nt(mem, w_in[2 * E:]) + b_in[:, 2 * E:]
    return _attend(q, k, v, w_out, b_out, None)


# ----------------------------- fused Pallas kernel ----------------------------------------------
def fused_predictor_kernel(
        mem_ref, pos_ref, qpos_ref, mf_ref,
        aw_in_ref, ab_in_ref, aw_out_ref, ab_out_ref,
        w1_ref, b1_ref, w2_ref, b2_ref,
        lnw_ref, lnb_ref, hw_ref, hb_ref,
        seg_ref):
    """Decoder stack + final norm + mask_embed MLP + seg matmul for the batch slice of this step."""
    E = HIDDEN
    pos = pos_ref[...]          # (S, E)   batch-invariant sine positional embedding
    qpos = qpos_ref[...]        # (Q_PAD, E) query_pos (padded rows are zero)

    # bias masking padded query key-columns in self-attention (padded rows dropped in wrapper)
    key_bias = jnp.where(
        jax.lax.broadcasted_iota(jnp.int32, (1, Q_PAD), 1) < NUM_QUERIES, 0.0, NEG_INF)

    bpg = mem_ref.shape[0]                      # batch elements handled by this grid step
    for bi in range(bpg):                       # static unroll over the folded batch
        mem = mem_ref[bi]                       # (S, E) cross-attention V input
        kmem = mem + pos                        # cross-attention K input; one add, hoisted
        tgt = jnp.zeros((Q_PAD, E), jnp.float32)

        for l in range(DEC_LAYERS):             # static unroll; tgt stays resident on-chip
            # ---- self-attention (post-norm) ----
            if l == 0:
                # exact shortcut: tgt == 0 -> every V row == b_v -> output == b_v @ Wo^T + b_o
                b_v = ab_in_ref[0, 0][:, 2 * E:]
                sa = jnp.broadcast_to(
                    _dot_nt(b_v, aw_out_ref[0, 0]) + ab_out_ref[0, 0], (Q_PAD, E))
            else:
                sa = _self_attention(tgt, qpos, aw_in_ref[l, 0], ab_in_ref[l, 0],
                                     aw_out_ref[l, 0], ab_out_ref[l, 0], key_bias)
            t = _layer_norm(tgt + sa, lnw_ref[l, 0], lnb_ref[l, 0])

            # ---- cross-attention ----
            ca = _cross_attention(t + qpos, kmem, mem,
                                  aw_in_ref[l, 1], ab_in_ref[l, 1],
                                  aw_out_ref[l, 1], ab_out_ref[l, 1])
            t = _layer_norm(t + ca, lnw_ref[l, 1], lnb_ref[l, 1])

            # ---- feed-forward: linear2(relu(linear1(t))) ----
            hdn = jnp.maximum(_dot_nt(t, w1_ref[l]) + b1_ref[l], 0.0)
            ffn = _dot_nt(hdn, w2_ref[l]) + b2_ref[l]
            tgt = _layer_norm(t + ffn, lnw_ref[l, 2], lnb_ref[l, 2])

        # ---- decoder norm -> mask_embed MLP -> einsum('qc,c(hw)->q(hw)') ----
        t = _layer_norm(tgt, hb_ref[0], hb_ref[1])                # hs[-1][b] (padded rows extra)
        m = jnp.maximum(_dot_nt(t, hw_ref[0]) + hb_ref[2], 0.0)
        m = jnp.maximum(_dot_nt(m, hw_ref[1]) + hb_ref[3], 0.0)
        m = _dot_nt(m, hw_ref[2]) + hb_ref[4]                     # (Q_PAD, MASK_DIM)
        seg_ref[bi] = jnp.dot(m, mf_ref[bi], preferred_element_type=jnp.float32)  # (Q_PAD, HW)


# ----------------------------- BlockSpec helpers -------------------------------------------------
def _batch_spec(shape, bpg):
    rest = tuple(shape[1:])
    nz = len(rest)
    return pl.BlockSpec((bpg,) + rest, lambda i: (i,) + (0,) * nz)


def _full_spec(shape):
    nd = len(shape)
    return pl.BlockSpec(tuple(shape), lambda *_: (0,) * nd)


# ----------------------------- positional embedding (shape-only glue, plain JAX) -----------------
def pe_sine_seq(H, W, num_pos_feats, temperature=10000.0):
    """PositionEmbeddingSine(normalize=True) with mask=None; batch-invariant -> (H*W, 2P)."""
    scale = 2.0 * math.pi
    eps = 1e-6
    y = jnp.broadcast_to(jnp.arange(1, H + 1, dtype=jnp.float32)[:, None], (H, W))
    x = jnp.broadcast_to(jnp.arange(1, W + 1, dtype=jnp.float32)[None, :], (H, W))
    y = y / (y[-1:, :] + eps) * scale
    x = x / (x[:, -1:] + eps) * scale
    dim_t = jnp.arange(num_pos_feats, dtype=jnp.float32)
    dim_t = temperature ** (2.0 * jnp.floor(dim_t / 2.0) / num_pos_feats)
    pos_x = x[..., None] / dim_t
    pos_y = y[..., None] / dim_t
    pos_x = jnp.stack((jnp.sin(pos_x[..., 0::2]), jnp.cos(pos_x[..., 1::2])),
                      axis=-1).reshape(H, W, num_pos_feats)
    pos_y = jnp.stack((jnp.sin(pos_y[..., 0::2]), jnp.cos(pos_y[..., 1::2])),
                      axis=-1).reshape(H, W, num_pos_feats)
    pos = jnp.concatenate((pos_y, pos_x), axis=-1)                # (H, W, 2P)
    return pos.reshape(H * W, 2 * num_pos_feats)                  # seq index = h*W + w


# ----------------------------- wrapper ------------------------------------------------------------
@jax.jit
def transformer_predictor(x, mask_features, params):
    """Equivalent of TransformerPredictor.forward(x, mask_features) -> outputs_seg_masks."""
    B, C, H, W = x.shape
    HW = H * W
    pos = pe_sine_seq(H, W, HIDDEN // 2)                             # (S, E), batch-invariant

    # input_proj is identity (C == HIDDEN); encoder has 0 layers -> memory = flattened src.
    memory = jnp.transpose(x.reshape(B, C, HW), (0, 2, 1))           # (B, S, E)
    mf = mask_features.reshape(B, MASK_DIM, HW)                      # (B, MASK_DIM, HW)

    # query_pos padded to Q_PAD rows (padded key columns masked in-kernel)
    qpos = jnp.pad(params["query_embed"], ((0, Q_PAD - NUM_QUERIES), (0, 0)))

    # At most 2 "parallel" grid steps (one per v7x TensorCore); remaining batch is folded
    # inside the kernel, so single-TC chips (v5e/v6e) do not pay B per-step overheads.
    nsteps = 2 if (B >= 2 and B % 2 == 0) else 1
    bpg = B // nsteps

    weights = [params[k] for k in WEIGHT_NAMES]
    in_specs = ([_batch_spec(memory.shape, bpg), _full_spec(pos.shape),
                 _full_spec(qpos.shape), _batch_spec(mf.shape, bpg)]
                + [_full_spec(w.shape) for w in weights])

    seg = pl.pallas_call(
        fused_predictor_kernel,
        grid=(nsteps,),
        in_specs=in_specs,
        out_specs=_batch_spec((B, Q_PAD, HW), bpg),
        out_shape=jax.ShapeDtypeStruct((B, Q_PAD, HW), jnp.float32),
        compiler_params=pltpu.CompilerParams(
            dimension_semantics=("parallel",),        # feeds both TensorCores on v7x
            vmem_limit_bytes=32 * 1024 * 1024),
    )(memory, pos, qpos, mf, *weights)

    # drop padded query rows; (.., HW) slab -> (B, Q, H, W) is layout plumbing only.
    return seg[:, :NUM_QUERIES].reshape(B, NUM_QUERIES, H, W)


# ----------------------------- deterministic parameter init --------------------------------------
def init_params(key):
    E, F, Q, MD, L = HIDDEN, DIM_FF, NUM_QUERIES, MASK_DIM, DEC_LAYERS
    assert MD == E, "head_w packing assumes mask_dim == hidden_dim (module default 192 == 192)"
    ks = iter(jax.random.split(key, 24))

    def xavier(shape):
        fan_out, fan_in = shape[-2], shape[-1]
        limit = math.sqrt(6.0 / (fan_in + fan_out))
        return jax.random.uniform(next(ks), shape, jnp.float32, -limit, limit)

    def small(shape):
        return 0.02 * jax.random.normal(next(ks), shape, jnp.float32)

    head_b = jnp.concatenate(
        [jnp.ones((1, 1, E), jnp.float32),       # decoder-norm weight
         jnp.zeros((1, 1, E), jnp.float32),      # decoder-norm bias
         small((3, 1, E))], axis=0)              # mask_embed MLP biases (m1, m2, m3)

    return dict(
        query_embed=jax.random.normal(next(ks), (Q, E), jnp.float32),
        # [:, 0] = self-attention, [:, 1] = cross-attention (PyTorch in_proj layout: q|k|v rows)
        attn_w_in=xavier((L, 2, 3 * E, E)),
        attn_b_in=small((L, 2, 1, 3 * E)),
        attn_w_out=xavier((L, 2, E, E)),
        attn_b_out=small((L, 2, 1, E)),
        ffn_w1=xavier((L, F, E)), ffn_b1=small((L, 1, F)),
        ffn_w2=xavier((L, E, F)), ffn_b2=small((L, 1, E)),
        ln_w=jnp.ones((L, 3, 1, E), jnp.float32),    # norm1 | norm2 | norm3
        ln_b=jnp.zeros((L, 3, 1, E), jnp.float32),
        head_w=xavier((3, E, E)),                    # mask_embed m1 | m2 | m3 (MD == E)
        head_b=head_b,
    )


# ----------------------------- main ----------------------------------------------------------------
if __name__ == "__main__":
    key = jax.random.PRNGKey(0)
    kx, kmf, kp = jax.random.split(key, 3)

    B, H, W = 2, 16, 16                                  # HW = 256 -> lane-dense seg stores
    x = jax.random.normal(kx, (B, IN_CH, H, W), jnp.float32)            # NCHW, like PyTorch
    mask_features = jax.random.normal(kmf, (B, MASK_DIM, H, W), jnp.float32)
    params = init_params(kp)

    out = transformer_predictor(x, mask_features, params)
    jax.block_until_ready(out)
    assert out.shape == (B, NUM_QUERIES, H, W)
    assert bool(jnp.all(jnp.isfinite(out)))
    print("KERNEL_OK")
</pallas_src>

<mosaic_0001>
module attributes {stable_mosaic.version = 11 : i64} {
  func.func @fused_predictor_kernel(%arg0: i32, %arg1: memref<1x256x32xf32, #tpu.memory_space<vmem>>, %arg2: memref<256x32xf32, #tpu.memory_space<vmem>>, %arg3: memref<8x32xf32, #tpu.memory_space<vmem>>, %arg4: memref<1x32x256xf32, #tpu.memory_space<vmem>>, %arg5: memref<2x2x96x32xf32, #tpu.memory_space<vmem>>, %arg6: memref<2x2x1x96xf32, #tpu.memory_space<vmem>>, %arg7: memref<2x2x32x32xf32, #tpu.memory_space<vmem>>, %arg8: memref<2x2x1x32xf32, #tpu.memory_space<vmem>>, %arg9: memref<2x64x32xf32, #tpu.memory_space<vmem>>, %arg10: memref<2x1x64xf32, #tpu.memory_space<vmem>>, %arg11: memref<2x32x64xf32, #tpu.memory_space<vmem>>, %arg12: memref<2x1x32xf32, #tpu.memory_space<vmem>>, %arg13: memref<2x3x1x32xf32, #tpu.memory_space<vmem>>, %arg14: memref<2x3x1x32xf32, #tpu.memory_space<vmem>>, %arg15: memref<3x32x32xf32, #tpu.memory_space<vmem>>, %arg16: memref<5x1x32xf32, #tpu.memory_space<vmem>>, %arg17: memref<1x8x256xf32, #tpu.memory_space<vmem>>) attributes {dimension_semantics = [#tpu.dimension_semantics<parallel>], iteration_bounds = array<i64: 2>, scalar_prefetch = 0 : i64, scratch_operands = 0 : i64, tpu.core_type = #tpu.core_type<tc>, window_params = [{transform_indices = @transform_0, window_bounds = array<i64: 1, 256, 32>}, {pipeline_mode = #tpu.pipeline_mode<synchronous>, transform_indices = @transform_1, window_bounds = array<i64: 256, 32>}, {pipeline_mode = #tpu.pipeline_mode<synchronous>, transform_indices = @transform_2, window_bounds = array<i64: 8, 32>}, {transform_indices = @transform_3, window_bounds = array<i64: 1, 32, 256>}, {pipeline_mode = #tpu.pipeline_mode<synchronous>, transform_indices = @transform_4, window_bounds = array<i64: 2, 2, 96, 32>}, {pipeline_mode = #tpu.pipeline_mode<synchronous>, transform_indices = @transform_5, window_bounds = array<i64: 2, 2, 1, 96>}, {pipeline_mode = #tpu.pipeline_mode<synchronous>, transform_indices = @transform_6, window_bounds = array<i64: 2, 2, 32, 32>}, {pipeline_mode = #tpu.pipeline_mode<synchronous>, transform_indices = @transform_7, window_bounds = array<i64: 2, 2, 1, 32>}, {pipeline_mode = #tpu.pipeline_mode<synchronous>, transform_indices = @transform_8, window_bounds = array<i64: 2, 64, 32>}, {pipeline_mode = #tpu.pipeline_mode<synchronous>, transform_indices = @transform_9, window_bounds = array<i64: 2, 1, 64>}, {pipeline_mode = #tpu.pipeline_mode<synchronous>, transform_indices = @transform_10, window_bounds = array<i64: 2, 32, 64>}, {pipeline_mode = #tpu.pipeline_mode<synchronous>, transform_indices = @transform_11, window_bounds = array<i64: 2, 1, 32>}, {pipeline_mode = #tpu.pipeline_mode<synchronous>, transform_indices = @transform_12, window_bounds = array<i64: 2, 3, 1, 32>}, {pipeline_mode = #tpu.pipeline_mode<synchronous>, transform_indices = @transform_13, window_bounds = array<i64: 2, 3, 1, 32>}, {pipeline_mode = #tpu.pipeline_mode<synchronous>, transform_indices = @transform_14, window_bounds = array<i64: 3, 32, 32>}, {pipeline_mode = #tpu.pipeline_mode<synchronous>, transform_indices = @transform_15, window_bounds = array<i64: 5, 1, 32>}, {transform_indices = @transform_16, window_bounds = array<i64: 1, 8, 256>}]} {
    %c0 = arith.constant 0 : index
    %c0_0 = arith.constant 0 : index
    %0 = vector.load %arg2[%c0, %c0_0] : memref<256x32xf32, #tpu.memory_space<vmem>>, vector<256x32xf32>
    %c0_1 = arith.constant 0 : index
    %c0_2 = arith.constant 0 : index
    %1 = vector.load %arg3[%c0_1, %c0_2] : memref<8x32xf32, #tpu.memory_space<vmem>>, vector<8x32xf32>
    %2 = tpu.iota {dimensions = array<i32: 1>} : vector<1x8xi32>
    %c3_i32 = arith.constant 3 : i32
    %3 = vector.broadcast %c3_i32 : i32 to vector<1x8xi32>
    %4 = arith.cmpi slt, %2, %3 : vector<1x8xi32>
    %cst = arith.constant 0.000000e+00 : f32
    %cst_3 = arith.constant -1.000000e+30 : f32
    %5 = vector.broadcast %cst : f32 to vector<1x8xf32>
    %6 = vector.broadcast %cst_3 : f32 to vector<1x8xf32>
    %7 = arith.select %4, %5, %6 : vector<1x8xi1>, vector<1x8xf32>
    %c0_4 = arith.constant 0 : index
    %c0_5 = arith.constant 0 : index
    %c0_6 = arith.constant 0 : index
    %8 = vector.load %arg1[%c0_4, %c0_5, %c0_6] : memref<1x256x32xf32, #tpu.memory_space<vmem>>, vector<1x256x32xf32>
    %9 = vector.shape_cast %8 : vector<1x256x32xf32> to vector<256x32xf32>
    %10 = arith.addf %9, %0 : vector<256x32xf32>
    %cst_7 = arith.constant 0.000000e+00 : f32
    %11 = vector.broadcast %cst_7 : f32 to vector<8x32xf32>
    %c0_8 = arith.constant 0 : index
    %c0_9 = arith.constant 0 : index
    %c0_10 = arith.constant 0 : index
    %c0_11 = arith.constant 0 : index
    %12 = vector.load %arg6[%c0_8, %c0_9, %c0_10, %c0_11] : memref<2x2x1x96xf32, #tpu.memory_space<vmem>>, vector<1x1x1x96xf32>
    %13 = vector.shape_cast %12 : vector<1x1x1x96xf32> to vector<1x96xf32>
    %14 = vector.extract_strided_slice %13 {offsets = [0, 64], sizes = [1, 32], strides = [1, 1]} : vector<1x96xf32> to vector<1x32xf32>
    %c0_12 = arith.constant 0 : index
    %c0_13 = arith.constant 0 : index
    %c0_14 = arith.constant 0 : index
    %c0_15 = arith.constant 0 : index
    %15 = vector.load %arg7[%c0_12, %c0_13, %c0_14, %c0_15] : memref<2x2x32x32xf32, #tpu.memory_space<vmem>>, vector<1x1x32x32xf32>
    %16 = vector.shape_cast %15 : vector<1x1x32x32xf32> to vector<32x32xf32>
    %cst_16 = arith.constant dense<0.000000e+00> : vector<1x32xf32>
    %17 = tpu.matmul %14, %16, %cst_16 {dimension_numbers = #tpu.dot_dimension_numbers<[1], [1], [0], [0], [0, 0, 1, 0], [], []>} : vector<1x32xf32>, vector<32x32xf32>, vector<1x32xf32> -> vector<1x32xf32>
    %c0_17 = arith.constant 0 : index
    %c0_18 = arith.constant 0 : index
    %c0_19 = arith.constant 0 : index
    %c0_20 = arith.constant 0 : index
    %18 = vector.load %arg8[%c0_17, %c0_18, %c0_19, %c0_20] : memref<2x2x1x32xf32, #tpu.memory_space<vmem>>, vector<1x1x1x32xf32>
    %19 = vector.shape_cast %18 : vector<1x1x1x32xf32> to vector<1x32xf32>
    %20 = arith.addf %17, %19 : vector<1x32xf32>
    %21 = vector.shape_cast %20 : vector<1x32xf32> to vector<1x32xf32>
    %22 = vector.broadcast %21 : vector<1x32xf32> to vector<8x32xf32>
    %23 = arith.addf %11, %22 : vector<8x32xf32>
    %c0_21 = arith.constant 0 : index
    %c0_22 = arith.constant 0 : index
    %c0_23 = arith.constant 0 : index
    %c0_24 = arith.constant 0 : index
    %24 = vector.load %arg13[%c0_21, %c0_22, %c0_23, %c0_24] : memref<2x3x1x32xf32, #tpu.memory_space<vmem>>, vector<1x1x1x32xf32>
    %25 = vector.shape_cast %24 : vector<1x1x1x32xf32> to vector<1x32xf32>
    %c0_25 = arith.constant 0 : index
    %c0_26 = arith.constant 0 : index
    %c0_27 = arith.constant 0 : index
    %c0_28 = arith.constant 0 : index
    %26 = vector.load %arg14[%c0_25, %c0_26, %c0_27, %c0_28] : memref<2x3x1x32xf32, #tpu.memory_space<vmem>>, vector<1x1x1x32xf32>
    %27 = vector.shape_cast %26 : vector<1x1x1x32xf32> to vector<1x32xf32>
    %cst_29 = arith.constant dense<0.000000e+00> : vector<8xf32>
    %28 = vector.multi_reduction <add>, %23, %cst_29 [1] : vector<8x32xf32> to vector<8xf32>
    %29 = vector.shape_cast %28 : vector<8xf32> to vector<8x1xf32>
    %cst_30 = arith.constant 3.200000e+01 : f32
    %30 = vector.broadcast %cst_30 : f32 to vector<8x1xf32>
    %31 = arith.divf %29, %30 : vector<8x1xf32>
    %32 = vector.broadcast %31 : vector<8x1xf32> to vector<8x32xf32>
    %33 = arith.subf %23, %32 : vector<8x32xf32>
    %34 = arith.mulf %33, %33 : vector<8x32xf32>
    %cst_31 = arith.constant dense<0.000000e+00> : vector<8xf32>
    %35 = vector.multi_reduction <add>, %34, %cst_31 [1] : vector<8x32xf32> to vector<8xf32>
    %36 = vector.shape_cast %35 : vector<8xf32> to vector<8x1xf32>
    %cst_32 = arith.constant 3.200000e+01 : f32
    %37 = vector.broadcast %cst_32 : f32 to vector<8x1xf32>
    %38 = arith.divf %36, %37 : vector<8x1xf32>
    %39 = vector.broadcast %31 : vector<8x1xf32> to vector<8x32xf32>
    %40 = arith.subf %23, %39 : vector<8x32xf32>
    %cst_33 = arith.constant 9.99999974E-6 : f32
    %41 = vector.broadcast %cst_33 : f32 to vector<8x1xf32>
    %42 = arith.addf %38, %41 : vector<8x1xf32>
    %43 = math.rsqrt %42 : vector<8x1xf32>
    %44 = vector.broadcast %43 : vector<8x1xf32> to vector<8x32xf32>
    %45 = arith.mulf %40, %44 : vector<8x32xf32>
    %46 = vector.broadcast %25 : vector<1x32xf32> to vector<8x32xf32>
    %47 = arith.mulf %45, %46 : vector<8x32xf32>
    %48 = vector.broadcast %27 : vector<1x32xf32> to vector<8x32xf32>
    %49 = arith.addf %47, %48 : vector<8x32xf32>
    %50 = arith.addf %49, %1 : vector<8x32xf32>
    %c0_34 = arith.constant 0 : index
    %c1 = arith.constant 1 : index
    %c0_35 = arith.constant 0 : index
    %c0_36 = arith.constant 0 : index
    %51 = vector.load %arg5[%c0_34, %c1, %c0_35, %c0_36] : memref<2x2x96x32xf32, #tpu.memory_space<vmem>>, vector<1x1x96x32xf32>
    %52 = vector.shape_cast %51 : vector<1x1x96x32xf32> to vector<96x32xf32>
    %c0_37 = arith.constant 0 : index
    %c1_38 = arith.constant 1 : index
    %c0_39 = arith.constant 0 : index
    %c0_40 = arith.constant 0 : index
    %53 = vector.load %arg6[%c0_37, %c1_38, %c0_39, %c0_40] : memref<2x2x1x96xf32, #tpu.memory_space<vmem>>, vector<1x1x1x96xf32>
    %54 = vector.shape_cast %53 : vector<1x1x1x96xf32> to vector<1x96xf32>
    %c0_41 = arith.constant 0 : index
    %c1_42 = arith.constant 1 : index
    %c0_43 = arith.constant 0 : index
    %c0_44 = arith.constant 0 : index
    %55 = vector.load %arg7[%c0_41, %c1_42, %c0_43, %c0_44] : memref<2x2x32x32xf32, #tpu.memory_space<vmem>>, vector<1x1x32x32xf32>
    %56 = vector.shape_cast %55 : vector<1x1x32x32xf32> to vector<32x32xf32>
    %c0_45 = arith.constant 0 : index
    %c1_46 = arith.constant 1 : index
    %c0_47 = arith.constant 0 : index
    %c0_48 = arith.constant 0 : index
    %57 = vector.load %arg8[%c0_45, %c1_46, %c0_47, %c0_48] : memref<2x2x1x32xf32, #tpu.memory_space<vmem>>, vector<1x1x1x32xf32>
    %58 = vector.shape_cast %57 : vector<1x1x1x32xf32> to vector<1x32xf32>
    %59 = vector.extract_strided_slice %52 {offsets = [0, 0], sizes = [32, 32], strides = [1, 1]} : vector<96x32xf32> to vector<32x32xf32>
    %cst_49 = arith.constant dense<0.000000e+00> : vector<8x32xf32>
    %60 = tpu.matmul %50, %59, %cst_49 {dimension_numbers = #tpu.dot_dimension_numbers<[1], [1], [0], [0], [0, 0, 1, 0], [], []>} : vector<8x32xf32>, vector<32x32xf32>, vector<8x32xf32> -> vector<8x32xf32>
    %61 = vector.extract_strided_slice %54 {offsets = [0, 0], sizes = [1, 32], strides = [1, 1]} : vector<1x96xf32> to vector<1x32xf32>
    %62 = vector.broadcast %61 : vector<1x32xf32> to vector<8x32xf32>
    %63 = arith.addf %60, %62 : vector<8x32xf32>
    %cst_50 = arith.constant 0.353553385 : f32
    %64 = vector.broadcast %cst_50 : f32 to vector<8x32xf32>
    %65 = arith.mulf %63, %64 : vector<8x32xf32>
    %66 = vector.extract_strided_slice %52 {offsets = [32, 0], sizes = [32, 32], strides = [1, 1]} : vector<96x32xf32> to vector<32x32xf32>
    %cst_51 = arith.constant dense<0.000000e+00> : vector<256x32xf32>
    %67 = tpu.matmul %10, %66, %cst_51 {dimension_numbers = #tpu.dot_dimension_numbers<[1], [1], [0], [0], [0, 0, 1, 0], [], []>} : vector<256x32xf32>, vector<32x32xf32>, vector<256x32xf32> -> vector<256x32xf32>
    %68 = vector.extract_strided_slice %54 {offsets = [0, 32], sizes = [1, 32], strides = [1, 1]} : vector<1x96xf32> to vector<1x32xf32>
    %69 = vector.broadcast %68 : vector<1x32xf32> to vector<256x32xf32>
    %70 = arith.addf %67, %69 : vector<256x32xf32>
    %71 = vector.extract_strided_slice %52 {offsets = [64, 0], sizes = [32, 32], strides = [1, 1]} : vector<96x32xf32> to vector<32x32xf32>
    %cst_52 = arith.constant dense<0.000000e+00> : vector<256x32xf32>
    %72 = tpu.matmul %9, %71, %cst_52 {dimension_numbers = #tpu.dot_dimension_numbers<[1], [1], [0], [0], [0, 0, 1, 0], [], []>} : vector<256x32xf32>, vector<32x32xf32>, vector<256x32xf32> -> vector<256x32xf32>
    %73 = vector.extract_strided_slice %54 {offsets = [0, 64], sizes = [1, 32], strides = [1, 1]} : vector<1x96xf32> to vector<1x32xf32>
    %74 = vector.broadcast %73 : vector<1x32xf32> to vector<256x32xf32>
    %75 = arith.addf %72, %74 : vector<256x32xf32>
    %76 = vector.extract_strided_slice %65 {offsets = [0, 0], sizes = [8, 8], strides = [1, 1]} : vector<8x32xf32> to vector<8x8xf32>
    %77 = vector.extract_strided_slice %70 {offsets = [0, 0], sizes = [256, 8], strides = [1, 1]} : vector<256x32xf32> to vector<256x8xf32>
    %cst_53 = arith.constant dense<0.000000e+00> : vector<8x256xf32>
    %78 = tpu.matmul %76, %77, %cst_53 {dimension_numbers = #tpu.dot_dimension_numbers<[1], [1], [0], [0], [0, 0, 1, 0], [], []>} : vector<8x8xf32>, vector<256x8xf32>, vector<8x256xf32> -> vector<8x256xf32>
    %79 = vector.extract_strided_slice %65 {offsets = [0, 8], sizes = [8, 8], strides = [1, 1]} : vector<8x32xf32> to vector<8x8xf32>
    %80 = vector.extract_strided_slice %70 {offsets = [0, 8], sizes = [256, 8], strides = [1, 1]} : vector<256x32xf32> to vector<256x8xf32>
    %cst_54 = arith.constant dense<0.000000e+00> : vector<8x256xf32>
    %81 = tpu.matmul %79, %80, %cst_54 {dimension_numbers = #tpu.dot_dimension_numbers<[1], [1], [0], [0], [0, 0, 1, 0], [], []>} : vector<8x8xf32>, vector<256x8xf32>, vector<8x256xf32> -> vector<8x256xf32>
    %82 = vector.extract_strided_slice %65 {offsets = [0, 16], sizes = [8, 8], strides = [1, 1]} : vector<8x32xf32> to vector<8x8xf32>
    %83 = vector.extract_strided_slice %70 {offsets = [0, 16], sizes = [256, 8], strides = [1, 1]} : vector<256x32xf32> to vector<256x8xf32>
    %cst_55 = arith.constant dense<0.000000e+00> : vector<8x256xf32>
    %84 = tpu.matmul %82, %83, %cst_55 {dimension_numbers = #tpu.dot_dimension_numbers<[1], [1], [0], [0], [0, 0, 1, 0], [], []>} : vector<8x8xf32>, vector<256x8xf32>, vector<8x256xf32> -> vector<8x256xf32>
    %85 = vector.extract_strided_slice %65 {offsets = [0, 24], sizes = [8, 8], strides = [1, 1]} : vector<8x32xf32> to vector<8x8xf32>
    %86 = vector.extract_strided_slice %70 {offsets = [0, 24], sizes = [256, 8], strides = [1, 1]} : vector<256x32xf32> to vector<256x8xf32>
    %cst_56 = arith.constant dense<0.000000e+00> : vector<8x256xf32>
    %87 = tpu.matmul %85, %86, %cst_56 {dimension_numbers = #tpu.dot_dimension_numbers<[1], [1], [0], [0], [0, 0, 1, 0], [], []>} : vector<8x8xf32>, vector<256x8xf32>, vector<8x256xf32> -> vector<8x256xf32>
    %88 = tpu.concatenate %78, %81, %84, %87 in 0 : vector<8x256xf32>, vector<8x256xf32>, vector<8x256xf32>, vector<8x256xf32> -> vector<32x256xf32>
    %cst_57 = arith.constant dense<0xFF800000> : vector<32xf32>
    %89 = vector.multi_reduction <maximumf>, %88, %cst_57 [1] : vector<32x256xf32> to vector<32xf32>
    %90 = vector.shape_cast %89 : vector<32xf32> to vector<32x1xf32>
    %91 = vector.broadcast %90 : vector<32x1xf32> to vector<32x256xf32>
    %92 = arith.subf %88, %91 : vector<32x256xf32>
    %93 = math.exp %92 : vector<32x256xf32>
    %cst_58 = arith.constant dense<0.000000e+00> : vector<32xf32>
    %94 = vector.multi_reduction <add>, %93, %cst_58 [1] : vector<32x256xf32> to vector<32xf32>
    %95 = vector.shape_cast %94 : vector<32xf32> to vector<32x1xf32>
    %96 = tpu.reciprocal %95 : vector<32x1xf32> -> vector<32x1xf32>
    %97 = vector.broadcast %96 : vector<32x1xf32> to vector<32x256xf32>
    %98 = arith.mulf %93, %97 : vector<32x256xf32>
    %99 = vector.extract_strided_slice %98 {offsets = [0, 0], sizes = [8, 256], strides = [1, 1]} : vector<32x256xf32> to vector<8x256xf32>
    %100 = vector.extract_strided_slice %75 {offsets = [0, 0], sizes = [256, 8], strides = [1, 1]} : vector<256x32xf32> to vector<256x8xf32>
    %cst_59 = arith.constant dense<0.000000e+00> : vector<8x8xf32>
    %101 = tpu.matmul %99, %100, %cst_59 {dimension_numbers = #tpu.dot_dimension_numbers<[1], [0], [0], [1], [0, 0, 1, 1], [], []>} : vector<8x256xf32>, vector<256x8xf32>, vector<8x8xf32> -> vector<8x8xf32>
    %102 = vector.extract_strided_slice %98 {offsets = [8, 0], sizes = [8, 256], strides = [1, 1]} : vector<32x256xf32> to vector<8x256xf32>
    %103 = vector.extract_strided_slice %75 {offsets = [0, 8], sizes = [256, 8], strides = [1, 1]} : vector<256x32xf32> to vector<256x8xf32>
    %cst_60 = arith.constant dense<0.000000e+00> : vector<8x8xf32>
    %104 = tpu.matmul %102, %103, %cst_60 {dimension_numbers = #tpu.dot_dimension_numbers<[1], [0], [0], [1], [0, 0, 1, 1], [], []>} : vector<8x256xf32>, vector<256x8xf32>, vector<8x8xf32> -> vector<8x8xf32>
    %105 = vector.extract_strided_slice %98 {offsets = [16, 0], sizes = [8, 256], strides = [1, 1]} : vector<32x256xf32> to vector<8x256xf32>
    %106 = vector.extract_strided_slice %75 {offsets = [0, 16], sizes = [256, 8], strides = [1, 1]} : vector<256x32xf32> to vector<256x8xf32>
    %cst_61 = arith.constant dense<0.000000e+00> : vector<8x8xf32>
    %107 = tpu.matmul %105, %106, %cst_61 {dimension_numbers = #tpu.dot_dimension_numbers<[1], [0], [0], [1], [0, 0, 1, 1], [], []>} : vector<8x256xf32>, vector<256x8xf32>, vector<8x8xf32> -> vector<8x8xf32>
    %108 = vector.extract_strided_slice %98 {offsets = [24, 0], sizes = [8, 256], strides = [1, 1]} : vector<32x256xf32> to vector<8x256xf32>
    %109 = vector.extract_strided_slice %75 {offsets = [0, 24], sizes = [256, 8], strides = [1, 1]} : vector<256x32xf32> to vector<256x8xf32>
    %cst_62 = arith.constant dense<0.000000e+00> : vector<8x8xf32>
    %110 = tpu.matmul %108, %109, %cst_62 {dimension_numbers = #tpu.dot_dimension_numbers<[1], [0], [0], [1], [0, 0, 1, 1], [], []>} : vector<8x256xf32>, vector<256x8xf32>, vector<8x8xf32> -> vector<8x8xf32>
    %111 = tpu.concatenate %101, %104, %107, %110 in 1 : vector<8x8xf32>, vector<8x8xf32>, vector<8x8xf32>, vector<8x8xf32> -> vector<8x32xf32>
    %cst_63 = arith.constant dense<0.000000e+00> : vector<8x32xf32>
    %112 = tpu.matmul %111, %56, %cst_63 {dimension_numbers = #tpu.dot_dimension_numbers<[1], [1], [0], [0], [0, 0, 1, 0], [], []>} : vector<8x32xf32>, vector<32x32xf32>, vector<8x32xf32> -> vector<8x32xf32>
    %113 = vector.broadcast %58 : vector<1x32xf32> to vector<8x32xf32>
    %114 = arith.addf %112, %113 : vector<8x32xf32>
    %115 = arith.addf %49, %114 : vector<8x32xf32>
    %c0_64 = arith.constant 0 : index
    %c1_65 = arith.constant 1 : index
    %c0_66 = arith.constant 0 : index
    %c0_67 = arith.constant 0 : index
    %116 = vector.load %arg13[%c0_64, %c1_65, %c0_66, %c0_67] : memref<2x3x1x32xf32, #tpu.memory_space<vmem>>, vector<1x1x1x32xf32>
    %117 = vector.shape_cast %116 : vector<1x1x1x32xf32> to vector<1x32xf32>
    %c0_68 = arith.constant 0 : index
    %c1_69 = arith.constant 1 : index
    %c0_70 = arith.constant 0 : index
    %c0_71 = arith.constant 0 : index
    %118 = vector.load %arg14[%c0_68, %c1_69, %c0_70, %c0_71] : memref<2x3x1x32xf32, #tpu.memory_space<vmem>>, vector<1x1x1x32xf32>
    %119 = vector.shape_cast %118 : vector<1x1x1x32xf32> to vector<1x32xf32>
    %cst_72 = arith.constant dense<0.000000e+00> : vector<8xf32>
    %120 = vector.multi_reduction <add>, %115, %cst_72 [1] : vector<8x32xf32> to vector<8xf32>
    %121 = vector.shape_cast %120 : vector<8xf32> to vector<8x1xf32>
    %cst_73 = arith.constant 3.200000e+01 : f32
    %122 = vector.broadcast %cst_73 : f32 to vector<8x1xf32>
    %123 = arith.divf %121, %122 : vector<8x1xf32>
    %124 = vector.broadcast %123 : vector<8x1xf32> to vector<8x32xf32>
    %125 = arith.subf %115, %124 : vector<8x32xf32>
    %126 = arith.mulf %125, %125 : vector<8x32xf32>
    %cst_74 = arith.constant dense<0.000000e+00> : vector<8xf32>
    %127 = vector.multi_reduction <add>, %126, %cst_74 [1] : vector<8x32xf32> to vector<8xf32>
    %128 = vector.shape_cast %127 : vector<8xf32> to vector<8x1xf32>
    %cst_75 = arith.constant 3.200000e+01 : f32
    %129 = vector.broadcast %cst_75 : f32 to vector<8x1xf32>
    %130 = arith.divf %128, %129 : vector<8x1xf32>
    %131 = vector.broadcast %123 : vector<8x1xf32> to vector<8x32xf32>
    %132 = arith.subf %115, %131 : vector<8x32xf32>
    %cst_76 = arith.constant 9.99999974E-6 : f32
    %133 = vector.broadcast %cst_76 : f32 to vector<8x1xf32>
    %134 = arith.addf %130, %133 : vector<8x1xf32>
    %135 = math.rsqrt %134 : vector<8x1xf32>
    %136 = vector.broadcast %135 : vector<8x1xf32> to vector<8x32xf32>
    %137 = arith.mulf %132, %136 : vector<8x32xf32>
    %138 = vector.broadcast %117 : vector<1x32xf32> to vector<8x32xf32>
    %139 = arith.mulf %137, %138 : vector<8x32xf32>
    %140 = vector.broadcast %119 : vector<1x32xf32> to vector<8x32xf32>
    %141 = arith.addf %139, %140 : vector<8x32xf32>
    %c0_77 = arith.constant 0 : index
    %c0_78 = arith.constant 0 : index
    %c0_79 = arith.constant 0 : index
    %142 = vector.load %arg9[%c0_77, %c0_78, %c0_79] : memref<2x64x32xf32, #tpu.memory_space<vmem>>, vector<1x64x32xf32>
    %143 = vector.shape_cast %142 : vector<1x64x32xf32> to vector<64x32xf32>
    %cst_80 = arith.constant dense<0.000000e+00> : vector<8x64xf32>
    %144 = tpu.matmul %141, %143, %cst_80 {dimension_numbers = #tpu.dot_dimension_numbers<[1], [1], [0], [0], [0, 0, 1, 0], [], []>} : vector<8x32xf32>, vector<64x32xf32>, vector<8x64xf32> -> vector<8x64xf32>
    %c0_81 = arith.constant 0 : index
    %c0_82 = arith.constant 0 : index
    %c0_83 = arith.constant 0 : index
    %145 = vector.load %arg10[%c0_81, %c0_82, %c0_83] : memref<2x1x64xf32, #tpu.memory_space<vmem>>, vector<1x1x64xf32>
    %146 = vector.shape_cast %145 : vector<1x1x64xf32> to vector<1x64xf32>
    %147 = vector.broadcast %146 : vector<1x64xf32> to vector<8x64xf32>
    %148 = arith.addf %144, %147 : vector<8x64xf32>
    %cst_84 = arith.constant 0.000000e+00 : f32
    %149 = vector.broadcast %cst_84 : f32 to vector<8x64xf32>
    %150 = arith.maximumf %148, %149 : vector<8x64xf32>
    %c0_85 = arith.constant 0 : index
    %c0_86 = arith.constant 0 : index
    %c0_87 = arith.constant 0 : index
    %151 = vector.load %arg11[%c0_85, %c0_86, %c0_87] : memref<2x32x64xf32, #tpu.memory_space<vmem>>, vector<1x32x64xf32>
    %152 = vector.shape_cast %151 : vector<1x32x64xf32> to vector<32x64xf32>
    %cst_88 = arith.constant dense<0.000000e+00> : vector<8x32xf32>
    %153 = tpu.matmul %150, %152, %cst_88 {dimension_numbers = #tpu.dot_dimension_numbers<[1], [1], [0], [0], [0, 0, 1, 0], [], []>} : vector<8x64xf32>, vector<32x64xf32>, vector<8x32xf32> -> vector<8x32xf32>
    %c0_89 = arith.constant 0 : index
    %c0_90 = arith.constant 0 : index
    %c0_91 = arith.constant 0 : index
    %154 = vector.load %arg12[%c0_89, %c0_90, %c0_91] : memref<2x1x32xf32, #tpu.memory_space<vmem>>, vector<1x1x32xf32>
    %155 = vector.shape_cast %154 : vector<1x1x32xf32> to vector<1x32xf32>
    %156 = vector.broadcast %155 : vector<1x32xf32> to vector<8x32xf32>
    %157 = arith.addf %153, %156 : vector<8x32xf32>
    %158 = arith.addf %141, %157 : vector<8x32xf32>
    %c0_92 = arith.constant 0 : index
    %c2 = arith.constant 2 : index
    %c0_93 = arith.constant 0 : index
    %c0_94 = arith.constant 0 : index
    %159 = vector.load %arg13[%c0_92, %c2, %c0_93, %c0_94] : memref<2x3x1x32xf32, #tpu.memory_space<vmem>>, vector<1x1x1x32xf32>
    %160 = vector.shape_cast %159 : vector<1x1x1x32xf32> to vector<1x32xf32>
    %c0_95 = arith.constant 0 : index
    %c2_96 = arith.constant 2 : index
    %c0_97 = arith.constant 0 : index
    %c0_98 = arith.constant 0 : index
    %161 = vector.load %arg14[%c0_95, %c2_96, %c0_97, %c0_98] : memref<2x3x1x32xf32, #tpu.memory_space<vmem>>, vector<1x1x1x32xf32>
    %162 = vector.shape_cast %161 : vector<1x1x1x32xf32> to vector<1x32xf32>
    %cst_99 = arith.constant dense<0.000000e+00> : vector<8xf32>
    %163 = vector.multi_reduction <add>, %158, %cst_99 [1] : vector<8x32xf32> to vector<8xf32>
    %164 = vector.shape_cast %163 : vector<8xf32> to vector<8x1xf32>
    %cst_100 = arith.constant 3.200000e+01 : f32
    %165 = vector.broadcast %cst_100 : f32 to vector<8x1xf32>
    %166 = arith.divf %164, %165 : vector<8x1xf32>
    %167 = vector.broadcast %166 : vector<8x1xf32> to vector<8x32xf32>
    %168 = arith.subf %158, %167 : vector<8x32xf32>
    %169 = arith.mulf %168, %168 : vector<8x32xf32>
    %cst_101 = arith.constant dense<0.000000e+00> : vector<8xf32>
    %170 = vector.multi_reduction <add>, %169, %cst_101 [1] : vector<8x32xf32> to vector<8xf32>
    %171 = vector.shape_cast %170 : vector<8xf32> to vector<8x1xf32>
    %cst_102 = arith.constant 3.200000e+01 : f32
    %172 = vector.broadcast %cst_102 : f32 to vector<8x1xf32>
    %173 = arith.divf %171, %172 : vector<8x1xf32>
    %174 = vector.broadcast %166 : vector<8x1xf32> to vector<8x32xf32>
    %175 = arith.subf %158, %174 : vector<8x32xf32>
    %cst_103 = arith.constant 9.99999974E-6 : f32
    %176 = vector.broadcast %cst_103 : f32 to vector<8x1xf32>
    %177 = arith.addf %173, %176 : vector<8x1xf32>
    %178 = math.rsqrt %177 : vector<8x1xf32>
    %179 = vector.broadcast %178 : vector<8x1xf32> to vector<8x32xf32>
    %180 = arith.mulf %175, %179 : vector<8x32xf32>
    %181 = vector.broadcast %160 : vector<1x32xf32> to vector<8x32xf32>
    %182 = arith.mulf %180, %181 : vector<8x32xf32>
    %183 = vector.broadcast %162 : vector<1x32xf32> to vector<8x32xf32>
    %184 = arith.addf %182, %183 : vector<8x32xf32>
    %c1_104 = arith.constant 1 : index
    %c0_105 = arith.constant 0 : index
    %c0_106 = arith.constant 0 : index
    %c0_107 = arith.constant 0 : index
    %185 = vector.load %arg5[%c1_104, %c0_105, %c0_106, %c0_107] : memref<2x2x96x32xf32, #tpu.memory_space<vmem>>, vector<1x1x96x32xf32>
    %186 = vector.shape_cast %185 : vector<1x1x96x32xf32> to vector<96x32xf32>
    %c1_108 = arith.constant 1 : index
    %c0_109 = arith.constant 0 : index
    %c0_110 = arith.constant 0 : index
    %c0_111 = arith.constant 0 : index
    %187 = vector.load %arg6[%c1_108, %c0_109, %c0_110, %c0_111] : memref<2x2x1x96xf32, #tpu.memory_space<vmem>>, vector<1x1x1x96xf32>
    %188 = vector.shape_cast %187 : vector<1x1x1x96xf32> to vector<1x96xf32>
    %c1_112 = arith.constant 1 : index
    %c0_113 = arith.constant 0 : index
    %c0_114 = arith.constant 0 : index
    %c0_115 = arith.constant 0 : index
    %189 = vector.load %arg7[%c1_112, %c0_113, %c0_114, %c0_115] : memref<2x2x32x32xf32, #tpu.memory_space<vmem>>, vector<1x1x32x32xf32>
    %190 = vector.shape_cast %189 : vector<1x1x32x32xf32> to vector<32x32xf32>
    %c1_116 = arith.constant 1 : index
    %c0_117 = arith.constant 0 : index
    %c0_118 = arith.constant 0 : index
    %c0_119 = arith.constant 0 : index
    %191 = vector.load %arg8[%c1_116, %c0_117, %c0_118, %c0_119] : memref<2x2x1x32xf32, #tpu.memory_space<vmem>>, vector<1x1x1x32xf32>
    %192 = vector.shape_cast %191 : vector<1x1x1x32xf32> to vector<1x32xf32>
    %193 = arith.addf %184, %1 : vector<8x32xf32>
    %194 = vector.extract_strided_slice %186 {offsets = [0, 0], sizes = [64, 32], strides = [1, 1]} : vector<96x32xf32> to vector<64x32xf32>
    %cst_120 = arith.constant dense<0.000000e+00> : vector<8x64xf32>
    %195 = tpu.matmul %193, %194, %cst_120 {dimension_numbers = #tpu.dot_dimension_numbers<[1], [1], [0], [0], [0, 0, 1, 0], [], []>} : vector<8x32xf32>, vector<64x32xf32>, vector<8x64xf32> -> vector<8x64xf32>
    %196 = vector.extract_strided_slice %188 {offsets = [0, 0], sizes = [1, 64], strides = [1, 1]} : vector<1x96xf32> to vector<1x64xf32>
    %197 = vector.broadcast %196 : vector<1x64xf32> to vector<8x64xf32>
    %198 = arith.addf %195, %197 : vector<8x64xf32>
    %199 = vector.extract_strided_slice %186 {offsets = [64, 0], sizes = [32, 32], strides = [1, 1]} : vector<96x32xf32> to vector<32x32xf32>
    %cst_121 = arith.constant dense<0.000000e+00> : vector<8x32xf32>
    %200 = tpu.matmul %184, %199, %cst_121 {dimension_numbers = #tpu.dot_dimension_numbers<[1], [1], [0], [0], [0, 0, 1, 0], [], []>} : vector<8x32xf32>, vector<32x32xf32>, vector<8x32xf32> -> vector<8x32xf32>
    %201 = vector.extract_strided_slice %188 {offsets = [0, 64], sizes = [1, 32], strides = [1, 1]} : vector<1x96xf32> to vector<1x32xf32>
    %202 = vector.broadcast %201 : vector<1x32xf32> to vector<8x32xf32>
    %203 = arith.addf %200, %202 : vector<8x32xf32>
    %204 = vector.extract_strided_slice %198 {offsets = [0, 0], sizes = [8, 32], strides = [1, 1]} : vector<8x64xf32> to vector<8x32xf32>
    %cst_122 = arith.constant 0.353553385 : f32
    %205 = vector.broadcast %cst_122 : f32 to vector<8x32xf32>
    %206 = arith.mulf %204, %205 : vector<8x32xf32>
    %207 = vector.extract_strided_slice %198 {offsets = [0, 32], sizes = [8, 32], strides = [1, 1]} : vector<8x64xf32> to vector<8x32xf32>
    %208 = vector.extract_strided_slice %206 {offsets = [0, 0], sizes = [8, 8], strides = [1, 1]} : vector<8x32xf32> to vector<8x8xf32>
    %209 = vector.extract_strided_slice %207 {offsets = [0, 0], sizes = [8, 8], strides = [1, 1]} : vector<8x32xf32> to vector<8x8xf32>
    %cst_123 = arith.constant dense<0.000000e+00> : vector<8x8xf32>
    %210 = tpu.matmul %208, %209, %cst_123 {dimension_numbers = #tpu.dot_dimension_numbers<[1], [1], [0], [0], [0, 0, 1, 0], [], []>} : vector<8x8xf32>, vector<8x8xf32>, vector<8x8xf32> -> vector<8x8xf32>
    %211 = vector.extract_strided_slice %206 {offsets = [0, 8], sizes = [8, 8], strides = [1, 1]} : vector<8x32xf32> to vector<8x8xf32>
    %212 = vector.extract_strided_slice %207 {offsets = [0, 8], sizes = [8, 8], strides = [1, 1]} : vector<8x32xf32> to vector<8x8xf32>
    %cst_124 = arith.constant dense<0.000000e+00> : vector<8x8xf32>
    %213 = tpu.matmul %211, %212, %cst_124 {dimension_numbers = #tpu.dot_dimension_numbers<[1], [1], [0], [0], [0, 0, 1, 0], [], []>} : vector<8x8xf32>, vector<8x8xf32>, vector<8x8xf32> -> vector<8x8xf32>
    %214 = vector.extract_strided_slice %206 {offsets = [0, 16], sizes = [8, 8], strides = [1, 1]} : vector<8x32xf32> to vector<8x8xf32>
    %215 = vector.extract_strided_slice %207 {offsets = [0, 16], sizes = [8, 8], strides = [1, 1]} : vector<8x32xf32> to vector<8x8xf32>
    %cst_125 = arith.constant dense<0.000000e+00> : vector<8x8xf32>
    %216 = tpu.matmul %214, %215, %cst_125 {dimension_numbers = #tpu.dot_dimension_numbers<[1], [1], [0], [0], [0, 0, 1, 0], [], []>} : vector<8x8xf32>, vector<8x8xf32>, vector<8x8xf32> -> vector<8x8xf32>
    %217 = vector.extract_strided_slice %206 {offsets = [0, 24], sizes = [8, 8], strides = [1, 1]} : vector<8x32xf32> to vector<8x8xf32>
    %218 = vector.extract_strided_slice %207 {offsets = [0, 24], sizes = [8, 8], strides = [1, 1]} : vector<8x32xf32> to vector<8x8xf32>
    %cst_126 = arith.constant dense<0.000000e+00> : vector<8x8xf32>
    %219 = tpu.matmul %217, %218, %cst_126 {dimension_numbers = #tpu.dot_dimension_numbers<[1], [1], [0], [0], [0, 0, 1, 0], [], []>} : vector<8x8xf32>, vector<8x8xf32>, vector<8x8xf32> -> vector<8x8xf32>
    %220 = tpu.concatenate %210, %213, %216, %219 in 0 : vector<8x8xf32>, vector<8x8xf32>, vector<8x8xf32>, vector<8x8xf32> -> vector<32x8xf32>
    %221 = vector.broadcast %7 : vector<1x8xf32> to vector<32x8xf32>
    %222 = arith.addf %220, %221 : vector<32x8xf32>
    %cst_127 = arith.constant dense<0xFF800000> : vector<32xf32>
    %223 = vector.multi_reduction <maximumf>, %222, %cst_127 [1] : vector<32x8xf32> to vector<32xf32>
    %224 = vector.shape_cast %223 : vector<32xf32> to vector<32x1xf32>
    %225 = vector.broadcast %224 : vector<32x1xf32> to vector<32x8xf32>
    %226 = arith.subf %222, %225 : vector<32x8xf32>
    %227 = math.exp %226 : vector<32x8xf32>
    %cst_128 = arith.constant dense<0.000000e+00> : vector<32xf32>
    %228 = vector.multi_reduction <add>, %227, %cst_128 [1] : vector<32x8xf32> to vector<32xf32>
    %229 = vector.shape_cast %228 : vector<32xf32> to vector<32x1xf32>
    %230 = tpu.reciprocal %229 : vector<32x1xf32> -> vector<32x1xf32>
    %231 = vector.broadcast %230 : vector<32x1xf32> to vector<32x8xf32>
    %232 = arith.mulf %227, %231 : vector<32x8xf32>
    %233 = vector.extract_strided_slice %232 {offsets = [0, 0], sizes = [8, 8], strides = [1, 1]} : vector<32x8xf32> to vector<8x8xf32>
    %234 = vector.extract_strided_slice %203 {offsets = [0, 0], sizes = [8, 8], strides = [1, 1]} : vector<8x32xf32> to vector<8x8xf32>
    %cst_129 = arith.constant dense<0.000000e+00> : vector<8x8xf32>
    %235 = tpu.matmul %233, %234, %cst_129 {dimension_numbers = #tpu.dot_dimension_numbers<[1], [0], [0], [1], [0, 0, 1, 1], [], []>} : vector<8x8xf32>, vector<8x8xf32>, vector<8x8xf32> -> vector<8x8xf32>
    %236 = vector.extract_strided_slice %232 {offsets = [8, 0], sizes = [8, 8], strides = [1, 1]} : vector<32x8xf32> to vector<8x8xf32>
    %237 = vector.extract_strided_slice %203 {offsets = [0, 8], sizes = [8, 8], strides = [1, 1]} : vector<8x32xf32> to vector<8x8xf32>
    %cst_130 = arith.constant dense<0.000000e+00> : vector<8x8xf32>
    %238 = tpu.matmul %236, %237, %cst_130 {dimension_numbers = #tpu.dot_dimension_numbers<[1], [0], [0], [1], [0, 0, 1, 1], [], []>} : vector<8x8xf32>, vector<8x8xf32>, vector<8x8xf32> -> vector<8x8xf32>
    %239 = vector.extract_strided_slice %232 {offsets = [16, 0], sizes = [8, 8], strides = [1, 1]} : vector<32x8xf32> to vector<8x8xf32>
    %240 = vector.extract_strided_slice %203 {offsets = [0, 16], sizes = [8, 8], strides = [1, 1]} : vector<8x32xf32> to vector<8x8xf32>
    %cst_131 = arith.constant dense<0.000000e+00> : vector<8x8xf32>
    %241 = tpu.matmul %239, %240, %cst_131 {dimension_numbers = #tpu.dot_dimension_numbers<[1], [0], [0], [1], [0, 0, 1, 1], [], []>} : vector<8x8xf32>, vector<8x8xf32>, vector<8x8xf32> -> vector<8x8xf32>
    %242 = vector.extract_strided_slice %232 {offsets = [24, 0], sizes = [8, 8], strides = [1, 1]} : vector<32x8xf32> to vector<8x8xf32>
    %243 = vector.extract_strided_slice %203 {offsets = [0, 24], sizes = [8, 8], strides = [1, 1]} : vector<8x32xf32> to vector<8x8xf32>
    %cst_132 = arith.constant dense<0.000000e+00> : vector<8x8xf32>
    %244 = tpu.matmul %242, %243, %cst_132 {dimension_numbers = #tpu.dot_dimension_numbers<[1], [0], [0], [1], [0, 0, 1, 1], [], []>} : vector<8x8xf32>, vector<8x8xf32>, vector<8x8xf32> -> vector<8x8xf32>
    %245 = tpu.concatenate %235, %238, %241, %244 in 1 : vector<8x8xf32>, vector<8x8xf32>, vector<8x8xf32>, vector<8x8xf32> -> vector<8x32xf32>
    %cst_133 = arith.constant dense<0.000000e+00> : vector<8x32xf32>
    %246 = tpu.matmul %245, %190, %cst_133 {dimension_numbers = #tpu.dot_dimension_numbers<[1], [1], [0], [0], [0, 0, 1, 0], [], []>} : vector<8x32xf32>, vector<32x32xf32>, vector<8x32xf32> -> vector<8x32xf32>
    %247 = vector.broadcast %192 : vector<1x32xf32> to vector<8x32xf32>
    %248 = arith.addf %246, %247 : vector<8x32xf32>
    %249 = arith.addf %184, %248 : vector<8x32xf32>
    %c1_134 = arith.constant 1 : index
    %c0_135 = arith.constant 0 : index
    %c0_136 = arith.constant 0 : index
    %c0_137 = arith.constant 0 : index
    %250 = vector.load %arg13[%c1_134, %c0_135, %c0_136, %c0_137] : memref<2x3x1x32xf32, #tpu.memory_space<vmem>>, vector<1x1x1x32xf32>
    %251 = vector.shape_cast %250 : vector<1x1x1x32xf32> to vector<1x32xf32>
    %c1_138 = arith.constant 1 : index
    %c0_139 = arith.constant 0 : index
    %c0_140 = arith.constant 0 : index
    %c0_141 = arith.constant 0 : index
    %252 = vector.load %arg14[%c1_138, %c0_139, %c0_140, %c0_141] : memref<2x3x1x32xf32, #tpu.memory_space<vmem>>, vector<1x1x1x32xf32>
    %253 = vector.shape_cast %252 : vector<1x1x1x32xf32> to vector<1x32xf32>
    %cst_142 = arith.constant dense<0.000000e+00> : vector<8xf32>
    %254 = vector.multi_reduction <add>, %249, %cst_142 [1] : vector<8x32xf32> to vector<8xf32>
    %255 = vector.shape_cast %254 : vector<8xf32> to vector<8x1xf32>
    %cst_143 = arith.constant 3.200000e+01 : f32
    %256 = vector.broadcast %cst_143 : f32 to vector<8x1xf32>
    %257 = arith.divf %255, %256 : vector<8x1xf32>
    %258 = vector.broadcast %257 : vector<8x1xf32> to vector<8x32xf32>
    %259 = arith.subf %249, %258 : vector<8x32xf32>
    %260 = arith.mulf %259, %259 : vector<8x32xf32>
    %cst_144 = arith.constant dense<0.000000e+00> : vector<8xf32>
    %261 = vector.multi_reduction <add>, %260, %cst_144 [1] : vector<8x32xf32> to vector<8xf32>
    %262 = vector.shape_cast %261 : vector<8xf32> to vector<8x1xf32>
    %cst_145 = arith.constant 3.200000e+01 : f32
    %263 = vector.broadcast %cst_145 : f32 to vector<8x1xf32>
    %264 = arith.divf %262, %263 : vector<8x1xf32>
    %265 = vector.broadcast %257 : vector<8x1xf32> to vector<8x32xf32>
    %266 = arith.subf %249, %265 : vector<8x32xf32>
    %cst_146 = arith.constant 9.99999974E-6 : f32
    %267 = vector.broadcast %cst_146 : f32 to vector<8x1xf32>
    %268 = arith.addf %264, %267 : vector<8x1xf32>
    %269 = math.rsqrt %268 : vector<8x1xf32>
    %270 = vector.broadcast %269 : vector<8x1xf32> to vector<8x32xf32>
    %271 = arith.mulf %266, %270 : vector<8x32xf32>
    %272 = vector.broadcast %251 : vector<1x32xf32> to vector<8x32xf32>
    %273 = arith.mulf %271, %272 : vector<8x32xf32>
    %274 = vector.broadcast %253 : vector<1x32xf32> to vector<8x32xf32>
    %275 = arith.addf %273, %274 : vector<8x32xf32>
    %276 = arith.addf %275, %1 : vector<8x32xf32>
    %c1_147 = arith.constant 1 : index
    %c1_148 = arith.constant 1 : index
    %c0_149 = arith.constant 0 : index
    %c0_150 = arith.constant 0 : index
    %277 = vector.load %arg5[%c1_147, %c1_148, %c0_149, %c0_150] : memref<2x2x96x32xf32, #tpu.memory_space<vmem>>, vector<1x1x96x32xf32>
    %278 = vector.shape_cast %277 : vector<1x1x96x32xf32> to vector<96x32xf32>
    %c1_151 = arith.constant 1 : index
    %c1_152 = arith.constant 1 : index
    %c0_153 = arith.constant 0 : index
    %c0_154 = arith.constant 0 : index
    %279 = vector.load %arg6[%c1_151, %c1_152, %c0_153, %c0_154] : memref<2x2x1x96xf32, #tpu.memory_space<vmem>>, vector<1x1x1x96xf32>
    %280 = vector.shape_cast %279 : vector<1x1x1x96xf32> to vector<1x96xf32>
    %c1_155 = arith.constant 1 : index
    %c1_156 = arith.constant 1 : index
    %c0_157 = arith.constant 0 : index
    %c0_158 = arith.constant 0 : index
    %281 = vector.load %arg7[%c1_155, %c1_156, %c0_157, %c0_158] : memref<2x2x32x32xf32, #tpu.memory_space<vmem>>, vector<1x1x32x32xf32>
    %282 = vector.shape_cast %281 : vector<1x1x32x32xf32> to vector<32x32xf32>
    %c1_159 = arith.constant 1 : index
    %c1_160 = arith.constant 1 : index
    %c0_161 = arith.constant 0 : index
    %c0_162 = arith.constant 0 : index
    %283 = vector.load %arg8[%c1_159, %c1_160, %c0_161, %c0_162] : memref<2x2x1x32xf32, #tpu.memory_space<vmem>>, vector<1x1x1x32xf32>
    %284 = vector.shape_cast %283 : vector<1x1x1x32xf32> to vector<1x32xf32>
    %285 = vector.extract_strided_slice %278 {offsets = [0, 0], sizes = [32, 32], strides = [1, 1]} : vector<96x32xf32> to vector<32x32xf32>
    %cst_163 = arith.constant dense<0.000000e+00> : vector<8x32xf32>
    %286 = tpu.matmul %276, %285, %cst_163 {dimension_numbers = #tpu.dot_dimension_numbers<[1], [1], [0], [0], [0, 0, 1, 0], [], []>} : vector<8x32xf32>, vector<32x32xf32>, vector<8x32xf32> -> vector<8x32xf32>
    %287 = vector.extract_strided_slice %280 {offsets = [0, 0], sizes = [1, 32], strides = [1, 1]} : vector<1x96xf32> to vector<1x32xf32>
    %288 = vector.broadcast %287 : vector<1x32xf32> to vector<8x32xf32>
    %289 = arith.addf %286, %288 : vector<8x32xf32>
    %cst_164 = arith.constant 0.353553385 : f32
    %290 = vector.broadcast %cst_164 : f32 to vector<8x32xf32>
    %291 = arith.mulf %289, %290 : vector<8x32xf32>
    %292 = vector.extract_strided_slice %278 {offsets = [32, 0], sizes = [32, 32], strides = [1, 1]} : vector<96x32xf32> to vector<32x32xf32>
    %cst_165 = arith.constant dense<0.000000e+00> : vector<256x32xf32>
    %293 = tpu.matmul %10, %292, %cst_165 {dimension_numbers = #tpu.dot_dimension_numbers<[1], [1], [0], [0], [0, 0, 1, 0], [], []>} : vector<256x32xf32>, vector<32x32xf32>, vector<256x32xf32> -> vector<256x32xf32>
    %294 = vector.extract_strided_slice %280 {offsets = [0, 32], sizes = [1, 32], strides = [1, 1]} : vector<1x96xf32> to vector<1x32xf32>
    %295 = vector.broadcast %294 : vector<1x32xf32> to vector<256x32xf32>
    %296 = arith.addf %293, %295 : vector<256x32xf32>
    %297 = vector.extract_strided_slice %278 {offsets = [64, 0], sizes = [32, 32], strides = [1, 1]} : vector<96x32xf32> to vector<32x32xf32>
    %cst_166 = arith.constant dense<0.000000e+00> : vector<256x32xf32>
    %298 = tpu.matmul %9, %297, %cst_166 {dimension_numbers = #tpu.dot_dimension_numbers<[1], [1], [0], [0], [0, 0, 1, 0], [], []>} : vector<256x32xf32>, vector<32x32xf32>, vector<256x32xf32> -> vector<256x32xf32>
    %299 = vector.extract_strided_slice %280 {offsets = [0, 64], sizes = [1, 32], strides = [1, 1]} : vector<1x96xf32> to vector<1x32xf32>
    %300 = vector.broadcast %299 : vector<1x32xf32> to vector<256x32xf32>
    %301 = arith.addf %298, %300 : vector<256x32xf32>
    %302 = vector.extract_strided_slice %291 {offsets = [0, 0], sizes = [8, 8], strides = [1, 1]} : vector<8x32xf32> to vector<8x8xf32>
    %303 = vector.extract_strided_slice %296 {offsets = [0, 0], sizes = [256, 8], strides = [1, 1]} : vector<256x32xf32> to vector<256x8xf32>
    %cst_167 = arith.constant dense<0.000000e+00> : vector<8x256xf32>
    %304 = tpu.matmul %302, %303, %cst_167 {dimension_numbers = #tpu.dot_dimension_numbers<[1], [1], [0], [0], [0, 0, 1, 0], [], []>} : vector<8x8xf32>, vector<256x8xf32>, vector<8x256xf32> -> vector<8x256xf32>
    %305 = vector.extract_strided_slice %291 {offsets = [0, 8], sizes = [8, 8], strides = [1, 1]} : vector<8x32xf32> to vector<8x8xf32>
    %306 = vector.extract_strided_slice %296 {offsets = [0, 8], sizes = [256, 8], strides = [1, 1]} : vector<256x32xf32> to vector<256x8xf32>
    %cst_168 = arith.constant dense<0.000000e+00> : vector<8x256xf32>
    %307 = tpu.matmul %305, %306, %cst_168 {dimension_numbers = #tpu.dot_dimension_numbers<[1], [1], [0], [0], [0, 0, 1, 0], [], []>} : vector<8x8xf32>, vector<256x8xf32>, vector<8x256xf32> -> vector<8x256xf32>
    %308 = vector.extract_strided_slice %291 {offsets = [0, 16], sizes = [8, 8], strides = [1, 1]} : vector<8x32xf32> to vector<8x8xf32>
    %309 = vector.extract_strided_slice %296 {offsets = [0, 16], sizes = [256, 8], strides = [1, 1]} : vector<256x32xf32> to vector<256x8xf32>
    %cst_169 = arith.constant dense<0.000000e+00> : vector<8x256xf32>
    %310 = tpu.matmul %308, %309, %cst_169 {dimension_numbers = #tpu.dot_dimension_numbers<[1], [1], [0], [0], [0, 0, 1, 0], [], []>} : vector<8x8xf32>, vector<256x8xf32>, vector<8x256xf32> -> vector<8x256xf32>
    %311 = vector.extract_strided_slice %291 {offsets = [0, 24], sizes = [8, 8], strides = [1, 1]} : vector<8x32xf32> to vector<8x8xf32>
    %312 = vector.extract_strided_slice %296 {offsets = [0, 24], sizes = [256, 8], strides = [1, 1]} : vector<256x32xf32> to vector<256x8xf32>
    %cst_170 = arith.constant dense<0.000000e+00> : vector<8x256xf32>
    %313 = tpu.matmul %311, %312, %cst_170 {dimension_numbers = #tpu.dot_dimension_numbers<[1], [1], [0], [0], [0, 0, 1, 0], [], []>} : vector<8x8xf32>, vector<256x8xf32>, vector<8x256xf32> -> vector<8x256xf32>
    %314 = tpu.concatenate %304, %307, %310, %313 in 0 : vector<8x256xf32>, vector<8x256xf32>, vector<8x256xf32>, vector<8x256xf32> -> vector<32x256xf32>
    %cst_171 = arith.constant dense<0xFF800000> : vector<32xf32>
    %315 = vector.multi_reduction <maximumf>, %314, %cst_171 [1] : vector<32x256xf32> to vector<32xf32>
    %316 = vector.shape_cast %315 : vector<32xf32> to vector<32x1xf32>
    %317 = vector.broadcast %316 : vector<32x1xf32> to vector<32x256xf32>
    %318 = arith.subf %314, %317 : vector<32x256xf32>
    %319 = math.exp %318 : vector<32x256xf32>
    %cst_172 = arith.constant dense<0.000000e+00> : vector<32xf32>
    %320 = vector.multi_reduction <add>, %319, %cst_172 [1] : vector<32x256xf32> to vector<32xf32>
    %321 = vector.shape_cast %320 : vector<32xf32> to vector<32x1xf32>
    %322 = tpu.reciprocal %321 : vector<32x1xf32> -> vector<32x1xf32>
    %323 = vector.broadcast %322 : vector<32x1xf32> to vector<32x256xf32>
    %324 = arith.mulf %319, %323 : vector<32x256xf32>
    %325 = vector.extract_strided_slice %324 {offsets = [0, 0], sizes = [8, 256], strides = [1, 1]} : vector<32x256xf32> to vector<8x256xf32>
    %326 = vector.extract_strided_slice %301 {offsets = [0, 0], sizes = [256, 8], strides = [1, 1]} : vector<256x32xf32> to vector<256x8xf32>
    %cst_173 = arith.constant dense<0.000000e+00> : vector<8x8xf32>
    %327 = tpu.matmul %325, %326, %cst_173 {dimension_numbers = #tpu.dot_dimension_numbers<[1], [0], [0], [1], [0, 0, 1, 1], [], []>} : vector<8x256xf32>, vector<256x8xf32>, vector<8x8xf32> -> vector<8x8xf32>
    %328 = vector.extract_strided_slice %324 {offsets = [8, 0], sizes = [8, 256], strides = [1, 1]} : vector<32x256xf32> to vector<8x256xf32>
    %329 = vector.extract_strided_slice %301 {offsets = [0, 8], sizes = [256, 8], strides = [1, 1]} : vector<256x32xf32> to vector<256x8xf32>
    %cst_174 = arith.constant dense<0.000000e+00> : vector<8x8xf32>
    %330 = tpu.matmul %328, %329, %cst_174 {dimension_numbers = #tpu.dot_dimension_numbers<[1], [0], [0], [1], [0, 0, 1, 1], [], []>} : vector<8x256xf32>, vector<256x8xf32>, vector<8x8xf32> -> vector<8x8xf32>
    %331 = vector.extract_strided_slice %324 {offsets = [16, 0], sizes = [8, 256], strides = [1, 1]} : vector<32x256xf32> to vector<8x256xf32>
    %332 = vector.extract_strided_slice %301 {offsets = [0, 16], sizes = [256, 8], strides = [1, 1]} : vector<256x32xf32> to vector<256x8xf32>
    %cst_175 = arith.constant dense<0.000000e+00> : vector<8x8xf32>
    %333 = tpu.matmul %331, %332, %cst_175 {dimension_numbers = #tpu.dot_dimension_numbers<[1], [0], [0], [1], [0, 0, 1, 1], [], []>} : vector<8x256xf32>, vector<256x8xf32>, vector<8x8xf32> -> vector<8x8xf32>
    %334 = vector.extract_strided_slice %324 {offsets = [24, 0], sizes = [8, 256], strides = [1, 1]} : vector<32x256xf32> to vector<8x256xf32>
    %335 = vector.extract_strided_slice %301 {offsets = [0, 24], sizes = [256, 8], strides = [1, 1]} : vector<256x32xf32> to vector<256x8xf32>
    %cst_176 = arith.constant dense<0.000000e+00> : vector<8x8xf32>
    %336 = tpu.matmul %334, %335, %cst_176 {dimension_numbers = #tpu.dot_dimension_numbers<[1], [0], [0], [1], [0, 0, 1, 1], [], []>} : vector<8x256xf32>, vector<256x8xf32>, vector<8x8xf32> -> vector<8x8xf32>
    %337 = tpu.concatenate %327, %330, %333, %336 in 1 : vector<8x8xf32>, vector<8x8xf32>, vector<8x8xf32>, vector<8x8xf32> -> vector<8x32xf32>
    %cst_177 = arith.constant dense<0.000000e+00> : vector<8x32xf32>
    %338 = tpu.matmul %337, %282, %cst_177 {dimension_numbers = #tpu.dot_dimension_numbers<[1], [1], [0], [0], [0, 0, 1, 0], [], []>} : vector<8x32xf32>, vector<32x32xf32>, vector<8x32xf32> -> vector<8x32xf32>
    %339 = vector.broadcast %284 : vector<1x32xf32> to vector<8x32xf32>
    %340 = arith.addf %338, %339 : vector<8x32xf32>
    %341 = arith.addf %275, %340 : vector<8x32xf32>
    %c1_178 = arith.constant 1 : index
    %c1_179 = arith.constant 1 : index
    %c0_180 = arith.constant 0 : index
    %c0_181 = arith.constant 0 : index
    %342 = vector.load %arg13[%c1_178, %c1_179, %c0_180, %c0_181] : memref<2x3x1x32xf32, #tpu.memory_space<vmem>>, vector<1x1x1x32xf32>
    %343 = vector.shape_cast %342 : vector<1x1x1x32xf32> to vector<1x32xf32>
    %c1_182 = arith.constant 1 : index
    %c1_183 = arith.constant 1 : index
    %c0_184 = arith.constant 0 : index
    %c0_185 = arith.constant 0 : index
    %344 = vector.load %arg14[%c1_182, %c1_183, %c0_184, %c0_185] : memref<2x3x1x32xf32, #tpu.memory_space<vmem>>, vector<1x1x1x32xf32>
    %345 = vector.shape_cast %344 : vector<1x1x1x32xf32> to vector<1x32xf32>
    %cst_186 = arith.constant dense<0.000000e+00> : vector<8xf32>
    %346 = vector.multi_reduction <add>, %341, %cst_186 [1] : vector<8x32xf32> to vector<8xf32>
    %347 = vector.shape_cast %346 : vector<8xf32> to vector<8x1xf32>
    %cst_187 = arith.constant 3.200000e+01 : f32
    %348 = vector.broadcast %cst_187 : f32 to vector<8x1xf32>
    %349 = arith.divf %347, %348 : vector<8x1xf32>
    %350 = vector.broadcast %349 : vector<8x1xf32> to vector<8x32xf32>
    %351 = arith.subf %341, %350 : vector<8x32xf32>
    %352 = arith.mulf %351, %351 : vector<8x32xf32>
    %cst_188 = arith.constant dense<0.000000e+00> : vector<8xf32>
    %353 = vector.multi_reduction <add>, %352, %cst_188 [1] : vector<8x32xf32> to vector<8xf32>
    %354 = vector.shape_cast %353 : vector<8xf32> to vector<8x1xf32>
    %cst_189 = arith.constant 3.200000e+01 : f32
    %355 = vector.broadcast %cst_189 : f32 to vector<8x1xf32>
    %356 = arith.divf %354, %355 : vector<8x1xf32>
    %357 = vector.broadcast %349 : vector<8x1xf32> to vector<8x32xf32>
    %358 = arith.subf %341, %357 : vector<8x32xf32>
    %cst_190 = arith.constant 9.99999974E-6 : f32
    %359 = vector.broadcast %cst_190 : f32 to vector<8x1xf32>
    %360 = arith.addf %356, %359 : vector<8x1xf32>
    %361 = math.rsqrt %360 : vector<8x1xf32>
    %362 = vector.broadcast %361 : vector<8x1xf32> to vector<8x32xf32>
    %363 = arith.mulf %358, %362 : vector<8x32xf32>
    %364 = vector.broadcast %343 : vector<1x32xf32> to vector<8x32xf32>
    %365 = arith.mulf %363, %364 : vector<8x32xf32>
    %366 = vector.broadcast %345 : vector<1x32xf32> to vector<8x32xf32>
    %367 = arith.addf %365, %366 : vector<8x32xf32>
    %c1_191 = arith.constant 1 : index
    %c0_192 = arith.constant 0 : index
    %c0_193 = arith.constant 0 : index
    %368 = vector.load %arg9[%c1_191, %c0_192, %c0_193] : memref<2x64x32xf32, #tpu.memory_space<vmem>>, vector<1x64x32xf32>
    %369 = vector.shape_cast %368 : vector<1x64x32xf32> to vector<64x32xf32>
    %cst_194 = arith.constant dense<0.000000e+00> : vector<8x64xf32>
    %370 = tpu.matmul %367, %369, %cst_194 {dimension_numbers = #tpu.dot_dimension_numbers<[1], [1], [0], [0], [0, 0, 1, 0], [], []>} : vector<8x32xf32>, vector<64x32xf32>, vector<8x64xf32> -> vector<8x64xf32>
    %c1_195 = arith.constant 1 : index
    %c0_196 = arith.constant 0 : index
    %c0_197 = arith.constant 0 : index
    %371 = vector.load %arg10[%c1_195, %c0_196, %c0_197] : memref<2x1x64xf32, #tpu.memory_space<vmem>>, vector<1x1x64xf32>
    %372 = vector.shape_cast %371 : vector<1x1x64xf32> to vector<1x64xf32>
    %373 = vector.broadcast %372 : vector<1x64xf32> to vector<8x64xf32>
    %374 = arith.addf %370, %373 : vector<8x64xf32>
    %cst_198 = arith.constant 0.000000e+00 : f32
    %375 = vector.broadcast %cst_198 : f32 to vector<8x64xf32>
    %376 = arith.maximumf %374, %375 : vector<8x64xf32>
    %c1_199 = arith.constant 1 : index
    %c0_200 = arith.constant 0 : index
    %c0_201 = arith.constant 0 : index
    %377 = vector.load %arg11[%c1_199, %c0_200, %c0_201] : memref<2x32x64xf32, #tpu.memory_space<vmem>>, vector<1x32x64xf32>
    %378 = vector.shape_cast %377 : vector<1x32x64xf32> to vector<32x64xf32>
    %cst_202 = arith.constant dense<0.000000e+00> : vector<8x32xf32>
    %379 = tpu.matmul %376, %378, %cst_202 {dimension_numbers = #tpu.dot_dimension_numbers<[1], [1], [0], [0], [0, 0, 1, 0], [], []>} : vector<8x64xf32>, vector<32x64xf32>, vector<8x32xf32> -> vector<8x32xf32>
    %c1_203 = arith.constant 1 : index
    %c0_204 = arith.constant 0 : index
    %c0_205 = arith.constant 0 : index
    %380 = vector.load %arg12[%c1_203, %c0_204, %c0_205] : memref<2x1x32xf32, #tpu.memory_space<vmem>>, vector<1x1x32xf32>
    %381 = vector.shape_cast %380 : vector<1x1x32xf32> to vector<1x32xf32>
    %382 = vector.broadcast %381 : vector<1x32xf32> to vector<8x32xf32>
    %383 = arith.addf %379, %382 : vector<8x32xf32>
    %384 = arith.addf %367, %383 : vector<8x32xf32>
    %c1_206 = arith.constant 1 : index
    %c2_207 = arith.constant 2 : index
    %c0_208 = arith.constant 0 : index
    %c0_209 = arith.constant 0 : index
    %385 = vector.load %arg13[%c1_206, %c2_207, %c0_208, %c0_209] : memref<2x3x1x32xf32, #tpu.memory_space<vmem>>, vector<1x1x1x32xf32>
    %386 = vector.shape_cast %385 : vector<1x1x1x32xf32> to vector<1x32xf32>
    %c1_210 = arith.constant 1 : index
    %c2_211 = arith.constant 2 : index
    %c0_212 = arith.constant 0 : index
    %c0_213 = arith.constant 0 : index
    %387 = vector.load %arg14[%c1_210, %c2_211, %c0_212, %c0_213] : memref<2x3x1x32xf32, #tpu.memory_space<vmem>>, vector<1x1x1x32xf32>
    %388 = vector.shape_cast %387 : vector<1x1x1x32xf32> to vector<1x32xf32>
    %cst_214 = arith.constant dense<0.000000e+00> : vector<8xf32>
    %389 = vector.multi_reduction <add>, %384, %cst_214 [1] : vector<8x32xf32> to vector<8xf32>
    %390 = vector.shape_cast %389 : vector<8xf32> to vector<8x1xf32>
    %cst_215 = arith.constant 3.200000e+01 : f32
    %391 = vector.broadcast %cst_215 : f32 to vector<8x1xf32>
    %392 = arith.divf %390, %391 : vector<8x1xf32>
    %393 = vector.broadcast %392 : vector<8x1xf32> to vector<8x32xf32>
    %394 = arith.subf %384, %393 : vector<8x32xf32>
    %395 = arith.mulf %394, %394 : vector<8x32xf32>
    %cst_216 = arith.constant dense<0.000000e+00> : vector<8xf32>
    %396 = vector.multi_reduction <add>, %395, %cst_216 [1] : vector<8x32xf32> to vector<8xf32>
    %397 = vector.shape_cast %396 : vector<8xf32> to vector<8x1xf32>
    %cst_217 = arith.constant 3.200000e+01 : f32
    %398 = vector.broadcast %cst_217 : f32 to vector<8x1xf32>
    %399 = arith.divf %397, %398 : vector<8x1xf32>
    %400 = vector.broadcast %392 : vector<8x1xf32> to vector<8x32xf32>
    %401 = arith.subf %384, %400 : vector<8x32xf32>
    %cst_218 = arith.constant 9.99999974E-6 : f32
    %402 = vector.broadcast %cst_218 : f32 to vector<8x1xf32>
    %403 = arith.addf %399, %402 : vector<8x1xf32>
    %404 = math.rsqrt %403 : vector<8x1xf32>
    %405 = vector.broadcast %404 : vector<8x1xf32> to vector<8x32xf32>
    %406 = arith.mulf %401, %405 : vector<8x32xf32>
    %407 = vector.broadcast %386 : vector<1x32xf32> to vector<8x32xf32>
    %408 = arith.mulf %406, %407 : vector<8x32xf32>
    %409 = vector.broadcast %388 : vector<1x32xf32> to vector<8x32xf32>
    %410 = arith.addf %408, %409 : vector<8x32xf32>
    %c0_219 = arith.constant 0 : index
    %c0_220 = arith.constant 0 : index
    %c0_221 = arith.constant 0 : index
    %411 = vector.load %arg16[%c0_219, %c0_220, %c0_221] : memref<5x1x32xf32, #tpu.memory_space<vmem>>, vector<1x1x32xf32>
    %412 = vector.shape_cast %411 : vector<1x1x32xf32> to vector<1x32xf32>
    %c1_222 = arith.constant 1 : index
    %c0_223 = arith.constant 0 : index
    %c0_224 = arith.constant 0 : index
    %413 = vector.load %arg16[%c1_222, %c0_223, %c0_224] : memref<5x1x32xf32, #tpu.memory_space<vmem>>, vector<1x1x32xf32>
    %414 = vector.shape_cast %413 : vector<1x1x32xf32> to vector<1x32xf32>
    %cst_225 = arith.constant dense<0.000000e+00> : vector<8xf32>
    %415 = vector.multi_reduction <add>, %410, %cst_225 [1] : vector<8x32xf32> to vector<8xf32>
    %416 = vector.shape_cast %415 : vector<8xf32> to vector<8x1xf32>
    %cst_226 = arith.constant 3.200000e+01 : f32
    %417 = vector.broadcast %cst_226 : f32 to vector<8x1xf32>
    %418 = arith.divf %416, %417 : vector<8x1xf32>
    %419 = vector.broadcast %418 : vector<8x1xf32> to vector<8x32xf32>
    %420 = arith.subf %410, %419 : vector<8x32xf32>
    %421 = arith.mulf %420, %420 : vector<8x32xf32>
    %cst_227 = arith.constant dense<0.000000e+00> : vector<8xf32>
    %422 = vector.multi_reduction <add>, %421, %cst_227 [1] : vector<8x32xf32> to vector<8xf32>
    %423 = vector.shape_cast %422 : vector<8xf32> to vector<8x1xf32>
    %cst_228 = arith.constant 3.200000e+01 : f32
    %424 = vector.broadcast %cst_228 : f32 to vector<8x1xf32>
    %425 = arith.divf %423, %424 : vector<8x1xf32>
    %426 = vector.broadcast %418 : vector<8x1xf32> to vector<8x32xf32>
    %427 = arith.subf %410, %426 : vector<8x32xf32>
    %cst_229 = arith.constant 9.99999974E-6 : f32
    %428 = vector.broadcast %cst_229 : f32 to vector<8x1xf32>
    %429 = arith.addf %425, %428 : vector<8x1xf32>
    %430 = math.rsqrt %429 : vector<8x1xf32>
    %431 = vector.broadcast %430 : vector<8x1xf32> to vector<8x32xf32>
    %432 = arith.mulf %427, %431 : vector<8x32xf32>
    %433 = vector.broadcast %412 : vector<1x32xf32> to vector<8x32xf32>
    %434 = arith.mulf %432, %433 : vector<8x32xf32>
    %435 = vector.broadcast %414 : vector<1x32xf32> to vector<8x32xf32>
    %436 = arith.addf %434, %435 : vector<8x32xf32>
    %c0_230 = arith.constant 0 : index
    %c0_231 = arith.constant 0 : index
    %c0_232 = arith.constant 0 : index
    %437 = vector.load %arg15[%c0_230, %c0_231, %c0_232] : memref<3x32x32xf32, #tpu.memory_space<vmem>>, vector<1x32x32xf32>
    %438 = vector.shape_cast %437 : vector<1x32x32xf32> to vector<32x32xf32>
    %cst_233 = arith.constant dense<0.000000e+00> : vector<8x32xf32>
    %439 = tpu.matmul %436, %438, %cst_233 {dimension_numbers = #tpu.dot_dimension_numbers<[1], [1], [0], [0], [0, 0, 1, 0], [], []>} : vector<8x32xf32>, vector<32x32xf32>, vector<8x32xf32> -> vector<8x32xf32>
    %c2_234 = arith.constant 2 : index
    %c0_235 = arith.constant 0 : index
    %c0_236 = arith.constant 0 : index
    %440 = vector.load %arg16[%c2_234, %c0_235, %c0_236] : memref<5x1x32xf32, #tpu.memory_space<vmem>>, vector<1x1x32xf32>
    %441 = vector.shape_cast %440 : vector<1x1x32xf32> to vector<1x32xf32>
    %442 = vector.broadcast %441 : vector<1x32xf32> to vector<8x32xf32>
    %443 = arith.addf %439, %442 : vector<8x32xf32>
    %cst_237 = arith.constant 0.000000e+00 : f32
    %444 = vector.broadcast %cst_237 : f32 to vector<8x32xf32>
    %445 = arith.maximumf %443, %444 : vector<8x32xf32>
    %c1_238 = arith.constant 1 : index
    %c0_239 = arith.constant 0 : index
    %c0_240 = arith.constant 0 : index
    %446 = vector.load %arg15[%c1_238, %c0_239, %c0_240] : memref<3x32x32xf32, #tpu.memory_space<vmem>>, vector<1x32x32xf32>
    %447 = vector.shape_cast %446 : vector<1x32x32xf32> to vector<32x32xf32>
    %cst_241 = arith.constant dense<0.000000e+00> : vector<8x32xf32>
    %448 = tpu.matmul %445, %447, %cst_241 {dimension_numbers = #tpu.dot_dimension_numbers<[1], [1], [0], [0], [0, 0, 1, 0], [], []>} : vector<8x32xf32>, vector<32x32xf32>, vector<8x32xf32> -> vector<8x32xf32>
    %c3 = arith.constant 3 : index
    %c0_242 = arith.constant 0 : index
    %c0_243 = arith.constant 0 : index
    %449 = vector.load %arg16[%c3, %c0_242, %c0_243] : memref<5x1x32xf32, #tpu.memory_space<vmem>>, vector<1x1x32xf32>
    %450 = vector.shape_cast %449 : vector<1x1x32xf32> to vector<1x32xf32>
    %451 = vector.broadcast %450 : vector<1x32xf32> to vector<8x32xf32>
    %452 = arith.addf %448, %451 : vector<8x32xf32>
    %cst_244 = arith.constant 0.000000e+00 : f32
    %453 = vector.broadcast %cst_244 : f32 to vector<8x32xf32>
    %454 = arith.maximumf %452, %453 : vector<8x32xf32>
    %c2_245 = arith.constant 2 : index
    %c0_246 = arith.constant 0 : index
    %c0_247 = arith.constant 0 : index
    %455 = vector.load %arg15[%c2_245, %c0_246, %c0_247] : memref<3x32x32xf32, #tpu.memory_space<vmem>>, vector<1x32x32xf32>
    %456 = vector.shape_cast %455 : vector<1x32x32xf32> to vector<32x32xf32>
    %cst_248 = arith.constant dense<0.000000e+00> : vector<8x32xf32>
    %457 = tpu.matmul %454, %456, %cst_248 {dimension_numbers = #tpu.dot_dimension_numbers<[1], [1], [0], [0], [0, 0, 1, 0], [], []>} : vector<8x32xf32>, vector<32x32xf32>, vector<8x32xf32> -> vector<8x32xf32>
    %c4 = arith.constant 4 : index
    %c0_249 = arith.constant 0 : index
    %c0_250 = arith.constant 0 : index
    %458 = vector.load %arg16[%c4, %c0_249, %c0_250] : memref<5x1x32xf32, #tpu.memory_space<vmem>>, vector<1x1x32xf32>
    %459 = vector.shape_cast %458 : vector<1x1x32xf32> to vector<1x32xf32>
    %460 = vector.broadcast %459 : vector<1x32xf32> to vector<8x32xf32>
    %461 = arith.addf %457, %460 : vector<8x32xf32>
    %c0_251 = arith.constant 0 : index
    %c0_252 = arith.constant 0 : index
    %c0_253 = arith.constant 0 : index
    %462 = vector.load %arg4[%c0_251, %c0_252, %c0_253] : memref<1x32x256xf32, #tpu.memory_space<vmem>>, vector<1x32x256xf32>
    %463 = vector.shape_cast %462 : vector<1x32x256xf32> to vector<32x256xf32>
    %cst_254 = arith.constant dense<0.000000e+00> : vector<8x256xf32>
    %464 = tpu.matmul %461, %463, %cst_254 {dimension_numbers = #tpu.dot_dimension_numbers<[1], [0], [0], [1], [0, 0, 1, 1], [], []>} : vector<8x32xf32>, vector<32x256xf32>, vector<8x256xf32> -> vector<8x256xf32>
    %c0_255 = arith.constant 0 : index
    %c0_256 = arith.constant 0 : index
    %c0_257 = arith.constant 0 : index
    %465 = vector.load %arg17[%c0_255, %c0_256, %c0_257] : memref<1x8x256xf32, #tpu.memory_space<vmem>>, vector<1x8x256xf32>
    %466 = vector.shape_cast %465 : vector<1x8x256xf32> to vector<8x256xf32>
    %467 = vector.shape_cast %464 : vector<8x256xf32> to vector<1x8x256xf32>
    tpu.vector_store %arg17[%c0_255, %c0_256, %c0_257], %467 {strides = array<i32>} : memref<1x8x256xf32, #tpu.memory_space<vmem>>, vector<1x8x256xf32>,
    return
  }
  func.func @transform_0(%arg0: i32) -> (i32, i32, i32) {
    %c0_i32 = arith.constant 0 : i32
    %c0_i32_0 = arith.constant 0 : i32
    %c0_i32_1 = arith.constant 0 : i32
    return %arg0, %c0_i32, %c0_i32_0 : i32, i32, i32
  }
  func.func @transform_1(%arg0: i32) -> (i32, i32) {
    %c0_i32 = arith.constant 0 : i32
    %c0_i32_0 = arith.constant 0 : i32
    %c0_i32_1 = arith.constant 0 : i32
    return %c0_i32, %c0_i32_0 : i32, i32
  }
  func.func @transform_2(%arg0: i32) -> (i32, i32) {
    %c0_i32 = arith.constant 0 : i32
    %c0_i32_0 = arith.constant 0 : i32
    %c0_i32_1 = arith.constant 0 : i32
    return %c0_i32, %c0_i32_0 : i32, i32
  }
  func.func @transform_3(%arg0: i32) -> (i32, i32, i32) {
    %c0_i32 = arith.constant 0 : i32
    %c0_i32_0 = arith.constant 0 : i32
    %c0_i32_1 = arith.constant 0 : i32
    return %arg0, %c0_i32, %c0_i32_0 : i32, i32, i32
  }
  func.func @transform_4(%arg0: i32) -> (i32, i32, i32, i32) {
    %c0_i32 = arith.constant 0 : i32
    %c0_i32_0 = arith.constant 0 : i32
    %c0_i32_1 = arith.constant 0 : i32
    %c0_i32_2 = arith.constant 0 : i32
    %c0_i32_3 = arith.constant 0 : i32
    return %c0_i32, %c0_i32_0, %c0_i32_1, %c0_i32_2 : i32, i32, i32, i32
  }
  func.func @transform_5(%arg0: i32) -> (i32, i32, i32, i32) {
    %c0_i32 = arith.constant 0 : i32
    %c0_i32_0 = arith.constant 0 : i32
    %c0_i32_1 = arith.constant 0 : i32
    %c0_i32_2 = arith.constant 0 : i32
    %c0_i32_3 = arith.constant 0 : i32
    return %c0_i32, %c0_i32_0, %c0_i32_1, %c0_i32_2 : i32, i32, i32, i32
  }
  func.func @transform_6(%arg0: i32) -> (i32, i32, i32, i32) {
    %c0_i32 = arith.constant 0 : i32
    %c0_i32_0 = arith.constant 0 : i32
    %c0_i32_1 = arith.constant 0 : i32
    %c0_i32_2 = arith.constant 0 : i32
    %c0_i32_3 = arith.constant 0 : i32
    return %c0_i32, %c0_i32_0, %c0_i32_1, %c0_i32_2 : i32, i32, i32, i32
  }
  func.func @transform_7(%arg0: i32) -> (i32, i32, i32, i32) {
    %c0_i32 = arith.constant 0 : i32
    %c0_i32_0 = arith.constant 0 : i32
    %c0_i32_1 = arith.constant 0 : i32
    %c0_i32_2 = arith.constant 0 : i32
    %c0_i32_3 = arith.constant 0 : i32
    return %c0_i32, %c0_i32_0, %c0_i32_1, %c0_i32_2 : i32, i32, i32, i32
  }
  func.func @transform_8(%arg0: i32) -> (i32, i32, i32) {
    %c0_i32 = arith.constant 0 : i32
    %c0_i32_0 = arith.constant 0 : i32
    %c0_i32_1 = arith.constant 0 : i32
    %c0_i32_2 = arith.constant 0 : i32
    return %c0_i32, %c0_i32_0, %c0_i32_1 : i32, i32, i32
  }
  func.func @transform_9(%arg0: i32) -> (i32, i32, i32) {
    %c0_i32 = arith.constant 0 : i32
    %c0_i32_0 = arith.constant 0 : i32
    %c0_i32_1 = arith.constant 0 : i32
    %c0_i32_2 = arith.constant 0 : i32
    return %c0_i32, %c0_i32_0, %c0_i32_1 : i32, i32, i32
  }
  func.func @transform_10(%arg0: i32) -> (i32, i32, i32) {
    %c0_i32 = arith.constant 0 : i32
    %c0_i32_0 = arith.constant 0 : i32
    %c0_i32_1 = arith.constant 0 : i32
    %c0_i32_2 = arith.constant 0 : i32
    return %c0_i32, %c0_i32_0, %c0_i32_1 : i32, i32, i32
  }
  func.func @transform_11(%arg0: i32) -> (i32, i32, i32) {
    %c0_i32 = arith.constant 0 : i32
    %c0_i32_0 = arith.constant 0 : i32
    %c0_i32_1 = arith.constant 0 : i32
    %c0_i32_2 = arith.constant 0 : i32
    return %c0_i32, %c0_i32_0, %c0_i32_1 : i32, i32, i32
  }
  func.func @transform_12(%arg0: i32) -> (i32, i32, i32, i32) {
    %c0_i32 = arith.constant 0 : i32
    %c0_i32_0 = arith.constant 0 : i32
    %c0_i32_1 = arith.constant 0 : i32
    %c0_i32_2 = arith.constant 0 : i32
    %c0_i32_3 = arith.constant 0 : i32
    return %c0_i32, %c0_i32_0, %c0_i32_1, %c0_i32_2 : i32, i32, i32, i32
  }
  func.func @transform_13(%arg0: i32) -> (i32, i32, i32, i32) {
    %c0_i32 = arith.constant 0 : i32
    %c0_i32_0 = arith.constant 0 : i32
    %c0_i32_1 = arith.constant 0 : i32
    %c0_i32_2 = arith.constant 0 : i32
    %c0_i32_3 = arith.constant 0 : i32
    return %c0_i32, %c0_i32_0, %c0_i32_1, %c0_i32_2 : i32, i32, i32, i32
  }
  func.func @transform_14(%arg0: i32) -> (i32, i32, i32) {
    %c0_i32 = arith.constant 0 : i32
    %c0_i32_0 = arith.constant 0 : i32
    %c0_i32_1 = arith.constant 0 : i32
    %c0_i32_2 = arith.constant 0 : i32
    return %c0_i32, %c0_i32_0, %c0_i32_1 : i32, i32, i32
  }
  func.func @transform_15(%arg0: i32) -> (i32, i32, i32) {
    %c0_i32 = arith.constant 0 : i32
    %c0_i32_0 = arith.constant 0 : i32
    %c0_i32_1 = arith.constant 0 : i32
    %c0_i32_2 = arith.constant 0 : i32
    return %c0_i32, %c0_i32_0, %c0_i32_1 : i32, i32, i32
  }
  func.func @transform_16(%arg0: i32) -> (i32, i32, i32) {
    %c0_i32 = arith.constant 0 : i32
    %c0_i32_0 = arith.constant 0 : i32
    %c0_i32_1 = arith.constant 0 : i32
    return %arg0, %c0_i32, %c0_i32_0 : i32, i32, i32
  }
}

</mosaic_0001>

<llo_original>
// kernel: transformer_predictor.1
$region0: #{transformer_predictor.1}
  #allocation0 [shape = 'u32[]', space=smem, size = 0x4, offset = 0x4, fixed_abs, tag = 'smem constant byte address 0x4 - core index']
  #allocation1 [shape = 'u32[144,128]{1,0:T(1,128)}', space=vmem, size = 0x12000, scoped, tag = 'internal scratch']
  %s0 = inlined_call_operand.vmem [shape: f32[2,256,32], index: 0, kind: input, shape index: {}]
  %s1 = inlined_call_operand.vmem [shape: f32[256,32], index: 1, kind: input, shape index: {}]
  %s2 = inlined_call_operand.vmem [shape: f32[8,32], index: 2, kind: input, shape index: {}]
  %s3 = inlined_call_operand.vmem [shape: f32[2,32,256], index: 3, kind: input, shape index: {}]
  %s4 = inlined_call_operand.vmem [shape: f32[2,2,96,32], index: 4, kind: input, shape index: {}]
  %s5 = inlined_call_operand.vmem [shape: f32[2,2,1,96], index: 5, kind: input, shape index: {}]
  %s6 = inlined_call_operand.vmem [shape: f32[2,2,32,32], index: 6, kind: input, shape index: {}]
  %s7 = inlined_call_operand.vmem [shape: f32[2,2,1,32], index: 7, kind: input, shape index: {}]
  %s8 = inlined_call_operand.vmem [shape: f32[2,64,32], index: 8, kind: input, shape index: {}]
  %s9 = inlined_call_operand.vmem [shape: f32[2,1,64], index: 9, kind: input, shape index: {}]
  %s10 = inlined_call_operand.vmem [shape: f32[2,32,64], index: 10, kind: input, shape index: {}]
  %s11 = inlined_call_operand.vmem [shape: f32[2,1,32], index: 11, kind: input, shape index: {}]
  %s12 = inlined_call_operand.vmem [shape: f32[2,3,1,32], index: 12, kind: input, shape index: {}]
  %s13 = inlined_call_operand.vmem [shape: f32[2,3,1,32], index: 13, kind: input, shape index: {}]
  %s14 = inlined_call_operand.vmem [shape: f32[3,32,32], index: 14, kind: input, shape index: {}]
  %s15 = inlined_call_operand.vmem [shape: f32[5,1,32], index: 15, kind: input, shape index: {}]
  %s16 = inlined_call_operand.vmem [shape: f32[2,8,256], index: 16, kind: output, shape index: {}]
  %s17 = sld [smem:[#allocation0]]
  $region97: #{transformer_predictor.1} parent=0
    _
  %s19 = ssub.s32 1, %s17
  %s20 = scalar_select 0, %s19, %s17
  loop: start=0, step=1, limit=4
  $region2: #{transformer_predictor.1} parent=0 // loop_pre_header
    _
  $region3: #{transformer_predictor.1} parent=0 // loop_header
    %s22 = sphi 0, %s26
    %p23 = scmp.ge.s32.totalorder %s22, 4
    %s32 = sphi 0, %s34
    %s35 = sphi 0, %s32
    %s36 = sphi 0, %s35
    %s52 = sphi 0, %s36
    %s56 = sphi 0, %s56
    %s58 = sphi 0, %s56
    %s59 = sphi 0, %s58
    %s73 = sphi 0, %s59
    %s77 = sphi 0, %s77
    %s79 = sphi 0, %s77
    %s80 = sphi 0, %s79
    %s94 = sphi 0, %s80
    %s100 = sphi 0, %s102
    %s103 = sphi 0, %s100
    %s104 = sphi 0, %s103
    %s120 = sphi 0, %s104
    %s124 = sphi 0, %s124
    %s126 = sphi 0, %s124
    %s127 = sphi 0, %s126
    %s141 = sphi 0, %s127
    %s145 = sphi 0, %s145
    %s147 = sphi 0, %s145
    %s148 = sphi 0, %s147
    %s162 = sphi 0, %s148
    %s166 = sphi 0, %s166
    %s168 = sphi 0, %s166
    %s169 = sphi 0, %s168
    %s183 = sphi 0, %s169
    %s187 = sphi 0, %s187
    %s189 = sphi 0, %s187
    %s190 = sphi 0, %s189
    %s204 = sphi 0, %s190
    %s208 = sphi 0, %s208
    %s210 = sphi 0, %s208
    %s211 = sphi 0, %s210
    %s225 = sphi 0, %s211
    %s229 = sphi 0, %s229
    %s231 = sphi 0, %s229
    %s232 = sphi 0, %s231
    %s246 = sphi 0, %s232
    %s250 = sphi 0, %s250
    %s252 = sphi 0, %s250
    %s253 = sphi 0, %s252
    %s267 = sphi 0, %s253
    %s271 = sphi 0, %s271
    %s273 = sphi 0, %s271
    %s274 = sphi 0, %s273
    %s288 = sphi 0, %s274
    %s292 = sphi 0, %s292
    %s294 = sphi 0, %s292
    %s295 = sphi 0, %s294
    %s309 = sphi 0, %s295
    %s313 = sphi 0, %s313
    %s315 = sphi 0, %s313
    %s316 = sphi 0, %s315
    %s330 = sphi 0, %s316
    %s334 = sphi 0, %s334
    %s336 = sphi 0, %s334
    %s337 = sphi 0, %s336
    %s351 = sphi 0, %s337
    %s355 = sphi 0, %s355
    %s357 = sphi 0, %s355
    %s358 = sphi 0, %s357
    %s372 = sphi 0, %s358
    %s378 = sphi 0, %s380
    %s381 = sphi 0, %s378
    %s382 = sphi 0, %s381
    %s398 = sphi 0, %s382
  $region4: #{transformer_predictor.1} parent=0 // loop_header_branch
    %25 = sbr.rel (%p23) target = $region8
  $region5: #{transformer_predictor.1} parent=0 // loop_body
    %s27 = ssub.s32 %s22, 1
    %s28 = ssub.s32 %s22, 2
    %s29 = sadd.s32 %s22, 1
    %s30 = ssub.s32 %s22, %s29
    %p31 = scmp.eq.s32.totalorder %s30, 0
    %s33 = sadd.s32 %s32, 1
    %s34 = scalar_select %p31, %s32, %s33
    %p37 = pneg %p31
    %p38 = scmp.eq.s32.totalorder %s22, 1
    %p39 = por %p37, %p38
    %p40 = scmp.ne.s32.totalorder %s32, %s35
    %p41 = scmp.eq.s32.totalorder %s22, 0
    %p42 = por %p40, %p41
    %p43 = scmp.ne.s32.totalorder %s32, %s35
    %p44 = scmp.eq.s32.totalorder %s27, 1
    %p45 = por %p43, %p44
    %p46 = scmp.ne.s32.totalorder %s35, %s36
    %p47 = scmp.eq.s32.totalorder %s27, 0
    %p48 = por %p46, %p47
    %p49 = scmp.ne.s32.totalorder %s35, %s36
    %p50 = scmp.eq.s32.totalorder %s28, 1
    %p51 = por %p49, %p50
    %p53 = scmp.ne.s32.totalorder %s36, %s52
    %p54 = scmp.eq.s32.totalorder %s28, 0
    %p55 = por %p53, %p54
    %s57 = sadd.s32 %s56, 1
    %p60 = scmp.eq.s32.totalorder %s22, 1
    %p61 = scmp.ne.s32.totalorder %s56, %s58
    %p62 = scmp.eq.s32.totalorder %s22, 0
    %p63 = por %p61, %p62
    %p64 = scmp.ne.s32.totalorder %s56, %s58
    %p65 = scmp.eq.s32.totalorder %s27, 1
    %p66 = por %p64, %p65
    %p67 = scmp.ne.s32.totalorder %s58, %s59
    %p68 = scmp.eq.s32.totalorder %s27, 0
    %p69 = por %p67, %p68
    %p70 = scmp.ne.s32.totalorder %s58, %s59
    %p71 = scmp.eq.s32.totalorder %s28, 1
    %p72 = por %p70, %p71
    %p74 = scmp.ne.s32.totalorder %s59, %s73
    %p75 = scmp.eq.s32.totalorder %s28, 0
    %p76 = por %p74, %p75
    %s78 = sadd.s32 %s77, 1
    %p81 = scmp.eq.s32.totalorder %s22, 1
    %p82 = scmp.ne.s32.totalorder %s77, %s79
    %p83 = scmp.eq.s32.totalorder %s22, 0
    %p84 = por %p82, %p83
    %p85 = scmp.ne.s32.totalorder %s77, %s79
    %p86 = scmp.eq.s32.totalorder %s27, 1
    %p87 = por %p85, %p86
    %p88 = scmp.ne.s32.totalorder %s79, %s80
    %p89 = scmp.eq.s32.totalorder %s27, 0
    %p90 = por %p88, %p89
    %p91 = scmp.ne.s32.totalorder %s79, %s80
    %p92 = scmp.eq.s32.totalorder %s28, 1
    %p93 = por %p91, %p92
    %p95 = scmp.ne.s32.totalorder %s80, %s94
    %p96 = scmp.eq.s32.totalorder %s28, 0
    %p97 = por %p95, %p96
    %s98 = ssub.s32 %s22, %s29
    %p99 = scmp.eq.s32.totalorder %s98, 0
    %s101 = sadd.s32 %s100, 1
    %s102 = scalar_select %p99, %s100, %s101
    %p105 = pneg %p99
    %p106 = scmp.eq.s32.totalorder %s22, 1
    %p107 = por %p105, %p106
    %p108 = scmp.ne.s32.totalorder %s100, %s103
    %p109 = scmp.eq.s32.totalorder %s22, 0
    %p110 = por %p108, %p109
    %p111 = scmp.ne.s32.totalorder %s100, %s103
    %p112 = scmp.eq.s32.totalorder %s27, 1
    %p113 = por %p111, %p112
    %p114 = scmp.ne.s32.totalorder %s103, %s104
    %p115 = scmp.eq.s32.totalorder %s27, 0
    %p116 = por %p114, %p115
    %p117 = scmp.ne.s32.totalorder %s103, %s104
    %p118 = scmp.eq.s32.totalorder %s28, 1
    %p119 = por %p117, %p118
    %p121 = scmp.ne.s32.totalorder %s104, %s120
    %p122 = scmp.eq.s32.totalorder %s28, 0
    %p123 = por %p121, %p122
    %s125 = sadd.s32 %s124, 1
    %p128 = scmp.eq.s32.totalorder %s22, 1
    %p129 = scmp.ne.s32.totalorder %s124, %s126
    %p130 = scmp.eq.s32.totalorder %s22, 0
    %p131 = por %p129, %p130
    %p132 = scmp.ne.s32.totalorder %s124, %s126
    %p133 = scmp.eq.s32.totalorder %s27, 1
    %p134 = por %p132, %p133
    %p135 = scmp.ne.s32.totalorder %s126, %s127
    %p136 = scmp.eq.s32.totalorder %s27, 0
    %p137 = por %p135, %p136
    %p138 = scmp.ne.s32.totalorder %s126, %s127
    %p139 = scmp.eq.s32.totalorder %s28, 1
    %p140 = por %p138, %p139
    %p142 = scmp.ne.s32.totalorder %s127, %s141
    %p143 = scmp.eq.s32.totalorder %s28, 0
    %p144 = por %p142, %p143
    %s146 = sadd.s32 %s145, 1
    %p149 = scmp.eq.s32.totalorder %s22, 1
    %p150 = scmp.ne.s32.totalorder %s145, %s147
    %p151 = scmp.eq.s32.totalorder %s22, 0
    %p152 = por %p150, %p151
    %p153 = scmp.ne.s32.totalorder %s145, %s147
    %p154 = scmp.eq.s32.totalorder %s27, 1
    %p155 = por %p153, %p154
    %p156 = scmp.ne.s32.totalorder %s147, %s148
    %p157 = scmp.eq.s32.totalorder %s27, 0
    %p158 = por %p156, %p157
    %p159 = scmp.ne.s32.totalorder %s147, %s148
    %p160 = scmp.eq.s32.totalorder %s28, 1
    %p161 = por %p159, %p160
    %p163 = scmp.ne.s32.totalorder %s148, %s162
    %p164 = scmp.eq.s32.totalorder %s28, 0
    %p165 = por %p163, %p164
    %s167 = sadd.s32 %s166, 1
    %p170 = scmp.eq.s32.totalorder %s22, 1
    %p171 = scmp.ne.s32.totalorder %s166, %s168
    %p172 = scmp.eq.s32.totalorder %s22, 0
    %p173 = por %p171, %p172
    %p174 = scmp.ne.s32.totalorder %s166, %s168
    %p175 = scmp.eq.s32.totalorder %s27, 1
    %p176 = por %p174, %p175
    %p177 = scmp.ne.s32.totalorder %s168, %s169
    %p178 = scmp.eq.s32.totalorder %s27, 0
    %p179 = por %p177, %p178
    %p180 = scmp.ne.s32.totalorder %s168, %s169
    %p181 = scmp.eq.s32.totalorder %s28, 1
    %p182 = por %p180, %p181
    %p184 = scmp.ne.s32.totalorder %s169, %s183
    %p185 = scmp.eq.s32.totalorder %s28, 0
    %p186 = por %p184, %p185
    %s188 = sadd.s32 %s187, 1
    %p191 = scmp.eq.s32.totalorder %s22, 1
    %p192 = scmp.ne.s32.totalorder %s187, %s189
    %p193 = scmp.eq.s32.totalorder %s22, 0
    %p194 = por %p192, %p193
    %p195 = scmp.ne.s32.totalorder %s187, %s189
    %p196 = scmp.eq.s32.totalorder %s27, 1
    %p197 = por %p195, %p196
    %p198 = scmp.ne.s32.totalorder %s189, %s190
    %p199 = scmp.eq.s32.totalorder %s27, 0
    %p200 = por %p198, %p199
    %p201 = scmp.ne.s32.totalorder %s189, %s190
    %p202 = scmp.eq.s32.totalorder %s28, 1
    %p203 = por %p201, %p202
    %p205 = scmp.ne.s32.totalorder %s190, %s204
    %p206 = scmp.eq.s32.totalorder %s28, 0
    %p207 = por %p205, %p206
    %s209 = sadd.s32 %s208, 1
    %p212 = scmp.eq.s32.totalorder %s22, 1
    %p213 = scmp.ne.s32.totalorder %s208, %s210
    %p214 = scmp.eq.s32.totalorder %s22, 0
    %p215 = por %p213, %p214
    %p216 = scmp.ne.s32.totalorder %s208, %s210
    %p217 = scmp.eq.s32.totalorder %s27, 1
    %p218 = por %p216, %p217
    %p219 = scmp.ne.s32.totalorder %s210, %s211
    %p220 = scmp.eq.s32.totalorder %s27, 0
    %p221 = por %p219, %p220
    %p222 = scmp.ne.s32.totalorder %s210, %s211
    %p223 = scmp.eq.s32.totalorder %s28, 1
    %p224 = por %p222, %p223
    %p226 = scmp.ne.s32.totalorder %s211, %s225
    %p227 = scmp.eq.s32.totalorder %s28, 0
    %p228 = por %p226, %p227
    %s230 = sadd.s32 %s229, 1
    %p233 = scmp.eq.s32.totalorder %s22, 1
    %p234 = scmp.ne.s32.totalorder %s229, %s231
    %p235 = scmp.eq.s32.totalorder %s22, 0
    %p236 = por %p234, %p235
    %p237 = scmp.ne.s32.totalorder %s229, %s231
    %p238 = scmp.eq.s32.totalorder %s27, 1
    %p239 = por %p237, %p238
    %p240 = scmp.ne.s32.totalorder %s231, %s232
    %p241 = scmp.eq.s32.totalorder %s27, 0
    %p242 = por %p240, %p241
    %p243 = scmp.ne.s32.totalorder %s231, %s232
    %p244 = scmp.eq.s32.totalorder %s28, 1
    %p245 = por %p243, %p244
    %p247 = scmp.ne.s32.totalorder %s232, %s246
    %p248 = scmp.eq.s32.totalorder %s28, 0
    %p249 = por %p247, %p248
    %s251 = sadd.s32 %s250, 1
    %p254 = scmp.eq.s32.totalorder %s22, 1
    %p255 = scmp.ne.s32.totalorder %s250, %s252
    %p256 = scmp.eq.s32.totalorder %s22, 0
    %p257 = por %p255, %p256
    %p258 = scmp.ne.s32.totalorder %s250, %s252
    %p259 = scmp.eq.s32.totalorder %s27, 1
    %p260 = por %p258, %p259
    %p261 = scmp.ne.s32.totalorder %s252, %s253
    %p262 = scmp.eq.s32.totalorder %s27, 0
    %p263 = por %p261, %p262
    %p264 = scmp.ne.s32.totalorder %s252, %s253
    %p265 = scmp.eq.s32.totalorder %s28, 1
    %p266 = por %p264, %p265
    %p268 = scmp.ne.s32.totalorder %s253, %s267
    %p269 = scmp.eq.s32.totalorder %s28, 0
    %p270 = por %p268, %p269
    %s272 = sadd.s32 %s271, 1
    %p275 = scmp.eq.s32.totalorder %s22, 1
    %p276 = scmp.ne.s32.totalorder %s271, %s273
    %p277 = scmp.eq.s32.totalorder %s22, 0
    %p278 = por %p276, %p277
    %p279 = scmp.ne.s32.totalorder %s271, %s273
    %p280 = scmp.eq.s32.totalorder %s27, 1
    %p281 = por %p279, %p280
    %p282 = scmp.ne.s32.totalorder %s273, %s274
    %p283 = scmp.eq.s32.totalorder %s27, 0
    %p284 = por %p282, %p283
    %p285 = scmp.ne.s32.totalorder %s273, %s274
    %p286 = scmp.eq.s32.totalorder %s28, 1
    %p287 = por %p285, %p286
    %p289 = scmp.ne.s32.totalorder %s274, %s288
    %p290 = scmp.eq.s32.totalorder %s28, 0
    %p291 = por %p289, %p290
    %s293 = sadd.s32 %s292, 1
    %p296 = scmp.eq.s32.totalorder %s22, 1
    %p297 = scmp.ne.s32.totalorder %s292, %s294
    %p298 = scmp.eq.s32.totalorder %s22, 0
    %p299 = por %p297, %p298
    %p300 = scmp.ne.s32.totalorder %s292, %s294
    %p301 = scmp.eq.s32.totalorder %s27, 1
    %p302 = por %p300, %p301
    %p303 = scmp.ne.s32.totalorder %s294, %s295
    %p304 = scmp.eq.s32.totalorder %s27, 0
    %p305 = por %p303, %p304
    %p306 = scmp.ne.s32.totalorder %s294, %s295
    %p307 = scmp.eq.s32.totalorder %s28, 1
    %p308 = por %p306, %p307
    %p310 = scmp.ne.s32.totalorder %s295, %s309
    %p311 = scmp.eq.s32.totalorder %s28, 0
    %p312 = por %p310, %p311
    %s314 = sadd.s32 %s313, 1
    %p317 = scmp.eq.s32.totalorder %s22, 1
    %p318 = scmp.ne.s32.totalorder %s313, %s315
    %p319 = scmp.eq.s32.totalorder %s22, 0
    %p320 = por %p318, %p319
    %p321 = scmp.ne.s32.totalorder %s313, %s315
    %p322 = scmp.eq.s32.totalorder %s27, 1
    %p323 = por %p321, %p322
    %p324 = scmp.ne.s32.totalorder %s315, %s316
    %p325 = scmp.eq.s32.totalorder %s27, 0
    %p326 = por %p324, %p325
    %p327 = scmp.ne.s32.totalorder %s315, %s316
    %p328 = scmp.eq.s32.totalorder %s28, 1
    %p329 = por %p327, %p328
    %p331 = scmp.ne.s32.totalorder %s316, %s330
    %p332 = scmp.eq.s32.totalorder %s28, 0
    %p333 = por %p331, %p332
    %s335 = sadd.s32 %s334, 1
    %p338 = scmp.eq.s32.totalorder %s22, 1
    %p339 = scmp.ne.s32.totalorder %s334, %s336
    %p340 = scmp.eq.s32.totalorder %s22, 0
    %p341 = por %p339, %p340
    %p342 = scmp.ne.s32.totalorder %s334, %s336
    %p343 = scmp.eq.s32.totalorder %s27, 1
    %p344 = por %p342, %p343
    %p345 = scmp.ne.s32.totalorder %s336, %s337
    %p346 = scmp.eq.s32.totalorder %s27, 0
    %p347 = por %p345, %p346
    %p348 = scmp.ne.s32.totalorder %s336, %s337
    %p349 = scmp.eq.s32.totalorder %s28, 1
    %p350 = por %p348, %p349
    %p352 = scmp.ne.s32.totalorder %s337, %s351
    %p353 = scmp.eq.s32.totalorder %s28, 0
    %p354 = por %p352, %p353
    %s356 = sadd.s32 %s355, 1
    %p359 = scmp.eq.s32.totalorder %s22, 1
    %p360 = scmp.ne.s32.totalorder %s355, %s357
    %p361 = scmp.eq.s32.totalorder %s22, 0
    %p362 = por %p360, %p361
    %p363 = scmp.ne.s32.totalorder %s355, %s357
    %p364 = scmp.eq.s32.totalorder %s27, 1
    %p365 = por %p363, %p364
    %p366 = scmp.ne.s32.totalorder %s357, %s358
    %p367 = scmp.eq.s32.totalorder %s27, 0
    %p368 = por %p366, %p367
    %p369 = scmp.ne.s32.totalorder %s357, %s358
    %p370 = scmp.eq.s32.totalorder %s28, 1
    %p371 = por %p369, %p370
    %p373 = scmp.ne.s32.totalorder %s358, %s372
    %p374 = scmp.eq.s32.totalorder %s28, 0
    %p375 = por %p373, %p374
    %s376 = ssub.s32 %s22, %s29
    %p377 = scmp.eq.s32.totalorder %s376, 0
    %s379 = sadd.s32 %s378, 1
    %s380 = scalar_select %p377, %s378, %s379
    %p383 = pneg %p377
    %p384 = scmp.eq.s32.totalorder %s22, 1
    %p385 = por %p383, %p384
    %p386 = scmp.ne.s32.totalorder %s378, %s381
    %p387 = scmp.eq.s32.totalorder %s22, 0
    %p388 = por %p386, %p387
    %p389 = scmp.ne.s32.totalorder %s378, %s381
    %p390 = scmp.eq.s32.totalorder %s27, 1
    %p391 = por %p389, %p390
    %p392 = scmp.ne.s32.totalorder %s381, %s382
    %p393 = scmp.eq.s32.totalorder %s27, 0
    %p394 = por %p392, %p393
    %p395 = scmp.ne.s32.totalorder %s381, %s382
    %p396 = scmp.eq.s32.totalorder %s28, 1
    %p397 = por %p395, %p396
    %p399 = scmp.ne.s32.totalorder %s382, %s398
    %p400 = scmp.eq.s32.totalorder %s28, 0
    %p401 = por %p399, %p400
    %p402 = scmp.le.s32.totalorder 1, %s22
    %p403 = scmp.lt.s32.totalorder %s22, 3
    %p404 = pnand %p402, %p403
    %p405 = pneg %p404
    // Predicated region
    $region9: #{transformer_predictor.1} parent=5 // pred_check
      _
    $region10: #{transformer_predictor.1} parent=5 // pred_check_branch
      %407 = sbr.rel (%p404) target = $region12
    $region11: #{transformer_predictor.1} parent=5 // pred_region
      %s408 = ssub.s32 %s22, 1
      // Predicated region
      $region13: #{transformer_predictor.1} parent=11 // pred_check
        %p409 = pneg %p69
      $region14: #{transformer_predictor.1} parent=11 // pred_check_branch
        %411 = sbr.rel (%p409) target = $region16
      $region15: #{transformer_predictor.1} parent=11 // pred_region
        _
      $region16: #{transformer_predictor.1} parent=11 // pred_fallthru
        _
      // Predicated region
      $region17: #{transformer_predictor.1} parent=11 // pred_check
        %p412 = pneg %p90
      $region18: #{transformer_predictor.1} parent=11 // pred_check_branch
        %414 = sbr.rel (%p412) target = $region20
      $region19: #{transformer_predictor.1} parent=11 // pred_region
        _
      $region20: #{transformer_predictor.1} parent=11 // pred_fallthru
        _
      // Predicated region
      $region21: #{transformer_predictor.1} parent=11 // pred_check
        %p415 = pneg %p137
      $region22: #{transformer_predictor.1} parent=11 // pred_check_branch
        %417 = sbr.rel (%p415) target = $region24
      $region23: #{transformer_predictor.1} parent=11 // pred_region
        _
      $region24: #{transformer_predictor.1} parent=11 // pred_fallthru
        _
      // Predicated region
      $region25: #{transformer_predictor.1} parent=11 // pred_check
        %p418 = pneg %p158
      $region26: #{transformer_predictor.1} parent=11 // pred_check_branch
        %420 = sbr.rel (%p418) target = $region28
      $region27: #{transformer_predictor.1} parent=11 // pred_region
        _
      $region28: #{transformer_predictor.1} parent=11 // pred_fallthru
        _
      // Predicated region
      $region29: #{transformer_predictor.1} parent=11 // pred_check
        %p421 = pneg %p179
      $region30: #{transformer_predictor.1} parent=11 // pred_check_branch
        %423 = sbr.rel (%p421) target = $region32
      $region31: #{transformer_predictor.1} parent=11 // pred_region
        _
      $region32: #{transformer_predictor.1} parent=11 // pred_fallthru
        _
      // Predicated region
      $region33: #{transformer_predictor.1} parent=11 // pred_check
        %p424 = pneg %p200
      $region34: #{transformer_predictor.1} parent=11 // pred_check_branch
        %426 = sbr.rel (%p424) target = $region36
      $region35: #{transformer_predictor.1} parent=11 // pred_region
        _
      $region36: #{transformer_predictor.1} parent=11 // pred_fallthru
        _
      // Predicated region
      $region37: #{transformer_predictor.1} parent=11 // pred_check
        %p427 = pneg %p221
      $region38: #{transformer_predictor.1} parent=11 // pred_check_branch
        %429 = sbr.rel (%p427) target = $region40
      $region39: #{transformer_predictor.1} parent=11 // pred_region
        _
      $region40: #{transformer_predictor.1} parent=11 // pred_fallthru
        _
      // Predicated region
      $region41: #{transformer_predictor.1} parent=11 // pred_check
        %p430 = pneg %p242
      $region42: #{transformer_predictor.1} parent=11 // pred_check_branch
        %432 = sbr.rel (%p430) target = $region44
      $region43: #{transformer_predictor.1} parent=11 // pred_region
        _
      $region44: #{transformer_predictor.1} parent=11 // pred_fallthru
        _
      // Predicated region
      $region45: #{transformer_predictor.1} parent=11 // pred_check
        %p433 = pneg %p263
      $region46: #{transformer_predictor.1} parent=11 // pred_check_branch
        %435 = sbr.rel (%p433) target = $region48
      $region47: #{transformer_predictor.1} parent=11 // pred_region
        _
      $region48: #{transformer_predictor.1} parent=11 // pred_fallthru
        _
      // Predicated region
      $region49: #{transformer_predictor.1} parent=11 // pred_check
        %p436 = pneg %p284
      $region50: #{transformer_predictor.1} parent=11 // pred_check_branch
        %438 = sbr.rel (%p436) target = $region52
      $region51: #{transformer_predictor.1} parent=11 // pred_region
        _
      $region52: #{transformer_predictor.1} parent=11 // pred_fallthru
        _
      // Predicated region
      $region53: #{transformer_predictor.1} parent=11 // pred_check
        %p439 = pneg %p305
      $region54: #{transformer_predictor.1} parent=11 // pred_check_branch
        %441 = sbr.rel (%p439) target = $region56
      $region55: #{transformer_predictor.1} parent=11 // pred_region
        _
      $region56: #{transformer_predictor.1} parent=11 // pred_fallthru
        _
      // Predicated region
      $region57: #{transformer_predictor.1} parent=11 // pred_check
        %p442 = pneg %p326
      $region58: #{transformer_predictor.1} parent=11 // pred_check_branch
        %444 = sbr.rel (%p442) target = $region60
      $region59: #{transformer_predictor.1} parent=11 // pred_region
        _
      $region60: #{transformer_predictor.1} parent=11 // pred_fallthru
        _
      // Predicated region
      $region61: #{transformer_predictor.1} parent=11 // pred_check
        %p445 = pneg %p347
      $region62: #{transformer_predictor.1} parent=11 // pred_check_branch
        %447 = sbr.rel (%p445) target = $region64
      $region63: #{transformer_predictor.1} parent=11 // pred_region
        _
      $region64: #{transformer_predictor.1} parent=11 // pred_fallthru
        _
      // Predicated region
      $region65: #{transformer_predictor.1} parent=11 // pred_check
        %p448 = pneg %p368
      $region66: #{transformer_predictor.1} parent=11 // pred_check_branch
        %450 = sbr.rel (%p448) target = $region68
      $region67: #{transformer_predictor.1} parent=11 // pred_region
        _
      $region68: #{transformer_predictor.1} parent=11 // pred_fallthru
        _
    $region12: #{transformer_predictor.1} parent=5 // pred_fallthru
      _
    %p451 = scmp.lt.s32.totalorder %s22, 2
    // Predicated region
    $region69: #{transformer_predictor.1} parent=5 // pred_check
      %p452 = pneg %p451
    $region70: #{transformer_predictor.1} parent=5 // pred_check_branch
      %454 = sbr.rel (%p452) target = $region72
    $region71: #{transformer_predictor.1} parent=5 // pred_region
      // Predicated region
      $region73: #{transformer_predictor.1} parent=71 // pred_check
        %p455 = pneg %p42
      $region74: #{transformer_predictor.1} parent=71 // pred_check_branch
        %457 = sbr.rel (%p455) target = $region76
      $region75: #{transformer_predictor.1} parent=71 // pred_region
        %p458 = scmp.lt.s32.totalorder %s22, 1
        %s459 = scalar_select %p458, %s22, 1
        %s460 = smul.addr %s459, 32
        %s461 = smul.addr %s460, 8
        %s462 = scalar_lea.vmem %s0, %s461
      $region76: #{transformer_predictor.1} parent=71 // pred_fallthru
        _
      // Predicated region
      $region77: #{transformer_predictor.1} parent=71 // pred_check
        %p463 = pneg %p110
      $region78: #{transformer_predictor.1} parent=71 // pred_check_branch
        %465 = sbr.rel (%p463) target = $region80
      $region79: #{transformer_predictor.1} parent=71 // pred_region
        %p466 = scmp.lt.s32.totalorder %s22, 1
        %s467 = scalar_select %p466, %s22, 1
        %s468 = smul.addr %s467, 8
        %s469 = smul.addr %s468, 8
        %s470 = scalar_lea.vmem %s3, %s469
      $region80: #{transformer_predictor.1} parent=71 // pred_fallthru
        _
    $region72: #{transformer_predictor.1} parent=5 // pred_fallthru
      _
    %p471 = scmp.le.s32.totalorder 1, %s22
    %p472 = scmp.lt.s32.totalorder %s22, 3
    %p473 = pnand %p471, %p472
    %p474 = pneg %p473
    // Predicated region
    $region81: #{transformer_predictor.1} parent=5 // pred_check
      _
    $region82: #{transformer_predictor.1} parent=5 // pred_check_branch
      %476 = sbr.rel (%p473) target = $region84
    $region83: #{transformer_predictor.1} parent=5 // pred_region
      %s477 = ssub.s32 %s22, 1
      %p478 = scmp.lt.s32.totalorder %s27, 1
      %s479 = scalar_select %p478, %s27, 1
      %s480 = smul.addr %s479, 32
      %s481 = smul.addr %s480, 8
      %s482 = scalar_lea.vmem %s0, %s481
      %p483 = pneg %p48
      %p484 = pneg %p45
      %p485 = pneg %p69
      %p486 = pneg %p66
      %p487 = pneg %p90
      %p488 = pneg %p87
      %p489 = scmp.lt.s32.totalorder %s27, 1
      %s490 = scalar_select %p489, %s27, 1
      %s491 = smul.addr %s490, 8
      %s492 = smul.addr %s491, 8
      %s493 = scalar_lea.vmem %s3, %s492
      %p494 = pneg %p116
      %p495 = pneg %p113
      %p496 = pneg %p137
      %p497 = pneg %p134
      %p498 = pneg %p158
      %p499 = pneg %p155
      %p500 = pneg %p179
      %p501 = pneg %p176
      %p502 = pneg %p200
      %p503 = pneg %p197
      %p504 = pneg %p221
      %p505 = pneg %p218
      %p506 = pneg %p242
      %p507 = pneg %p239
      %p508 = pneg %p263
      %p509 = pneg %p260
      %p510 = pneg %p284
      %p511 = pneg %p281
      %p512 = pneg %p305
      %p513 = pneg %p302
      %p514 = pneg %p326
      %p515 = pneg %p323
      %p516 = pneg %p347
      %p517 = pneg %p344
      %p518 = pneg %p368
      %p519 = pneg %p365
      %p520 = pneg %p394
      %p521 = pneg %p391
      %p522 = scmp.lt.s32.totalorder %s27, 1
      %s523 = scalar_select %p522, %s27, 1
      %s524 = smul.addr %s523, 2
      %s525 = smul.addr %s524, 8
      %s526 = scalar_lea.vmem %s16, %s525
      %p527 = scmp.lt.s32.totalorder %s27, 1
      %s528 = scalar_select %p527, %s27, 1
      %s529 = smul.addr %s528, 32
      %s530 = smul.addr %s529, 8
      %s531 = scalar_lea.vmem %s0, %s530
      %p532 = scmp.lt.s32.totalorder %s27, 1
      %s533 = scalar_select %p532, %s27, 1
      %s534 = smul.addr %s533, 8
      %s535 = smul.addr %s534, 8
      %s536 = scalar_lea.vmem %s3, %s535
      %p537 = scmp.lt.s32.totalorder %s27, 1
      %s538 = scalar_select %p537, %s27, 1
      %s539 = smul.addr %s538, 2
      %s540 = smul.addr %s539, 8
      %s541 = scalar_lea.vmem %s16, %s540
      %v542 = vld [vmem:[%s1] sm:$0xff]
      %v543 = vld [vmem:[%s1 + $0x8] sm:$0xff]
      %v544 = vld [vmem:[%s1 + $0x10] sm:$0xff]
      %v545 = vld [vmem:[%s1 + $0x18] sm:$0xff]
      %v546 = vld [vmem:[%s1 + $0x20] sm:$0xff]
      %v547 = vld [vmem:[%s1 + $0x28] sm:$0xff]
      %v548 = vld [vmem:[%s1 + $0x30] sm:$0xff]
      %v549 = vld [vmem:[%s1 + $0x38] sm:$0xff]
      %v550 = vld [vmem:[%s1 + $0x40] sm:$0xff]
      %v551 = vld [vmem:[%s1 + $0x48] sm:$0xff]
      %v552 = vld [vmem:[%s1 + $0x50] sm:$0xff]
      %v553 = vld [vmem:[%s1 + $0x58] sm:$0xff]
      %v554 = vld [vmem:[%s1 + $0x60] sm:$0xff]
      %v555 = vld [vmem:[%s1 + $0x68] sm:$0xff]
      %v556 = vld [vmem:[%s1 + $0x70] sm:$0xff]
      %v557 = vld [vmem:[%s1 + $0x78] sm:$0xff]
      %v558 = vld [vmem:[%s1 + $0x80] sm:$0xff]
      %v559 = vld [vmem:[%s1 + $0x88] sm:$0xff]
      %v560 = vld [vmem:[%s1 + $0x90] sm:$0xff]
      %v561 = vld [vmem:[%s1 + $0x98] sm:$0xff]
      %v562 = vld [vmem:[%s1 + $0xa0] sm:$0xff]
      %v563 = vld [vmem:[%s1 + $0xa8] sm:$0xff]
      %v564 = vld [vmem:[%s1 + $0xb0] sm:$0xff]
      %v565 = vld [vmem:[%s1 + $0xb8] sm:$0xff]
      %v566 = vld [vmem:[%s1 + $0xc0] sm:$0xff]
      %v567 = vld [vmem:[%s1 + $0xc8] sm:$0xff]
      %v568 = vld [vmem:[%s1 + $0xd0] sm:$0xff]
      %v569 = vld [vmem:[%s1 + $0xd8] sm:$0xff]
      %v570 = vld [vmem:[%s1 + $0xe0] sm:$0xff]
      %v571 = vld [vmem:[%s1 + $0xe8] sm:$0xff]
      %v572 = vld [vmem:[%s1 + $0xf0] sm:$0xff]
      %v573 = vld [vmem:[%s1 + $0xf8] sm:$0xff]
      %v574 = vld [vmem:[%s2] sm:$0xff]
      %v575 = vlaneseq
      %v576 = vand.u32 %v575, 127
      %vm577 = vcmp.lt.s32.totalorder %v576, 3
      %v578 = vsel %vm577, 0.0, -1e+30
      %v579 = vld [vmem:[%s531] sm:$0xff]
      %v580 = vld [vmem:[%s531 + $0x8] sm:$0xff]
      %v581 = vld [vmem:[%s531 + $0x10] sm:$0xff]
      %v582 = vld [vmem:[%s531 + $0x18] sm:$0xff]
      %v583 = vld [vmem:[%s531 + $0x20] sm:$0xff]
      %v584 = vld [vmem:[%s531 + $0x28] sm:$0xff]
      %v585 = vld [vmem:[%s531 + $0x30] sm:$0xff]
      %v586 = vld [vmem:[%s531 + $0x38] sm:$0xff]
      %v587 = vld [vmem:[%s531 + $0x40] sm:$0xff]
      %v588 = vld [vmem:[%s531 + $0x48] sm:$0xff]
      %v589 = vld [vmem:[%s531 + $0x50] sm:$0xff]
      %v590 = vld [vmem:[%s531 + $0x58] sm:$0xff]
      %v591 = vld [vmem:[%s531 + $0x60] sm:$0xff]
      %v592 = vld [vmem:[%s531 + $0x68] sm:$0xff]
      %v593 = vld [vmem:[%s531 + $0x70] sm:$0xff]
      %v594 = vld [vmem:[%s531 + $0x78] sm:$0xff]
      %v595 = vld [vmem:[%s531 + $0x80] sm:$0xff]
      %v596 = vld [vmem:[%s531 + $0x88] sm:$0xff]
      %v597 = vld [vmem:[%s531 + $0x90] sm:$0xff]
      %v598 = vld [vmem:[%s531 + $0x98] sm:$0xff]
      %v599 = vld [vmem:[%s531 + $0xa0] sm:$0xff]
      %v600 = vld [vmem:[%s531 + $0xa8] sm:$0xff]
      %v601 = vld [vmem:[%s531 + $0xb0] sm:$0xff]
      %v602 = vld [vmem:[%s531 + $0xb8] sm:$0xff]
      %v603 = vld [vmem:[%s531 + $0xc0] sm:$0xff]
      %v604 = vld [vmem:[%s531 + $0xc8] sm:$0xff]
      %v605 = vld [vmem:[%s531 + $0xd0] sm:$0xff]
      %v606 = vld [vmem:[%s531 + $0xd8] sm:$0xff]
      %v607 = vld [vmem:[%s531 + $0xe0] sm:$0xff]
      %v608 = vld [vmem:[%s531 + $0xe8] sm:$0xff]
      %v609 = vld [vmem:[%s531 + $0xf0] sm:$0xff]
      %v610 = vld [vmem:[%s531 + $0xf8] sm:$0xff]
      %v611 = vadd.f32 %v579, %v542
      %v612 = vadd.f32 %v580, %v543
      %v613 = vadd.f32 %v581, %v544
      %v614 = vadd.f32 %v582, %v545
      %v615 = vadd.f32 %v583, %v546
      %v616 = vadd.f32 %v584, %v547
      %v617 = vadd.f32 %v585, %v548
      %v618 = vadd.f32 %v586, %v549
      %v619 = vadd.f32 %v587, %v550
      %v620 = vadd.f32 %v588, %v551
      %v621 = vadd.f32 %v589, %v552
      %v622 = vadd.f32 %v590, %v553
      %v623 = vadd.f32 %v591, %v554
      %v624 = vadd.f32 %v592, %v555
      %v625 = vadd.f32 %v593, %v556
      %v626 = vadd.f32 %v594, %v557
      %v627 = vadd.f32 %v595, %v558
      %v628 = vadd.f32 %v596, %v559
      %v629 = vadd.f32 %v597, %v560
      %v630 = vadd.f32 %v598, %v561
      %v631 = vadd.f32 %v599, %v562
      %v632 = vadd.f32 %v600, %v563
      %v633 = vadd.f32 %v601, %v564
      %v634 = vadd.f32 %v602, %v565
      %v635 = vadd.f32 %v603, %v566
      %v636 = vadd.f32 %v604, %v567
      %v637 = vadd.f32 %v605, %v568
      %v638 = vadd.f32 %v606, %v569
      %v639 = vadd.f32 %v607, %v570
      %v640 = vadd.f32 %v608, %v571
      %v641 = vadd.f32 %v609, %v572
      %v642 = vadd.f32 %v610, %v573
      %v643 = vld [vmem:[%s5] sm:$0x1]
      %v644 = vld [vmem:[%s6] sm:$0xff]
      %v645 = vld [vmem:[%s6 + $0x8] sm:$0xff]
      %v646 = vld [vmem:[%s6 + $0x10] sm:$0xff]
      %v647 = vld [vmem:[%s6 + $0x18] sm:$0xff]
      %v648 = vld [vmem:[%s7] sm:$0x1]
      %v650 = vlaneseq
      %v651 = vshrl.u32 %v650, 7
      %v652 = vsub.s32 0, %v651
      %v653 = vrot.slane %v643, %v652
      %654 = vrot.lane.b32.xlu0 %v653, 64
      %v655 = vpop.permute.xlu0 %654
      %vm656 = vcmask 261120
      %v657 = vsel %vm656, %v655, 0
      %v660 = vsel %vm656, %v644, 0
      %v663 = vsel %vm656, %v645, 0
      %v666 = vsel %vm656, %v646, 0
      %v669 = vsel %vm656, %v647, 0
      %671 = vmatprep.subr.mxu0 0.0
      %672 = vmatpush1.xpose.msra.mxu0 %v660
      %673 = vmatprep.subr.mxu0 0.0
      %674 = vmatpush1.xpose.msra.mxu0 %v663
      %675 = vmatprep.subr.mxu0 0.0
      %676 = vmatpush1.xpose.msra.mxu0 %v666
      %677 = vmatprep.subr.mxu0 0.0
      %678 = vmatpush1.xpose.msra.mxu0 %v669
      %679 = vmatprep.subr.mxu0 0.0
      %680 = vmatpush1.xpose.msra.mxu0 0.0
      %681 = vmatprep.subr.mxu0 0.0
      %682 = vmatpush1.xpose.msra.mxu0 0.0
      %683 = vmatprep.subr.mxu0 0.0
      %684 = vmatpush1.xpose.msra.mxu0 0.0
      %685 = vmatprep.subr.mxu0 0.0
      %686 = vmatpush1.xpose.msra.mxu0 0.0
      %687 = vmatprep.subr.mxu0 0.0
      %688 = vmatpush1.xpose.msra.mxu0 0.0
      %689 = vmatprep.subr.mxu0 0.0
      %690 = vmatpush1.xpose.msra.mxu0 0.0
      %691 = vmatprep.subr.mxu0 0.0
      %692 = vmatpush1.xpose.msra.mxu0 0.0
      %693 = vmatprep.subr.mxu0 0.0
      %694 = vmatpush1.xpose.msra.mxu0 0.0
      %695 = vmatprep.subr.mxu0 0.0
      %696 = vmatpush1.xpose.msra.mxu0 0.0
      %697 = vmatprep.subr.mxu0 0.0
      %698 = vmatpush1.xpose.msra.mxu0 0.0
      %699 = vmatprep.subr.mxu0 0.0
      %700 = vmatpush1.xpose.msra.mxu0 0.0
      %701 = vmatprep.subr.mxu0 0.0
      %702 = vmatpush1.xpose.msra.mxu0 0.0
      %703 = vmatprep.subr.mxu0 0.0
      %704 = vmatpush1.xpose.msra.mxu0 0.0
      %705 = vmatprep.subr.mxu0 0.0
      %706 = vmatpush1.xpose.msra.mxu0 0.0
      %707 = vmatprep.subr.mxu0 0.0
      %708 = vmatpush1.xpose.msra.mxu0 0.0
      %709 = vmatprep.subr.mxu0 0.0
      %710 = vmatpush1.xpose.msra.mxu0 0.0
      %711 = vmatprep.subr.mxu0 0.0
      %712 = vmatpush1.xpose.msra.mxu0 0.0
      %713 = vmatprep.subr.mxu0 0.0
      %714 = vmatpush1.xpose.msra.mxu0 0.0
      %715 = vmatprep.subr.mxu0 0.0
      %716 = vmatpush1.xpose.msra.mxu0 0.0
      %717 = vmatprep.subr.mxu0 0.0
      %718 = vmatpush1.xpose.msra.mxu0 0.0
      %719 = vmatprep.subr.mxu0 0.0
      %720 = vmatpush1.xpose.msra.mxu0 0.0
      %721 = vmatprep.subr.mxu0 0.0
      %722 = vmatpush1.xpose.msra.mxu0 0.0
      %723 = vmatprep.subr.mxu0 0.0
      %724 = vmatpush1.xpose.msra.mxu0 0.0
      %725 = vmatprep.subr.mxu0 0.0
      %726 = vmatpush1.xpose.msra.mxu0 0.0
      %727 = vmatprep.subr.mxu0 0.0
      %728 = vmatpush1.xpose.msra.mxu0 0.0
      %729 = vmatprep.subr.mxu0 0.0
      %730 = vmatpush1.xpose.msra.mxu0 0.0
      %731 = vmatprep.subr.mxu0 0.0
      %732 = vmatpush1.xpose.msra.mxu0 0.0
      %733 = vmatprep.subr.mxu0 0.0
      %734 = vmatpush1.xpose.msra.mxu0 0.0
      %735 = vmatprep.mubr.f32.mxu0 0.0
      %736 = vmatmul.mubr.f32.gmra.mrb[0].mxu0 %v657
      %v737 = vpop.f32.mrb[0].mxu0
      %v738 = vadd.f32 %v648, %v737
      %v739 = vpop.f32.mrb[0].mxu0
      %740 = vdwg.mxu0
      %v741 = vlaneseq
      %v742 = vshrl.u32 %v741, 7
      %v743 = vsub.s32 0, %v742
      %v744 = vrot.slane %v738, %v743
      %v745 = vadd.f32 %v744, 0.0
      %v746 = vld [vmem:[%s12] sm:$0x1]
      %v747 = vld [vmem:[%s13] sm:$0x1]
      %v748 = vsel %vm656, %v745, 0.0
      %749 = vadd.xlane.f32.xlu0 %v748
      %v750 = vpop.xlane.xlu0 %749
      %v751 = vrcp.pop 32.0
      %v752 = vmul.f32 %v750, %v751
      %v753 = vsub.f32 %v745, %v752
      %v754 = vmul.f32 %v753, %v753
      %v755 = vsel %vm656, %v754, 0.0
      %756 = vadd.xlane.f32.xlu0 %v755
      %v757 = vpop.xlane.xlu0 %756
      %v758 = vmul.f32 %v757, %v751
      %v759 = vadd.f32 %v758, 1e-05
      %v760 = vrsqrt.pop %v759
      %v761 = vmul.f32 %v753, %v760
      %v763 = vlaneseq
      %v764 = vshrl.u32 %v763, 7
      %v765 = vsub.s32 0, %v764
      %v766 = vrot.slane %v746, %v765
      %v768 = vmul.f32 %v761, %v766
      %v770 = vlaneseq
      %v771 = vshrl.u32 %v770, 7
      %v772 = vsub.s32 0, %v771
      %v773 = vrot.slane %v747, %v772
      %v775 = vadd.f32 %v768, %v773
      %v776 = vadd.f32 %v775, %v574
      %s777 = scalar_lea.vmem %s4, 96
      %v778 = vld [vmem:[%s777] sm:$0xff]
      %v779 = vld [vmem:[%s777 + $0x8] sm:$0xff]
      %v780 = vld [vmem:[%s777 + $0x10] sm:$0xff]
      %v781 = vld [vmem:[%s777 + $0x18] sm:$0xff]
      %v782 = vld [vmem:[%s777 + $0x20] sm:$0xff]
      %v783 = vld [vmem:[%s777 + $0x28] sm:$0xff]
      %v784 = vld [vmem:[%s777 + $0x30] sm:$0xff]
      %v785 = vld [vmem:[%s777 + $0x38] sm:$0xff]
      %v786 = vld [vmem:[%s777 + $0x40] sm:$0xff]
      %v787 = vld [vmem:[%s777 + $0x48] sm:$0xff]
      %v788 = vld [vmem:[%s777 + $0x50] sm:$0xff]
      %v789 = vld [vmem:[%s777 + $0x58] sm:$0xff]
      %s790 = scalar_lea.vmem %s5, 1
      %v791 = vld [vmem:[%s790] sm:$0x1]
      %s792 = scalar_lea.vmem %s6, 32
      %v793 = vld [vmem:[%s792] sm:$0xff]
      %v794 = vld [vmem:[%s792 + $0x8] sm:$0xff]
      %v795 = vld [vmem:[%s792 + $0x10] sm:$0xff]
      %v796 = vld [vmem:[%s792 + $0x18] sm:$0xff]
      %s797 = scalar_lea.vmem %s7, 1
      %v798 = vld [vmem:[%s797] sm:$0x1]
      %v800 = vlaneseq
      %v801 = vshrl.u32 %v800, 7
      %v802 = vsub.s32 0, %v801
      %v803 = vrot.slane %v791, %v802
      %v806 = vsel %vm656, %v776, 0
      %v809 = vsel %vm656, %v778, 0
      %v812 = vsel %vm656, %v779, 0
      %v815 = vsel %vm656, %v780, 0
      %v818 = vsel %vm656, %v781, 0
      %820 = vmatprep.subr.mxu0 0.0
      %821 = vmatpush1.xpose.msra.mxu0 %v809
      %822 = vmatprep.subr.mxu0 0.0
      %823 = vmatpush1.xpose.msra.mxu0 %v812
      %824 = vmatprep.subr.mxu0 0.0
      %825 = vmatpush1.xpose.msra.mxu0 %v815
      %826 = vmatprep.subr.mxu0 0.0
      %827 = vmatpush1.xpose.msra.mxu0 %v818
      %828 = vmatprep.subr.mxu0 0.0
      %829 = vmatpush1.xpose.msra.mxu0 0.0
      %830 = vmatprep.subr.mxu0 0.0
      %831 = vmatpush1.xpose.msra.mxu0 0.0
      %832 = vmatprep.subr.mxu0 0.0
      %833 = vmatpush1.xpose.msra.mxu0 0.0
      %834 = vmatprep.subr.mxu0 0.0
      %835 = vmatpush1.xpose.msra.mxu0 0.0
      %836 = vmatprep.subr.mxu0 0.0
      %837 = vmatpush1.xpose.msra.mxu0 0.0
      %838 = vmatprep.subr.mxu0 0.0
      %839 = vmatpush1.xpose.msra.mxu0 0.0
      %840 = vmatprep.subr.mxu0 0.0
      %841 = vmatpush1.xpose.msra.mxu0 0.0
      %842 = vmatprep.subr.mxu0 0.0
      %843 = vmatpush1.xpose.msra.mxu0 0.0
      %844 = vmatprep.subr.mxu0 0.0
      %845 = vmatpush1.xpose.msra.mxu0 0.0
      %846 = vmatprep.subr.mxu0 0.0
      %847 = vmatpush1.xpose.msra.mxu0 0.0
      %848 = vmatprep.subr.mxu0 0.0
      %849 = vmatpush1.xpose.msra.mxu0 0.0
      %850 = vmatprep.subr.mxu0 0.0
      %851 = vmatpush1.xpose.msra.mxu0 0.0
      %852 = vmatprep.subr.mxu0 0.0
      %853 = vmatpush1.xpose.msra.mxu0 0.0
      %854 = vmatprep.subr.mxu0 0.0
      %855 = vmatpush1.xpose.msra.mxu0 0.0
      %856 = vmatprep.subr.mxu0 0.0
      %857 = vmatpush1.xpose.msra.mxu0 0.0
      %858 = vmatprep.subr.mxu0 0.0
      %859 = vmatpush1.xpose.msra.mxu0 0.0
      %860 = vmatprep.subr.mxu0 0.0
      %861 = vmatpush1.xpose.msra.mxu0 0.0
      %862 = vmatprep.subr.mxu0 0.0
      %863 = vmatpush1.xpose.msra.mxu0 0.0
      %864 = vmatprep.subr.mxu0 0.0
      %865 = vmatpush1.xpose.msra.mxu0 0.0
      %866 = vmatprep.subr.mxu0 0.0
      %867 = vmatpush1.xpose.msra.mxu0 0.0
      %868 = vmatprep.subr.mxu0 0.0
      %869 = vmatpush1.xpose.msra.mxu0 0.0
      %870 = vmatprep.subr.mxu0 0.0
      %871 = vmatpush1.xpose.msra.mxu0 0.0
      %872 = vmatprep.subr.mxu0 0.0
      %873 = vmatpush1.xpose.msra.mxu0 0.0
      %874 = vmatprep.subr.mxu0 0.0
      %875 = vmatpush1.xpose.msra.mxu0 0.0
      %876 = vmatprep.subr.mxu0 0.0
      %877 = vmatpush1.xpose.msra.mxu0 0.0
      %878 = vmatprep.subr.mxu0 0.0
      %879 = vmatpush1.xpose.msra.mxu0 0.0
      %880 = vmatprep.subr.mxu0 0.0
      %881 = vmatpush1.xpose.msra.mxu0 0.0
      %882 = vmatprep.subr.mxu0 0.0
      %883 = vmatpush1.xpose.msra.mxu0 0.0
      %884 = vmatprep.mubr.f32.mxu0 0.0
      %885 = vmatmul.mubr.f32.gmra.mrb[0].mxu0 %v806
      %v886 = vpop.f32.mrb[0].mxu0
      %v887 = vadd.f32 %v803, %v886
      %v888 = vpop.f32.mrb[0].mxu0
      %889 = vdwg.mxu0
      %v890 = vmul.f32 %v887, 0.35355338
      %891 = vrot.lane.b32.xlu0 %v803, 96
      %v892 = vpop.permute.xlu0 %891
      %v895 = vsel %vm656, %v611, 0
      %v898 = vsel %vm656, %v612, 0
      %v901 = vsel %vm656, %v613, 0
      %v904 = vsel %vm656, %v614, 0
      %v907 = vsel %vm656, %v615, 0
      %v910 = vsel %vm656, %v616, 0
      %v913 = vsel %vm656, %v617, 0
      %v916 = vsel %vm656, %v618, 0
      %v919 = vsel %vm656, %v619, 0
      %v922 = vsel %vm656, %v620, 0
      %v925 = vsel %vm656, %v621, 0
      %v928 = vsel %vm656, %v622, 0
      %v931 = vsel %vm656, %v623, 0
      %v934 = vsel %vm656, %v624, 0
      %v937 = vsel %vm656, %v625, 0
      %v940 = vsel %vm656, %v626, 0
      %v943 = vsel %vm656, %v627, 0
      %v946 = vsel %vm656, %v628, 0
      %v949 = vsel %vm656, %v629, 0
      %v952 = vsel %vm656, %v630, 0
      %v955 = vsel %vm656, %v631, 0
      %v958 = vsel %vm656, %v632, 0
      %v961 = vsel %vm656, %v633, 0
      %v964 = vsel %vm656, %v634, 0
      %v967 = vsel %vm656, %v635, 0
      %v970 = vsel %vm656, %v636, 0
      %v973 = vsel %vm656, %v637, 0
      %v976 = vsel %vm656, %v638, 0
      %v979 = vsel %vm656, %v639, 0
      %v982 = vsel %vm656, %v640, 0
      %v985 = vsel %vm656, %v641, 0
      %v988 = vsel %vm656, %v642, 0
      %v991 = vsel %vm656, %v782, 0
      %v994 = vsel %vm656, %v783, 0
      %v997 = vsel %vm656, %v784, 0
      %v1000 = vsel %vm656, %v785, 0
      %1002 = vmatprep.subr.mxu0 0.0
      %1003 = vmatpush1.xpose.msra.mxu0 %v991
      %1004 = vmatprep.subr.mxu0 0.0
      %1005 = vmatpush1.xpose.msra.mxu0 %v994
      %1006 = vmatprep.subr.mxu0 0.0
      %1007 = vmatpush1.xpose.msra.mxu0 %v997
      %1008 = vmatprep.subr.mxu0 0.0
      %1009 = vmatpush1.xpose.msra.mxu0 %v1000
      %1010 = vmatprep.subr.mxu0 0.0
      %1011 = vmatpush1.xpose.msra.mxu0 0.0
      %1012 = vmatprep.subr.mxu0 0.0
      %1013 = vmatpush1.xpose.msra.mxu0 0.0
      %1014 = vmatprep.subr.mxu0 0.0
      %1015 = vmatpush1.xpose.msra.mxu0 0.0
      %1016 = vmatprep.subr.mxu0 0.0
      %1017 = vmatpush1.xpose.msra.mxu0 0.0
      %1018 = vmatprep.subr.mxu0 0.0
      %1019 = vmatpush1.xpose.msra.mxu0 0.0
      %1020 = vmatprep.subr.mxu0 0.0
      %1021 = vmatpush1.xpose.msra.mxu0 0.0
      %1022 = vmatprep.subr.mxu0 0.0
      %1023 = vmatpush1.xpose.msra.mxu0 0.0
      %1024 = vmatprep.subr.mxu0 0.0
      %1025 = vmatpush1.xpose.msra.mxu0 0.0
      %1026 = vmatprep.subr.mxu0 0.0
      %1027 = vmatpush1.xpose.msra.mxu0 0.0
      %1028 = vmatprep.subr.mxu0 0.0
      %1029 = vmatpush1.xpose.msra.mxu0 0.0
      %1030 = vmatprep.subr.mxu0 0.0
      %1031 = vmatpush1.xpose.msra.mxu0 0.0
      %1032 = vmatprep.subr.mxu0 0.0
      %1033 = vmatpush1.xpose.msra.mxu0 0.0
      %1034 = vmatprep.subr.mxu0 0.0
      %1035 = vmatpush1.xpose.msra.mxu0 0.0
      %1036 = vmatprep.subr.mxu0 0.0
      %1037 = vmatpush1.xpose.msra.mxu0 0.0
      %1038 = vmatprep.subr.mxu0 0.0
      %1039 = vmatpush1.xpose.msra.mxu0 0.0
      %1040 = vmatprep.subr.mxu0 0.0
      %1041 = vmatpush1.xpose.msra.mxu0 0.0
      %1042 = vmatprep.subr.mxu0 0.0
      %1043 = vmatpush1.xpose.msra.mxu0 0.0
      %1044 = vmatprep.subr.mxu0 0.0
      %1045 = vmatpush1.xpose.msra.mxu0 0.0
      %1046 = vmatprep.subr.mxu0 0.0
      %1047 = vmatpush1.xpose.msra.mxu0 0.0
      %1048 = vmatprep.subr.mxu0 0.0
      %1049 = vmatpush1.xpose.msra.mxu0 0.0
      %1050 = vmatprep.subr.mxu0 0.0
      %1051 = vmatpush1.xpose.msra.mxu0 0.0
      %1052 = vmatprep.subr.mxu0 0.0
      %1053 = vmatpush1.xpose.msra.mxu0 0.0
      %1054 = vmatprep.subr.mxu0 0.0
      %1055 = vmatpush1.xpose.msra.mxu0 0.0
      %1056 = vmatprep.subr.mxu0 0.0
      %1057 = vmatpush1.xpose.msra.mxu0 0.0
      %1058 = vmatprep.subr.mxu0 0.0
      %1059 = vmatpush1.xpose.msra.mxu0 0.0
      %1060 = vmatprep.subr.mxu0 0.0
      %1061 = vmatpush1.xpose.msra.mxu0 0.0
      %1062 = vmatprep.subr.mxu0 0.0
      %1063 = vmatpush1.xpose.msra.mxu0 0.0
      %1064 = vmatprep.subr.mxu0 0.0
      %1065 = vmatpush1.xpose.msra.mxu0 0.0
      %1066 = vmatprep.mubr.f32.mxu0 0.0
      %1067 = vmatmul.mubr.f32.gmra.mrb[0].mxu0 %v895
      %v1068 = vpop.f32.mrb[0].mxu0
      %v1069 = vadd.f32 %v892, %v1068
      %v1070 = vpop.f32.mrb[0].mxu0
      %1071 = vmatprep.mubr.f32.mxu0 0.0
      %1072 = vmatmul.mubr.f32.gmra.mrb[0].mxu0 %v898
      %v1073 = vpop.f32.mrb[0].mxu0
      %v1074 = vadd.f32 %v892, %v1073
      %v1075 = vpop.f32.mrb[0].mxu0
      %1076 = vmatprep.mubr.f32.mxu0 0.0
      %1077 = vmatmul.mubr.f32.gmra.mrb[0].mxu0 %v901
      %v1078 = vpop.f32.mrb[0].mxu0
      %v1079 = vadd.f32 %v892, %v1078
      %v1080 = vpop.f32.mrb[0].mxu0
      %1081 = vmatprep.mubr.f32.mxu0 0.0
      %1082 = vmatmul.mubr.f32.gmra.mrb[0].mxu0 %v904
      %v1083 = vpop.f32.mrb[0].mxu0
      %v1084 = vadd.f32 %v892, %v1083
      %v1085 = vpop.f32.mrb[0].mxu0
      %1086 = vmatprep.mubr.f32.mxu0 0.0
      %1087 = vmatmul.mubr.f32.gmra.mrb[0].mxu0 %v907
      %v1088 = vpop.f32.mrb[0].mxu0
      %v1089 = vadd.f32 %v892, %v1088
      %v1090 = vpop.f32.mrb[0].mxu0
      %1091 = vmatprep.mubr.f32.mxu0 0.0
      %1092 = vmatmul.mubr.f32.gmra.mrb[0].mxu0 %v910
      %v1093 = vpop.f32.mrb[0].mxu0
      %v1094 = vadd.f32 %v892, %v1093
      %v1095 = vpop.f32.mrb[0].mxu0
      %1096 = vmatprep.mubr.f32.mxu0 0.0
      %1097 = vmatmul.mubr.f32.gmra.mrb[0].mxu0 %v913
      %v1098 = vpop.f32.mrb[0].mxu0
      %v1099 = vadd.f32 %v892, %v1098
      %v1100 = vpop.f32.mrb[0].mxu0
      %1101 = vmatprep.mubr.f32.mxu0 0.0
      %1102 = vmatmul.mubr.f32.gmra.mrb[0].mxu0 %v916
      %v1103 = vpop.f32.mrb[0].mxu0
      %v1104 = vadd.f32 %v892, %v1103
      %v1105 = vpop.f32.mrb[0].mxu0
      %1106 = vmatprep.mubr.f32.mxu0 0.0
      %1107 = vmatmul.mubr.f32.gmra.mrb[0].mxu0 %v919
      %v1108 = vpop.f32.mrb[0].mxu0
      %v1109 = vadd.f32 %v892, %v1108
      %v1110 = vpop.f32.mrb[0].mxu0
      %1111 = vmatprep.mubr.f32.mxu0 0.0
      %1112 = vmatmul.mubr.f32.gmra.mrb[0].mxu0 %v922
      %v1113 = vpop.f32.mrb[0].mxu0
      %v1114 = vadd.f32 %v892, %v1113
      %v1115 = vpop.f32.mrb[0].mxu0
      %1116 = vmatprep.mubr.f32.mxu0 0.0
      %1117 = vmatmul.mubr.f32.gmra.mrb[0].mxu0 %v925
      %v1118 = vpop.f32.mrb[0].mxu0
      %v1119 = vadd.f32 %v892, %v1118
      %v1120 = vpop.f32.mrb[0].mxu0
      %1121 = vmatprep.mubr.f32.mxu0 0.0
      %1122 = vmatmul.mubr.f32.gmra.mrb[0].mxu0 %v928
      %v1123 = vpop.f32.mrb[0].mxu0
      %v1124 = vadd.f32 %v892, %v1123
      %v1125 = vpop.f32.mrb[0].mxu0
      %1126 = vmatprep.mubr.f32.mxu0 0.0
      %1127 = vmatmul.mubr.f32.gmra.mrb[0].mxu0 %v931
      %v1128 = vpop.f32.mrb[0].mxu0
      %v1129 = vadd.f32 %v892, %v1128
      %v1130 = vpop.f32.mrb[0].mxu0
      %1131 = vmatprep.mubr.f32.mxu0 0.0
      %1132 = vmatmul.mubr.f32.gmra.mrb[0].mxu0 %v934
      %v1133 = vpop.f32.mrb[0].mxu0
      %v1134 = vadd.f32 %v892, %v1133
      %v1135 = vpop.f32.mrb[0].mxu0
      %1136 = vmatprep.mubr.f32.mxu0 0.0
      %1137 = vmatmul.mubr.f32.gmra.mrb[0].mxu0 %v937
      %v1138 = vpop.f32.mrb[0].mxu0
      %v1139 = vadd.f32 %v892, %v1138
      %v1140 = vpop.f32.mrb[0].mxu0
      %1141 = vmatprep.mubr.f32.mxu0 0.0
      %1142 = vmatmul.mubr.f32.gmra.mrb[0].mxu0 %v940
      %v1143 = vpop.f32.mrb[0].mxu0
      %v1144 = vadd.f32 %v892, %v1143
      %v1145 = vpop.f32.mrb[0].mxu0
      %1146 = vmatprep.mubr.f32.mxu0 0.0
      %1147 = vmatmul.mubr.f32.gmra.mrb[0].mxu0 %v943
      %v1148 = vpop.f32.mrb[0].mxu0
      %v1149 = vadd.f32 %v892, %v1148
      %v1150 = vpop.f32.mrb[0].mxu0
      %1151 = vmatprep.mubr.f32.mxu0 0.0
      %1152 = vmatmul.mubr.f32.gmra.mrb[0].mxu0 %v946
      %v1153 = vpop.f32.mrb[0].mxu0
      %v1154 = vadd.f32 %v892, %v1153
      %v1155 = vpop.f32.mrb[0].mxu0
      %1156 = vmatprep.mubr.f32.mxu0 0.0
      %1157 = vmatmul.mubr.f32.gmra.mrb[0].mxu0 %v949
      %v1158 = vpop.f32.mrb[0].mxu0
      %v1159 = vadd.f32 %v892, %v1158
      %v1160 = vpop.f32.mrb[0].mxu0
      %1161 = vmatprep.mubr.f32.mxu0 0.0
      %1162 = vmatmul.mubr.f32.gmra.mrb[0].mxu0 %v952
      %v1163 = vpop.f32.mrb[0].mxu0
      %v1164 = vadd.f32 %v892, %v1163
      %v1165 = vpop.f32.mrb[0].mxu0
      %1166 = vmatprep.mubr.f32.mxu0 0.0
      %1167 = vmatmul.mubr.f32.gmra.mrb[0].mxu0 %v955
      %v1168 = vpop.f32.mrb[0].mxu0
      %v1169 = vadd.f32 %v892, %v1168
      %v1170 = vpop.f32.mrb[0].mxu0
      %1171 = vmatprep.mubr.f32.mxu0 0.0
      %1172 = vmatmul.mubr.f32.gmra.mrb[0].mxu0 %v958
      %v1173 = vpop.f32.mrb[0].mxu0
      %v1174 = vadd.f32 %v892, %v1173
      %v1175 = vpop.f32.mrb[0].mxu0
      %1176 = vmatprep.mubr.f32.mxu0 0.0
      %1177 = vmatmul.mubr.f32.gmra.mrb[0].mxu0 %v961
      %v1178 = vpop.f32.mrb[0].mxu0
      %v1179 = vadd.f32 %v892, %v1178
      %v1180 = vpop.f32.mrb[0].mxu0
      %1181 = vmatprep.mubr.f32.mxu0 0.0
      %1182 = vmatmul.mubr.f32.gmra.mrb[0].mxu0 %v964
      %v1183 = vpop.f32.mrb[0].mxu0
      %v1184 = vadd.f32 %v892, %v1183
      %v1185 = vpop.f32.mrb[0].mxu0
      %1186 = vmatprep.mubr.f32.mxu0 0.0
      %1187 = vmatmul.mubr.f32.gmra.mrb[0].mxu0 %v967
      %v1188 = vpop.f32.mrb[0].mxu0
      %v1189 = vadd.f32 %v892, %v1188
      %v1190 = vpop.f32.mrb[0].mxu0
      %1191 = vmatprep.mubr.f32.mxu0 0.0
      %1192 = vmatmul.mubr.f32.gmra.mrb[0].mxu0 %v970
      %v1193 = vpop.f32.mrb[0].mxu0
      %v1194 = vadd.f32 %v892, %v1193
      %v1195 = vpop.f32.mrb[0].mxu0
      %1196 = vmatprep.mubr.f32.mxu0 0.0
      %1197 = vmatmul.mubr.f32.gmra.mrb[0].mxu0 %v973
      %v1198 = vpop.f32.mrb[0].mxu0
      %v1199 = vadd.f32 %v892, %v1198
      %v1200 = vpop.f32.mrb[0].mxu0
      %1201 = vmatprep.mubr.f32.mxu0 0.0
      %1202 = vmatmul.mubr.f32.gmra.mrb[0].mxu0 %v976
      %v1203 = vpop.f32.mrb[0].mxu0
      %v1204 = vadd.f32 %v892, %v1203
      %v1205 = vpop.f32.mrb[0].mxu0
      %1206 = vmatprep.mubr.f32.mxu0 0.0
      %1207 = vmatmul.mubr.f32.gmra.mrb[0].mxu0 %v979
      %v1208 = vpop.f32.mrb[0].mxu0
      %v1209 = vadd.f32 %v892, %v1208
      %v1210 = vpop.f32.mrb[0].mxu0
      %1211 = vmatprep.mubr.f32.mxu0 0.0
      %1212 = vmatmul.mubr.f32.gmra.mrb[0].mxu0 %v982
      %v1213 = vpop.f32.mrb[0].mxu0
      %v1214 = vadd.f32 %v892, %v1213
      %v1215 = vpop.f32.mrb[0].mxu0
      %1216 = vmatprep.mubr.f32.mxu0 0.0
      %1217 = vmatmul.mubr.f32.gmra.mrb[0].mxu0 %v985
      %v1218 = vpop.f32.mrb[0].mxu0
      %v1219 = vadd.f32 %v892, %v1218
      %v1220 = vpop.f32.mrb[0].mxu0
      %1221 = vmatprep.mubr.f32.mxu0 0.0
      %1222 = vmatmul.mubr.f32.gmra.mrb[0].mxu0 %v988
      %v1223 = vpop.f32.mrb[0].mxu0
      %v1224 = vadd.f32 %v892, %v1223
      %v1225 = vpop.f32.mrb[0].mxu0
      %1226 = vdwg.mxu0
      %1227 = vrot.lane.b32.xlu0 %v803, 64
      %v1228 = vpop.permute.xlu0 %1227
      %v1231 = vsel %vm656, %v579, 0
      %v1234 = vsel %vm656, %v580, 0
      %v1237 = vsel %vm656, %v581, 0
      %v1240 = vsel %vm656, %v582, 0
      %v1243 = vsel %vm656, %v583, 0
      %v1246 = vsel %vm656, %v584, 0
      %v1249 = vsel %vm656, %v585, 0
      %v1252 = vsel %vm656, %v586, 0
      %v1255 = vsel %vm656, %v587, 0
      %v1258 = vsel %vm656, %v588, 0
      %v1261 = vsel %vm656, %v589, 0
      %v1264 = vsel %vm656, %v590, 0
      %v1267 = vsel %vm656, %v591, 0
      %v1270 = vsel %vm656, %v592, 0
      %v1273 = vsel %vm656, %v593, 0
      %v1276 = vsel %vm656, %v594, 0
      %v1279 = vsel %vm656, %v595, 0
      %v1282 = vsel %vm656, %v596, 0
      %v1285 = vsel %vm656, %v597, 0
      %v1288 = vsel %vm656, %v598, 0
      %v1291 = vsel %vm656, %v599, 0
      %v1294 = vsel %vm656, %v600, 0
      %v1297 = vsel %vm656, %v601, 0
      %v1300 = vsel %vm656, %v602, 0
      %v1303 = vsel %vm656, %v603, 0
      %v1306 = vsel %vm656, %v604, 0
      %v1309 = vsel %vm656, %v605, 0
      %v1312 = vsel %vm656, %v606, 0
      %v1315 = vsel %vm656, %v607, 0
      %v1318 = vsel %vm656, %v608, 0
      %v1321 = vsel %vm656, %v609, 0
      %v1324 = vsel %vm656, %v610, 0
      %v1327 = vsel %vm656, %v786, 0
      %v1330 = vsel %vm656, %v787, 0
      %v1333 = vsel %vm656, %v788, 0
      %v1336 = vsel %vm656, %v789, 0
      %1338 = vmatprep.subr.mxu0 0.0
      %1339 = vmatpush1.xpose.msra.mxu0 %v1327
      %1340 = vmatprep.subr.mxu0 0.0
      %1341 = vmatpush1.xpose.msra.mxu0 %v1330
      %1342 = vmatprep.subr.mxu0 0.0
      %1343 = vmatpush1.xpose.msra.mxu0 %v1333
      %1344 = vmatprep.subr.mxu0 0.0
      %1345 = vmatpush1.xpose.msra.mxu0 %v1336
      %1346 = vmatprep.subr.mxu0 0.0
      %1347 = vmatpush1.xpose.msra.mxu0 0.0
      %1348 = vmatprep.subr.mxu0 0.0
      %1349 = vmatpush1.xpose.msra.mxu0 0.0
      %1350 = vmatprep.subr.mxu0 0.0
      %1351 = vmatpush1.xpose.msra.mxu0 0.0
      %1352 = vmatprep.subr.mxu0 0.0
      %1353 = vmatpush1.xpose.msra.mxu0 0.0
      %1354 = vmatprep.subr.mxu0 0.0
      %1355 = vmatpush1.xpose.msra.mxu0 0.0
      %1356 = vmatprep.subr.mxu0 0.0
      %1357 = vmatpush1.xpose.msra.mxu0 0.0
      %1358 = vmatprep.subr.mxu0 0.0
      %1359 = vmatpush1.xpose.msra.mxu0 0.0
      %1360 = vmatprep.subr.mxu0 0.0
      %1361 = vmatpush1.xpose.msra.mxu0 0.0
      %1362 = vmatprep.subr.mxu0 0.0
      %1363 = vmatpush1.xpose.msra.mxu0 0.0
      %1364 = vmatprep.subr.mxu0 0.0
      %1365 = vmatpush1.xpose.msra.mxu0 0.0
      %1366 = vmatprep.subr.mxu0 0.0
      %1367 = vmatpush1.xpose.msra.mxu0 0.0
      %1368 = vmatprep.subr.mxu0 0.0
      %1369 = vmatpush1.xpose.msra.mxu0 0.0
      %1370 = vmatprep.subr.mxu0 0.0
      %1371 = vmatpush1.xpose.msra.mxu0 0.0
      %1372 = vmatprep.subr.mxu0 0.0
      %1373 = vmatpush1.xpose.msra.mxu0 0.0
      %1374 = vmatprep.subr.mxu0 0.0
      %1375 = vmatpush1.xpose.msra.mxu0 0.0
      %1376 = vmatprep.subr.mxu0 0.0
      %1377 = vmatpush1.xpose.msra.mxu0 0.0
      %1378 = vmatprep.subr.mxu0 0.0
      %1379 = vmatpush1.xpose.msra.mxu0 0.0
      %1380 = vmatprep.subr.mxu0 0.0
      %1381 = vmatpush1.xpose.msra.mxu0 0.0
      %1382 = vmatprep.subr.mxu0 0.0
      %1383 = vmatpush1.xpose.msra.mxu0 0.0
      %1384 = vmatprep.subr.mxu0 0.0
      %1385 = vmatpush1.xpose.msra.mxu0 0.0
      %1386 = vmatprep.subr.mxu0 0.0
      %1387 = vmatpush1.xpose.msra.mxu0 0.0
      %1388 = vmatprep.subr.mxu0 0.0
      %1389 = vmatpush1.xpose.msra.mxu0 0.0
      %1390 = vmatprep.subr.mxu0 0.0
      %1391 = vmatpush1.xpose.msra.mxu0 0.0
      %1392 = vmatprep.subr.mxu0 0.0
      %1393 = vmatpush1.xpose.msra.mxu0 0.0
      %1394 = vmatprep.subr.mxu0 0.0
      %1395 = vmatpush1.xpose.msra.mxu0 0.0
      %1396 = vmatprep.subr.mxu0 0.0
      %1397 = vmatpush1.xpose.msra.mxu0 0.0
      %1398 = vmatprep.subr.mxu0 0.0
      %1399 = vmatpush1.xpose.msra.mxu0 0.0
      %1400 = vmatprep.subr.mxu0 0.0
      %1401 = vmatpush1.xpose.msra.mxu0 0.0
      %1402 = vmatprep.mubr.f32.mxu0 0.0
      %1403 = vmatmul.mubr.f32.gmra.mrb[0].mxu0 %v1231
      %v1404 = vpop.f32.mrb[0].mxu0
      %v1405 = vadd.f32 %v1228, %v1404
      %v1406 = vpop.f32.mrb[0].mxu0
      %1407 = vmatprep.mubr.f32.mxu0 0.0
      %1408 = vmatmul.mubr.f32.gmra.mrb[0].mxu0 %v1234
      %v1409 = vpop.f32.mrb[0].mxu0
      %v1410 = vadd.f32 %v1228, %v1409
      %v1411 = vpop.f32.mrb[0].mxu0
      %1412 = vmatprep.mubr.f32.mxu0 0.0
      %1413 = vmatmul.mubr.f32.gmra.mrb[0].mxu0 %v1237
      %v1414 = vpop.f32.mrb[0].mxu0
      %v1415 = vadd.f32 %v1228, %v1414
      %v1416 = vpop.f32.mrb[0].mxu0
      %1417 = vmatprep.mubr.f32.mxu0 0.0
      %1418 = vmatmul.mubr.f32.gmra.mrb[0].mxu0 %v1240
      %v1419 = vpop.f32.mrb[0].mxu0
      %v1420 = vadd.f32 %v1228, %v1419
      %v1421 = vpop.f32.mrb[0].mxu0
      %1422 = vmatprep.mubr.f32.mxu0 0.0
      %1423 = vmatmul.mubr.f32.gmra.mrb[0].mxu0 %v1243
      %v1424 = vpop.f32.mrb[0].mxu0
      %v1425 = vadd.f32 %v1228, %v1424
      %v1426 = vpop.f32.mrb[0].mxu0
      %1427 = vmatprep.mubr.f32.mxu0 0.0
      %1428 = vmatmul.mubr.f32.gmra.mrb[0].mxu0 %v1246
      %v1429 = vpop.f32.mrb[0].mxu0
      %v1430 = vadd.f32 %v1228, %v1429
      %v1431 = vpop.f32.mrb[0].mxu0
      %1432 = vmatprep.mubr.f32.mxu0 0.0
      %1433 = vmatmul.mubr.f32.gmra.mrb[0].mxu0 %v1249
      %v1434 = vpop.f32.mrb[0].mxu0
      %v1435 = vadd.f32 %v1228, %v1434
      %v1436 = vpop.f32.mrb[0].mxu0
      %1437 = vmatprep.mubr.f32.mxu0 0.0
      %1438 = vmatmul.mubr.f32.gmra.mrb[0].mxu0 %v1252
      %v1439 = vpop.f32.mrb[0].mxu0
      %v1440 = vadd.f32 %v1228, %v1439
      %v1441 = vpop.f32.mrb[0].mxu0
      %1442 = vmatprep.mubr.f32.mxu0 0.0
      %1443 = vmatmul.mubr.f32.gmra.mrb[0].mxu0 %v1255
      %v1444 = vpop.f32.mrb[0].mxu0
      %v1445 = vadd.f32 %v1228, %v1444
      %v1446 = vpop.f32.mrb[0].mxu0
      %1447 = vmatprep.mubr.f32.mxu0 0.0
      %1448 = vmatmul.mubr.f32.gmra.mrb[0].mxu0 %v1258
      %v1449 = vpop.f32.mrb[0].mxu0
      %v1450 = vadd.f32 %v1228, %v1449
      %v1451 = vpop.f32.mrb[0].mxu0
      %1452 = vmatprep.mubr.f32.mxu0 0.0
      %1453 = vmatmul.mubr.f32.gmra.mrb[0].mxu0 %v1261
      %v1454 = vpop.f32.mrb[0].mxu0
      %v1455 = vadd.f32 %v1228, %v1454
      %v1456 = vpop.f32.mrb[0].mxu0
      %1457 = vmatprep.mubr.f32.mxu0 0.0
      %1458 = vmatmul.mubr.f32.gmra.mrb[0].mxu0 %v1264
      %v1459 = vpop.f32.mrb[0].mxu0
      %v1460 = vadd.f32 %v1228, %v1459
      %v1461 = vpop.f32.mrb[0].mxu0
      %1462 = vmatprep.mubr.f32.mxu0 0.0
      %1463 = vmatmul.mubr.f32.gmra.mrb[0].mxu0 %v1267
      %v1464 = vpop.f32.mrb[0].mxu0
      %v1465 = vadd.f32 %v1228, %v1464
      %v1466 = vpop.f32.mrb[0].mxu0
      %1467 = vmatprep.mubr.f32.mxu0 0.0
      %1468 = vmatmul.mubr.f32.gmra.mrb[0].mxu0 %v1270
      %v1469 = vpop.f32.mrb[0].mxu0
      %v1470 = vadd.f32 %v1228, %v1469
      %v1471 = vpop.f32.mrb[0].mxu0
      %1472 = vmatprep.mubr.f32.mxu0 0.0
      %1473 = vmatmul.mubr.f32.gmra.mrb[0].mxu0 %v1273
      %v1474 = vpop.f32.mrb[0].mxu0
      %v1475 = vadd.f32 %v1228, %v1474
      %v1476 = vpop.f32.mrb[0].mxu0
      %1477 = vmatprep.mubr.f32.mxu0 0.0
      %1478 = vmatmul.mubr.f32.gmra.mrb[0].mxu0 %v1276
      %v1479 = vpop.f32.mrb[0].mxu0
      %v1480 = vadd.f32 %v1228, %v1479
      %v1481 = vpop.f32.mrb[0].mxu0
      %1482 = vmatprep.mubr.f32.mxu0 0.0
      %1483 = vmatmul.mubr.f32.gmra.mrb[0].mxu0 %v1279
      %v1484 = vpop.f32.mrb[0].mxu0
      %v1485 = vadd.f32 %v1228, %v1484
      %v1486 = vpop.f32.mrb[0].mxu0
      %1487 = vmatprep.mubr.f32.mxu0 0.0
      %1488 = vmatmul.mubr.f32.gmra.mrb[0].mxu0 %v1282
      %v1489 = vpop.f32.mrb[0].mxu0
      %v1490 = vadd.f32 %v1228, %v1489
      %v1491 = vpop.f32.mrb[0].mxu0
      %1492 = vmatprep.mubr.f32.mxu0 0.0
      %1493 = vmatmul.mubr.f32.gmra.mrb[0].mxu0 %v1285
      %v1494 = vpop.f32.mrb[0].mxu0
      %v1495 = vadd.f32 %v1228, %v1494
      %v1496 = vpop.f32.mrb[0].mxu0
      %1497 = vmatprep.mubr.f32.mxu0 0.0
      %1498 = vmatmul.mubr.f32.gmra.mrb[0].mxu0 %v1288
      %v1499 = vpop.f32.mrb[0].mxu0
      %v1500 = vadd.f32 %v1228, %v1499
      %v1501 = vpop.f32.mrb[0].mxu0
      %1502 = vmatprep.mubr.f32.mxu0 0.0
      %1503 = vmatmul.mubr.f32.gmra.mrb[0].mxu0 %v1291
      %v1504 = vpop.f32.mrb[0].mxu0
      %v1505 = vadd.f32 %v1228, %v1504
      %v1506 = vpop.f32.mrb[0].mxu0
      %1507 = vmatprep.mubr.f32.mxu0 0.0
      %1508 = vmatmul.mubr.f32.gmra.mrb[0].mxu0 %v1294
      %v1509 = vpop.f32.mrb[0].mxu0
      %v1510 = vadd.f32 %v1228, %v1509
      %v1511 = vpop.f32.mrb[0].mxu0
      %1512 = vmatprep.mubr.f32.mxu0 0.0
      %1513 = vmatmul.mubr.f32.gmra.mrb[0].mxu0 %v1297
      %v1514 = vpop.f32.mrb[0].mxu0
      %v1515 = vadd.f32 %v1228, %v1514
      %v1516 = vpop.f32.mrb[0].mxu0
      %1517 = vmatprep.mubr.f32.mxu0 0.0
      %1518 = vmatmul.mubr.f32.gmra.mrb[0].mxu0 %v1300
      %v1519 = vpop.f32.mrb[0].mxu0
      %v1520 = vadd.f32 %v1228, %v1519
      %v1521 = vpop.f32.mrb[0].mxu0
      %1522 = vmatprep.mubr.f32.mxu0 0.0
      %1523 = vmatmul.mubr.f32.gmra.mrb[0].mxu0 %v1303
      %v1524 = vpop.f32.mrb[0].mxu0
      %v1525 = vadd.f32 %v1228, %v1524
      %v1526 = vpop.f32.mrb[0].mxu0
      %1527 = vmatprep.mubr.f32.mxu0 0.0
      %1528 = vmatmul.mubr.f32.gmra.mrb[0].mxu0 %v1306
      %v1529 = vpop.f32.mrb[0].mxu0
      %v1530 = vadd.f32 %v1228, %v1529
      %v1531 = vpop.f32.mrb[0].mxu0
      %1532 = vmatprep.mubr.f32.mxu0 0.0
      %1533 = vmatmul.mubr.f32.gmra.mrb[0].mxu0 %v1309
      %v1534 = vpop.f32.mrb[0].mxu0
      %v1535 = vadd.f32 %v1228, %v1534
      %v1536 = vpop.f32.mrb[0].mxu0
      %1537 = vmatprep.mubr.f32.mxu0 0.0
      %1538 = vmatmul.mubr.f32.gmra.mrb[0].mxu0 %v1312
      %v1539 = vpop.f32.mrb[0].mxu0
      %v1540 = vadd.f32 %v1228, %v1539
      %v1541 = vpop.f32.mrb[0].mxu0
      %1542 = vmatprep.mubr.f32.mxu0 0.0
      %1543 = vmatmul.mubr.f32.gmra.mrb[0].mxu0 %v1315
      %v1544 = vpop.f32.mrb[0].mxu0
      %v1545 = vadd.f32 %v1228, %v1544
      %v1546 = vpop.f32.mrb[0].mxu0
      %1547 = vmatprep.mubr.f32.mxu0 0.0
      %1548 = vmatmul.mubr.f32.gmra.mrb[0].mxu0 %v1318
      %v1549 = vpop.f32.mrb[0].mxu0
      %v1550 = vadd.f32 %v1228, %v1549
      %v1551 = vpop.f32.mrb[0].mxu0
      %1552 = vmatprep.mubr.f32.mxu0 0.0
      %1553 = vmatmul.mubr.f32.gmra.mrb[0].mxu0 %v1321
      %v1554 = vpop.f32.mrb[0].mxu0
      %v1555 = vadd.f32 %v1228, %v1554
      %v1556 = vpop.f32.mrb[0].mxu0
      %1557 = vmatprep.mubr.f32.mxu0 0.0
      %1558 = vmatmul.mubr.f32.gmra.mrb[0].mxu0 %v1324
      %v1559 = vpop.f32.mrb[0].mxu0
      %v1560 = vadd.f32 %v1228, %v1559
      %v1561 = vpop.f32.mrb[0].mxu0
      %1562 = vdwg.mxu0
      %vm1563 = vcmask 64512
      %v1565 = vsel %vm1563, %v890, 0
      %v1568 = vsel %vm1563, %v1069, 0
      %v1571 = vsel %vm1563, %v1074, 0
      %v1574 = vsel %vm1563, %v1079, 0
      %v1577 = vsel %vm1563, %v1084, 0
      %v1580 = vsel %vm1563, %v1089, 0
      %v1583 = vsel %vm1563, %v1094, 0
      %v1586 = vsel %vm1563, %v1099, 0
      %v1589 = vsel %vm1563, %v1104, 0
      %v1592 = vsel %vm1563, %v1109, 0
      %v1595 = vsel %vm1563, %v1114, 0
      %v1598 = vsel %vm1563, %v1119, 0
      %v1601 = vsel %vm1563, %v1124, 0
      %v1604 = vsel %vm1563, %v1129, 0
      %v1607 = vsel %vm1563, %v1134, 0
      %v1610 = vsel %vm1563, %v1139, 0
      %v1613 = vsel %vm1563, %v1144, 0
      %v1616 = vsel %vm1563, %v1149, 0
      %v1619 = vsel %vm1563, %v1154, 0
      %v1622 = vsel %vm1563, %v1159, 0
      %v1625 = vsel %vm1563, %v1164, 0
      %v1628 = vsel %vm1563, %v1169, 0
      %v1631 = vsel %vm1563, %v1174, 0
      %v1634 = vsel %vm1563, %v1179, 0
      %v1637 = vsel %vm1563, %v1184, 0
      %v1640 = vsel %vm1563, %v1189, 0
      %v1643 = vsel %vm1563, %v1194, 0
      %v1646 = vsel %vm1563, %v1199, 0
      %v1649 = vsel %vm1563, %v1204, 0
      %v1652 = vsel %vm1563, %v1209, 0
      %v1655 = vsel %vm1563, %v1214, 0
      %v1658 = vsel %vm1563, %v1219, 0
      %v1661 = vsel %vm1563, %v1224, 0
      %1663 = vmatprep.subr.mxu0 0.0
      %1664 = vmatpush1.xpose.msra.mxu0 %v1568
      %1665 = vmatprep.subr.mxu0 0.0
      %1666 = vmatpush1.xpose.msra.mxu0 %v1571
      %1667 = vmatprep.subr.mxu0 0.0
      %1668 = vmatpush1.xpose.msra.mxu0 %v1574
      %1669 = vmatprep.subr.mxu0 0.0
      %1670 = vmatpush1.xpose.msra.mxu0 %v1577
      %1671 = vmatprep.subr.mxu0 0.0
      %1672 = vmatpush1.xpose.msra.mxu0 %v1580
      %1673 = vmatprep.subr.mxu0 0.0
      %1674 = vmatpush1.xpose.msra.mxu0 %v1583
      %1675 = vmatprep.subr.mxu0 0.0
      %1676 = vmatpush1.xpose.msra.mxu0 %v1586
      %1677 = vmatprep.subr.mxu0 0.0
      %1678 = vmatpush1.xpose.msra.mxu0 %v1589
      %1679 = vmatprep.subr.mxu0 0.0
      %1680 = vmatpush1.xpose.msra.mxu0 %v1592
      %1681 = vmatprep.subr.mxu0 0.0
      %1682 = vmatpush1.xpose.msra.mxu0 %v1595
      %1683 = vmatprep.subr.mxu0 0.0
      %1684 = vmatpush1.xpose.msra.mxu0 %v1598
      %1685 = vmatprep.subr.mxu0 0.0
      %1686 = vmatpush1.xpose.msra.mxu0 %v1601
      %1687 = vmatprep.subr.mxu0 0.0
      %1688 = vmatpush1.xpose.msra.mxu0 %v1604
      %1689 = vmatprep.subr.mxu0 0.0
      %1690 = vmatpush1.xpose.msra.mxu0 %v1607
      %1691 = vmatprep.subr.mxu0 0.0
      %1692 = vmatpush1.xpose.msra.mxu0 %v1610
      %1693 = vmatprep.subr.mxu0 0.0
      %1694 = vmatpush1.xpose.msra.mxu0 %v1613
      %1695 = vmatprep.subr.mxu0 0.0
      %1696 = vmatpush1.xpose.msra.mxu0 %v1616
      %1697 = vmatprep.subr.mxu0 0.0
      %1698 = vmatpush1.xpose.msra.mxu0 %v1619
      %1699 = vmatprep.subr.mxu0 0.0
      %1700 = vmatpush1.xpose.msra.mxu0 %v1622
      %1701 = vmatprep.subr.mxu0 0.0
      %1702 = vmatpush1.xpose.msra.mxu0 %v1625
      %1703 = vmatprep.subr.mxu0 0.0
      %1704 = vmatpush1.xpose.msra.mxu0 %v1628
      %1705 = vmatprep.subr.mxu0 0.0
      %1706 = vmatpush1.xpose.msra.mxu0 %v1631
      %1707 = vmatprep.subr.mxu0 0.0
      %1708 = vmatpush1.xpose.msra.mxu0 %v1634
      %1709 = vmatprep.subr.mxu0 0.0
      %1710 = vmatpush1.xpose.msra.mxu0 %v1637
      %1711 = vmatprep.subr.mxu0 0.0
      %1712 = vmatpush1.xpose.msra.mxu0 %v1640
      %1713 = vmatprep.subr.mxu0 0.0
      %1714 = vmatpush1.xpose.msra.mxu0 %v1643
      %1715 = vmatprep.subr.mxu0 0.0
      %1716 = vmatpush1.xpose.msra.mxu0 %v1646
      %1717 = vmatprep.subr.mxu0 0.0
      %1718 = vmatpush1.xpose.msra.mxu0 %v1649
      %1719 = vmatprep.subr.mxu0 0.0
      %1720 = vmatpush1.xpose.msra.mxu0 %v1652
      %1721 = vmatprep.subr.mxu0 0.0
      %1722 = vmatpush1.xpose.msra.mxu0 %v1655
      %1723 = vmatprep.subr.mxu0 0.0
      %1724 = vmatpush1.xpose.msra.mxu0 %v1658
      %1725 = vmatprep.subr.mxu0 0.0
      %1726 = vmatpush1.xpose.msra.mxu0 %v1661
      %1727 = vmatprep.mubr.f32.mxu0 0.0
      %1728 = vmatmul.mubr.f32.gmra.mrb[0].mxu0 %v1565
      %v1729 = vpop.f32.mrb[0].mxu0
      %v1730 = vadd.f32 0.0, %v1729
      %v1731 = vpop.f32.mrb[0].mxu0
      %v1732 = vadd.f32 0.0, %v1731
      %1733 = vdwg.mxu0
      %1734 = vrot.lane.b32.xlu0 %v890, 120
      %v1735 = vpop.permute.xlu0 %1734
      %1736 = vrot.lane.b32.xlu0 %v1069, 120
      %v1737 = vpop.permute.xlu0 %1736
      %1738 = vrot.lane.b32.xlu0 %v1074, 120
      %v1739 = vpop.permute.xlu0 %1738
      %1740 = vrot.lane.b32.xlu0 %v1079, 120
      %v1741 = vpop.permute.xlu0 %1740
      %1742 = vrot.lane.b32.xlu0 %v1084, 120
      %v1743 = vpop.permute.xlu0 %1742
      %1744 = vrot.lane.b32.xlu0 %v1089, 120
      %v1745 = vpop.permute.xlu0 %1744
      %1746 = vrot.lane.b32.xlu0 %v1094, 120
      %v1747 = vpop.permute.xlu0 %1746
      %1748 = vrot.lane.b32.xlu0 %v1099, 120
      %v1749 = vpop.permute.xlu0 %1748
      %1750 = vrot.lane.b32.xlu0 %v1104, 120
      %v1751 = vpop.permute.xlu0 %1750
      %1752 = vrot.lane.b32.xlu0 %v1109, 120
      %v1753 = vpop.permute.xlu0 %1752
      %1754 = vrot.lane.b32.xlu0 %v1114, 120
      %v1755 = vpop.permute.xlu0 %1754
      %1756 = vrot.lane.b32.xlu0 %v1119, 120
      %v1757 = vpop.permute.xlu0 %1756
      %1758 = vrot.lane.b32.xlu0 %v1124, 120
      %v1759 = vpop.permute.xlu0 %1758
      %1760 = vrot.lane.b32.xlu0 %v1129, 120
      %v1761 = vpop.permute.xlu0 %1760
      %1762 = vrot.lane.b32.xlu0 %v1134, 120
      %v1763 = vpop.permute.xlu0 %1762
      %1764 = vrot.lane.b32.xlu0 %v1139, 120
      %v1765 = vpop.permute.xlu0 %1764
      %1766 = vrot.lane.b32.xlu0 %v1144, 120
      %v1767 = vpop.permute.xlu0 %1766
      %1768 = vrot.lane.b32.xlu0 %v1149, 120
      %v1769 = vpop.permute.xlu0 %1768
      %1770 = vrot.lane.b32.xlu0 %v1154, 120
      %v1771 = vpop.permute.xlu0 %1770
      %1772 = vrot.lane.b32.xlu0 %v1159, 120
      %v1773 = vpop.permute.xlu0 %1772
      %1774 = vrot.lane.b32.xlu0 %v1164, 120
      %v1775 = vpop.permute.xlu0 %1774
      %1776 = vrot.lane.b32.xlu0 %v1169, 120
      %v1777 = vpop.permute.xlu0 %1776
      %1778 = vrot.lane.b32.xlu0 %v1174, 120
      %v1779 = vpop.permute.xlu0 %1778
      %1780 = vrot.lane.b32.xlu0 %v1179, 120
      %v1781 = vpop.permute.xlu0 %1780
      %1782 = vrot.lane.b32.xlu0 %v1184, 120
      %v1783 = vpop.permute.xlu0 %1782
      %1784 = vrot.lane.b32.xlu0 %v1189, 120
      %v1785 = vpop.permute.xlu0 %1784
      %1786 = vrot.lane.b32.xlu0 %v1194, 120
      %v1787 = vpop.permute.xlu0 %1786
      %1788 = vrot.lane.b32.xlu0 %v1199, 120
      %v1789 = vpop.permute.xlu0 %1788
      %1790 = vrot.lane.b32.xlu0 %v1204, 120
      %v1791 = vpop.permute.xlu0 %1790
      %1792 = vrot.lane.b32.xlu0 %v1209, 120
      %v1793 = vpop.permute.xlu0 %1792
      %1794 = vrot.lane.b32.xlu0 %v1214, 120
      %v1795 = vpop.permute.xlu0 %1794
      %1796 = vrot.lane.b32.xlu0 %v1219, 120
      %v1797 = vpop.permute.xlu0 %1796
      %1798 = vrot.lane.b32.xlu0 %v1224, 120
      %v1799 = vpop.permute.xlu0 %1798
      %v1800 = vsel %vm1563, %v1735, 0
      %v1802 = vsel %vm1563, %v1737, 0
      %v1804 = vsel %vm1563, %v1739, 0
      %v1806 = vsel %vm1563, %v1741, 0
      %v1808 = vsel %vm1563, %v1743, 0
      %v1810 = vsel %vm1563, %v1745, 0
      %v1812 = vsel %vm1563, %v1747, 0
      %v1814 = vsel %vm1563, %v1749, 0
      %v1816 = vsel %vm1563, %v1751, 0
      %v1818 = vsel %vm1563, %v1753, 0
      %v1820 = vsel %vm1563, %v1755, 0
      %v1822 = vsel %vm1563, %v1757, 0
      %v1824 = vsel %vm1563, %v1759, 0
      %v1826 = vsel %vm1563, %v1761, 0
      %v1828 = vsel %vm1563, %v1763, 0
      %v1830 = vsel %vm1563, %v1765, 0
      %v1832 = vsel %vm1563, %v1767, 0
      %v1834 = vsel %vm1563, %v1769, 0
      %v1836 = vsel %vm1563, %v1771, 0
      %v1838 = vsel %vm1563, %v1773, 0
      %v1840 = vsel %vm1563, %v1775, 0
      %v1842 = vsel %vm1563, %v1777, 0
      %v1844 = vsel %vm1563, %v1779, 0
      %v1846 = vsel %vm1563, %v1781, 0
      %v1848 = vsel %vm1563, %v1783, 0
      %v1850 = vsel %vm1563, %v1785, 0
      %v1852 = vsel %vm1563, %v1787, 0
      %v1854 = vsel %vm1563, %v1789, 0
      %v1856 = vsel %vm1563, %v1791, 0
      %v1858 = vsel %vm1563, %v1793, 0
      %v1860 = vsel %vm1563, %v1795, 0
      %v1862 = vsel %vm1563, %v1797, 0
      %v1864 = vsel %vm1563, %v1799, 0
      %1866 = vmatprep.subr.mxu0 0.0
      %1867 = vmatpush1.xpose.msra.mxu0 %v1802
      %1868 = vmatprep.subr.mxu0 0.0
      %1869 = vmatpush1.xpose.msra.mxu0 %v1804
      %1870 = vmatprep.subr.mxu0 0.0
      %1871 = vmatpush1.xpose.msra.mxu0 %v1806
      %1872 = vmatprep.subr.mxu0 0.0
      %1873 = vmatpush1.xpose.msra.mxu0 %v1808
      %1874 = vmatprep.subr.mxu0 0.0
      %1875 = vmatpush1.xpose.msra.mxu0 %v1810
      %1876 = vmatprep.subr.mxu0 0.0
      %1877 = vmatpush1.xpose.msra.mxu0 %v1812
      %1878 = vmatprep.subr.mxu0 0.0
      %1879 = vmatpush1.xpose.msra.mxu0 %v1814
      %1880 = vmatprep.subr.mxu0 0.0
      %1881 = vmatpush1.xpose.msra.mxu0 %v1816
      %1882 = vmatprep.subr.mxu0 0.0
      %1883 = vmatpush1.xpose.msra.mxu0 %v1818
      %1884 = vmatprep.subr.mxu0 0.0
      %1885 = vmatpush1.xpose.msra.mxu0 %v1820
      %1886 = vmatprep.subr.mxu0 0.0
      %1887 = vmatpush1.xpose.msra.mxu0 %v1822
      %1888 = vmatprep.subr.mxu0 0.0
      %1889 = vmatpush1.xpose.msra.mxu0 %v1824
      %1890 = vmatprep.subr.mxu0 0.0
      %1891 = vmatpush1.xpose.msra.mxu0 %v1826
      %1892 = vmatprep.subr.mxu0 0.0
      %1893 = vmatpush1.xpose.msra.mxu0 %v1828
      %1894 = vmatprep.subr.mxu0 0.0
      %1895 = vmatpush1.xpose.msra.mxu0 %v1830
      %1896 = vmatprep.subr.mxu0 0.0
      %1897 = vmatpush1.xpose.msra.mxu0 %v1832
      %1898 = vmatprep.subr.mxu0 0.0
      %1899 = vmatpush1.xpose.msra.mxu0 %v1834
      %1900 = vmatprep.subr.mxu0 0.0
      %1901 = vmatpush1.xpose.msra.mxu0 %v1836
      %1902 = vmatprep.subr.mxu0 0.0
      %1903 = vmatpush1.xpose.msra.mxu0 %v1838
      %1904 = vmatprep.subr.mxu0 0.0
      %1905 = vmatpush1.xpose.msra.mxu0 %v1840
      %1906 = vmatprep.subr.mxu0 0.0
      %1907 = vmatpush1.xpose.msra.mxu0 %v1842
      %1908 = vmatprep.subr.mxu0 0.0
      %1909 = vmatpush1.xpose.msra.mxu0 %v1844
      %1910 = vmatprep.subr.mxu0 0.0
      %1911 = vmatpush1.xpose.msra.mxu0 %v1846
      %1912 = vmatprep.subr.mxu0 0.0
      %1913 = vmatpush1.xpose.msra.mxu0 %v1848
      %1914 = vmatprep.subr.mxu0 0.0
      %1915 = vmatpush1.xpose.msra.mxu0 %v1850
      %1916 = vmatprep.subr.mxu0 0.0
      %1917 = vmatpush1.xpose.msra.mxu0 %v1852
      %1918 = vmatprep.subr.mxu0 0.0
      %1919 = vmatpush1.xpose.msra.mxu0 %v1854
      %1920 = vmatprep.subr.mxu0 0.0
      %1921 = vmatpush1.xpose.msra.mxu0 %v1856
      %1922 = vmatprep.subr.mxu0 0.0
      %1923 = vmatpush1.xpose.msra.mxu0 %v1858
      %1924 = vmatprep.subr.mxu0 0.0
      %1925 = vmatpush1.xpose.msra.mxu0 %v1860
      %1926 = vmatprep.subr.mxu0 0.0
      %1927 = vmatpush1.xpose.msra.mxu0 %v1862
      %1928 = vmatprep.subr.mxu0 0.0
      %1929 = vmatpush1.xpose.msra.mxu0 %v1864
      %1930 = vmatprep.mubr.f32.mxu0 0.0
      %1931 = vmatmul.mubr.f32.gmra.mrb[0].mxu0 %v1800
      %v1932 = vpop.f32.mrb[0].mxu0
      %v1933 = vadd.f32 0.0, %v1932
      %v1934 = vpop.f32.mrb[0].mxu0
      %v1935 = vadd.f32 0.0, %v1934
      %1936 = vdwg.mxu0
      %1937 = vrot.lane.b32.xlu0 %v890, 112
      %v1938 = vpop.permute.xlu0 %1937
      %1939 = vrot.lane.b32.xlu0 %v1069, 112
      %v1940 = vpop.permute.xlu0 %1939
      %1941 = vrot.lane.b32.xlu0 %v1074, 112
      %v1942 = vpop.permute.xlu0 %1941
      %1943 = vrot.lane.b32.xlu0 %v1079, 112
      %v1944 = vpop.permute.xlu0 %1943
      %1945 = vrot.lane.b32.xlu0 %v1084, 112
      %v1946 = vpop.permute.xlu0 %1945
      %1947 = vrot.lane.b32.xlu0 %v1089, 112
      %v1948 = vpop.permute.xlu0 %1947
      %1949 = vrot.lane.b32.xlu0 %v1094, 112
      %v1950 = vpop.permute.xlu0 %1949
      %1951 = vrot.lane.b32.xlu0 %v1099, 112
      %v1952 = vpop.permute.xlu0 %1951
      %1953 = vrot.lane.b32.xlu0 %v1104, 112
      %v1954 = vpop.permute.xlu0 %1953
      %1955 = vrot.lane.b32.xlu0 %v1109, 112
      %v1956 = vpop.permute.xlu0 %1955
      %1957 = vrot.lane.b32.xlu0 %v1114, 112
      %v1958 = vpop.permute.xlu0 %1957
      %1959 = vrot.lane.b32.xlu0 %v1119, 112
      %v1960 = vpop.permute.xlu0 %1959
      %1961 = vrot.lane.b32.xlu0 %v1124, 112
      %v1962 = vpop.permute.xlu0 %1961
      %1963 = vrot.lane.b32.xlu0 %v1129, 112
      %v1964 = vpop.permute.xlu0 %1963
      %1965 = vrot.lane.b32.xlu0 %v1134, 112
      %v1966 = vpop.permute.xlu0 %1965
      %1967 = vrot.lane.b32.xlu0 %v1139, 112
      %v1968 = vpop.permute.xlu0 %1967
      %1969 = vrot.lane.b32.xlu0 %v1144, 112
      %v1970 = vpop.permute.xlu0 %1969
      %1971 = vrot.lane.b32.xlu0 %v1149, 112
      %v1972 = vpop.permute.xlu0 %1971
      %1973 = vrot.lane.b32.xlu0 %v1154, 112
      %v1974 = vpop.permute.xlu0 %1973
      %1975 = vrot.lane.b32.xlu0 %v1159, 112
      %v1976 = vpop.permute.xlu0 %1975
      %1977 = vrot.lane.b32.xlu0 %v1164, 112
      %v1978 = vpop.permute.xlu0 %1977
      %1979 = vrot.lane.b32.xlu0 %v1169, 112
      %v1980 = vpop.permute.xlu0 %1979
      %1981 = vrot.lane.b32.xlu0 %v1174, 112
      %v1982 = vpop.permute.xlu0 %1981
      %1983 = vrot.lane.b32.xlu0 %v1179, 112
      %v1984 = vpop.permute.xlu0 %1983
      %1985 = vrot.lane.b32.xlu0 %v1184, 112
      %v1986 = vpop.permute.xlu0 %1985
      %1987 = vrot.lane.b32.xlu0 %v1189, 112
      %v1988 = vpop.permute.xlu0 %1987
      %1989 = vrot.lane.b32.xlu0 %v1194, 112
      %v1990 = vpop.permute.xlu0 %1989
      %1991 = vrot.lane.b32.xlu0 %v1199, 112
      %v1992 = vpop.permute.xlu0 %1991
      %1993 = vrot.lane.b32.xlu0 %v1204, 112
      %v1994 = vpop.permute.xlu0 %1993
      %1995 = vrot.lane.b32.xlu0 %v1209, 112
      %v1996 = vpop.permute.xlu0 %1995
      %1997 = vrot.lane.b32.xlu0 %v1214, 112
      %v1998 = vpop.permute.xlu0 %1997
      %1999 = vrot.lane.b32.xlu0 %v1219, 112
      %v2000 = vpop.permute.xlu0 %1999
      %2001 = vrot.lane.b32.xlu0 %v1224, 112
      %v2002 = vpop.permute.xlu0 %2001
      %v2003 = vsel %vm1563, %v1938, 0
      %v2005 = vsel %vm1563, %v1940, 0
      %v2007 = vsel %vm1563, %v1942, 0
      %v2009 = vsel %vm1563, %v1944, 0
      %v2011 = vsel %vm1563, %v1946, 0
      %v2013 = vsel %vm1563, %v1948, 0
      %v2015 = vsel %vm1563, %v1950, 0
      %v2017 = vsel %vm1563, %v1952, 0
      %v2019 = vsel %vm1563, %v1954, 0
      %v2021 = vsel %vm1563, %v1956, 0
      %v2023 = vsel %vm1563, %v1958, 0
      %v2025 = vsel %vm1563, %v1960, 0
      %v2027 = vsel %vm1563, %v1962, 0
      %v2029 = vsel %vm1563, %v1964, 0
      %v2031 = vsel %vm1563, %v1966, 0
      %v2033 = vsel %vm1563, %v1968, 0
      %v2035 = vsel %vm1563, %v1970, 0
      %v2037 = vsel %vm1563, %v1972, 0
      %v2039 = vsel %vm1563, %v1974, 0
      %v2041 = vsel %vm1563, %v1976, 0
      %v2043 = vsel %vm1563, %v1978, 0
      %v2045 = vsel %vm1563, %v1980, 0
      %v2047 = vsel %vm1563, %v1982, 0
      %v2049 = vsel %vm1563, %v1984, 0
      %v2051 = vsel %vm1563, %v1986, 0
      %v2053 = vsel %vm1563, %v1988, 0
      %v2055 = vsel %vm1563, %v1990, 0
      %v2057 = vsel %vm1563, %v1992, 0
      %v2059 = vsel %vm1563, %v1994, 0
      %v2061 = vsel %vm1563, %v1996, 0
      %v2063 = vsel %vm1563, %v1998, 0
      %v2065 = vsel %vm1563, %v2000, 0
      %v2067 = vsel %vm1563, %v2002, 0
      %2069 = vmatprep.subr.mxu0 0.0
      %2070 = vmatpush1.xpose.msra.mxu0 %v2005
      %2071 = vmatprep.subr.mxu0 0.0
      %2072 = vmatpush1.xpose.msra.mxu0 %v2007
      %2073 = vmatprep.subr.mxu0 0.0
      %2074 = vmatpush1.xpose.msra.mxu0 %v2009
      %2075 = vmatprep.subr.mxu0 0.0
      %2076 = vmatpush1.xpose.msra.mxu0 %v2011
      %2077 = vmatprep.subr.mxu0 0.0
      %2078 = vmatpush1.xpose.msra.mxu0 %v2013
      %2079 = vmatprep.subr.mxu0 0.0
      %2080 = vmatpush1.xpose.msra.mxu0 %v2015
      %2081 = vmatprep.subr.mxu0 0.0
      %2082 = vmatpush1.xpose.msra.mxu0 %v2017
      %2083 = vmatprep.subr.mxu0 0.0
      %2084 = vmatpush1.xpose.msra.mxu0 %v2019
      %2085 = vmatprep.subr.mxu0 0.0
      %2086 = vmatpush1.xpose.msra.mxu0 %v2021
      %2087 = vmatprep.subr.mxu0 0.0
      %2088 = vmatpush1.xpose.msra.mxu0 %v2023
      %2089 = vmatprep.subr.mxu0 0.0
      %2090 = vmatpush1.xpose.msra.mxu0 %v2025
      %2091 = vmatprep.subr.mxu0 0.0
      %2092 = vmatpush1.xpose.msra.mxu0 %v2027
      %2093 = vmatprep.subr.mxu0 0.0
      %2094 = vmatpush1.xpose.msra.mxu0 %v2029
      %2095 = vmatprep.subr.mxu0 0.0
      %2096 = vmatpush1.xpose.msra.mxu0 %v2031
      %2097 = vmatprep.subr.mxu0 0.0
      %2098 = vmatpush1.xpose.msra.mxu0 %v2033
      %2099 = vmatprep.subr.mxu0 0.0
      %2100 = vmatpush1.xpose.msra.mxu0 %v2035
      %2101 = vmatprep.subr.mxu0 0.0
      %2102 = vmatpush1.xpose.msra.mxu0 %v2037
      %2103 = vmatprep.subr.mxu0 0.0
      %2104 = vmatpush1.xpose.msra.mxu0 %v2039
      %2105 = vmatprep.subr.mxu0 0.0
      %2106 = vmatpush1.xpose.msra.mxu0 %v2041
      %2107 = vmatprep.subr.mxu0 0.0
      %2108 = vmatpush1.xpose.msra.mxu0 %v2043
      %2109 = vmatprep.subr.mxu0 0.0
      %2110 = vmatpush1.xpose.msra.mxu0 %v2045
      %2111 = vmatprep.subr.mxu0 0.0
      %2112 = vmatpush1.xpose.msra.mxu0 %v2047
      %2113 = vmatprep.subr.mxu0 0.0
      %2114 = vmatpush1.xpose.msra.mxu0 %v2049
      %2115 = vmatprep.subr.mxu0 0.0
      %2116 = vmatpush1.xpose.msra.mxu0 %v2051
      %2117 = vmatprep.subr.mxu0 0.0
      %2118 = vmatpush1.xpose.msra.mxu0 %v2053
      %2119 = vmatprep.subr.mxu0 0.0
      %2120 = vmatpush1.xpose.msra.mxu0 %v2055
      %2121 = vmatprep.subr.mxu0 0.0
      %2122 = vmatpush1.xpose.msra.mxu0 %v2057
      %2123 = vmatprep.subr.mxu0 0.0
      %2124 = vmatpush1.xpose.msra.mxu0 %v2059
      %2125 = vmatprep.subr.mxu0 0.0
      %2126 = vmatpush1.xpose.msra.mxu0 %v2061
      %2127 = vmatprep.subr.mxu0 0.0
      %2128 = vmatpush1.xpose.msra.mxu0 %v2063
      %2129 = vmatprep.subr.mxu0 0.0
      %2130 = vmatpush1.xpose.msra.mxu0 %v2065
      %2131 = vmatprep.subr.mxu0 0.0
      %2132 = vmatpush1.xpose.msra.mxu0 %v2067
      %2133 = vmatprep.mubr.f32.mxu0 0.0
      %2134 = vmatmul.mubr.f32.gmra.mrb[0].mxu0 %v2003
      %v2135 = vpop.f32.mrb[0].mxu0
      %v2136 = vadd.f32 0.0, %v2135
      %v2137 = vpop.f32.mrb[0].mxu0
      %v2138 = vadd.f32 0.0, %v2137
      %2139 = vdwg.mxu0
      %2140 = vrot.lane.b32.xlu0 %v890, 104
      %v2141 = vpop.permute.xlu0 %2140
      %2142 = vrot.lane.b32.xlu0 %v1069, 104
      %v2143 = vpop.permute.xlu0 %2142
      %2144 = vrot.lane.b32.xlu0 %v1074, 104
      %v2145 = vpop.permute.xlu0 %2144
      %2146 = vrot.lane.b32.xlu0 %v1079, 104
      %v2147 = vpop.permute.xlu0 %2146
      %2148 = vrot.lane.b32.xlu0 %v1084, 104
      %v2149 = vpop.permute.xlu0 %2148
      %2150 = vrot.lane.b32.xlu0 %v1089, 104
      %v2151 = vpop.permute.xlu0 %2150
      %2152 = vrot.lane.b32.xlu0 %v1094, 104
      %v2153 = vpop.permute.xlu0 %2152
      %2154 = vrot.lane.b32.xlu0 %v1099, 104
      %v2155 = vpop.permute.xlu0 %2154
      %2156 = vrot.lane.b32.xlu0 %v1104, 104
      %v2157 = vpop.permute.xlu0 %2156
      %2158 = vrot.lane.b32.xlu0 %v1109, 104
      %v2159 = vpop.permute.xlu0 %2158
      %2160 = vrot.lane.b32.xlu0 %v1114, 104
      %v2161 = vpop.permute.xlu0 %2160
      %2162 = vrot.lane.b32.xlu0 %v1119, 104
      %v2163 = vpop.permute.xlu0 %2162
      %2164 = vrot.lane.b32.xlu0 %v1124, 104
      %v2165 = vpop.permute.xlu0 %2164
      %2166 = vrot.lane.b32.xlu0 %v1129, 104
      %v2167 = vpop.permute.xlu0 %2166
      %2168 = vrot.lane.b32.xlu0 %v1134, 104
      %v2169 = vpop.permute.xlu0 %2168
      %2170 = vrot.lane.b32.xlu0 %v1139, 104
      %v2171 = vpop.permute.xlu0 %2170
      %2172 = vrot.lane.b32.xlu0 %v1144, 104
      %v2173 = vpop.permute.xlu0 %2172
      %2174 = vrot.lane.b32.xlu0 %v1149, 104
      %v2175 = vpop.permute.xlu0 %2174
      %2176 = vrot.lane.b32.xlu0 %v1154, 104
      %v2177 = vpop.permute.xlu0 %2176
      %2178 = vrot.lane.b32.xlu0 %v1159, 104
      %v2179 = vpop.permute.xlu0 %2178
      %2180 = vrot.lane.b32.xlu0 %v1164, 104
      %v2181 = vpop.permute.xlu0 %2180
      %2182 = vrot.lane.b32.xlu0 %v1169, 104
      %v2183 = vpop.permute.xlu0 %2182
      %2184 = vrot.lane.b32.xlu0 %v1174, 104
      %v2185 = vpop.permute.xlu0 %2184
      %2186 = vrot.lane.b32.xlu0 %v1179, 104
      %v2187 = vpop.permute.xlu0 %2186
      %2188 = vrot.lane.b32.xlu0 %v1184, 104
      %v2189 = vpop.permute.xlu0 %2188
      %2190 = vrot.lane.b32.xlu0 %v1189, 104
      %v2191 = vpop.permute.xlu0 %2190
      %2192 = vrot.lane.b32.xlu0 %v1194, 104
      %v2193 = vpop.permute.xlu0 %2192
      %2194 = vrot.lane.b32.xlu0 %v1199, 104
      %v2195 = vpop.permute.xlu0 %2194
      %2196 = vrot.lane.b32.xlu0 %v1204, 104
      %v2197 = vpop.permute.xlu0 %2196
      %2198 = vrot.lane.b32.xlu0 %v1209, 104
      %v2199 = vpop.permute.xlu0 %2198
      %2200 = vrot.lane.b32.xlu0 %v1214, 104
      %v2201 = vpop.permute.xlu0 %2200
      %2202 = vrot.lane.b32.xlu0 %v1219, 104
      %v2203 = vpop.permute.xlu0 %2202
      %2204 = vrot.lane.b32.xlu0 %v1224, 104
      %v2205 = vpop.permute.xlu0 %2204
      %v2206 = vsel %vm1563, %v2141, 0
      %v2208 = vsel %vm1563, %v2143, 0
      %v2210 = vsel %vm1563, %v2145, 0
      %v2212 = vsel %vm1563, %v2147, 0
      %v2214 = vsel %vm1563, %v2149, 0
      %v2216 = vsel %vm1563, %v2151, 0
      %v2218 = vsel %vm1563, %v2153, 0
      %v2220 = vsel %vm1563, %v2155, 0
      %v2222 = vsel %vm1563, %v2157, 0
      %v2224 = vsel %vm1563, %v2159, 0
      %v2226 = vsel %vm1563, %v2161, 0
      %v2228 = vsel %vm1563, %v2163, 0
      %v2230 = vsel %vm1563, %v2165, 0
      %v2232 = vsel %vm1563, %v2167, 0
      %v2234 = vsel %vm1563, %v2169, 0
      %v2236 = vsel %vm1563, %v2171, 0
      %v2238 = vsel %vm1563, %v2173, 0
      %v2240 = vsel %vm1563, %v2175, 0
      %v2242 = vsel %vm1563, %v2177, 0
      %v2244 = vsel %vm1563, %v2179, 0
      %v2246 = vsel %vm1563, %v2181, 0
      %v2248 = vsel %vm1563, %v2183, 0
      %v2250 = vsel %vm1563, %v2185, 0
      %v2252 = vsel %vm1563, %v2187, 0
      %v2254 = vsel %vm1563, %v2189, 0
      %v2256 = vsel %vm1563, %v2191, 0
      %v2258 = vsel %vm1563, %v2193, 0
      %v2260 = vsel %vm1563, %v2195, 0
      %v2262 = vsel %vm1563, %v2197, 0
      %v2264 = vsel %vm1563, %v2199, 0
      %v2266 = vsel %vm1563, %v2201, 0
      %v2268 = vsel %vm1563, %v2203, 0
      %v2270 = vsel %vm1563, %v2205, 0
      %2272 = vmatprep.subr.mxu0 0.0
      %2273 = vmatpush1.xpose.msra.mxu0 %v2208
      %2274 = vmatprep.subr.mxu0 0.0
      %2275 = vmatpush1.xpose.msra.mxu0 %v2210
      %2276 = vmatprep.subr.mxu0 0.0
      %2277 = vmatpush1.xpose.msra.mxu0 %v2212
      %2278 = vmatprep.subr.mxu0 0.0
      %2279 = vmatpush1.xpose.msra.mxu0 %v2214
      %2280 = vmatprep.subr.mxu0 0.0
      %2281 = vmatpush1.xpose.msra.mxu0 %v2216
      %2282 = vmatprep.subr.mxu0 0.0
      %2283 = vmatpush1.xpose.msra.mxu0 %v2218
      %2284 = vmatprep.subr.mxu0 0.0
      %2285 = vmatpush1.xpose.msra.mxu0 %v2220
      %2286 = vmatprep.subr.mxu0 0.0
      %2287 = vmatpush1.xpose.msra.mxu0 %v2222
      %2288 = vmatprep.subr.mxu0 0.0
      %2289 = vmatpush1.xpose.msra.mxu0 %v2224
      %2290 = vmatprep.subr.mxu0 0.0
      %2291 = vmatpush1.xpose.msra.mxu0 %v2226
      %2292 = vmatprep.subr.mxu0 0.0
      %2293 = vmatpush1.xpose.msra.mxu0 %v2228
      %2294 = vmatprep.subr.mxu0 0.0
      %2295 = vmatpush1.xpose.msra.mxu0 %v2230
      %2296 = vmatprep.subr.mxu0 0.0
      %2297 = vmatpush1.xpose.msra.mxu0 %v2232
      %2298 = vmatprep.subr.mxu0 0.0
      %2299 = vmatpush1.xpose.msra.mxu0 %v2234
      %2300 = vmatprep.subr.mxu0 0.0
      %2301 = vmatpush1.xpose.msra.mxu0 %v2236
      %2302 = vmatprep.subr.mxu0 0.0
      %2303 = vmatpush1.xpose.msra.mxu0 %v2238
      %2304 = vmatprep.subr.mxu0 0.0
      %2305 = vmatpush1.xpose.msra.mxu0 %v2240
      %2306 = vmatprep.subr.mxu0 0.0
      %2307 = vmatpush1.xpose.msra.mxu0 %v2242
      %2308 = vmatprep.subr.mxu0 0.0
      %2309 = vmatpush1.xpose.msra.mxu0 %v2244
      %2310 = vmatprep.subr.mxu0 0.0
      %2311 = vmatpush1.xpose.msra.mxu0 %v2246
      %2312 = vmatprep.subr.mxu0 0.0
      %2313 = vmatpush1.xpose.msra.mxu0 %v2248
      %2314 = vmatprep.subr.mxu0 0.0
      %2315 = vmatpush1.xpose.msra.mxu0 %v2250
      %2316 = vmatprep.subr.mxu0 0.0
      %2317 = vmatpush1.xpose.msra.mxu0 %v2252
      %2318 = vmatprep.subr.mxu0 0.0
      %2319 = vmatpush1.xpose.msra.mxu0 %v2254
      %2320 = vmatprep.subr.mxu0 0.0
      %2321 = vmatpush1.xpose.msra.mxu0 %v2256
      %2322 = vmatprep.subr.mxu0 0.0
      %2323 = vmatpush1.xpose.msra.mxu0 %v2258
      %2324 = vmatprep.subr.mxu0 0.0
      %2325 = vmatpush1.xpose.msra.mxu0 %v2260
      %2326 = vmatprep.subr.mxu0 0.0
      %2327 = vmatpush1.xpose.msra.mxu0 %v2262
      %2328 = vmatprep.subr.mxu0 0.0
      %2329 = vmatpush1.xpose.msra.mxu0 %v2264
      %2330 = vmatprep.subr.mxu0 0.0
      %2331 = vmatpush1.xpose.msra.mxu0 %v2266
      %2332 = vmatprep.subr.mxu0 0.0
      %2333 = vmatpush1.xpose.msra.mxu0 %v2268
      %2334 = vmatprep.subr.mxu0 0.0
      %2335 = vmatpush1.xpose.msra.mxu0 %v2270
      %2336 = vmatprep.mubr.f32.mxu0 0.0
      %2337 = vmatmul.mubr.f32.gmra.mrb[0].mxu0 %v2206
      %v2338 = vpop.f32.mrb[0].mxu0
      %v2339 = vadd.f32 0.0, %v2338
      %v2340 = vpop.f32.mrb[0].mxu0
      %v2341 = vadd.f32 0.0, %v2340
      %2342 = vdwg.mxu0
      %v2343 = vmax.f32 %v1730, %v1732
      %2344 = vmax.xlane.f32.xlu0 %v2343
      %v2345 = vpop.xlane.xlu0 %2344
      %v2346 = vmax.f32 %v1933, %v1935
      %2347 = vmax.xlane.f32.xlu0 %v2346
      %v2348 = vpop.xlane.xlu0 %2347
      %v2349 = vmax.f32 %v2136, %v2138
      %2350 = vmax.xlane.f32.xlu0 %v2349
      %v2351 = vpop.xlane.xlu0 %2350
      %v2352 = vmax.f32 %v2339, %v2341
      %2353 = vmax.xlane.f32.xlu0 %v2352
      %v2354 = vpop.xlane.xlu0 %2353
      %v2355 = vsub.f32 %v1730, %v2345
      %v2356 = vsub.f32 %v1732, %v2345
      %v2357 = vsub.f32 %v1933, %v2348
      %v2358 = vsub.f32 %v1935, %v2348
      %v2359 = vsub.f32 %v2136, %v2351
      %v2360 = vsub.f32 %v2138, %v2351
      %v2361 = vsub.f32 %v2339, %v2354
      %v2362 = vsub.f32 %v2341, %v2354
      %v2363 = vmul.f32 %v2355, 1.442695
      %v2364 = vpow.pop %v2363
      %v2365 = vmul.f32 %v2356, 1.442695
      %v2366 = vpow.pop %v2365
      %v2367 = vmul.f32 %v2357, 1.442695
      %v2368 = vpow.pop %v2367
      %v2369 = vmul.f32 %v2358, 1.442695
      %v2370 = vpow.pop %v2369
      %v2371 = vmul.f32 %v2359, 1.442695
      %v2372 = vpow.pop %v2371
      %v2373 = vmul.f32 %v2360, 1.442695
      %v2374 = vpow.pop %v2373
      %v2375 = vmul.f32 %v2361, 1.442695
      %v2376 = vpow.pop %v2375
      %v2377 = vmul.f32 %v2362, 1.442695
      %v2378 = vpow.pop %v2377
      %v2379 = vadd.f32 %v2364, %v2366
      %2380 = vadd.xlane.f32.xlu0 %v2379
      %v2381 = vpop.xlane.xlu0 %2380
      %v2382 = vadd.f32 %v2368, %v2370
      %2383 = vadd.xlane.f32.xlu0 %v2382
      %v2384 = vpop.xlane.xlu0 %2383
      %v2385 = vadd.f32 %v2372, %v2374
      %2386 = vadd.xlane.f32.xlu0 %v2385
      %v2387 = vpop.xlane.xlu0 %2386
      %v2388 = vadd.f32 %v2376, %v2378
      %2389 = vadd.xlane.f32.xlu0 %v2388
      %v2390 = vpop.xlane.xlu0 %2389
      %v2391 = vrcp.pop %v2381
      %v2392 = vrcp.pop %v2384
      %v2393 = vrcp.pop %v2387
      %v2394 = vrcp.pop %v2390
      %v2395 = vmul.f32 %v2364, %v2391
      %v2396 = vmul.f32 %v2366, %v2391
      %v2397 = vmul.f32 %v2368, %v2392
      %v2398 = vmul.f32 %v2370, %v2392
      %v2399 = vmul.f32 %v2372, %v2393
      %v2400 = vmul.f32 %v2374, %v2393
      %v2401 = vmul.f32 %v2376, %v2394
      %v2402 = vmul.f32 %v2378, %v2394
      %2403 = vmatprep.subr.mxu0 0.0
      %2404 = vmatpush1.msra.mxu0 %v1405
      %2405 = vmatprep.subr.mxu0 0.0
      %2406 = vmatpush1.msra.mxu0 %v1410
      %2407 = vmatprep.subr.mxu0 0.0
      %2408 = vmatpush1.msra.mxu0 %v1415
      %2409 = vmatprep.subr.mxu0 0.0
      %2410 = vmatpush1.msra.mxu0 %v1420
      %2411 = vmatprep.subr.mxu0 0.0
      %2412 = vmatpush1.msra.mxu0 %v1425
      %2413 = vmatprep.subr.mxu0 0.0
      %2414 = vmatpush1.msra.mxu0 %v1430
      %2415 = vmatprep.subr.mxu0 0.0
      %2416 = vmatpush1.msra.mxu0 %v1435
      %2417 = vmatprep.subr.mxu0 0.0
      %2418 = vmatpush1.msra.mxu0 %v1440
      %2419 = vmatprep.subr.mxu0 0.0
      %2420 = vmatpush1.msra.mxu0 %v1445
      %2421 = vmatprep.subr.mxu0 0.0
      %2422 = vmatpush1.msra.mxu0 %v1450
      %2423 = vmatprep.subr.mxu0 0.0
      %2424 = vmatpush1.msra.mxu0 %v1455
      %2425 = vmatprep.subr.mxu0 0.0
      %2426 = vmatpush1.msra.mxu0 %v1460
      %2427 = vmatprep.subr.mxu0 0.0
      %2428 = vmatpush1.msra.mxu0 %v1465
      %2429 = vmatprep.subr.mxu0 0.0
      %2430 = vmatpush1.msra.mxu0 %v1470
      %2431 = vmatprep.subr.mxu0 0.0
      %2432 = vmatpush1.msra.mxu0 %v1475
      %2433 = vmatprep.subr.mxu0 0.0
      %2434 = vmatpush1.msra.mxu0 %v1480
      %2435 = vmatprep.subr.mxu0 0.0
      %2436 = vmatpush1.msra.mxu0 %v1485
      %2437 = vmatprep.subr.mxu0 0.0
      %2438 = vmatpush1.msra.mxu0 %v1490
      %2439 = vmatprep.subr.mxu0 0.0
      %2440 = vmatpush1.msra.mxu0 %v1495
      %2441 = vmatprep.subr.mxu0 0.0
      %2442 = vmatpush1.msra.mxu0 %v1500
      %2443 = vmatprep.subr.mxu0 0.0
      %2444 = vmatpush1.msra.mxu0 %v1505
      %2445 = vmatprep.subr.mxu0 0.0
      %2446 = vmatpush1.msra.mxu0 %v1510
      %2447 = vmatprep.subr.mxu0 0.0
      %2448 = vmatpush1.msra.mxu0 %v1515
      %2449 = vmatprep.subr.mxu0 0.0
      %2450 = vmatpush1.msra.mxu0 %v1520
      %2451 = vmatprep.subr.mxu0 0.0
      %2452 = vmatpush1.msra.mxu0 %v1525
      %2453 = vmatprep.subr.mxu0 0.0
      %2454 = vmatpush1.msra.mxu0 %v1530
      %2455 = vmatprep.subr.mxu0 0.0
      %2456 = vmatpush1.msra.mxu0 %v1535
      %2457 = vmatprep.subr.mxu0 0.0
      %2458 = vmatpush1.msra.mxu0 %v1540
      %2459 = vmatprep.subr.mxu0 0.0
      %2460 = vmatpush1.msra.mxu0 %v1545
      %2461 = vmatprep.subr.mxu0 0.0
      %2462 = vmatpush1.msra.mxu0 %v1550
      %2463 = vmatprep.subr.mxu0 0.0
      %2464 = vmatpush1.msra.mxu0 %v1555
      %2465 = vmatprep.subr.mxu0 0.0
      %2466 = vmatpush1.msra.mxu0 %v1560
      %2467 = vmatprep.mubr.f32.mxu0 %v2396
      %2468 = vmatmul.mubr.f32.gmra.mrb[0].mxu0 %v2395
      %v2469 = vpop.f32.mrb[0].mxu0
      %v2470 = vadd.f32 0.0, %v2469
      %v2471 = vpop.f32.mrb[0].mxu0
      %2472 = vdwg.mxu0
      %2505 = vrot.lane.b32.xlu0 %v1405, 120
      %v2506 = vpop.permute.xlu0 %2505
      %2507 = vrot.lane.b32.xlu0 %v1410, 120
      %v2508 = vpop.permute.xlu0 %2507
      %2509 = vrot.lane.b32.xlu0 %v1415, 120
      %v2510 = vpop.permute.xlu0 %2509
      %2511 = vrot.lane.b32.xlu0 %v1420, 120
      %v2512 = vpop.permute.xlu0 %2511
      %2513 = vrot.lane.b32.xlu0 %v1425, 120
      %v2514 = vpop.permute.xlu0 %2513
      %2515 = vrot.lane.b32.xlu0 %v1430, 120
      %v2516 = vpop.permute.xlu0 %2515
      %2517 = vrot.lane.b32.xlu0 %v1435, 120
      %v2518 = vpop.permute.xlu0 %2517
      %2519 = vrot.lane.b32.xlu0 %v1440, 120
      %v2520 = vpop.permute.xlu0 %2519
      %2521 = vrot.lane.b32.xlu0 %v1445, 120
      %v2522 = vpop.permute.xlu0 %2521
      %2523 = vrot.lane.b32.xlu0 %v1450, 120
      %v2524 = vpop.permute.xlu0 %2523
      %2525 = vrot.lane.b32.xlu0 %v1455, 120
      %v2526 = vpop.permute.xlu0 %2525
      %2527 = vrot.lane.b32.xlu0 %v1460, 120
      %v2528 = vpop.permute.xlu0 %2527
      %2529 = vrot.lane.b32.xlu0 %v1465, 120
      %v2530 = vpop.permute.xlu0 %2529
      %2531 = vrot.lane.b32.xlu0 %v1470, 120
      %v2532 = vpop.permute.xlu0 %2531
      %2533 = vrot.lane.b32.xlu0 %v1475, 120
      %v2534 = vpop.permute.xlu0 %2533
      %2535 = vrot.lane.b32.xlu0 %v1480, 120
      %v2536 = vpop.permute.xlu0 %2535
      %2537 = vrot.lane.b32.xlu0 %v1485, 120
      %v2538 = vpop.permute.xlu0 %2537
      %2539 = vrot.lane.b32.xlu0 %v1490, 120
      %v2540 = vpop.permute.xlu0 %2539
      %2541 = vrot.lane.b32.xlu0 %v1495, 120
      %v2542 = vpop.permute.xlu0 %2541
      %2543 = vrot.lane.b32.xlu0 %v1500, 120
      %v2544 = vpop.permute.xlu0 %2543
      %2545 = vrot.lane.b32.xlu0 %v1505, 120
      %v2546 = vpop.permute.xlu0 %2545
      %2547 = vrot.lane.b32.xlu0 %v1510, 120
      %v2548 = vpop.permute.xlu0 %2547
      %2549 = vrot.lane.b32.xlu0 %v1515, 120
      %v2550 = vpop.permute.xlu0 %2549
      %2551 = vrot.lane.b32.xlu0 %v1520, 120
      %v2552 = vpop.permute.xlu0 %2551
      %2553 = vrot.lane.b32.xlu0 %v1525, 120
      %v2554 = vpop.permute.xlu0 %2553
      %2555 = vrot.lane.b32.xlu0 %v1530, 120
      %v2556 = vpop.permute.xlu0 %2555
      %2557 = vrot.lane.b32.xlu0 %v1535, 120
      %v2558 = vpop.permute.xlu0 %2557
      %2559 = vrot.lane.b32.xlu0 %v1540, 120
      %v2560 = vpop.permute.xlu0 %2559
      %2561 = vrot.lane.b32.xlu0 %v1545, 120
      %v2562 = vpop.permute.xlu0 %2561
      %2563 = vrot.lane.b32.xlu0 %v1550, 120
      %v2564 = vpop.permute.xlu0 %2563
      %2565 = vrot.lane.b32.xlu0 %v1555, 120
      %v2566 = vpop.permute.xlu0 %2565
      %2567 = vrot.lane.b32.xlu0 %v1560, 120
      %v2568 = vpop.permute.xlu0 %2567
      %2601 = vmatprep.subr.mxu0 0.0
      %2602 = vmatpush1.msra.mxu0 %v2506
      %2603 = vmatprep.subr.mxu0 0.0
      %2604 = vmatpush1.msra.mxu0 %v2508
      %2605 = vmatprep.subr.mxu0 0.0
      %2606 = vmatpush1.msra.mxu0 %v2510
      %2607 = vmatprep.subr.mxu0 0.0
      %2608 = vmatpush1.msra.mxu0 %v2512
      %2609 = vmatprep.subr.mxu0 0.0
      %2610 = vmatpush1.msra.mxu0 %v2514
      %2611 = vmatprep.subr.mxu0 0.0
      %2612 = vmatpush1.msra.mxu0 %v2516
      %2613 = vmatprep.subr.mxu0 0.0
      %2614 = vmatpush1.msra.mxu0 %v2518
      %2615 = vmatprep.subr.mxu0 0.0
      %2616 = vmatpush1.msra.mxu0 %v2520
      %2617 = vmatprep.subr.mxu0 0.0
      %2618 = vmatpush1.msra.mxu0 %v2522
      %2619 = vmatprep.subr.mxu0 0.0
      %2620 = vmatpush1.msra.mxu0 %v2524
      %2621 = vmatprep.subr.mxu0 0.0
      %2622 = vmatpush1.msra.mxu0 %v2526
      %2623 = vmatprep.subr.mxu0 0.0
      %2624 = vmatpush1.msra.mxu0 %v2528
      %2625 = vmatprep.subr.mxu0 0.0
      %2626 = vmatpush1.msra.mxu0 %v2530
      %2627 = vmatprep.subr.mxu0 0.0
      %2628 = vmatpush1.msra.mxu0 %v2532
      %2629 = vmatprep.subr.mxu0 0.0
      %2630 = vmatpush1.msra.mxu0 %v2534
      %2631 = vmatprep.subr.mxu0 0.0
      %2632 = vmatpush1.msra.mxu0 %v2536
      %2633 = vmatprep.subr.mxu0 0.0
      %2634 = vmatpush1.msra.mxu0 %v2538
      %2635 = vmatprep.subr.mxu0 0.0
      %2636 = vmatpush1.msra.mxu0 %v2540
      %2637 = vmatprep.subr.mxu0 0.0
      %2638 = vmatpush1.msra.mxu0 %v2542
      %2639 = vmatprep.subr.mxu0 0.0
      %2640 = vmatpush1.msra.mxu0 %v2544
      %2641 = vmatprep.subr.mxu0 0.0
      %2642 = vmatpush1.msra.mxu0 %v2546
      %2643 = vmatprep.subr.mxu0 0.0
      %2644 = vmatpush1.msra.mxu0 %v2548
      %2645 = vmatprep.subr.mxu0 0.0
      %2646 = vmatpush1.msra.mxu0 %v2550
      %2647 = vmatprep.subr.mxu0 0.0
      %2648 = vmatpush1.msra.mxu0 %v2552
      %2649 = vmatprep.subr.mxu0 0.0
      %2650 = vmatpush1.msra.mxu0 %v2554
      %2651 = vmatprep.subr.mxu0 0.0
      %2652 = vmatpush1.msra.mxu0 %v2556
      %2653 = vmatprep.subr.mxu0 0.0
      %2654 = vmatpush1.msra.mxu0 %v2558
      %2655 = vmatprep.subr.mxu0 0.0
      %2656 = vmatpush1.msra.mxu0 %v2560
      %2657 = vmatprep.subr.mxu0 0.0
      %2658 = vmatpush1.msra.mxu0 %v2562
      %2659 = vmatprep.subr.mxu0 0.0
      %2660 = vmatpush1.msra.mxu0 %v2564
      %2661 = vmatprep.subr.mxu0 0.0
      %2662 = vmatpush1.msra.mxu0 %v2566
      %2663 = vmatprep.subr.mxu0 0.0
      %2664 = vmatpush1.msra.mxu0 %v2568
      %2665 = vmatprep.mubr.f32.mxu0 %v2398
      %2666 = vmatmul.mubr.f32.gmra.mrb[0].mxu0 %v2397
      %v2667 = vpop.f32.mrb[0].mxu0
      %v2668 = vadd.f32 0.0, %v2667
      %v2669 = vpop.f32.mrb[0].mxu0
      %2670 = vdwg.mxu0
      %2671 = vrot.lane.b32.xlu0 %v1405, 112
      %v2672 = vpop.permute.xlu0 %2671
      %2673 = vrot.lane.b32.xlu0 %v1410, 112
      %v2674 = vpop.permute.xlu0 %2673
      %2675 = vrot.lane.b32.xlu0 %v1415, 112
      %v2676 = vpop.permute.xlu0 %2675
      %2677 = vrot.lane.b32.xlu0 %v1420, 112
      %v2678 = vpop.permute.xlu0 %2677
      %2679 = vrot.lane.b32.xlu0 %v1425, 112
      %v2680 = vpop.permute.xlu0 %2679
      %2681 = vrot.lane.b32.xlu0 %v1430, 112
      %v2682 = vpop.permute.xlu0 %2681
      %2683 = vrot.lane.b32.xlu0 %v1435, 112
      %v2684 = vpop.permute.xlu0 %2683
      %2685 = vrot.lane.b32.xlu0 %v1440, 112
      %v2686 = vpop.permute.xlu0 %2685
      %2687 = vrot.lane.b32.xlu0 %v1445, 112
      %v2688 = vpop.permute.xlu0 %2687
      %2689 = vrot.lane.b32.xlu0 %v1450, 112
      %v2690 = vpop.permute.xlu0 %2689
      %2691 = vrot.lane.b32.xlu0 %v1455, 112
      %v2692 = vpop.permute.xlu0 %2691
      %2693 = vrot.lane.b32.xlu0 %v1460, 112
      %v2694 = vpop.permute.xlu0 %2693
      %2695 = vrot.lane.b32.xlu0 %v1465, 112
      %v2696 = vpop.permute.xlu0 %2695
      %2697 = vrot.lane.b32.xlu0 %v1470, 112
      %v2698 = vpop.permute.xlu0 %2697
      %2699 = vrot.lane.b32.xlu0 %v1475, 112
      %v2700 = vpop.permute.xlu0 %2699
      %2701 = vrot.lane.b32.xlu0 %v1480, 112
      %v2702 = vpop.permute.xlu0 %2701
      %2703 = vrot.lane.b32.xlu0 %v1485, 112
      %v2704 = vpop.permute.xlu0 %2703
      %2705 = vrot.lane.b32.xlu0 %v1490, 112
      %v2706 = vpop.permute.xlu0 %2705
      %2707 = vrot.lane.b32.xlu0 %v1495, 112
      %v2708 = vpop.permute.xlu0 %2707
      %2709 = vrot.lane.b32.xlu0 %v1500, 112
      %v2710 = vpop.permute.xlu0 %2709
      %2711 = vrot.lane.b32.xlu0 %v1505, 112
      %v2712 = vpop.permute.xlu0 %2711
      %2713 = vrot.lane.b32.xlu0 %v1510, 112
      %v2714 = vpop.permute.xlu0 %2713
      %2715 = vrot.lane.b32.xlu0 %v1515, 112
      %v2716 = vpop.permute.xlu0 %2715
      %2717 = vrot.lane.b32.xlu0 %v1520, 112
      %v2718 = vpop.permute.xlu0 %2717
      %2719 = vrot.lane.b32.xlu0 %v1525, 112
      %v2720 = vpop.permute.xlu0 %2719
      %2721 = vrot.lane.b32.xlu0 %v1530, 112
      %v2722 = vpop.permute.xlu0 %2721
      %2723 = vrot.lane.b32.xlu0 %v1535, 112
      %v2724 = vpop.permute.xlu0 %2723
      %2725 = vrot.lane.b32.xlu0 %v1540, 112
      %v2726 = vpop.permute.xlu0 %2725
      %2727 = vrot.lane.b32.xlu0 %v1545, 112
      %v2728 = vpop.permute.xlu0 %2727
      %2729 = vrot.lane.b32.xlu0 %v1550, 112
      %v2730 = vpop.permute.xlu0 %2729
      %2731 = vrot.lane.b32.xlu0 %v1555, 112
      %v2732 = vpop.permute.xlu0 %2731
      %2733 = vrot.lane.b32.xlu0 %v1560, 112
      %v2734 = vpop.permute.xlu0 %2733
      %2767 = vmatprep.subr.mxu0 0.0
      %2768 = vmatpush1.msra.mxu0 %v2672
      %2769 = vmatprep.subr.mxu0 0.0
      %2770 = vmatpush1.msra.mxu0 %v2674
      %2771 = vmatprep.subr.mxu0 0.0
      %2772 = vmatpush1.msra.mxu0 %v2676
      %2773 = vmatprep.subr.mxu0 0.0
      %2774 = vmatpush1.msra.mxu0 %v2678
      %2775 = vmatprep.subr.mxu0 0.0
      %2776 = vmatpush1.msra.mxu0 %v2680
      %2777 = vmatprep.subr.mxu0 0.0
      %2778 = vmatpush1.msra.mxu0 %v2682
      %2779 = vmatprep.subr.mxu0 0.0
      %2780 = vmatpush1.msra.mxu0 %v2684
      %2781 = vmatprep.subr.mxu0 0.0
      %2782 = vmatpush1.msra.mxu0 %v2686
      %2783 = vmatprep.subr.mxu0 0.0
      %2784 = vmatpush1.msra.mxu0 %v2688
      %2785 = vmatprep.subr.mxu0 0.0
      %2786 = vmatpush1.msra.mxu0 %v2690
      %2787 = vmatprep.subr.mxu0 0.0
      %2788 = vmatpush1.msra.mxu0 %v2692
      %2789 = vmatprep.subr.mxu0 0.0
      %2790 = vmatpush1.msra.mxu0 %v2694
      %2791 = vmatprep.subr.mxu0 0.0
      %2792 = vmatpush1.msra.mxu0 %v2696
      %2793 = vmatprep.subr.mxu0 0.0
      %2794 = vmatpush1.msra.mxu0 %v2698
      %2795 = vmatprep.subr.mxu0 0.0
      %2796 = vmatpush1.msra.mxu0 %v2700
      %2797 = vmatprep.subr.mxu0 0.0
      %2798 = vmatpush1.msra.mxu0 %v2702
      %2799 = vmatprep.subr.mxu0 0.0
      %2800 = vmatpush1.msra.mxu0 %v2704
      %2801 = vmatprep.subr.mxu0 0.0
      %2802 = vmatpush1.msra.mxu0 %v2706
      %2803 = vmatprep.subr.mxu0 0.0
      %2804 = vmatpush1.msra.mxu0 %v2708
      %2805 = vmatprep.subr.mxu0 0.0
      %2806 = vmatpush1.msra.mxu0 %v2710
      %2807 = vmatprep.subr.mxu0 0.0
      %2808 = vmatpush1.msra.mxu0 %v2712
      %2809 = vmatprep.subr.mxu0 0.0
      %2810 = vmatpush1.msra.mxu0 %v2714
      %2811 = vmatprep.subr.mxu0 0.0
      %2812 = vmatpush1.msra.mxu0 %v2716
      %2813 = vmatprep.subr.mxu0 0.0
      %2814 = vmatpush1.msra.mxu0 %v2718
      %2815 = vmatprep.subr.mxu0 0.0
      %2816 = vmatpush1.msra.mxu0 %v2720
      %2817 = vmatprep.subr.mxu0 0.0
      %2818 = vmatpush1.msra.mxu0 %v2722
      %2819 = vmatprep.subr.mxu0 0.0
      %2820 = vmatpush1.msra.mxu0 %v2724
      %2821 = vmatprep.subr.mxu0 0.0
      %2822 = vmatpush1.msra.mxu0 %v2726
      %2823 = vmatprep.subr.mxu0 0.0
      %2824 = vmatpush1.msra.mxu0 %v2728
      %2825 = vmatprep.subr.mxu0 0.0
      %2826 = vmatpush1.msra.mxu0 %v2730
      %2827 = vmatprep.subr.mxu0 0.0
      %2828 = vmatpush1.msra.mxu0 %v2732
      %2829 = vmatprep.subr.mxu0 0.0
      %2830 = vmatpush1.msra.mxu0 %v2734
      %2831 = vmatprep.mubr.f32.mxu0 %v2400
      %2832 = vmatmul.mubr.f32.gmra.mrb[0].mxu0 %v2399
      %v2833 = vpop.f32.mrb[0].mxu0
      %v2834 = vadd.f32 0.0, %v2833
      %v2835 = vpop.f32.mrb[0].mxu0
      %2836 = vdwg.mxu0
      %2837 = vrot.lane.b32.xlu0 %v1405, 104
      %v2838 = vpop.permute.xlu0 %2837
      %2839 = vrot.lane.b32.xlu0 %v1410, 104
      %v2840 = vpop.permute.xlu0 %2839
      %2841 = vrot.lane.b32.xlu0 %v1415, 104
      %v2842 = vpop.permute.xlu0 %2841
      %2843 = vrot.lane.b32.xlu0 %v1420, 104
      %v2844 = vpop.permute.xlu0 %2843
      %2845 = vrot.lane.b32.xlu0 %v1425, 104
      %v2846 = vpop.permute.xlu0 %2845
      %2847 = vrot.lane.b32.xlu0 %v1430, 104
      %v2848 = vpop.permute.xlu0 %2847
      %2849 = vrot.lane.b32.xlu0 %v1435, 104
      %v2850 = vpop.permute.xlu0 %2849
      %2851 = vrot.lane.b32.xlu0 %v1440, 104
      %v2852 = vpop.permute.xlu0 %2851
      %2853 = vrot.lane.b32.xlu0 %v1445, 104
      %v2854 = vpop.permute.xlu0 %2853
      %2855 = vrot.lane.b32.xlu0 %v1450, 104
      %v2856 = vpop.permute.xlu0 %2855
      %2857 = vrot.lane.b32.xlu0 %v1455, 104
      %v2858 = vpop.permute.xlu0 %2857
      %2859 = vrot.lane.b32.xlu0 %v1460, 104
      %v2860 = vpop.permute.xlu0 %2859
      %2861 = vrot.lane.b32.xlu0 %v1465, 104
      %v2862 = vpop.permute.xlu0 %2861
      %2863 = vrot.lane.b32.xlu0 %v1470, 104
      %v2864 = vpop.permute.xlu0 %2863
      %2865 = vrot.lane.b32.xlu0 %v1475, 104
      %v2866 = vpop.permute.xlu0 %2865
      %2867 = vrot.lane.b32.xlu0 %v1480, 104
      %v2868 = vpop.permute.xlu0 %2867
      %2869 = vrot.lane.b32.xlu0 %v1485, 104
      %v2870 = vpop.permute.xlu0 %2869
      %2871 = vrot.lane.b32.xlu0 %v1490, 104
      %v2872 = vpop.permute.xlu0 %2871
      %2873 = vrot.lane.b32.xlu0 %v1495, 104
      %v2874 = vpop.permute.xlu0 %2873
      %2875 = vrot.lane.b32.xlu0 %v1500, 104
      %v2876 = vpop.permute.xlu0 %2875
      %2877 = vrot.lane.b32.xlu0 %v1505, 104
      %v2878 = vpop.permute.xlu0 %2877
      %2879 = vrot.lane.b32.xlu0 %v1510, 104
      %v2880 = vpop.permute.xlu0 %2879
      %2881 = vrot.lane.b32.xlu0 %v1515, 104
      %v2882 = vpop.permute.xlu0 %2881
      %2883 = vrot.lane.b32.xlu0 %v1520, 104
      %v2884 = vpop.permute.xlu0 %2883
      %2885 = vrot.lane.b32.xlu0 %v1525, 104
      %v2886 = vpop.permute.xlu0 %2885
      %2887 = vrot.lane.b32.xlu0 %v1530, 104
      %v2888 = vpop.permute.xlu0 %2887
      %2889 = vrot.lane.b32.xlu0 %v1535, 104
      %v2890 = vpop.permute.xlu0 %2889
      %2891 = vrot.lane.b32.xlu0 %v1540, 104
      %v2892 = vpop.permute.xlu0 %2891
      %2893 = vrot.lane.b32.xlu0 %v1545, 104
      %v2894 = vpop.permute.xlu0 %2893
      %2895 = vrot.lane.b32.xlu0 %v1550, 104
      %v2896 = vpop.permute.xlu0 %2895
      %2897 = vrot.lane.b32.xlu0 %v1555, 104
      %v2898 = vpop.permute.xlu0 %2897
      %2899 = vrot.lane.b32.xlu0 %v1560, 104
      %v2900 = vpop.permute.xlu0 %2899
      %2933 = vmatprep.subr.mxu0 0.0
      %2934 = vmatpush1.msra.mxu0 %v2838
      %2935 = vmatprep.subr.mxu0 0.0
      %2936 = vmatpush1.msra.mxu0 %v2840
      %2937 = vmatprep.subr.mxu0 0.0
      %2938 = vmatpush1.msra.mxu0 %v2842
      %2939 = vmatprep.subr.mxu0 0.0
      %2940 = vmatpush1.msra.mxu0 %v2844
      %2941 = vmatprep.subr.mxu0 0.0
      %2942 = vmatpush1.msra.mxu0 %v2846
      %2943 = vmatprep.subr.mxu0 0.0
      %2944 = vmatpush1.msra.mxu0 %v2848
      %2945 = vmatprep.subr.mxu0 0.0
      %2946 = vmatpush1.msra.mxu0 %v2850
      %2947 = vmatprep.subr.mxu0 0.0
      %2948 = vmatpush1.msra.mxu0 %v2852
      %2949 = vmatprep.subr.mxu0 0.0
      %2950 = vmatpush1.msra.mxu0 %v2854
      %2951 = vmatprep.subr.mxu0 0.0
      %2952 = vmatpush1.msra.mxu0 %v2856
      %2953 = vmatprep.subr.mxu0 0.0
      %2954 = vmatpush1.msra.mxu0 %v2858
      %2955 = vmatprep.subr.mxu0 0.0
      %2956 = vmatpush1.msra.mxu0 %v2860
      %2957 = vmatprep.subr.mxu0 0.0
      %2958 = vmatpush1.msra.mxu0 %v2862
      %2959 = vmatprep.subr.mxu0 0.0
      %2960 = vmatpush1.msra.mxu0 %v2864
      %2961 = vmatprep.subr.mxu0 0.0
      %2962 = vmatpush1.msra.mxu0 %v2866
      %2963 = vmatprep.subr.mxu0 0.0
      %2964 = vmatpush1.msra.mxu0 %v2868
      %2965 = vmatprep.subr.mxu0 0.0
      %2966 = vmatpush1.msra.mxu0 %v2870
      %2967 = vmatprep.subr.mxu0 0.0
      %2968 = vmatpush1.msra.mxu0 %v2872
      %2969 = vmatprep.subr.mxu0 0.0
      %2970 = vmatpush1.msra.mxu0 %v2874
      %2971 = vmatprep.subr.mxu0 0.0
      %2972 = vmatpush1.msra.mxu0 %v2876
      %2973 = vmatprep.subr.mxu0 0.0
      %2974 = vmatpush1.msra.mxu0 %v2878
      %2975 = vmatprep.subr.mxu0 0.0
      %2976 = vmatpush1.msra.mxu0 %v2880
      %2977 = vmatprep.subr.mxu0 0.0
      %2978 = vmatpush1.msra.mxu0 %v2882
      %2979 = vmatprep.subr.mxu0 0.0
      %2980 = vmatpush1.msra.mxu0 %v2884
      %2981 = vmatprep.subr.mxu0 0.0
      %2982 = vmatpush1.msra.mxu0 %v2886
      %2983 = vmatprep.subr.mxu0 0.0
      %2984 = vmatpush1.msra.mxu0 %v2888
      %2985 = vmatprep.subr.mxu0 0.0
      %2986 = vmatpush1.msra.mxu0 %v2890
      %2987 = vmatprep.subr.mxu0 0.0
      %2988 = vmatpush1.msra.mxu0 %v2892
      %2989 = vmatprep.subr.mxu0 0.0
      %2990 = vmatpush1.msra.mxu0 %v2894
      %2991 = vmatprep.subr.mxu0 0.0
      %2992 = vmatpush1.msra.mxu0 %v2896
      %2993 = vmatprep.subr.mxu0 0.0
      %2994 = vmatpush1.msra.mxu0 %v2898
      %2995 = vmatprep.subr.mxu0 0.0
      %2996 = vmatpush1.msra.mxu0 %v2900
      %2997 = vmatprep.mubr.f32.mxu0 %v2402
      %2998 = vmatmul.mubr.f32.gmra.mrb[0].mxu0 %v2401
      %v2999 = vpop.f32.mrb[0].mxu0
      %v3000 = vadd.f32 0.0, %v2999
      %v3001 = vpop.f32.mrb[0].mxu0
      %3002 = vdwg.mxu0
      %3004 = vrot.lane.b32.xlu0 %v2668, 8
      %v3005 = vpop.permute.xlu0 %3004
      %3008 = vrot.lane.b32.xlu0 %v2834, 16
      %v3009 = vpop.permute.xlu0 %3008
      %3012 = vrot.lane.b32.xlu0 %v3000, 24
      %v3013 = vpop.permute.xlu0 %3012
      %v3015 = vsel %vm1563, %v2470, %v3005
      %vm3016 = vcmask 130048
      %v3017 = vsel %vm3016, %v3015, %v3009
      %vm3018 = vcmask 195584
      %v3019 = vsel %vm3018, %v3017, %v3013
      %v3021 = vlaneseq
      %v3022 = vshrl.u32 %v3021, 7
      %v3023 = vsub.s32 0, %v3022
      %v3024 = vrot.slane %v798, %v3023
      %v3027 = vsel %vm656, %v3019, 0
      %v3030 = vsel %vm656, %v793, 0
      %v3033 = vsel %vm656, %v794, 0
      %v3036 = vsel %vm656, %v795, 0
      %v3039 = vsel %vm656, %v796, 0
      %3041 = vmatprep.subr.mxu0 0.0
      %3042 = vmatpush1.xpose.msra.mxu0 %v3030
      %3043 = vmatprep.subr.mxu0 0.0
      %3044 = vmatpush1.xpose.msra.mxu0 %v3033
      %3045 = vmatprep.subr.mxu0 0.0
      %3046 = vmatpush1.xpose.msra.mxu0 %v3036
      %3047 = vmatprep.subr.mxu0 0.0
      %3048 = vmatpush1.xpose.msra.mxu0 %v3039
      %3049 = vmatprep.subr.mxu0 0.0
      %3050 = vmatpush1.xpose.msra.mxu0 0.0
      %3051 = vmatprep.subr.mxu0 0.0
      %3052 = vmatpush1.xpose.msra.mxu0 0.0
      %3053 = vmatprep.subr.mxu0 0.0
      %3054 = vmatpush1.xpose.msra.mxu0 0.0
      %3055 = vmatprep.subr.mxu0 0.0
      %3056 = vmatpush1.xpose.msra.mxu0 0.0
      %3057 = vmatprep.subr.mxu0 0.0
      %3058 = vmatpush1.xpose.msra.mxu0 0.0
      %3059 = vmatprep.subr.mxu0 0.0
      %3060 = vmatpush1.xpose.msra.mxu0 0.0
      %3061 = vmatprep.subr.mxu0 0.0
      %3062 = vmatpush1.xpose.msra.mxu0 0.0
      %3063 = vmatprep.subr.mxu0 0.0
      %3064 = vmatpush1.xpose.msra.mxu0 0.0
      %3065 = vmatprep.subr.mxu0 0.0
      %3066 = vmatpush1.xpose.msra.mxu0 0.0
      %3067 = vmatprep.subr.mxu0 0.0
      %3068 = vmatpush1.xpose.msra.mxu0 0.0
      %3069 = vmatprep.subr.mxu0 0.0
      %3070 = vmatpush1.xpose.msra.mxu0 0.0
      %3071 = vmatprep.subr.mxu0 0.0
      %3072 = vmatpush1.xpose.msra.mxu0 0.0
      %3073 = vmatprep.subr.mxu0 0.0
      %3074 = vmatpush1.xpose.msra.mxu0 0.0
      %3075 = vmatprep.subr.mxu0 0.0
      %3076 = vmatpush1.xpose.msra.mxu0 0.0
      %3077 = vmatprep.subr.mxu0 0.0
      %3078 = vmatpush1.xpose.msra.mxu0 0.0
      %3079 = vmatprep.subr.mxu0 0.0
      %3080 = vmatpush1.xpose.msra.mxu0 0.0
      %3081 = vmatprep.subr.mxu0 0.0
      %3082 = vmatpush1.xpose.msra.mxu0 0.0
      %3083 = vmatprep.subr.mxu0 0.0
      %3084 = vmatpush1.xpose.msra.mxu0 0.0
      %3085 = vmatprep.subr.mxu0 0.0
      %3086 = vmatpush1.xpose.msra.mxu0 0.0
      %3087 = vmatprep.subr.mxu0 0.0
      %3088 = vmatpush1.xpose.msra.mxu0 0.0
      %3089 = vmatprep.subr.mxu0 0.0
      %3090 = vmatpush1.xpose.msra.mxu0 0.0
      %3091 = vmatprep.subr.mxu0 0.0
      %3092 = vmatpush1.xpose.msra.mxu0 0.0
      %3093 = vmatprep.subr.mxu0 0.0
      %3094 = vmatpush1.xpose.msra.mxu0 0.0
      %3095 = vmatprep.subr.mxu0 0.0
      %3096 = vmatpush1.xpose.msra.mxu0 0.0
      %3097 = vmatprep.subr.mxu0 0.0
      %3098 = vmatpush1.xpose.msra.mxu0 0.0
      %3099 = vmatprep.subr.mxu0 0.0
      %3100 = vmatpush1.xpose.msra.mxu0 0.0
      %3101 = vmatprep.subr.mxu0 0.0
      %3102 = vmatpush1.xpose.msra.mxu0 0.0
      %3103 = vmatprep.subr.mxu0 0.0
      %3104 = vmatpush1.xpose.msra.mxu0 0.0
      %3105 = vmatprep.mubr.f32.mxu0 0.0
      %3106 = vmatmul.mubr.f32.gmra.mrb[0].mxu0 %v3027
      %v3107 = vpop.f32.mrb[0].mxu0
      %v3108 = vadd.f32 %v3024, %v3107
      %v3109 = vpop.f32.mrb[0].mxu0
      %3110 = vdwg.mxu0
      %v3111 = vadd.f32 %v775, %v3108
      %s3112 = scalar_lea.vmem %s12, 1
      %v3113 = vld [vmem:[%s3112] sm:$0x1]
      %s3114 = scalar_lea.vmem %s13, 1
      %v3115 = vld [vmem:[%s3114] sm:$0x1]
      %v3116 = vsel %vm656, %v3111, 0.0
      %3117 = vadd.xlane.f32.xlu0 %v3116
      %v3118 = vpop.xlane.xlu0 %3117
      %v3119 = vmul.f32 %v3118, %v751
      %v3120 = vsub.f32 %v3111, %v3119
      %v3121 = vmul.f32 %v3120, %v3120
      %v3122 = vsel %vm656, %v3121, 0.0
      %3123 = vadd.xlane.f32.xlu0 %v3122
      %v3124 = vpop.xlane.xlu0 %3123
      %v3125 = vmul.f32 %v3124, %v751
      %v3126 = vadd.f32 %v3125, 1e-05
      %v3127 = vrsqrt.pop %v3126
      %v3128 = vmul.f32 %v3120, %v3127
      %v3130 = vlaneseq
      %v3131 = vshrl.u32 %v3130, 7
      %v3132 = vsub.s32 0, %v3131
      %v3133 = vrot.slane %v3113, %v3132
      %v3135 = vmul.f32 %v3128, %v3133
      %v3137 = vlaneseq
      %v3138 = vshrl.u32 %v3137, 7
      %v3139 = vsub.s32 0, %v3138
      %v3140 = vrot.slane %v3115, %v3139
      %v3142 = vadd.f32 %v3135, %v3140
      %v3143 = vld [vmem:[%s8] sm:$0xff]
      %v3144 = vld [vmem:[%s8 + $0x8] sm:$0xff]
      %v3145 = vld [vmem:[%s8 + $0x10] sm:$0xff]
      %v3146 = vld [vmem:[%s8 + $0x18] sm:$0xff]
      %v3147 = vld [vmem:[%s8 + $0x20] sm:$0xff]
      %v3148 = vld [vmem:[%s8 + $0x28] sm:$0xff]
      %v3149 = vld [vmem:[%s8 + $0x30] sm:$0xff]
      %v3150 = vld [vmem:[%s8 + $0x38] sm:$0xff]
      %v3151 = vld [vmem:[%s9] sm:$0x1]
      %v3153 = vlaneseq
      %v3154 = vshrl.u32 %v3153, 7
      %v3155 = vsub.s32 0, %v3154
      %v3156 = vrot.slane %v3151, %v3155
      %v3159 = vsel %vm656, %v3142, 0
      %v3162 = vsel %vm656, %v3143, 0
      %v3165 = vsel %vm656, %v3144, 0
      %v3168 = vsel %vm656, %v3145, 0
      %v3171 = vsel %vm656, %v3146, 0
      %v3174 = vsel %vm656, %v3147, 0
      %v3177 = vsel %vm656, %v3148, 0
      %v3180 = vsel %vm656, %v3149, 0
      %v3183 = vsel %vm656, %v3150, 0
      %3185 = vmatprep.subr.mxu0 0.0
      %3186 = vmatpush1.xpose.msra.mxu0 %v3162
      %3187 = vmatprep.subr.mxu0 0.0
      %3188 = vmatpush1.xpose.msra.mxu0 %v3165
      %3189 = vmatprep.subr.mxu0 0.0
      %3190 = vmatpush1.xpose.msra.mxu0 %v3168
      %3191 = vmatprep.subr.mxu0 0.0
      %3192 = vmatpush1.xpose.msra.mxu0 %v3171
      %3193 = vmatprep.subr.mxu0 0.0
      %3194 = vmatpush1.xpose.msra.mxu0 %v3174
      %3195 = vmatprep.subr.mxu0 0.0
      %3196 = vmatpush1.xpose.msra.mxu0 %v3177
      %3197 = vmatprep.subr.mxu0 0.0
      %3198 = vmatpush1.xpose.msra.mxu0 %v3180
      %3199 = vmatprep.subr.mxu0 0.0
      %3200 = vmatpush1.xpose.msra.mxu0 %v3183
      %3201 = vmatprep.subr.mxu0 0.0
      %3202 = vmatpush1.xpose.msra.mxu0 0.0
      %3203 = vmatprep.subr.mxu0 0.0
      %3204 = vmatpush1.xpose.msra.mxu0 0.0
      %3205 = vmatprep.subr.mxu0 0.0
      %3206 = vmatpush1.xpose.msra.mxu0 0.0
      %3207 = vmatprep.subr.mxu0 0.0
      %3208 = vmatpush1.xpose.msra.mxu0 0.0
      %3209 = vmatprep.subr.mxu0 0.0
      %3210 = vmatpush1.xpose.msra.mxu0 0.0
      %3211 = vmatprep.subr.mxu0 0.0
      %3212 = vmatpush1.xpose.msra.mxu0 0.0
      %3213 = vmatprep.subr.mxu0 0.0
      %3214 = vmatpush1.xpose.msra.mxu0 0.0
      %3215 = vmatprep.subr.mxu0 0.0
      %3216 = vmatpush1.xpose.msra.mxu0 0.0
      %3217 = vmatprep.subr.mxu0 0.0
      %3218 = vmatpush1.xpose.msra.mxu0 0.0
      %3219 = vmatprep.subr.mxu0 0.0
      %3220 = vmatpush1.xpose.msra.mxu0 0.0
      %3221 = vmatprep.subr.mxu0 0.0
      %3222 = vmatpush1.xpose.msra.mxu0 0.0
      %3223 = vmatprep.subr.mxu0 0.0
      %3224 = vmatpush1.xpose.msra.mxu0 0.0
      %3225 = vmatprep.subr.mxu0 0.0
      %3226 = vmatpush1.xpose.msra.mxu0 0.0
      %3227 = vmatprep.subr.mxu0 0.0
      %3228 = vmatpush1.xpose.msra.mxu0 0.0
      %3229 = vmatprep.subr.mxu0 0.0
      %3230 = vmatpush1.xpose.msra.mxu0 0.0
      %3231 = vmatprep.subr.mxu0 0.0
      %3232 = vmatpush1.xpose.msra.mxu0 0.0
      %3233 = vmatprep.subr.mxu0 0.0
      %3234 = vmatpush1.xpose.msra.mxu0 0.0
      %3235 = vmatprep.subr.mxu0 0.0
      %3236 = vmatpush1.xpose.msra.mxu0 0.0
      %3237 = vmatprep.subr.mxu0 0.0
      %3238 = vmatpush1.xpose.msra.mxu0 0.0
      %3239 = vmatprep.subr.mxu0 0.0
      %3240 = vmatpush1.xpose.msra.mxu0 0.0
      %3241 = vmatprep.subr.mxu0 0.0
      %3242 = vmatpush1.xpose.msra.mxu0 0.0
      %3243 = vmatprep.subr.mxu0 0.0
      %3244 = vmatpush1.xpose.msra.mxu0 0.0
      %3245 = vmatprep.subr.mxu0 0.0
      %3246 = vmatpush1.xpose.msra.mxu0 0.0
      %3247 = vmatprep.subr.mxu0 0.0
      %3248 = vmatpush1.xpose.msra.mxu0 0.0
      %3249 = vmatprep.mubr.f32.mxu0 0.0
      %3250 = vmatmul.mubr.f32.gmra.mrb[0].mxu0 %v3159
      %v3251 = vpop.f32.mrb[0].mxu0
      %v3252 = vadd.f32 %v3156, %v3251
      %v3253 = vpop.f32.mrb[0].mxu0
      %3254 = vdwg.mxu0
      %v3255 = vmax.f32 %v3252, 0.0
      %v3256 = vld [vmem:[%s10] sm:$0xff]
      %v3257 = vld [vmem:[%s10 + $0x8] sm:$0xff]
      %v3258 = vld [vmem:[%s10 + $0x10] sm:$0xff]
      %v3259 = vld [vmem:[%s10 + $0x18] sm:$0xff]
      %v3260 = vld [vmem:[%s11] sm:$0x1]
      %v3262 = vlaneseq
      %v3263 = vshrl.u32 %v3262, 7
      %v3264 = vsub.s32 0, %v3263
      %v3265 = vrot.slane %v3260, %v3264
      %vm3267 = vcmask 523264
      %v3269 = vsel %vm3267, %v3255, 0
      %v3272 = vsel %vm3267, %v3256, 0
      %v3275 = vsel %vm3267, %v3257, 0
      %v3278 = vsel %vm3267, %v3258, 0
      %v3281 = vsel %vm3267, %v3259, 0
      %3283 = vmatprep.subr.mxu0 0.0
      %3284 = vmatpush1.xpose.msra.mxu0 %v3272
      %3285 = vmatprep.subr.mxu0 0.0
      %3286 = vmatpush1.xpose.msra.mxu0 %v3275
      %3287 = vmatprep.subr.mxu0 0.0
      %3288 = vmatpush1.xpose.msra.mxu0 %v3278
      %3289 = vmatprep.subr.mxu0 0.0
      %3290 = vmatpush1.xpose.msra.mxu0 %v3281
      %3291 = vmatprep.subr.mxu0 0.0
      %3292 = vmatpush1.xpose.msra.mxu0 0.0
      %3293 = vmatprep.subr.mxu0 0.0
      %3294 = vmatpush1.xpose.msra.mxu0 0.0
      %3295 = vmatprep.subr.mxu0 0.0
      %3296 = vmatpush1.xpose.msra.mxu0 0.0
      %3297 = vmatprep.subr.mxu0 0.0
      %3298 = vmatpush1.xpose.msra.mxu0 0.0
      %3299 = vmatprep.subr.mxu0 0.0
      %3300 = vmatpush1.xpose.msra.mxu0 0.0
      %3301 = vmatprep.subr.mxu0 0.0
      %3302 = vmatpush1.xpose.msra.mxu0 0.0
      %3303 = vmatprep.subr.mxu0 0.0
      %3304 = vmatpush1.xpose.msra.mxu0 0.0
      %3305 = vmatprep.subr.mxu0 0.0
      %3306 = vmatpush1.xpose.msra.mxu0 0.0
      %3307 = vmatprep.subr.mxu0 0.0
      %3308 = vmatpush1.xpose.msra.mxu0 0.0
      %3309 = vmatprep.subr.mxu0 0.0
      %3310 = vmatpush1.xpose.msra.mxu0 0.0
      %3311 = vmatprep.subr.mxu0 0.0
      %3312 = vmatpush1.xpose.msra.mxu0 0.0
      %3313 = vmatprep.subr.mxu0 0.0
      %3314 = vmatpush1.xpose.msra.mxu0 0.0
      %3315 = vmatprep.subr.mxu0 0.0
      %3316 = vmatpush1.xpose.msra.mxu0 0.0
      %3317 = vmatprep.subr.mxu0 0.0
      %3318 = vmatpush1.xpose.msra.mxu0 0.0
      %3319 = vmatprep.subr.mxu0 0.0
      %3320 = vmatpush1.xpose.msra.mxu0 0.0
      %3321 = vmatprep.subr.mxu0 0.0
      %3322 = vmatpush1.xpose.msra.mxu0 0.0
      %3323 = vmatprep.subr.mxu0 0.0
      %3324 = vmatpush1.xpose.msra.mxu0 0.0
      %3325 = vmatprep.subr.mxu0 0.0
      %3326 = vmatpush1.xpose.msra.mxu0 0.0
      %3327 = vmatprep.subr.mxu0 0.0
      %3328 = vmatpush1.xpose.msra.mxu0 0.0
      %3329 = vmatprep.subr.mxu0 0.0
      %3330 = vmatpush1.xpose.msra.mxu0 0.0
      %3331 = vmatprep.subr.mxu0 0.0
      %3332 = vmatpush1.xpose.msra.mxu0 0.0
      %3333 = vmatprep.subr.mxu0 0.0
      %3334 = vmatpush1.xpose.msra.mxu0 0.0
      %3335 = vmatprep.subr.mxu0 0.0
      %3336 = vmatpush1.xpose.msra.mxu0 0.0
      %3337 = vmatprep.subr.mxu0 0.0
      %3338 = vmatpush1.xpose.msra.mxu0 0.0
      %3339 = vmatprep.subr.mxu0 0.0
      %3340 = vmatpush1.xpose.msra.mxu0 0.0
      %3341 = vmatprep.subr.mxu0 0.0
      %3342 = vmatpush1.xpose.msra.mxu0 0.0
      %3343 = vmatprep.subr.mxu0 0.0
      %3344 = vmatpush1.xpose.msra.mxu0 0.0
      %3345 = vmatprep.subr.mxu0 0.0
      %3346 = vmatpush1.xpose.msra.mxu0 0.0
      %3347 = vmatprep.mubr.f32.mxu0 0.0
      %3348 = vmatmul.mubr.f32.gmra.mrb[0].mxu0 %v3269
      %v3349 = vpop.f32.mrb[0].mxu0
      %v3350 = vadd.f32 %v3265, %v3349
      %v3351 = vpop.f32.mrb[0].mxu0
      %3352 = vdwg.mxu0
      %v3353 = vadd.f32 %v3142, %v3350
      %s3354 = scalar_lea.vmem %s12, 2
      %v3355 = vld [vmem:[%s3354] sm:$0x1]
      %s3356 = scalar_lea.vmem %s13, 2
      %v3357 = vld [vmem:[%s3356] sm:$0x1]
      %v3358 = vsel %vm656, %v3353, 0.0
      %3359 = vadd.xlane.f32.xlu0 %v3358
      %v3360 = vpop.xlane.xlu0 %3359
      %v3361 = vmul.f32 %v3360, %v751
      %v3362 = vsub.f32 %v3353, %v3361
      %v3363 = vmul.f32 %v3362, %v3362
      %v3364 = vsel %vm656, %v3363, 0.0
      %3365 = vadd.xlane.f32.xlu0 %v3364
      %v3366 = vpop.xlane.xlu0 %3365
      %v3367 = vmul.f32 %v3366, %v751
      %v3368 = vadd.f32 %v3367, 1e-05
      %v3369 = vrsqrt.pop %v3368
      %v3370 = vmul.f32 %v3362, %v3369
      %v3372 = vlaneseq
      %v3373 = vshrl.u32 %v3372, 7
      %v3374 = vsub.s32 0, %v3373
      %v3375 = vrot.slane %v3355, %v3374
      %v3377 = vmul.f32 %v3370, %v3375
      %v3379 = vlaneseq
      %v3380 = vshrl.u32 %v3379, 7
      %v3381 = vsub.s32 0, %v3380
      %v3382 = vrot.slane %v3357, %v3381
      %v3384 = vadd.f32 %v3377, %v3382
      %s3385 = scalar_lea.vmem %s4, 192
      %v3386 = vld [vmem:[%s3385] sm:$0xff]
      %v3387 = vld [vmem:[%s3385 + $0x8] sm:$0xff]
      %v3388 = vld [vmem:[%s3385 + $0x10] sm:$0xff]
      %v3389 = vld [vmem:[%s3385 + $0x18] sm:$0xff]
      %v3390 = vld [vmem:[%s3385 + $0x20] sm:$0xff]
      %v3391 = vld [vmem:[%s3385 + $0x28] sm:$0xff]
      %v3392 = vld [vmem:[%s3385 + $0x30] sm:$0xff]
      %v3393 = vld [vmem:[%s3385 + $0x38] sm:$0xff]
      %v3394 = vld [vmem:[%s3385 + $0x40] sm:$0xff]
      %v3395 = vld [vmem:[%s3385 + $0x48] sm:$0xff]
      %v3396 = vld [vmem:[%s3385 + $0x50] sm:$0xff]
      %v3397 = vld [vmem:[%s3385 + $0x58] sm:$0xff]
      %s3398 = scalar_lea.vmem %s5, 2
      %v3399 = vld [vmem:[%s3398] sm:$0x1]
      %s3400 = scalar_lea.vmem %s6, 64
      %v3401 = vld [vmem:[%s3400] sm:$0xff]
      %v3402 = vld [vmem:[%s3400 + $0x8] sm:$0xff]
      %v3403 = vld [vmem:[%s3400 + $0x10] sm:$0xff]
      %v3404 = vld [vmem:[%s3400 + $0x18] sm:$0xff]
      %s3405 = scalar_lea.vmem %s7, 2
      %v3406 = vld [vmem:[%s3405] sm:$0x1]
      %v3407 = vadd.f32 %v3384, %v574
      %v3409 = vlaneseq
      %v3410 = vshrl.u32 %v3409, 7
      %v3411 = vsub.s32 0, %v3410
      %v3412 = vrot.slane %v3399, %v3411
      %v3415 = vsel %vm656, %v3407, 0
      %v3418 = vsel %vm656, %v3386, 0
      %v3421 = vsel %vm656, %v3387, 0
      %v3424 = vsel %vm656, %v3388, 0
      %v3427 = vsel %vm656, %v3389, 0
      %v3430 = vsel %vm656, %v3390, 0
      %v3433 = vsel %vm656, %v3391, 0
      %v3436 = vsel %vm656, %v3392, 0
      %v3439 = vsel %vm656, %v3393, 0
      %3441 = vmatprep.subr.mxu0 0.0
      %3442 = vmatpush1.xpose.msra.mxu0 %v3418
      %3443 = vmatprep.subr.mxu0 0.0
      %3444 = vmatpush1.xpose.msra.mxu0 %v3421
      %3445 = vmatprep.subr.mxu0 0.0
      %3446 = vmatpush1.xpose.msra.mxu0 %v3424
      %3447 = vmatprep.subr.mxu0 0.0
      %3448 = vmatpush1.xpose.msra.mxu0 %v3427
      %3449 = vmatprep.subr.mxu0 0.0
      %3450 = vmatpush1.xpose.msra.mxu0 %v3430
      %3451 = vmatprep.subr.mxu0 0.0
      %3452 = vmatpush1.xpose.msra.mxu0 %v3433
      %3453 = vmatprep.subr.mxu0 0.0
      %3454 = vmatpush1.xpose.msra.mxu0 %v3436
      %3455 = vmatprep.subr.mxu0 0.0
      %3456 = vmatpush1.xpose.msra.mxu0 %v3439
      %3457 = vmatprep.subr.mxu0 0.0
      %3458 = vmatpush1.xpose.msra.mxu0 0.0
      %3459 = vmatprep.subr.mxu0 0.0
      %3460 = vmatpush1.xpose.msra.mxu0 0.0
      %3461 = vmatprep.subr.mxu0 0.0
      %3462 = vmatpush1.xpose.msra.mxu0 0.0
      %3463 = vmatprep.subr.mxu0 0.0
      %3464 = vmatpush1.xpose.msra.mxu0 0.0
      %3465 = vmatprep.subr.mxu0 0.0
      %3466 = vmatpush1.xpose.msra.mxu0 0.0
      %3467 = vmatprep.subr.mxu0 0.0
      %3468 = vmatpush1.xpose.msra.mxu0 0.0
      %3469 = vmatprep.subr.mxu0 0.0
      %3470 = vmatpush1.xpose.msra.mxu0 0.0
      %3471 = vmatprep.subr.mxu0 0.0
      %3472 = vmatpush1.xpose.msra.mxu0 0.0
      %3473 = vmatprep.subr.mxu0 0.0
      %3474 = vmatpush1.xpose.msra.mxu0 0.0
      %3475 = vmatprep.subr.mxu0 0.0
      %3476 = vmatpush1.xpose.msra.mxu0 0.0
      %3477 = vmatprep.subr.mxu0 0.0
      %3478 = vmatpush1.xpose.msra.mxu0 0.0
      %3479 = vmatprep.subr.mxu0 0.0
      %3480 = vmatpush1.xpose.msra.mxu0 0.0
      %3481 = vmatprep.subr.mxu0 0.0
      %3482 = vmatpush1.xpose.msra.mxu0 0.0
      %3483 = vmatprep.subr.mxu0 0.0
      %3484 = vmatpush1.xpose.msra.mxu0 0.0
      %3485 = vmatprep.subr.mxu0 0.0
      %3486 = vmatpush1.xpose.msra.mxu0 0.0
      %3487 = vmatprep.subr.mxu0 0.0
      %3488 = vmatpush1.xpose.msra.mxu0 0.0
      %3489 = vmatprep.subr.mxu0 0.0
      %3490 = vmatpush1.xpose.msra.mxu0 0.0
      %3491 = vmatprep.subr.mxu0 0.0
      %3492 = vmatpush1.xpose.msra.mxu0 0.0
      %3493 = vmatprep.subr.mxu0 0.0
      %3494 = vmatpush1.xpose.msra.mxu0 0.0
      %3495 = vmatprep.subr.mxu0 0.0
      %3496 = vmatpush1.xpose.msra.mxu0 0.0
      %3497 = vmatprep.subr.mxu0 0.0
      %3498 = vmatpush1.xpose.msra.mxu0 0.0
      %3499 = vmatprep.subr.mxu0 0.0
      %3500 = vmatpush1.xpose.msra.mxu0 0.0
      %3501 = vmatprep.subr.mxu0 0.0
      %3502 = vmatpush1.xpose.msra.mxu0 0.0
      %3503 = vmatprep.subr.mxu0 0.0
      %3504 = vmatpush1.xpose.msra.mxu0 0.0
      %3505 = vmatprep.mubr.f32.mxu0 0.0
      %3506 = vmatmul.mubr.f32.gmra.mrb[0].mxu0 %v3415
      %v3507 = vpop.f32.mrb[0].mxu0
      %v3508 = vadd.f32 %v3412, %v3507
      %v3509 = vpop.f32.mrb[0].mxu0
      %3510 = vdwg.mxu0
      %3511 = vrot.lane.b32.xlu0 %v3412, 64
      %v3512 = vpop.permute.xlu0 %3511
      %v3515 = vsel %vm656, %v3384, 0
      %v3518 = vsel %vm656, %v3394, 0
      %v3521 = vsel %vm656, %v3395, 0
      %v3524 = vsel %vm656, %v3396, 0
      %v3527 = vsel %vm656, %v3397, 0
      %3529 = vmatprep.subr.mxu0 0.0
      %3530 = vmatpush1.xpose.msra.mxu0 %v3518
      %3531 = vmatprep.subr.mxu0 0.0
      %3532 = vmatpush1.xpose.msra.mxu0 %v3521
      %3533 = vmatprep.subr.mxu0 0.0
      %3534 = vmatpush1.xpose.msra.mxu0 %v3524
      %3535 = vmatprep.subr.mxu0 0.0
      %3536 = vmatpush1.xpose.msra.mxu0 %v3527
      %3537 = vmatprep.subr.mxu0 0.0
      %3538 = vmatpush1.xpose.msra.mxu0 0.0
      %3539 = vmatprep.subr.mxu0 0.0
      %3540 = vmatpush1.xpose.msra.mxu0 0.0
      %3541 = vmatprep.subr.mxu0 0.0
      %3542 = vmatpush1.xpose.msra.mxu0 0.0
      %3543 = vmatprep.subr.mxu0 0.0
      %3544 = vmatpush1.xpose.msra.mxu0 0.0
      %3545 = vmatprep.subr.mxu0 0.0
      %3546 = vmatpush1.xpose.msra.mxu0 0.0
      %3547 = vmatprep.subr.mxu0 0.0
      %3548 = vmatpush1.xpose.msra.mxu0 0.0
      %3549 = vmatprep.subr.mxu0 0.0
      %3550 = vmatpush1.xpose.msra.mxu0 0.0
      %3551 = vmatprep.subr.mxu0 0.0
      %3552 = vmatpush1.xpose.msra.mxu0 0.0
      %3553 = vmatprep.subr.mxu0 0.0
      %3554 = vmatpush1.xpose.msra.mxu0 0.0
      %3555 = vmatprep.subr.mxu0 0.0
      %3556 = vmatpush1.xpose.msra.mxu0 0.0
      %3557 = vmatprep.subr.mxu0 0.0
      %3558 = vmatpush1.xpose.msra.mxu0 0.0
      %3559 = vmatprep.subr.mxu0 0.0
      %3560 = vmatpush1.xpose.msra.mxu0 0.0
      %3561 = vmatprep.subr.mxu0 0.0
      %3562 = vmatpush1.xpose.msra.mxu0 0.0
      %3563 = vmatprep.subr.mxu0 0.0
      %3564 = vmatpush1.xpose.msra.mxu0 0.0
      %3565 = vmatprep.subr.mxu0 0.0
      %3566 = vmatpush1.xpose.msra.mxu0 0.0
      %3567 = vmatprep.subr.mxu0 0.0
      %3568 = vmatpush1.xpose.msra.mxu0 0.0
      %3569 = vmatprep.subr.mxu0 0.0
      %3570 = vmatpush1.xpose.msra.mxu0 0.0
      %3571 = vmatprep.subr.mxu0 0.0
      %3572 = vmatpush1.xpose.msra.mxu0 0.0
      %3573 = vmatprep.subr.mxu0 0.0
      %3574 = vmatpush1.xpose.msra.mxu0 0.0
      %3575 = vmatprep.subr.mxu0 0.0
      %3576 = vmatpush1.xpose.msra.mxu0 0.0
      %3577 = vmatprep.subr.mxu0 0.0
      %3578 = vmatpush1.xpose.msra.mxu0 0.0
      %3579 = vmatprep.subr.mxu0 0.0
      %3580 = vmatpush1.xpose.msra.mxu0 0.0
      %3581 = vmatprep.subr.mxu0 0.0
      %3582 = vmatpush1.xpose.msra.mxu0 0.0
      %3583 = vmatprep.subr.mxu0 0.0
      %3584 = vmatpush1.xpose.msra.mxu0 0.0
      %3585 = vmatprep.subr.mxu0 0.0
      %3586 = vmatpush1.xpose.msra.mxu0 0.0
      %3587 = vmatprep.subr.mxu0 0.0
      %3588 = vmatpush1.xpose.msra.mxu0 0.0
      %3589 = vmatprep.subr.mxu0 0.0
      %3590 = vmatpush1.xpose.msra.mxu0 0.0
      %3591 = vmatprep.subr.mxu0 0.0
      %3592 = vmatpush1.xpose.msra.mxu0 0.0
      %3593 = vmatprep.mubr.f32.mxu0 0.0
      %3594 = vmatmul.mubr.f32.gmra.mrb[0].mxu0 %v3515
      %v3595 = vpop.f32.mrb[0].mxu0
      %v3596 = vadd.f32 %v3512, %v3595
      %v3597 = vpop.f32.mrb[0].mxu0
      %3598 = vdwg.mxu0
      %v3599 = vmul.f32 %v3508, 0.35355338
      %3601 = vrot.lane.b32.xlu0 %v3508, 96
      %v3602 = vpop.permute.xlu0 %3601
      %v3604 = vsel %vm1563, %v3599, 0
      %v3606 = vsel %vm1563, %v3602, 0
      %3608 = vmatprep.subr.mxu0 0.0
      %3609 = vmatpush1.xpose.msra.mxu0 %v3606
      %3610 = vmatprep.subr.mxu0 0.0
      %3611 = vmatpush1.xpose.msra.mxu0 0.0
      %3612 = vmatprep.subr.mxu0 0.0
      %3613 = vmatpush1.xpose.msra.mxu0 0.0
      %3614 = vmatprep.subr.mxu0 0.0
      %3615 = vmatpush1.xpose.msra.mxu0 0.0
      %3616 = vmatprep.subr.mxu0 0.0
      %3617 = vmatpush1.xpose.msra.mxu0 0.0
      %3618 = vmatprep.subr.mxu0 0.0
      %3619 = vmatpush1.xpose.msra.mxu0 0.0
      %3620 = vmatprep.subr.mxu0 0.0
      %3621 = vmatpush1.xpose.msra.mxu0 0.0
      %3622 = vmatprep.subr.mxu0 0.0
      %3623 = vmatpush1.xpose.msra.mxu0 0.0
      %3624 = vmatprep.subr.mxu0 0.0
      %3625 = vmatpush1.xpose.msra.mxu0 0.0
      %3626 = vmatprep.subr.mxu0 0.0
      %3627 = vmatpush1.xpose.msra.mxu0 0.0
      %3628 = vmatprep.subr.mxu0 0.0
      %3629 = vmatpush1.xpose.msra.mxu0 0.0
      %3630 = vmatprep.subr.mxu0 0.0
      %3631 = vmatpush1.xpose.msra.mxu0 0.0
      %3632 = vmatprep.subr.mxu0 0.0
      %3633 = vmatpush1.xpose.msra.mxu0 0.0
      %3634 = vmatprep.subr.mxu0 0.0
      %3635 = vmatpush1.xpose.msra.mxu0 0.0
      %3636 = vmatprep.subr.mxu0 0.0
      %3637 = vmatpush1.xpose.msra.mxu0 0.0
      %3638 = vmatprep.subr.mxu0 0.0
      %3639 = vmatpush1.xpose.msra.mxu0 0.0
      %3640 = vmatprep.subr.mxu0 0.0
      %3641 = vmatpush1.xpose.msra.mxu0 0.0
      %3642 = vmatprep.subr.mxu0 0.0
      %3643 = vmatpush1.xpose.msra.mxu0 0.0
      %3644 = vmatprep.subr.mxu0 0.0
      %3645 = vmatpush1.xpose.msra.mxu0 0.0
      %3646 = vmatprep.subr.mxu0 0.0
      %3647 = vmatpush1.xpose.msra.mxu0 0.0
      %3648 = vmatprep.subr.mxu0 0.0
      %3649 = vmatpush1.xpose.msra.mxu0 0.0
      %3650 = vmatprep.subr.mxu0 0.0
      %3651 = vmatpush1.xpose.msra.mxu0 0.0
      %3652 = vmatprep.subr.mxu0 0.0
      %3653 = vmatpush1.xpose.msra.mxu0 0.0
      %3654 = vmatprep.subr.mxu0 0.0
      %3655 = vmatpush1.xpose.msra.mxu0 0.0
      %3656 = vmatprep.subr.mxu0 0.0
      %3657 = vmatpush1.xpose.msra.mxu0 0.0
      %3658 = vmatprep.subr.mxu0 0.0
      %3659 = vmatpush1.xpose.msra.mxu0 0.0
      %3660 = vmatprep.subr.mxu0 0.0
      %3661 = vmatpush1.xpose.msra.mxu0 0.0
      %3662 = vmatprep.subr.mxu0 0.0
      %3663 = vmatpush1.xpose.msra.mxu0 0.0
      %3664 = vmatprep.subr.mxu0 0.0
      %3665 = vmatpush1.xpose.msra.mxu0 0.0
      %3666 = vmatprep.subr.mxu0 0.0
      %3667 = vmatpush1.xpose.msra.mxu0 0.0
      %3668 = vmatprep.subr.mxu0 0.0
      %3669 = vmatpush1.xpose.msra.mxu0 0.0
      %3670 = vmatprep.subr.mxu0 0.0
      %3671 = vmatpush1.xpose.msra.mxu0 0.0
      %3672 = vmatprep.mubr.f32.mxu0 0.0
      %3673 = vmatmul.mubr.f32.gmra.mrb[0].mxu0 %v3604
      %v3674 = vpop.f32.mrb[0].mxu0
      %v3675 = vadd.f32 0.0, %v3674
      %v3676 = vpop.f32.mrb[0].mxu0
      %3677 = vdwg.mxu0
      %3678 = vrot.lane.b32.xlu0 %v3599, 120
      %v3679 = vpop.permute.xlu0 %3678
      %3680 = vrot.lane.b32.xlu0 %v3508, 88
      %v3681 = vpop.permute.xlu0 %3680
      %v3682 = vsel %vm1563, %v3679, 0
      %v3684 = vsel %vm1563, %v3681, 0
      %3686 = vmatprep.subr.mxu0 0.0
      %3687 = vmatpush1.xpose.msra.mxu0 %v3684
      %3688 = vmatprep.subr.mxu0 0.0
      %3689 = vmatpush1.xpose.msra.mxu0 0.0
      %3690 = vmatprep.subr.mxu0 0.0
      %3691 = vmatpush1.xpose.msra.mxu0 0.0
      %3692 = vmatprep.subr.mxu0 0.0
      %3693 = vmatpush1.xpose.msra.mxu0 0.0
      %3694 = vmatprep.subr.mxu0 0.0
      %3695 = vmatpush1.xpose.msra.mxu0 0.0
      %3696 = vmatprep.subr.mxu0 0.0
      %3697 = vmatpush1.xpose.msra.mxu0 0.0
      %3698 = vmatprep.subr.mxu0 0.0
      %3699 = vmatpush1.xpose.msra.mxu0 0.0
      %3700 = vmatprep.subr.mxu0 0.0
      %3701 = vmatpush1.xpose.msra.mxu0 0.0
      %3702 = vmatprep.subr.mxu0 0.0
      %3703 = vmatpush1.xpose.msra.mxu0 0.0
      %3704 = vmatprep.subr.mxu0 0.0
      %3705 = vmatpush1.xpose.msra.mxu0 0.0
      %3706 = vmatprep.subr.mxu0 0.0
      %3707 = vmatpush1.xpose.msra.mxu0 0.0
      %3708 = vmatprep.subr.mxu0 0.0
      %3709 = vmatpush1.xpose.msra.mxu0 0.0
      %3710 = vmatprep.subr.mxu0 0.0
      %3711 = vmatpush1.xpose.msra.mxu0 0.0
      %3712 = vmatprep.subr.mxu0 0.0
      %3713 = vmatpush1.xpose.msra.mxu0 0.0
      %3714 = vmatprep.subr.mxu0 0.0
      %3715 = vmatpush1.xpose.msra.mxu0 0.0
      %3716 = vmatprep.subr.mxu0 0.0
      %3717 = vmatpush1.xpose.msra.mxu0 0.0
      %3718 = vmatprep.subr.mxu0 0.0
      %3719 = vmatpush1.xpose.msra.mxu0 0.0
      %3720 = vmatprep.subr.mxu0 0.0
      %3721 = vmatpush1.xpose.msra.mxu0 0.0
      %3722 = vmatprep.subr.mxu0 0.0
      %3723 = vmatpush1.xpose.msra.mxu0 0.0
      %3724 = vmatprep.subr.mxu0 0.0
      %3725 = vmatpush1.xpose.msra.mxu0 0.0
      %3726 = vmatprep.subr.mxu0 0.0
      %3727 = vmatpush1.xpose.msra.mxu0 0.0
      %3728 = vmatprep.subr.mxu0 0.0
      %3729 = vmatpush1.xpose.msra.mxu0 0.0
      %3730 = vmatprep.subr.mxu0 0.0
      %3731 = vmatpush1.xpose.msra.mxu0 0.0
      %3732 = vmatprep.subr.mxu0 0.0
      %3733 = vmatpush1.xpose.msra.mxu0 0.0
      %3734 = vmatprep.subr.mxu0 0.0
      %3735 = vmatpush1.xpose.msra.mxu0 0.0
      %3736 = vmatprep.subr.mxu0 0.0
      %3737 = vmatpush1.xpose.msra.mxu0 0.0
      %3738 = vmatprep.subr.mxu0 0.0
      %3739 = vmatpush1.xpose.msra.mxu0 0.0
      %3740 = vmatprep.subr.mxu0 0.0
      %3741 = vmatpush1.xpose.msra.mxu0 0.0
      %3742 = vmatprep.subr.mxu0 0.0
      %3743 = vmatpush1.xpose.msra.mxu0 0.0
      %3744 = vmatprep.subr.mxu0 0.0
      %3745 = vmatpush1.xpose.msra.mxu0 0.0
      %3746 = vmatprep.subr.mxu0 0.0
      %3747 = vmatpush1.xpose.msra.mxu0 0.0
      %3748 = vmatprep.subr.mxu0 0.0
      %3749 = vmatpush1.xpose.msra.mxu0 0.0
      %3750 = vmatprep.mubr.f32.mxu0 0.0
      %3751 = vmatmul.mubr.f32.gmra.mrb[0].mxu0 %v3682
      %v3752 = vpop.f32.mrb[0].mxu0
      %v3753 = vadd.f32 0.0, %v3752
      %v3754 = vpop.f32.mrb[0].mxu0
      %3755 = vdwg.mxu0
      %3756 = vrot.lane.b32.xlu0 %v3599, 112
      %v3757 = vpop.permute.xlu0 %3756
      %3758 = vrot.lane.b32.xlu0 %v3508, 80
      %v3759 = vpop.permute.xlu0 %3758
      %v3760 = vsel %vm1563, %v3757, 0
      %v3762 = vsel %vm1563, %v3759, 0
      %3764 = vmatprep.subr.mxu0 0.0
      %3765 = vmatpush1.xpose.msra.mxu0 %v3762
      %3766 = vmatprep.subr.mxu0 0.0
      %3767 = vmatpush1.xpose.msra.mxu0 0.0
      %3768 = vmatprep.subr.mxu0 0.0
      %3769 = vmatpush1.xpose.msra.mxu0 0.0
      %3770 = vmatprep.subr.mxu0 0.0
      %3771 = vmatpush1.xpose.msra.mxu0 0.0
      %3772 = vmatprep.subr.mxu0 0.0
      %3773 = vmatpush1.xpose.msra.mxu0 0.0
      %3774 = vmatprep.subr.mxu0 0.0
      %3775 = vmatpush1.xpose.msra.mxu0 0.0
      %3776 = vmatprep.subr.mxu0 0.0
      %3777 = vmatpush1.xpose.msra.mxu0 0.0
      %3778 = vmatprep.subr.mxu0 0.0
      %3779 = vmatpush1.xpose.msra.mxu0 0.0
      %3780 = vmatprep.subr.mxu0 0.0
      %3781 = vmatpush1.xpose.msra.mxu0 0.0
      %3782 = vmatprep.subr.mxu0 0.0
      %3783 = vmatpush1.xpose.msra.mxu0 0.0
      %3784 = vmatprep.subr.mxu0 0.0
      %3785 = vmatpush1.xpose.msra.mxu0 0.0
      %3786 = vmatprep.subr.mxu0 0.0
      %3787 = vmatpush1.xpose.msra.mxu0 0.0
      %3788 = vmatprep.subr.mxu0 0.0
      %3789 = vmatpush1.xpose.msra.mxu0 0.0
      %3790 = vmatprep.subr.mxu0 0.0
      %3791 = vmatpush1.xpose.msra.mxu0 0.0
      %3792 = vmatprep.subr.mxu0 0.0
      %3793 = vmatpush1.xpose.msra.mxu0 0.0
      %3794 = vmatprep.subr.mxu0 0.0
      %3795 = vmatpush1.xpose.msra.mxu0 0.0
      %3796 = vmatprep.subr.mxu0 0.0
      %3797 = vmatpush1.xpose.msra.mxu0 0.0
      %3798 = vmatprep.subr.mxu0 0.0
      %3799 = vmatpush1.xpose.msra.mxu0 0.0
      %3800 = vmatprep.subr.mxu0 0.0
      %3801 = vmatpush1.xpose.msra.mxu0 0.0
      %3802 = vmatprep.subr.mxu0 0.0
      %3803 = vmatpush1.xpose.msra.mxu0 0.0
      %3804 = vmatprep.subr.mxu0 0.0
      %3805 = vmatpush1.xpose.msra.mxu0 0.0
      %3806 = vmatprep.subr.mxu0 0.0
      %3807 = vmatpush1.xpose.msra.mxu0 0.0
      %3808 = vmatprep.subr.mxu0 0.0
      %3809 = vmatpush1.xpose.msra.mxu0 0.0
      %3810 = vmatprep.subr.mxu0 0.0
      %3811 = vmatpush1.xpose.msra.mxu0 0.0
      %3812 = vmatprep.subr.mxu0 0.0
      %3813 = vmatpush1.xpose.msra.mxu0 0.0
      %3814 = vmatprep.subr.mxu0 0.0
      %3815 = vmatpush1.xpose.msra.mxu0 0.0
      %3816 = vmatprep.subr.mxu0 0.0
      %3817 = vmatpush1.xpose.msra.mxu0 0.0
      %3818 = vmatprep.subr.mxu0 0.0
      %3819 = vmatpush1.xpose.msra.mxu0 0.0
      %3820 = vmatprep.subr.mxu0 0.0
      %3821 = vmatpush1.xpose.msra.mxu0 0.0
      %3822 = vmatprep.subr.mxu0 0.0
      %3823 = vmatpush1.xpose.msra.mxu0 0.0
      %3824 = vmatprep.subr.mxu0 0.0
      %3825 = vmatpush1.xpose.msra.mxu0 0.0
      %3826 = vmatprep.subr.mxu0 0.0
      %3827 = vmatpush1.xpose.msra.mxu0 0.0
      %3828 = vmatprep.mubr.f32.mxu0 0.0
      %3829 = vmatmul.mubr.f32.gmra.mrb[0].mxu0 %v3760
      %v3830 = vpop.f32.mrb[0].mxu0
      %v3831 = vadd.f32 0.0, %v3830
      %v3832 = vpop.f32.mrb[0].mxu0
      %3833 = vdwg.mxu0
      %3834 = vrot.lane.b32.xlu0 %v3599, 104
      %v3835 = vpop.permute.xlu0 %3834
      %3836 = vrot.lane.b32.xlu0 %v3508, 72
      %v3837 = vpop.permute.xlu0 %3836
      %v3838 = vsel %vm1563, %v3835, 0
      %v3840 = vsel %vm1563, %v3837, 0
      %3842 = vmatprep.subr.mxu0 0.0
      %3843 = vmatpush1.xpose.msra.mxu0 %v3840
      %3844 = vmatprep.subr.mxu0 0.0
      %3845 = vmatpush1.xpose.msra.mxu0 0.0
      %3846 = vmatprep.subr.mxu0 0.0
      %3847 = vmatpush1.xpose.msra.mxu0 0.0
      %3848 = vmatprep.subr.mxu0 0.0
      %3849 = vmatpush1.xpose.msra.mxu0 0.0
      %3850 = vmatprep.subr.mxu0 0.0
      %3851 = vmatpush1.xpose.msra.mxu0 0.0
      %3852 = vmatprep.subr.mxu0 0.0
      %3853 = vmatpush1.xpose.msra.mxu0 0.0
      %3854 = vmatprep.subr.mxu0 0.0
      %3855 = vmatpush1.xpose.msra.mxu0 0.0
      %3856 = vmatprep.subr.mxu0 0.0
      %3857 = vmatpush1.xpose.msra.mxu0 0.0
      %3858 = vmatprep.subr.mxu0 0.0
      %3859 = vmatpush1.xpose.msra.mxu0 0.0
      %3860 = vmatprep.subr.mxu0 0.0
      %3861 = vmatpush1.xpose.msra.mxu0 0.0
      %3862 = vmatprep.subr.mxu0 0.0
      %3863 = vmatpush1.xpose.msra.mxu0 0.0
      %3864 = vmatprep.subr.mxu0 0.0
      %3865 = vmatpush1.xpose.msra.mxu0 0.0
      %3866 = vmatprep.subr.mxu0 0.0
      %3867 = vmatpush1.xpose.msra.mxu0 0.0
      %3868 = vmatprep.subr.mxu0 0.0
      %3869 = vmatpush1.xpose.msra.mxu0 0.0
      %3870 = vmatprep.subr.mxu0 0.0
      %3871 = vmatpush1.xpose.msra.mxu0 0.0
      %3872 = vmatprep.subr.mxu0 0.0
      %3873 = vmatpush1.xpose.msra.mxu0 0.0
      %3874 = vmatprep.subr.mxu0 0.0
      %3875 = vmatpush1.xpose.msra.mxu0 0.0
      %3876 = vmatprep.subr.mxu0 0.0
      %3877 = vmatpush1.xpose.msra.mxu0 0.0
      %3878 = vmatprep.subr.mxu0 0.0
      %3879 = vmatpush1.xpose.msra.mxu0 0.0
      %3880 = vmatprep.subr.mxu0 0.0
      %3881 = vmatpush1.xpose.msra.mxu0 0.0
      %3882 = vmatprep.subr.mxu0 0.0
      %3883 = vmatpush1.xpose.msra.mxu0 0.0
      %3884 = vmatprep.subr.mxu0 0.0
      %3885 = vmatpush1.xpose.msra.mxu0 0.0
      %3886 = vmatprep.subr.mxu0 0.0
      %3887 = vmatpush1.xpose.msra.mxu0 0.0
      %3888 = vmatprep.subr.mxu0 0.0
      %3889 = vmatpush1.xpose.msra.mxu0 0.0
      %3890 = vmatprep.subr.mxu0 0.0
      %3891 = vmatpush1.xpose.msra.mxu0 0.0
      %3892 = vmatprep.subr.mxu0 0.0
      %3893 = vmatpush1.xpose.msra.mxu0 0.0
      %3894 = vmatprep.subr.mxu0 0.0
      %3895 = vmatpush1.xpose.msra.mxu0 0.0
      %3896 = vmatprep.subr.mxu0 0.0
      %3897 = vmatpush1.xpose.msra.mxu0 0.0
      %3898 = vmatprep.subr.mxu0 0.0
      %3899 = vmatpush1.xpose.msra.mxu0 0.0
      %3900 = vmatprep.subr.mxu0 0.0
      %3901 = vmatpush1.xpose.msra.mxu0 0.0
      %3902 = vmatprep.subr.mxu0 0.0
      %3903 = vmatpush1.xpose.msra.mxu0 0.0
      %3904 = vmatprep.subr.mxu0 0.0
      %3905 = vmatpush1.xpose.msra.mxu0 0.0
      %3906 = vmatprep.mubr.f32.mxu0 0.0
      %3907 = vmatmul.mubr.f32.gmra.mrb[0].mxu0 %v3838
      %v3908 = vpop.f32.mrb[0].mxu0
      %v3909 = vadd.f32 0.0, %v3908
      %v3910 = vpop.f32.mrb[0].mxu0
      %3911 = vdwg.mxu0
      %v3912 = vadd.f32 %v3675, %v578
      %v3913 = vadd.f32 %v3753, %v578
      %v3914 = vadd.f32 %v3831, %v578
      %v3915 = vadd.f32 %v3909, %v578
      %v3916 = vsel %vm1563, %v3912, -inf
      %3917 = vmax.xlane.f32.xlu0 %v3916
      %v3918 = vpop.xlane.xlu0 %3917
      %v3919 = vsel %vm1563, %v3913, -inf
      %3920 = vmax.xlane.f32.xlu0 %v3919
      %v3921 = vpop.xlane.xlu0 %3920
      %v3922 = vsel %vm1563, %v3914, -inf
      %3923 = vmax.xlane.f32.xlu0 %v3922
      %v3924 = vpop.xlane.xlu0 %3923
      %v3925 = vsel %vm1563, %v3915, -inf
      %3926 = vmax.xlane.f32.xlu0 %v3925
      %v3927 = vpop.xlane.xlu0 %3926
      %v3928 = vsub.f32 %v3912, %v3918
      %v3929 = vsub.f32 %v3913, %v3921
      %v3930 = vsub.f32 %v3914, %v3924
      %v3931 = vsub.f32 %v3915, %v3927
      %v3932 = vmul.f32 %v3928, 1.442695
      %v3933 = vpow.pop %v3932
      %v3934 = vmul.f32 %v3929, 1.442695
      %v3935 = vpow.pop %v3934
      %v3936 = vmul.f32 %v3930, 1.442695
      %v3937 = vpow.pop %v3936
      %v3938 = vmul.f32 %v3931, 1.442695
      %v3939 = vpow.pop %v3938
      %v3940 = vsel %vm1563, %v3933, 0.0
      %3941 = vadd.xlane.f32.xlu0 %v3940
      %v3942 = vpop.xlane.xlu0 %3941
      %v3943 = vsel %vm1563, %v3935, 0.0
      %3944 = vadd.xlane.f32.xlu0 %v3943
      %v3945 = vpop.xlane.xlu0 %3944
      %v3946 = vsel %vm1563, %v3937, 0.0
      %3947 = vadd.xlane.f32.xlu0 %v3946
      %v3948 = vpop.xlane.xlu0 %3947
      %v3949 = vsel %vm1563, %v3939, 0.0
      %3950 = vadd.xlane.f32.xlu0 %v3949
      %v3951 = vpop.xlane.xlu0 %3950
      %v3952 = vrcp.pop %v3942
      %v3953 = vrcp.pop %v3945
      %v3954 = vrcp.pop %v3948
      %v3955 = vrcp.pop %v3951
      %v3956 = vmul.f32 %v3933, %v3952
      %v3957 = vmul.f32 %v3935, %v3953
      %v3958 = vmul.f32 %v3937, %v3954
      %v3959 = vmul.f32 %v3939, %v3955
      %v3961 = vsel %vm1563, %v3956, 0
      %3963 = vmatprep.subr.mxu0 0.0
      %3964 = vmatpush1.msra.mxu0 %v3596
      %3965 = vmatprep.subr.mxu0 0.0
      %3966 = vmatpush1.msra.mxu0 0.0
      %3967 = vmatprep.subr.mxu0 0.0
      %3968 = vmatpush1.msra.mxu0 0.0
      %3969 = vmatprep.subr.mxu0 0.0
      %3970 = vmatpush1.msra.mxu0 0.0
      %3971 = vmatprep.subr.mxu0 0.0
      %3972 = vmatpush1.msra.mxu0 0.0
      %3973 = vmatprep.subr.mxu0 0.0
      %3974 = vmatpush1.msra.mxu0 0.0
      %3975 = vmatprep.subr.mxu0 0.0
      %3976 = vmatpush1.msra.mxu0 0.0
      %3977 = vmatprep.subr.mxu0 0.0
      %3978 = vmatpush1.msra.mxu0 0.0
      %3979 = vmatprep.subr.mxu0 0.0
      %3980 = vmatpush1.msra.mxu0 0.0
      %3981 = vmatprep.subr.mxu0 0.0
      %3982 = vmatpush1.msra.mxu0 0.0
      %3983 = vmatprep.subr.mxu0 0.0
      %3984 = vmatpush1.msra.mxu0 0.0
      %3985 = vmatprep.subr.mxu0 0.0
      %3986 = vmatpush1.msra.mxu0 0.0
      %3987 = vmatprep.subr.mxu0 0.0
      %3988 = vmatpush1.msra.mxu0 0.0
      %3989 = vmatprep.subr.mxu0 0.0
      %3990 = vmatpush1.msra.mxu0 0.0
      %3991 = vmatprep.subr.mxu0 0.0
      %3992 = vmatpush1.msra.mxu0 0.0
      %3993 = vmatprep.subr.mxu0 0.0
      %3994 = vmatpush1.msra.mxu0 0.0
      %3995 = vmatprep.subr.mxu0 0.0
      %3996 = vmatpush1.msra.mxu0 0.0
      %3997 = vmatprep.subr.mxu0 0.0
      %3998 = vmatpush1.msra.mxu0 0.0
      %3999 = vmatprep.subr.mxu0 0.0
      %4000 = vmatpush1.msra.mxu0 0.0
      %4001 = vmatprep.subr.mxu0 0.0
      %4002 = vmatpush1.msra.mxu0 0.0
      %4003 = vmatprep.subr.mxu0 0.0
      %4004 = vmatpush1.msra.mxu0 0.0
      %4005 = vmatprep.subr.mxu0 0.0
      %4006 = vmatpush1.msra.mxu0 0.0
      %4007 = vmatprep.subr.mxu0 0.0
      %4008 = vmatpush1.msra.mxu0 0.0
      %4009 = vmatprep.subr.mxu0 0.0
      %4010 = vmatpush1.msra.mxu0 0.0
      %4011 = vmatprep.subr.mxu0 0.0
      %4012 = vmatpush1.msra.mxu0 0.0
      %4013 = vmatprep.subr.mxu0 0.0
      %4014 = vmatpush1.msra.mxu0 0.0
      %4015 = vmatprep.subr.mxu0 0.0
      %4016 = vmatpush1.msra.mxu0 0.0
      %4017 = vmatprep.subr.mxu0 0.0
      %4018 = vmatpush1.msra.mxu0 0.0
      %4019 = vmatprep.subr.mxu0 0.0
      %4020 = vmatpush1.msra.mxu0 0.0
      %4021 = vmatprep.subr.mxu0 0.0
      %4022 = vmatpush1.msra.mxu0 0.0
      %4023 = vmatprep.subr.mxu0 0.0
      %4024 = vmatpush1.msra.mxu0 0.0
      %4025 = vmatprep.subr.mxu0 0.0
      %4026 = vmatpush1.msra.mxu0 0.0
      %4027 = vmatprep.mubr.f32.mxu0 0.0
      %4028 = vmatmul.mubr.f32.gmra.mrb[0].mxu0 %v3961
      %v4029 = vpop.f32.mrb[0].mxu0
      %v4030 = vadd.f32 0.0, %v4029
      %v4031 = vpop.f32.mrb[0].mxu0
      %4032 = vdwg.mxu0
      %4034 = vrot.lane.b32.xlu0 %v3596, 120
      %v4035 = vpop.permute.xlu0 %4034
      %v4038 = vsel %vm1563, %v3957, 0
      %4040 = vmatprep.subr.mxu0 0.0
      %4041 = vmatpush1.msra.mxu0 %v4035
      %4042 = vmatprep.subr.mxu0 0.0
      %4043 = vmatpush1.msra.mxu0 0.0
      %4044 = vmatprep.subr.mxu0 0.0
      %4045 = vmatpush1.msra.mxu0 0.0
      %4046 = vmatprep.subr.mxu0 0.0
      %4047 = vmatpush1.msra.mxu0 0.0
      %4048 = vmatprep.subr.mxu0 0.0
      %4049 = vmatpush1.msra.mxu0 0.0
      %4050 = vmatprep.subr.mxu0 0.0
      %4051 = vmatpush1.msra.mxu0 0.0
      %4052 = vmatprep.subr.mxu0 0.0
      %4053 = vmatpush1.msra.mxu0 0.0
      %4054 = vmatprep.subr.mxu0 0.0
      %4055 = vmatpush1.msra.mxu0 0.0
      %4056 = vmatprep.subr.mxu0 0.0
      %4057 = vmatpush1.msra.mxu0 0.0
      %4058 = vmatprep.subr.mxu0 0.0
      %4059 = vmatpush1.msra.mxu0 0.0
      %4060 = vmatprep.subr.mxu0 0.0
      %4061 = vmatpush1.msra.mxu0 0.0
      %4062 = vmatprep.subr.mxu0 0.0
      %4063 = vmatpush1.msra.mxu0 0.0
      %4064 = vmatprep.subr.mxu0 0.0
      %4065 = vmatpush1.msra.mxu0 0.0
      %4066 = vmatprep.subr.mxu0 0.0
      %4067 = vmatpush1.msra.mxu0 0.0
      %4068 = vmatprep.subr.mxu0 0.0
      %4069 = vmatpush1.msra.mxu0 0.0
      %4070 = vmatprep.subr.mxu0 0.0
      %4071 = vmatpush1.msra.mxu0 0.0
      %4072 = vmatprep.subr.mxu0 0.0
      %4073 = vmatpush1.msra.mxu0 0.0
      %4074 = vmatprep.subr.mxu0 0.0
      %4075 = vmatpush1.msra.mxu0 0.0
      %4076 = vmatprep.subr.mxu0 0.0
      %4077 = vmatpush1.msra.mxu0 0.0
      %4078 = vmatprep.subr.mxu0 0.0
      %4079 = vmatpush1.msra.mxu0 0.0
      %4080 = vmatprep.subr.mxu0 0.0
      %4081 = vmatpush1.msra.mxu0 0.0
      %4082 = vmatprep.subr.mxu0 0.0
      %4083 = vmatpush1.msra.mxu0 0.0
      %4084 = vmatprep.subr.mxu0 0.0
      %4085 = vmatpush1.msra.mxu0 0.0
      %4086 = vmatprep.subr.mxu0 0.0
      %4087 = vmatpush1.msra.mxu0 0.0
      %4088 = vmatprep.subr.mxu0 0.0
      %4089 = vmatpush1.msra.mxu0 0.0
      %4090 = vmatprep.subr.mxu0 0.0
      %4091 = vmatpush1.msra.mxu0 0.0
      %4092 = vmatprep.subr.mxu0 0.0
      %4093 = vmatpush1.msra.mxu0 0.0
      %4094 = vmatprep.subr.mxu0 0.0
      %4095 = vmatpush1.msra.mxu0 0.0
      %4096 = vmatprep.subr.mxu0 0.0
      %4097 = vmatpush1.msra.mxu0 0.0
      %4098 = vmatprep.subr.mxu0 0.0
      %4099 = vmatpush1.msra.mxu0 0.0
      %4100 = vmatprep.subr.mxu0 0.0
      %4101 = vmatpush1.msra.mxu0 0.0
      %4102 = vmatprep.subr.mxu0 0.0
      %4103 = vmatpush1.msra.mxu0 0.0
      %4104 = vmatprep.mubr.f32.mxu0 0.0
      %4105 = vmatmul.mubr.f32.gmra.mrb[0].mxu0 %v4038
      %v4106 = vpop.f32.mrb[0].mxu0
      %v4107 = vadd.f32 0.0, %v4106
      %v4108 = vpop.f32.mrb[0].mxu0
      %4109 = vdwg.mxu0
      %4110 = vrot.lane.b32.xlu0 %v3596, 112
      %v4111 = vpop.permute.xlu0 %4110
      %v4114 = vsel %vm1563, %v3958, 0
      %4116 = vmatprep.subr.mxu0 0.0
      %4117 = vmatpush1.msra.mxu0 %v4111
      %4118 = vmatprep.subr.mxu0 0.0
      %4119 = vmatpush1.msra.mxu0 0.0
      %4120 = vmatprep.subr.mxu0 0.0
      %4121 = vmatpush1.msra.mxu0 0.0
      %4122 = vmatprep.subr.mxu0 0.0
      %4123 = vmatpush1.msra.mxu0 0.0
      %4124 = vmatprep.subr.mxu0 0.0
      %4125 = vmatpush1.msra.mxu0 0.0
      %4126 = vmatprep.subr.mxu0 0.0
      %4127 = vmatpush1.msra.mxu0 0.0
      %4128 = vmatprep.subr.mxu0 0.0
      %4129 = vmatpush1.msra.mxu0 0.0
      %4130 = vmatprep.subr.mxu0 0.0
      %4131 = vmatpush1.msra.mxu0 0.0
      %4132 = vmatprep.subr.mxu0 0.0
      %4133 = vmatpush1.msra.mxu0 0.0
      %4134 = vmatprep.subr.mxu0 0.0
      %4135 = vmatpush1.msra.mxu0 0.0
      %4136 = vmatprep.subr.mxu0 0.0
      %4137 = vmatpush1.msra.mxu0 0.0
      %4138 = vmatprep.subr.mxu0 0.0
      %4139 = vmatpush1.msra.mxu0 0.0
      %4140 = vmatprep.subr.mxu0 0.0
      %4141 = vmatpush1.msra.mxu0 0.0
      %4142 = vmatprep.subr.mxu0 0.0
      %4143 = vmatpush1.msra.mxu0 0.0
      %4144 = vmatprep.subr.mxu0 0.0
      %4145 = vmatpush1.msra.mxu0 0.0
      %4146 = vmatprep.subr.mxu0 0.0
      %4147 = vmatpush1.msra.mxu0 0.0
      %4148 = vmatprep.subr.mxu0 0.0
      %4149 = vmatpush1.msra.mxu0 0.0
      %4150 = vmatprep.subr.mxu0 0.0
      %4151 = vmatpush1.msra.mxu0 0.0
      %4152 = vmatprep.subr.mxu0 0.0
      %4153 = vmatpush1.msra.mxu0 0.0
      %4154 = vmatprep.subr.mxu0 0.0
      %4155 = vmatpush1.msra.mxu0 0.0
      %4156 = vmatprep.subr.mxu0 0.0
      %4157 = vmatpush1.msra.mxu0 0.0
      %4158 = vmatprep.subr.mxu0 0.0
      %4159 = vmatpush1.msra.mxu0 0.0
      %4160 = vmatprep.subr.mxu0 0.0
      %4161 = vmatpush1.msra.mxu0 0.0
      %4162 = vmatprep.subr.mxu0 0.0
      %4163 = vmatpush1.msra.mxu0 0.0
      %4164 = vmatprep.subr.mxu0 0.0
      %4165 = vmatpush1.msra.mxu0 0.0
      %4166 = vmatprep.subr.mxu0 0.0
      %4167 = vmatpush1.msra.mxu0 0.0
      %4168 = vmatprep.subr.mxu0 0.0
      %4169 = vmatpush1.msra.mxu0 0.0
      %4170 = vmatprep.subr.mxu0 0.0
      %4171 = vmatpush1.msra.mxu0 0.0
      %4172 = vmatprep.subr.mxu0 0.0
      %4173 = vmatpush1.msra.mxu0 0.0
      %4174 = vmatprep.subr.mxu0 0.0
      %4175 = vmatpush1.msra.mxu0 0.0
      %4176 = vmatprep.subr.mxu0 0.0
      %4177 = vmatpush1.msra.mxu0 0.0
      %4178 = vmatprep.subr.mxu0 0.0
      %4179 = vmatpush1.msra.mxu0 0.0
      %4180 = vmatprep.mubr.f32.mxu0 0.0
      %4181 = vmatmul.mubr.f32.gmra.mrb[0].mxu0 %v4114
      %v4182 = vpop.f32.mrb[0].mxu0
      %v4183 = vadd.f32 0.0, %v4182
      %v4184 = vpop.f32.mrb[0].mxu0
      %4185 = vdwg.mxu0
      %4186 = vrot.lane.b32.xlu0 %v3596, 104
      %v4187 = vpop.permute.xlu0 %4186
      %v4190 = vsel %vm1563, %v3959, 0
      %4192 = vmatprep.subr.mxu0 0.0
      %4193 = vmatpush1.msra.mxu0 %v4187
      %4194 = vmatprep.subr.mxu0 0.0
      %4195 = vmatpush1.msra.mxu0 0.0
      %4196 = vmatprep.subr.mxu0 0.0
      %4197 = vmatpush1.msra.mxu0 0.0
      %4198 = vmatprep.subr.mxu0 0.0
      %4199 = vmatpush1.msra.mxu0 0.0
      %4200 = vmatprep.subr.mxu0 0.0
      %4201 = vmatpush1.msra.mxu0 0.0
      %4202 = vmatprep.subr.mxu0 0.0
      %4203 = vmatpush1.msra.mxu0 0.0
      %4204 = vmatprep.subr.mxu0 0.0
      %4205 = vmatpush1.msra.mxu0 0.0
      %4206 = vmatprep.subr.mxu0 0.0
      %4207 = vmatpush1.msra.mxu0 0.0
      %4208 = vmatprep.subr.mxu0 0.0
      %4209 = vmatpush1.msra.mxu0 0.0
      %4210 = vmatprep.subr.mxu0 0.0
      %4211 = vmatpush1.msra.mxu0 0.0
      %4212 = vmatprep.subr.mxu0 0.0
      %4213 = vmatpush1.msra.mxu0 0.0
      %4214 = vmatprep.subr.mxu0 0.0
      %4215 = vmatpush1.msra.mxu0 0.0
      %4216 = vmatprep.subr.mxu0 0.0
      %4217 = vmatpush1.msra.mxu0 0.0
      %4218 = vmatprep.subr.mxu0 0.0
      %4219 = vmatpush1.msra.mxu0 0.0
      %4220 = vmatprep.subr.mxu0 0.0
      %4221 = vmatpush1.msra.mxu0 0.0
      %4222 = vmatprep.subr.mxu0 0.0
      %4223 = vmatpush1.msra.mxu0 0.0
      %4224 = vmatprep.subr.mxu0 0.0
      %4225 = vmatpush1.msra.mxu0 0.0
      %4226 = vmatprep.subr.mxu0 0.0
      %4227 = vmatpush1.msra.mxu0 0.0
      %4228 = vmatprep.subr.mxu0 0.0
      %4229 = vmatpush1.msra.mxu0 0.0
      %4230 = vmatprep.subr.mxu0 0.0
      %4231 = vmatpush1.msra.mxu0 0.0
      %4232 = vmatprep.subr.mxu0 0.0
      %4233 = vmatpush1.msra.mxu0 0.0
      %4234 = vmatprep.subr.mxu0 0.0
      %4235 = vmatpush1.msra.mxu0 0.0
      %4236 = vmatprep.subr.mxu0 0.0
      %4237 = vmatpush1.msra.mxu0 0.0
      %4238 = vmatprep.subr.mxu0 0.0
      %4239 = vmatpush1.msra.mxu0 0.0
      %4240 = vmatprep.subr.mxu0 0.0
      %4241 = vmatpush1.msra.mxu0 0.0
      %4242 = vmatprep.subr.mxu0 0.0
      %4243 = vmatpush1.msra.mxu0 0.0
      %4244 = vmatprep.subr.mxu0 0.0
      %4245 = vmatpush1.msra.mxu0 0.0
      %4246 = vmatprep.subr.mxu0 0.0
      %4247 = vmatpush1.msra.mxu0 0.0
      %4248 = vmatprep.subr.mxu0 0.0
      %4249 = vmatpush1.msra.mxu0 0.0
      %4250 = vmatprep.subr.mxu0 0.0
      %4251 = vmatpush1.msra.mxu0 0.0
      %4252 = vmatprep.subr.mxu0 0.0
      %4253 = vmatpush1.msra.mxu0 0.0
      %4254 = vmatprep.subr.mxu0 0.0
      %4255 = vmatpush1.msra.mxu0 0.0
      %4256 = vmatprep.mubr.f32.mxu0 0.0
      %4257 = vmatmul.mubr.f32.gmra.mrb[0].mxu0 %v4190
      %v4258 = vpop.f32.mrb[0].mxu0
      %v4259 = vadd.f32 0.0, %v4258
      %v4260 = vpop.f32.mrb[0].mxu0
      %4261 = vdwg.mxu0
      %4263 = vrot.lane.b32.xlu0 %v4107, 8
      %v4264 = vpop.permute.xlu0 %4263
      %4267 = vrot.lane.b32.xlu0 %v4183, 16
      %v4268 = vpop.permute.xlu0 %4267
      %4271 = vrot.lane.b32.xlu0 %v4259, 24
      %v4272 = vpop.permute.xlu0 %4271
      %v4274 = vsel %vm1563, %v4030, %v4264
      %v4275 = vsel %vm3016, %v4274, %v4268
      %v4276 = vsel %vm3018, %v4275, %v4272
      %v4278 = vlaneseq
      %v4279 = vshrl.u32 %v4278, 7
      %v4280 = vsub.s32 0, %v4279
      %v4281 = vrot.slane %v3406, %v4280
      %v4284 = vsel %vm656, %v4276, 0
      %v4287 = vsel %vm656, %v3401, 0
      %v4290 = vsel %vm656, %v3402, 0
      %v4293 = vsel %vm656, %v3403, 0
      %v4296 = vsel %vm656, %v3404, 0
      %4298 = vmatprep.subr.mxu0 0.0
      %4299 = vmatpush1.xpose.msra.mxu0 %v4287
      %4300 = vmatprep.subr.mxu0 0.0
      %4301 = vmatpush1.xpose.msra.mxu0 %v4290
      %4302 = vmatprep.subr.mxu0 0.0
      %4303 = vmatpush1.xpose.msra.mxu0 %v4293
      %4304 = vmatprep.subr.mxu0 0.0
      %4305 = vmatpush1.xpose.msra.mxu0 %v4296
      %4306 = vmatprep.subr.mxu0 0.0
      %4307 = vmatpush1.xpose.msra.mxu0 0.0
      %4308 = vmatprep.subr.mxu0 0.0
      %4309 = vmatpush1.xpose.msra.mxu0 0.0
      %4310 = vmatprep.subr.mxu0 0.0
      %4311 = vmatpush1.xpose.msra.mxu0 0.0
      %4312 = vmatprep.subr.mxu0 0.0
      %4313 = vmatpush1.xpose.msra.mxu0 0.0
      %4314 = vmatprep.subr.mxu0 0.0
      %4315 = vmatpush1.xpose.msra.mxu0 0.0
      %4316 = vmatprep.subr.mxu0 0.0
      %4317 = vmatpush1.xpose.msra.mxu0 0.0
      %4318 = vmatprep.subr.mxu0 0.0
      %4319 = vmatpush1.xpose.msra.mxu0 0.0
      %4320 = vmatprep.subr.mxu0 0.0
      %4321 = vmatpush1.xpose.msra.mxu0 0.0
      %4322 = vmatprep.subr.mxu0 0.0
      %4323 = vmatpush1.xpose.msra.mxu0 0.0
      %4324 = vmatprep.subr.mxu0 0.0
      %4325 = vmatpush1.xpose.msra.mxu0 0.0
      %4326 = vmatprep.subr.mxu0 0.0
      %4327 = vmatpush1.xpose.msra.mxu0 0.0
      %4328 = vmatprep.subr.mxu0 0.0
      %4329 = vmatpush1.xpose.msra.mxu0 0.0
      %4330 = vmatprep.subr.mxu0 0.0
      %4331 = vmatpush1.xpose.msra.mxu0 0.0
      %4332 = vmatprep.subr.mxu0 0.0
      %4333 = vmatpush1.xpose.msra.mxu0 0.0
      %4334 = vmatprep.subr.mxu0 0.0
      %4335 = vmatpush1.xpose.msra.mxu0 0.0
      %4336 = vmatprep.subr.mxu0 0.0
      %4337 = vmatpush1.xpose.msra.mxu0 0.0
      %4338 = vmatprep.subr.mxu0 0.0
      %4339 = vmatpush1.xpose.msra.mxu0 0.0
      %4340 = vmatprep.subr.mxu0 0.0
      %4341 = vmatpush1.xpose.msra.mxu0 0.0
      %4342 = vmatprep.subr.mxu0 0.0
      %4343 = vmatpush1.xpose.msra.mxu0 0.0
      %4344 = vmatprep.subr.mxu0 0.0
      %4345 = vmatpush1.xpose.msra.mxu0 0.0
      %4346 = vmatprep.subr.mxu0 0.0
      %4347 = vmatpush1.xpose.msra.mxu0 0.0
      %4348 = vmatprep.subr.mxu0 0.0
      %4349 = vmatpush1.xpose.msra.mxu0 0.0
      %4350 = vmatprep.subr.mxu0 0.0
      %4351 = vmatpush1.xpose.msra.mxu0 0.0
      %4352 = vmatprep.subr.mxu0 0.0
      %4353 = vmatpush1.xpose.msra.mxu0 0.0
      %4354 = vmatprep.subr.mxu0 0.0
      %4355 = vmatpush1.xpose.msra.mxu0 0.0
      %4356 = vmatprep.subr.mxu0 0.0
      %4357 = vmatpush1.xpose.msra.mxu0 0.0
      %4358 = vmatprep.subr.mxu0 0.0
      %4359 = vmatpush1.xpose.msra.mxu0 0.0
      %4360 = vmatprep.subr.mxu0 0.0
      %4361 = vmatpush1.xpose.msra.mxu0 0.0
      %4362 = vmatprep.mubr.f32.mxu0 0.0
      %4363 = vmatmul.mubr.f32.gmra.mrb[0].mxu0 %v4284
      %v4364 = vpop.f32.mrb[0].mxu0
      %v4365 = vadd.f32 %v4281, %v4364
      %v4366 = vpop.f32.mrb[0].mxu0
      %4367 = vdwg.mxu0
      %v4368 = vadd.f32 %v3384, %v4365
      %s4369 = scalar_lea.vmem %s12, 3
      %v4370 = vld [vmem:[%s4369] sm:$0x1]
      %s4371 = scalar_lea.vmem %s13, 3
      %v4372 = vld [vmem:[%s4371] sm:$0x1]
      %v4373 = vsel %vm656, %v4368, 0.0
      %4374 = vadd.xlane.f32.xlu0 %v4373
      %v4375 = vpop.xlane.xlu0 %4374
      %v4376 = vmul.f32 %v4375, %v751
      %v4377 = vsub.f32 %v4368, %v4376
      %v4378 = vmul.f32 %v4377, %v4377
      %v4379 = vsel %vm656, %v4378, 0.0
      %4380 = vadd.xlane.f32.xlu0 %v4379
      %v4381 = vpop.xlane.xlu0 %4380
      %v4382 = vmul.f32 %v4381, %v751
      %v4383 = vadd.f32 %v4382, 1e-05
      %v4384 = vrsqrt.pop %v4383
      %v4385 = vmul.f32 %v4377, %v4384
      %v4387 = vlaneseq
      %v4388 = vshrl.u32 %v4387, 7
      %v4389 = vsub.s32 0, %v4388
      %v4390 = vrot.slane %v4370, %v4389
      %v4392 = vmul.f32 %v4385, %v4390
      %v4394 = vlaneseq
      %v4395 = vshrl.u32 %v4394, 7
      %v4396 = vsub.s32 0, %v4395
      %v4397 = vrot.slane %v4372, %v4396
      %v4399 = vadd.f32 %v4392, %v4397
      %v4400 = vadd.f32 %v4399, %v574
      %s4401 = scalar_lea.vmem %s4, 288
      %v4402 = vld [vmem:[%s4401] sm:$0xff]
      %v4403 = vld [vmem:[%s4401 + $0x8] sm:$0xff]
      %v4404 = vld [vmem:[%s4401 + $0x10] sm:$0xff]
      %v4405 = vld [vmem:[%s4401 + $0x18] sm:$0xff]
      %v4406 = vld [vmem:[%s4401 + $0x20] sm:$0xff]
      %v4407 = vld [vmem:[%s4401 + $0x28] sm:$0xff]
      %v4408 = vld [vmem:[%s4401 + $0x30] sm:$0xff]
      %v4409 = vld [vmem:[%s4401 + $0x38] sm:$0xff]
      %v4410 = vld [vmem:[%s4401 + $0x40] sm:$0xff]
      %v4411 = vld [vmem:[%s4401 + $0x48] sm:$0xff]
      %v4412 = vld [vmem:[%s4401 + $0x50] sm:$0xff]
      %v4413 = vld [vmem:[%s4401 + $0x58] sm:$0xff]
      %s4414 = scalar_lea.vmem %s5, 3
      %v4415 = vld [vmem:[%s4414] sm:$0x1]
      %s4416 = scalar_lea.vmem %s6, 96
      %v4417 = vld [vmem:[%s4416] sm:$0xff]
      %v4418 = vld [vmem:[%s4416 + $0x8] sm:$0xff]
      %v4419 = vld [vmem:[%s4416 + $0x10] sm:$0xff]
      %v4420 = vld [vmem:[%s4416 + $0x18] sm:$0xff]
      %s4421 = scalar_lea.vmem %s7, 3
      %v4422 = vld [vmem:[%s4421] sm:$0x1]
      %v4424 = vlaneseq
      %v4425 = vshrl.u32 %v4424, 7
      %v4426 = vsub.s32 0, %v4425
      %v4427 = vrot.slane %v4415, %v4426
      %v4430 = vsel %vm656, %v4400, 0
      %v4433 = vsel %vm656, %v4402, 0
      %v4436 = vsel %vm656, %v4403, 0
      %v4439 = vsel %vm656, %v4404, 0
      %v4442 = vsel %vm656, %v4405, 0
      %4444 = vmatprep.subr.mxu0 0.0
      %4445 = vmatpush1.xpose.msra.mxu0 %v4433
      %4446 = vmatprep.subr.mxu0 0.0
      %4447 = vmatpush1.xpose.msra.mxu0 %v4436
      %4448 = vmatprep.subr.mxu0 0.0
      %4449 = vmatpush1.xpose.msra.mxu0 %v4439
      %4450 = vmatprep.subr.mxu0 0.0
      %4451 = vmatpush1.xpose.msra.mxu0 %v4442
      %4452 = vmatprep.subr.mxu0 0.0
      %4453 = vmatpush1.xpose.msra.mxu0 0.0
      %4454 = vmatprep.subr.mxu0 0.0
      %4455 = vmatpush1.xpose.msra.mxu0 0.0
      %4456 = vmatprep.subr.mxu0 0.0
      %4457 = vmatpush1.xpose.msra.mxu0 0.0
      %4458 = vmatprep.subr.mxu0 0.0
      %4459 = vmatpush1.xpose.msra.mxu0 0.0
      %4460 = vmatprep.subr.mxu0 0.0
      %4461 = vmatpush1.xpose.msra.mxu0 0.0
      %4462 = vmatprep.subr.mxu0 0.0
      %4463 = vmatpush1.xpose.msra.mxu0 0.0
      %4464 = vmatprep.subr.mxu0 0.0
      %4465 = vmatpush1.xpose.msra.mxu0 0.0
      %4466 = vmatprep.subr.mxu0 0.0
      %4467 = vmatpush1.xpose.msra.mxu0 0.0
      %4468 = vmatprep.subr.mxu0 0.0
      %4469 = vmatpush1.xpose.msra.mxu0 0.0
      %4470 = vmatprep.subr.mxu0 0.0
      %4471 = vmatpush1.xpose.msra.mxu0 0.0
      %4472 = vmatprep.subr.mxu0 0.0
      %4473 = vmatpush1.xpose.msra.mxu0 0.0
      %4474 = vmatprep.subr.mxu0 0.0
      %4475 = vmatpush1.xpose.msra.mxu0 0.0
      %4476 = vmatprep.subr.mxu0 0.0
      %4477 = vmatpush1.xpose.msra.mxu0 0.0
      %4478 = vmatprep.subr.mxu0 0.0
      %4479 = vmatpush1.xpose.msra.mxu0 0.0
      %4480 = vmatprep.subr.mxu0 0.0
      %4481 = vmatpush1.xpose.msra.mxu0 0.0
      %4482 = vmatprep.subr.mxu0 0.0
      %4483 = vmatpush1.xpose.msra.mxu0 0.0
      %4484 = vmatprep.subr.mxu0 0.0
      %4485 = vmatpush1.xpose.msra.mxu0 0.0
      %4486 = vmatprep.subr.mxu0 0.0
      %4487 = vmatpush1.xpose.msra.mxu0 0.0
      %4488 = vmatprep.subr.mxu0 0.0
      %4489 = vmatpush1.xpose.msra.mxu0 0.0
      %4490 = vmatprep.subr.mxu0 0.0
      %4491 = vmatpush1.xpose.msra.mxu0 0.0
      %4492 = vmatprep.subr.mxu0 0.0
      %4493 = vmatpush1.xpose.msra.mxu0 0.0
      %4494 = vmatprep.subr.mxu0 0.0
      %4495 = vmatpush1.xpose.msra.mxu0 0.0
      %4496 = vmatprep.subr.mxu0 0.0
      %4497 = vmatpush1.xpose.msra.mxu0 0.0
      %4498 = vmatprep.subr.mxu0 0.0
      %4499 = vmatpush1.xpose.msra.mxu0 0.0
      %4500 = vmatprep.subr.mxu0 0.0
      %4501 = vmatpush1.xpose.msra.mxu0 0.0
      %4502 = vmatprep.subr.mxu0 0.0
      %4503 = vmatpush1.xpose.msra.mxu0 0.0
      %4504 = vmatprep.subr.mxu0 0.0
      %4505 = vmatpush1.xpose.msra.mxu0 0.0
      %4506 = vmatprep.subr.mxu0 0.0
      %4507 = vmatpush1.xpose.msra.mxu0 0.0
      %4508 = vmatprep.mubr.f32.mxu0 0.0
      %4509 = vmatmul.mubr.f32.gmra.mrb[0].mxu0 %v4430
      %v4510 = vpop.f32.mrb[0].mxu0
      %v4511 = vadd.f32 %v4427, %v4510
      %v4512 = vpop.f32.mrb[0].mxu0
      %4513 = vdwg.mxu0
      %v4514 = vmul.f32 %v4511, 0.35355338
      %4515 = vrot.lane.b32.xlu0 %v4427, 96
      %v4516 = vpop.permute.xlu0 %4515
      %v4519 = vsel %vm656, %v4406, 0
      %v4522 = vsel %vm656, %v4407, 0
      %v4525 = vsel %vm656, %v4408, 0
      %v4528 = vsel %vm656, %v4409, 0
      %4530 = vmatprep.subr.mxu0 0.0
      %4531 = vmatpush1.xpose.msra.mxu0 %v4519
      %4532 = vmatprep.subr.mxu0 0.0
      %4533 = vmatpush1.xpose.msra.mxu0 %v4522
      %4534 = vmatprep.subr.mxu0 0.0
      %4535 = vmatpush1.xpose.msra.mxu0 %v4525
      %4536 = vmatprep.subr.mxu0 0.0
      %4537 = vmatpush1.xpose.msra.mxu0 %v4528
      %4538 = vmatprep.subr.mxu0 0.0
      %4539 = vmatpush1.xpose.msra.mxu0 0.0
      %4540 = vmatprep.subr.mxu0 0.0
      %4541 = vmatpush1.xpose.msra.mxu0 0.0
      %4542 = vmatprep.subr.mxu0 0.0
      %4543 = vmatpush1.xpose.msra.mxu0 0.0
      %4544 = vmatprep.subr.mxu0 0.0
      %4545 = vmatpush1.xpose.msra.mxu0 0.0
      %4546 = vmatprep.subr.mxu0 0.0
      %4547 = vmatpush1.xpose.msra.mxu0 0.0
      %4548 = vmatprep.subr.mxu0 0.0
      %4549 = vmatpush1.xpose.msra.mxu0 0.0
      %4550 = vmatprep.subr.mxu0 0.0
      %4551 = vmatpush1.xpose.msra.mxu0 0.0
      %4552 = vmatprep.subr.mxu0 0.0
      %4553 = vmatpush1.xpose.msra.mxu0 0.0
      %4554 = vmatprep.subr.mxu0 0.0
      %4555 = vmatpush1.xpose.msra.mxu0 0.0
      %4556 = vmatprep.subr.mxu0 0.0
      %4557 = vmatpush1.xpose.msra.mxu0 0.0
      %4558 = vmatprep.subr.mxu0 0.0
      %4559 = vmatpush1.xpose.msra.mxu0 0.0
      %4560 = vmatprep.subr.mxu0 0.0
      %4561 = vmatpush1.xpose.msra.mxu0 0.0
      %4562 = vmatprep.subr.mxu0 0.0
      %4563 = vmatpush1.xpose.msra.mxu0 0.0
      %4564 = vmatprep.subr.mxu0 0.0
      %4565 = vmatpush1.xpose.msra.mxu0 0.0
      %4566 = vmatprep.subr.mxu0 0.0
      %4567 = vmatpush1.xpose.msra.mxu0 0.0
      %4568 = vmatprep.subr.mxu0 0.0
      %4569 = vmatpush1.xpose.msra.mxu0 0.0
      %4570 = vmatprep.subr.mxu0 0.0
      %4571 = vmatpush1.xpose.msra.mxu0 0.0
      %4572 = vmatprep.subr.mxu0 0.0
      %4573 = vmatpush1.xpose.msra.mxu0 0.0
      %4574 = vmatprep.subr.mxu0 0.0
      %4575 = vmatpush1.xpose.msra.mxu0 0.0
      %4576 = vmatprep.subr.mxu0 0.0
      %4577 = vmatpush1.xpose.msra.mxu0 0.0
      %4578 = vmatprep.subr.mxu0 0.0
      %4579 = vmatpush1.xpose.msra.mxu0 0.0
      %4580 = vmatprep.subr.mxu0 0.0
      %4581 = vmatpush1.xpose.msra.mxu0 0.0
      %4582 = vmatprep.subr.mxu0 0.0
      %4583 = vmatpush1.xpose.msra.mxu0 0.0
      %4584 = vmatprep.subr.mxu0 0.0
      %4585 = vmatpush1.xpose.msra.mxu0 0.0
      %4586 = vmatprep.subr.mxu0 0.0
      %4587 = vmatpush1.xpose.msra.mxu0 0.0
      %4588 = vmatprep.subr.mxu0 0.0
      %4589 = vmatpush1.xpose.msra.mxu0 0.0
      %4590 = vmatprep.subr.mxu0 0.0
      %4591 = vmatpush1.xpose.msra.mxu0 0.0
      %4592 = vmatprep.subr.mxu0 0.0
      %4593 = vmatpush1.xpose.msra.mxu0 0.0
      %4594 = vmatprep.mubr.f32.mxu0 0.0
      %4595 = vmatmul.mubr.f32.gmra.mrb[0].mxu0 %v895
      %v4596 = vpop.f32.mrb[0].mxu0
      %v4597 = vadd.f32 %v4516, %v4596
      %v4598 = vpop.f32.mrb[0].mxu0
      %4599 = vmatprep.mubr.f32.mxu0 0.0
      %4600 = vmatmul.mubr.f32.gmra.mrb[0].mxu0 %v898
      %v4601 = vpop.f32.mrb[0].mxu0
      %v4602 = vadd.f32 %v4516, %v4601
      %v4603 = vpop.f32.mrb[0].mxu0
      %4604 = vmatprep.mubr.f32.mxu0 0.0
      %4605 = vmatmul.mubr.f32.gmra.mrb[0].mxu0 %v901
      %v4606 = vpop.f32.mrb[0].mxu0
      %v4607 = vadd.f32 %v4516, %v4606
      %v4608 = vpop.f32.mrb[0].mxu0
      %4609 = vmatprep.mubr.f32.mxu0 0.0
      %4610 = vmatmul.mubr.f32.gmra.mrb[0].mxu0 %v904
      %v4611 = vpop.f32.mrb[0].mxu0
      %v4612 = vadd.f32 %v4516, %v4611
      %v4613 = vpop.f32.mrb[0].mxu0
      %4614 = vmatprep.mubr.f32.mxu0 0.0
      %4615 = vmatmul.mubr.f32.gmra.mrb[0].mxu0 %v907
      %v4616 = vpop.f32.mrb[0].mxu0
      %v4617 = vadd.f32 %v4516, %v4616
      %v4618 = vpop.f32.mrb[0].mxu0
      %4619 = vmatprep.mubr.f32.mxu0 0.0
      %4620 = vmatmul.mubr.f32.gmra.mrb[0].mxu0 %v910
      %v4621 = vpop.f32.mrb[0].mxu0
      %v4622 = vadd.f32 %v4516, %v4621
      %v4623 = vpop.f32.mrb[0].mxu0
      %4624 = vmatprep.mubr.f32.mxu0 0.0
      %4625 = vmatmul.mubr.f32.gmra.mrb[0].mxu0 %v913
      %v4626 = vpop.f32.mrb[0].mxu0
      %v4627 = vadd.f32 %v4516, %v4626
      %v4628 = vpop.f32.mrb[0].mxu0
      %4629 = vmatprep.mubr.f32.mxu0 0.0
      %4630 = vmatmul.mubr.f32.gmra.mrb[0].mxu0 %v916
      %v4631 = vpop.f32.mrb[0].mxu0
      %v4632 = vadd.f32 %v4516, %v4631
      %v4633 = vpop.f32.mrb[0].mxu0
      %4634 = vmatprep.mubr.f32.mxu0 0.0
      %4635 = vmatmul.mubr.f32.gmra.mrb[0].mxu0 %v919
      %v4636 = vpop.f32.mrb[0].mxu0
      %v4637 = vadd.f32 %v4516, %v4636
      %v4638 = vpop.f32.mrb[0].mxu0
      %4639 = vmatprep.mubr.f32.mxu0 0.0
      %4640 = vmatmul.mubr.f32.gmra.mrb[0].mxu0 %v922
      %v4641 = vpop.f32.mrb[0].mxu0
      %v4642 = vadd.f32 %v4516, %v4641
      %v4643 = vpop.f32.mrb[0].mxu0
      %4644 = vmatprep.mubr.f32.mxu0 0.0
      %4645 = vmatmul.mubr.f32.gmra.mrb[0].mxu0 %v925
      %v4646 = vpop.f32.mrb[0].mxu0
      %v4647 = vadd.f32 %v4516, %v4646
      %v4648 = vpop.f32.mrb[0].mxu0
      %4649 = vmatprep.mubr.f32.mxu0 0.0
      %4650 = vmatmul.mubr.f32.gmra.mrb[0].mxu0 %v928
      %v4651 = vpop.f32.mrb[0].mxu0
      %v4652 = vadd.f32 %v4516, %v4651
      %v4653 = vpop.f32.mrb[0].mxu0
      %4654 = vmatprep.mubr.f32.mxu0 0.0
      %4655 = vmatmul.mubr.f32.gmra.mrb[0].mxu0 %v931
      %v4656 = vpop.f32.mrb[0].mxu0
      %v4657 = vadd.f32 %v4516, %v4656
      %v4658 = vpop.f32.mrb[0].mxu0
      %4659 = vmatprep.mubr.f32.mxu0 0.0
      %4660 = vmatmul.mubr.f32.gmra.mrb[0].mxu0 %v934
      %v4661 = vpop.f32.mrb[0].mxu0
      %v4662 = vadd.f32 %v4516, %v4661
      %v4663 = vpop.f32.mrb[0].mxu0
      %4664 = vmatprep.mubr.f32.mxu0 0.0
      %4665 = vmatmul.mubr.f32.gmra.mrb[0].mxu0 %v937
      %v4666 = vpop.f32.mrb[0].mxu0
      %v4667 = vadd.f32 %v4516, %v4666
      %v4668 = vpop.f32.mrb[0].mxu0
      %4669 = vmatprep.mubr.f32.mxu0 0.0
      %4670 = vmatmul.mubr.f32.gmra.mrb[0].mxu0 %v940
      %v4671 = vpop.f32.mrb[0].mxu0
      %v4672 = vadd.f32 %v4516, %v4671
      %v4673 = vpop.f32.mrb[0].mxu0
      %4674 = vmatprep.mubr.f32.mxu0 0.0
      %4675 = vmatmul.mubr.f32.gmra.mrb[0].mxu0 %v943
      %v4676 = vpop.f32.mrb[0].mxu0
      %v4677 = vadd.f32 %v4516, %v4676
      %v4678 = vpop.f32.mrb[0].mxu0
      %4679 = vmatprep.mubr.f32.mxu0 0.0
      %4680 = vmatmul.mubr.f32.gmra.mrb[0].mxu0 %v946
      %v4681 = vpop.f32.mrb[0].mxu0
      %v4682 = vadd.f32 %v4516, %v4681
      %v4683 = vpop.f32.mrb[0].mxu0
      %4684 = vmatprep.mubr.f32.mxu0 0.0
      %4685 = vmatmul.mubr.f32.gmra.mrb[0].mxu0 %v949
      %v4686 = vpop.f32.mrb[0].mxu0
      %v4687 = vadd.f32 %v4516, %v4686
      %v4688 = vpop.f32.mrb[0].mxu0
      %4689 = vmatprep.mubr.f32.mxu0 0.0
      %4690 = vmatmul.mubr.f32.gmra.mrb[0].mxu0 %v952
      %v4691 = vpop.f32.mrb[0].mxu0
      %v4692 = vadd.f32 %v4516, %v4691
      %v4693 = vpop.f32.mrb[0].mxu0
      %4694 = vmatprep.mubr.f32.mxu0 0.0
      %4695 = vmatmul.mubr.f32.gmra.mrb[0].mxu0 %v955
      %v4696 = vpop.f32.mrb[0].mxu0
      %v4697 = vadd.f32 %v4516, %v4696
      %v4698 = vpop.f32.mrb[0].mxu0
      %4699 = vmatprep.mubr.f32.mxu0 0.0
      %4700 = vmatmul.mubr.f32.gmra.mrb[0].mxu0 %v958
      %v4701 = vpop.f32.mrb[0].mxu0
      %v4702 = vadd.f32 %v4516, %v4701
      %v4703 = vpop.f32.mrb[0].mxu0
      %4704 = vmatprep.mubr.f32.mxu0 0.0
      %4705 = vmatmul.mubr.f32.gmra.mrb[0].mxu0 %v961
      %v4706 = vpop.f32.mrb[0].mxu0
      %v4707 = vadd.f32 %v4516, %v4706
      %v4708 = vpop.f32.mrb[0].mxu0
      %4709 = vmatprep.mubr.f32.mxu0 0.0
      %4710 = vmatmul.mubr.f32.gmra.mrb[0].mxu0 %v964
      %v4711 = vpop.f32.mrb[0].mxu0
      %v4712 = vadd.f32 %v4516, %v4711
      %v4713 = vpop.f32.mrb[0].mxu0
      %4714 = vmatprep.mubr.f32.mxu0 0.0
      %4715 = vmatmul.mubr.f32.gmra.mrb[0].mxu0 %v967
      %v4716 = vpop.f32.mrb[0].mxu0
      %v4717 = vadd.f32 %v4516, %v4716
      %v4718 = vpop.f32.mrb[0].mxu0
      %4719 = vmatprep.mubr.f32.mxu0 0.0
      %4720 = vmatmul.mubr.f32.gmra.mrb[0].mxu0 %v970
      %v4721 = vpop.f32.mrb[0].mxu0
      %v4722 = vadd.f32 %v4516, %v4721
      %v4723 = vpop.f32.mrb[0].mxu0
      %4724 = vmatprep.mubr.f32.mxu0 0.0
      %4725 = vmatmul.mubr.f32.gmra.mrb[0].mxu0 %v973
      %v4726 = vpop.f32.mrb[0].mxu0
      %v4727 = vadd.f32 %v4516, %v4726
      %v4728 = vpop.f32.mrb[0].mxu0
      %4729 = vmatprep.mubr.f32.mxu0 0.0
      %4730 = vmatmul.mubr.f32.gmra.mrb[0].mxu0 %v976
      %v4731 = vpop.f32.mrb[0].mxu0
      %v4732 = vadd.f32 %v4516, %v4731
      %v4733 = vpop.f32.mrb[0].mxu0
      %4734 = vmatprep.mubr.f32.mxu0 0.0
      %4735 = vmatmul.mubr.f32.gmra.mrb[0].mxu0 %v979
      %v4736 = vpop.f32.mrb[0].mxu0
      %v4737 = vadd.f32 %v4516, %v4736
      %v4738 = vpop.f32.mrb[0].mxu0
      %4739 = vmatprep.mubr.f32.mxu0 0.0
      %4740 = vmatmul.mubr.f32.gmra.mrb[0].mxu0 %v982
      %v4741 = vpop.f32.mrb[0].mxu0
      %v4742 = vadd.f32 %v4516, %v4741
      %v4743 = vpop.f32.mrb[0].mxu0
      %4744 = vmatprep.mubr.f32.mxu0 0.0
      %4745 = vmatmul.mubr.f32.gmra.mrb[0].mxu0 %v985
      %v4746 = vpop.f32.mrb[0].mxu0
      %v4747 = vadd.f32 %v4516, %v4746
      %v4748 = vpop.f32.mrb[0].mxu0
      %4749 = vmatprep.mubr.f32.mxu0 0.0
      %4750 = vmatmul.mubr.f32.gmra.mrb[0].mxu0 %v988
      %v4751 = vpop.f32.mrb[0].mxu0
      %v4752 = vadd.f32 %v4516, %v4751
      %v4753 = vpop.f32.mrb[0].mxu0
      %4754 = vdwg.mxu0
      %4755 = vrot.lane.b32.xlu0 %v4427, 64
      %v4756 = vpop.permute.xlu0 %4755
      %v4759 = vsel %vm656, %v4410, 0
      %v4762 = vsel %vm656, %v4411, 0
      %v4765 = vsel %vm656, %v4412, 0
      %v4768 = vsel %vm656, %v4413, 0
      %4770 = vmatprep.subr.mxu0 0.0
      %4771 = vmatpush1.xpose.msra.mxu0 %v4759
      %4772 = vmatprep.subr.mxu0 0.0
      %4773 = vmatpush1.xpose.msra.mxu0 %v4762
      %4774 = vmatprep.subr.mxu0 0.0
      %4775 = vmatpush1.xpose.msra.mxu0 %v4765
      %4776 = vmatprep.subr.mxu0 0.0
      %4777 = vmatpush1.xpose.msra.mxu0 %v4768
      %4778 = vmatprep.subr.mxu0 0.0
      %4779 = vmatpush1.xpose.msra.mxu0 0.0
      %4780 = vmatprep.subr.mxu0 0.0
      %4781 = vmatpush1.xpose.msra.mxu0 0.0
      %4782 = vmatprep.subr.mxu0 0.0
      %4783 = vmatpush1.xpose.msra.mxu0 0.0
      %4784 = vmatprep.subr.mxu0 0.0
      %4785 = vmatpush1.xpose.msra.mxu0 0.0
      %4786 = vmatprep.subr.mxu0 0.0
      %4787 = vmatpush1.xpose.msra.mxu0 0.0
      %4788 = vmatprep.subr.mxu0 0.0
      %4789 = vmatpush1.xpose.msra.mxu0 0.0
      %4790 = vmatprep.subr.mxu0 0.0
      %4791 = vmatpush1.xpose.msra.mxu0 0.0
      %4792 = vmatprep.subr.mxu0 0.0
      %4793 = vmatpush1.xpose.msra.mxu0 0.0
      %4794 = vmatprep.subr.mxu0 0.0
      %4795 = vmatpush1.xpose.msra.mxu0 0.0
      %4796 = vmatprep.subr.mxu0 0.0
      %4797 = vmatpush1.xpose.msra.mxu0 0.0
      %4798 = vmatprep.subr.mxu0 0.0
      %4799 = vmatpush1.xpose.msra.mxu0 0.0
      %4800 = vmatprep.subr.mxu0 0.0
      %4801 = vmatpush1.xpose.msra.mxu0 0.0
      %4802 = vmatprep.subr.mxu0 0.0
      %4803 = vmatpush1.xpose.msra.mxu0 0.0
      %4804 = vmatprep.subr.mxu0 0.0
      %4805 = vmatpush1.xpose.msra.mxu0 0.0
      %4806 = vmatprep.subr.mxu0 0.0
      %4807 = vmatpush1.xpose.msra.mxu0 0.0
      %4808 = vmatprep.subr.mxu0 0.0
      %4809 = vmatpush1.xpose.msra.mxu0 0.0
      %4810 = vmatprep.subr.mxu0 0.0
      %4811 = vmatpush1.xpose.msra.mxu0 0.0
      %4812 = vmatprep.subr.mxu0 0.0
      %4813 = vmatpush1.xpose.msra.mxu0 0.0
      %4814 = vmatprep.subr.mxu0 0.0
      %4815 = vmatpush1.xpose.msra.mxu0 0.0
      %4816 = vmatprep.subr.mxu0 0.0
      %4817 = vmatpush1.xpose.msra.mxu0 0.0
      %4818 = vmatprep.subr.mxu0 0.0
      %4819 = vmatpush1.xpose.msra.mxu0 0.0
      %4820 = vmatprep.subr.mxu0 0.0
      %4821 = vmatpush1.xpose.msra.mxu0 0.0
      %4822 = vmatprep.subr.mxu0 0.0
      %4823 = vmatpush1.xpose.msra.mxu0 0.0
      %4824 = vmatprep.subr.mxu0 0.0
      %4825 = vmatpush1.xpose.msra.mxu0 0.0
      %4826 = vmatprep.subr.mxu0 0.0
      %4827 = vmatpush1.xpose.msra.mxu0 0.0
      %4828 = vmatprep.subr.mxu0 0.0
      %4829 = vmatpush1.xpose.msra.mxu0 0.0
      %4830 = vmatprep.subr.mxu0 0.0
      %4831 = vmatpush1.xpose.msra.mxu0 0.0
      %4832 = vmatprep.subr.mxu0 0.0
      %4833 = vmatpush1.xpose.msra.mxu0 0.0
      %4834 = vmatprep.mubr.f32.mxu0 0.0
      %4835 = vmatmul.mubr.f32.gmra.mrb[0].mxu0 %v1231
      %v4836 = vpop.f32.mrb[0].mxu0
      %v4837 = vadd.f32 %v4756, %v4836
      %v4838 = vpop.f32.mrb[0].mxu0
      %4839 = vmatprep.mubr.f32.mxu0 0.0
      %4840 = vmatmul.mubr.f32.gmra.mrb[0].mxu0 %v1234
      %v4841 = vpop.f32.mrb[0].mxu0
      %v4842 = vadd.f32 %v4756, %v4841
      %v4843 = vpop.f32.mrb[0].mxu0
      %4844 = vmatprep.mubr.f32.mxu0 0.0
      %4845 = vmatmul.mubr.f32.gmra.mrb[0].mxu0 %v1237
      %v4846 = vpop.f32.mrb[0].mxu0
      %v4847 = vadd.f32 %v4756, %v4846
      %v4848 = vpop.f32.mrb[0].mxu0
      %4849 = vmatprep.mubr.f32.mxu0 0.0
      %4850 = vmatmul.mubr.f32.gmra.mrb[0].mxu0 %v1240
      %v4851 = vpop.f32.mrb[0].mxu0
      %v4852 = vadd.f32 %v4756, %v4851
      %v4853 = vpop.f32.mrb[0].mxu0
      %4854 = vmatprep.mubr.f32.mxu0 0.0
      %4855 = vmatmul.mubr.f32.gmra.mrb[0].mxu0 %v1243
      %v4856 = vpop.f32.mrb[0].mxu0
      %v4857 = vadd.f32 %v4756, %v4856
      %v4858 = vpop.f32.mrb[0].mxu0
      %4859 = vmatprep.mubr.f32.mxu0 0.0
      %4860 = vmatmul.mubr.f32.gmra.mrb[0].mxu0 %v1246
      %v4861 = vpop.f32.mrb[0].mxu0
      %v4862 = vadd.f32 %v4756, %v4861
      %v4863 = vpop.f32.mrb[0].mxu0
      %4864 = vmatprep.mubr.f32.mxu0 0.0
      %4865 = vmatmul.mubr.f32.gmra.mrb[0].mxu0 %v1249
      %v4866 = vpop.f32.mrb[0].mxu0
      %v4867 = vadd.f32 %v4756, %v4866
      %v4868 = vpop.f32.mrb[0].mxu0
      %4869 = vmatprep.mubr.f32.mxu0 0.0
      %4870 = vmatmul.mubr.f32.gmra.mrb[0].mxu0 %v1252
      %v4871 = vpop.f32.mrb[0].mxu0
      %v4872 = vadd.f32 %v4756, %v4871
      %v4873 = vpop.f32.mrb[0].mxu0
      %4874 = vmatprep.mubr.f32.mxu0 0.0
      %4875 = vmatmul.mubr.f32.gmra.mrb[0].mxu0 %v1255
      %v4876 = vpop.f32.mrb[0].mxu0
      %v4877 = vadd.f32 %v4756, %v4876
      %v4878 = vpop.f32.mrb[0].mxu0
      %4879 = vmatprep.mubr.f32.mxu0 0.0
      %4880 = vmatmul.mubr.f32.gmra.mrb[0].mxu0 %v1258
      %v4881 = vpop.f32.mrb[0].mxu0
      %v4882 = vadd.f32 %v4756, %v4881
      %v4883 = vpop.f32.mrb[0].mxu0
      %4884 = vmatprep.mubr.f32.mxu0 0.0
      %4885 = vmatmul.mubr.f32.gmra.mrb[0].mxu0 %v1261
      %v4886 = vpop.f32.mrb[0].mxu0
      %v4887 = vadd.f32 %v4756, %v4886
      %v4888 = vpop.f32.mrb[0].mxu0
      %4889 = vmatprep.mubr.f32.mxu0 0.0
      %4890 = vmatmul.mubr.f32.gmra.mrb[0].mxu0 %v1264
      %v4891 = vpop.f32.mrb[0].mxu0
      %v4892 = vadd.f32 %v4756, %v4891
      %v4893 = vpop.f32.mrb[0].mxu0
      %4894 = vmatprep.mubr.f32.mxu0 0.0
      %4895 = vmatmul.mubr.f32.gmra.mrb[0].mxu0 %v1267
      %v4896 = vpop.f32.mrb[0].mxu0
      %v4897 = vadd.f32 %v4756, %v4896
      %v4898 = vpop.f32.mrb[0].mxu0
      %4899 = vmatprep.mubr.f32.mxu0 0.0
      %4900 = vmatmul.mubr.f32.gmra.mrb[0].mxu0 %v1270
      %v4901 = vpop.f32.mrb[0].mxu0
      %v4902 = vadd.f32 %v4756, %v4901
      %v4903 = vpop.f32.mrb[0].mxu0
      %4904 = vmatprep.mubr.f32.mxu0 0.0
      %4905 = vmatmul.mubr.f32.gmra.mrb[0].mxu0 %v1273
      %v4906 = vpop.f32.mrb[0].mxu0
      %v4907 = vadd.f32 %v4756, %v4906
      %v4908 = vpop.f32.mrb[0].mxu0
      %4909 = vmatprep.mubr.f32.mxu0 0.0
      %4910 = vmatmul.mubr.f32.gmra.mrb[0].mxu0 %v1276
      %v4911 = vpop.f32.mrb[0].mxu0
      %v4912 = vadd.f32 %v4756, %v4911
      %v4913 = vpop.f32.mrb[0].mxu0
      %4914 = vmatprep.mubr.f32.mxu0 0.0
      %4915 = vmatmul.mubr.f32.gmra.mrb[0].mxu0 %v1279
      %v4916 = vpop.f32.mrb[0].mxu0
      %v4917 = vadd.f32 %v4756, %v4916
      %v4918 = vpop.f32.mrb[0].mxu0
      %4919 = vmatprep.mubr.f32.mxu0 0.0
      %4920 = vmatmul.mubr.f32.gmra.mrb[0].mxu0 %v1282
      %v4921 = vpop.f32.mrb[0].mxu0
      %v4922 = vadd.f32 %v4756, %v4921
      %v4923 = vpop.f32.mrb[0].mxu0
      %4924 = vmatprep.mubr.f32.mxu0 0.0
      %4925 = vmatmul.mubr.f32.gmra.mrb[0].mxu0 %v1285
      %v4926 = vpop.f32.mrb[0].mxu0
      %v4927 = vadd.f32 %v4756, %v4926
      %v4928 = vpop.f32.mrb[0].mxu0
      %4929 = vmatprep.mubr.f32.mxu0 0.0
      %4930 = vmatmul.mubr.f32.gmra.mrb[0].mxu0 %v1288
      %v4931 = vpop.f32.mrb[0].mxu0
      %v4932 = vadd.f32 %v4756, %v4931
      %v4933 = vpop.f32.mrb[0].mxu0
      %4934 = vmatprep.mubr.f32.mxu0 0.0
      %4935 = vmatmul.mubr.f32.gmra.mrb[0].mxu0 %v1291
      %v4936 = vpop.f32.mrb[0].mxu0
      %v4937 = vadd.f32 %v4756, %v4936
      %v4938 = vpop.f32.mrb[0].mxu0
      %4939 = vmatprep.mubr.f32.mxu0 0.0
      %4940 = vmatmul.mubr.f32.gmra.mrb[0].mxu0 %v1294
      %v4941 = vpop.f32.mrb[0].mxu0
      %v4942 = vadd.f32 %v4756, %v4941
      %v4943 = vpop.f32.mrb[0].mxu0
      %4944 = vmatprep.mubr.f32.mxu0 0.0
      %4945 = vmatmul.mubr.f32.gmra.mrb[0].mxu0 %v1297
      %v4946 = vpop.f32.mrb[0].mxu0
      %v4947 = vadd.f32 %v4756, %v4946
      %v4948 = vpop.f32.mrb[0].mxu0
      %4949 = vmatprep.mubr.f32.mxu0 0.0
      %4950 = vmatmul.mubr.f32.gmra.mrb[0].mxu0 %v1300
      %v4951 = vpop.f32.mrb[0].mxu0
      %v4952 = vadd.f32 %v4756, %v4951
      %v4953 = vpop.f32.mrb[0].mxu0
      %4954 = vmatprep.mubr.f32.mxu0 0.0
      %4955 = vmatmul.mubr.f32.gmra.mrb[0].mxu0 %v1303
      %v4956 = vpop.f32.mrb[0].mxu0
      %v4957 = vadd.f32 %v4756, %v4956
      %v4958 = vpop.f32.mrb[0].mxu0
      %4959 = vmatprep.mubr.f32.mxu0 0.0
      %4960 = vmatmul.mubr.f32.gmra.mrb[0].mxu0 %v1306
      %v4961 = vpop.f32.mrb[0].mxu0
      %v4962 = vadd.f32 %v4756, %v4961
      %v4963 = vpop.f32.mrb[0].mxu0
      %4964 = vmatprep.mubr.f32.mxu0 0.0
      %4965 = vmatmul.mubr.f32.gmra.mrb[0].mxu0 %v1309
      %v4966 = vpop.f32.mrb[0].mxu0
      %v4967 = vadd.f32 %v4756, %v4966
      %v4968 = vpop.f32.mrb[0].mxu0
      %4969 = vmatprep.mubr.f32.mxu0 0.0
      %4970 = vmatmul.mubr.f32.gmra.mrb[0].mxu0 %v1312
      %v4971 = vpop.f32.mrb[0].mxu0
      %v4972 = vadd.f32 %v4756, %v4971
      %v4973 = vpop.f32.mrb[0].mxu0
      %4974 = vmatprep.mubr.f32.mxu0 0.0
      %4975 = vmatmul.mubr.f32.gmra.mrb[0].mxu0 %v1315
      %v4976 = vpop.f32.mrb[0].mxu0
      %v4977 = vadd.f32 %v4756, %v4976
      %v4978 = vpop.f32.mrb[0].mxu0
      %4979 = vmatprep.mubr.f32.mxu0 0.0
      %4980 = vmatmul.mubr.f32.gmra.mrb[0].mxu0 %v1318
      %v4981 = vpop.f32.mrb[0].mxu0
      %v4982 = vadd.f32 %v4756, %v4981
      %v4983 = vpop.f32.mrb[0].mxu0
      %4984 = vmatprep.mubr.f32.mxu0 0.0
      %4985 = vmatmul.mubr.f32.gmra.mrb[0].mxu0 %v1321
      %v4986 = vpop.f32.mrb[0].mxu0
      %v4987 = vadd.f32 %v4756, %v4986
      %v4988 = vpop.f32.mrb[0].mxu0
      %4989 = vmatprep.mubr.f32.mxu0 0.0
      %4990 = vmatmul.mubr.f32.gmra.mrb[0].mxu0 %v1324
      %v4991 = vpop.f32.mrb[0].mxu0
      %v4992 = vadd.f32 %v4756, %v4991
      %v4993 = vpop.f32.mrb[0].mxu0
      %4994 = vdwg.mxu0
      %v4996 = vsel %vm1563, %v4514, 0
      %v4999 = vsel %vm1563, %v4597, 0
      %v5002 = vsel %vm1563, %v4602, 0
      %v5005 = vsel %vm1563, %v4607, 0
      %v5008 = vsel %vm1563, %v4612, 0
      %v5011 = vsel %vm1563, %v4617, 0
      %v5014 = vsel %vm1563, %v4622, 0
      %v5017 = vsel %vm1563, %v4627, 0
      %v5020 = vsel %vm1563, %v4632, 0
      %v5023 = vsel %vm1563, %v4637, 0
      %v5026 = vsel %vm1563, %v4642, 0
      %v5029 = vsel %vm1563, %v4647, 0
      %v5032 = vsel %vm1563, %v4652, 0
      %v5035 = vsel %vm1563, %v4657, 0
      %v5038 = vsel %vm1563, %v4662, 0
      %v5041 = vsel %vm1563, %v4667, 0
      %v5044 = vsel %vm1563, %v4672, 0
      %v5047 = vsel %vm1563, %v4677, 0
      %v5050 = vsel %vm1563, %v4682, 0
      %v5053 = vsel %vm1563, %v4687, 0
      %v5056 = vsel %vm1563, %v4692, 0
      %v5059 = vsel %vm1563, %v4697, 0
      %v5062 = vsel %vm1563, %v4702, 0
      %v5065 = vsel %vm1563, %v4707, 0
      %v5068 = vsel %vm1563, %v4712, 0
      %v5071 = vsel %vm1563, %v4717, 0
      %v5074 = vsel %vm1563, %v4722, 0
      %v5077 = vsel %vm1563, %v4727, 0
      %v5080 = vsel %vm1563, %v4732, 0
      %v5083 = vsel %vm1563, %v4737, 0
      %v5086 = vsel %vm1563, %v4742, 0
      %v5089 = vsel %vm1563, %v4747, 0
      %v5092 = vsel %vm1563, %v4752, 0
      %5094 = vmatprep.subr.mxu0 0.0
      %5095 = vmatpush1.xpose.msra.mxu0 %v4999
      %5096 = vmatprep.subr.mxu0 0.0
      %5097 = vmatpush1.xpose.msra.mxu0 %v5002
      %5098 = vmatprep.subr.mxu0 0.0
      %5099 = vmatpush1.xpose.msra.mxu0 %v5005
      %5100 = vmatprep.subr.mxu0 0.0
      %5101 = vmatpush1.xpose.msra.mxu0 %v5008
      %5102 = vmatprep.subr.mxu0 0.0
      %5103 = vmatpush1.xpose.msra.mxu0 %v5011
      %5104 = vmatprep.subr.mxu0 0.0
      %5105 = vmatpush1.xpose.msra.mxu0 %v5014
      %5106 = vmatprep.subr.mxu0 0.0
      %5107 = vmatpush1.xpose.msra.mxu0 %v5017
      %5108 = vmatprep.subr.mxu0 0.0
      %5109 = vmatpush1.xpose.msra.mxu0 %v5020
      %5110 = vmatprep.subr.mxu0 0.0
      %5111 = vmatpush1.xpose.msra.mxu0 %v5023
      %5112 = vmatprep.subr.mxu0 0.0
      %5113 = vmatpush1.xpose.msra.mxu0 %v5026
      %5114 = vmatprep.subr.mxu0 0.0
      %5115 = vmatpush1.xpose.msra.mxu0 %v5029
      %5116 = vmatprep.subr.mxu0 0.0
      %5117 = vmatpush1.xpose.msra.mxu0 %v5032
      %5118 = vmatprep.subr.mxu0 0.0
      %5119 = vmatpush1.xpose.msra.mxu0 %v5035
      %5120 = vmatprep.subr.mxu0 0.0
      %5121 = vmatpush1.xpose.msra.mxu0 %v5038
      %5122 = vmatprep.subr.mxu0 0.0
      %5123 = vmatpush1.xpose.msra.mxu0 %v5041
      %5124 = vmatprep.subr.mxu0 0.0
      %5125 = vmatpush1.xpose.msra.mxu0 %v5044
      %5126 = vmatprep.subr.mxu0 0.0
      %5127 = vmatpush1.xpose.msra.mxu0 %v5047
      %5128 = vmatprep.subr.mxu0 0.0
      %5129 = vmatpush1.xpose.msra.mxu0 %v5050
      %5130 = vmatprep.subr.mxu0 0.0
      %5131 = vmatpush1.xpose.msra.mxu0 %v5053
      %5132 = vmatprep.subr.mxu0 0.0
      %5133 = vmatpush1.xpose.msra.mxu0 %v5056
      %5134 = vmatprep.subr.mxu0 0.0
      %5135 = vmatpush1.xpose.msra.mxu0 %v5059
      %5136 = vmatprep.subr.mxu0 0.0
      %5137 = vmatpush1.xpose.msra.mxu0 %v5062
      %5138 = vmatprep.subr.mxu0 0.0
      %5139 = vmatpush1.xpose.msra.mxu0 %v5065
      %5140 = vmatprep.subr.mxu0 0.0
      %5141 = vmatpush1.xpose.msra.mxu0 %v5068
      %5142 = vmatprep.subr.mxu0 0.0
      %5143 = vmatpush1.xpose.msra.mxu0 %v5071
      %5144 = vmatprep.subr.mxu0 0.0
      %5145 = vmatpush1.xpose.msra.mxu0 %v5074
      %5146 = vmatprep.subr.mxu0 0.0
      %5147 = vmatpush1.xpose.msra.mxu0 %v5077
      %5148 = vmatprep.subr.mxu0 0.0
      %5149 = vmatpush1.xpose.msra.mxu0 %v5080
      %5150 = vmatprep.subr.mxu0 0.0
      %5151 = vmatpush1.xpose.msra.mxu0 %v5083
      %5152 = vmatprep.subr.mxu0 0.0
      %5153 = vmatpush1.xpose.msra.mxu0 %v5086
      %5154 = vmatprep.subr.mxu0 0.0
      %5155 = vmatpush1.xpose.msra.mxu0 %v5089
      %5156 = vmatprep.subr.mxu0 0.0
      %5157 = vmatpush1.xpose.msra.mxu0 %v5092
      %5158 = vmatprep.mubr.f32.mxu0 0.0
      %5159 = vmatmul.mubr.f32.gmra.mrb[0].mxu0 %v4996
      %v5160 = vpop.f32.mrb[0].mxu0
      %v5161 = vadd.f32 0.0, %v5160
      %v5162 = vpop.f32.mrb[0].mxu0
      %v5163 = vadd.f32 0.0, %v5162
      %5164 = vdwg.mxu0
      %5165 = vrot.lane.b32.xlu0 %v4514, 120
      %v5166 = vpop.permute.xlu0 %5165
      %5167 = vrot.lane.b32.xlu0 %v4597, 120
      %v5168 = vpop.permute.xlu0 %5167
      %5169 = vrot.lane.b32.xlu0 %v4602, 120
      %v5170 = vpop.permute.xlu0 %5169
      %5171 = vrot.lane.b32.xlu0 %v4607, 120
      %v5172 = vpop.permute.xlu0 %5171
      %5173 = vrot.lane.b32.xlu0 %v4612, 120
      %v5174 = vpop.permute.xlu0 %5173
      %5175 = vrot.lane.b32.xlu0 %v4617, 120
      %v5176 = vpop.permute.xlu0 %5175
      %5177 = vrot.lane.b32.xlu0 %v4622, 120
      %v5178 = vpop.permute.xlu0 %5177
      %5179 = vrot.lane.b32.xlu0 %v4627, 120
      %v5180 = vpop.permute.xlu0 %5179
      %5181 = vrot.lane.b32.xlu0 %v4632, 120
      %v5182 = vpop.permute.xlu0 %5181
      %5183 = vrot.lane.b32.xlu0 %v4637, 120
      %v5184 = vpop.permute.xlu0 %5183
      %5185 = vrot.lane.b32.xlu0 %v4642, 120
      %v5186 = vpop.permute.xlu0 %5185
      %5187 = vrot.lane.b32.xlu0 %v4647, 120
      %v5188 = vpop.permute.xlu0 %5187
      %5189 = vrot.lane.b32.xlu0 %v4652, 120
      %v5190 = vpop.permute.xlu0 %5189
      %5191 = vrot.lane.b32.xlu0 %v4657, 120
      %v5192 = vpop.permute.xlu0 %5191
      %5193 = vrot.lane.b32.xlu0 %v4662, 120
      %v5194 = vpop.permute.xlu0 %5193
      %5195 = vrot.lane.b32.xlu0 %v4667, 120
      %v5196 = vpop.permute.xlu0 %5195
      %5197 = vrot.lane.b32.xlu0 %v4672, 120
      %v5198 = vpop.permute.xlu0 %5197
      %5199 = vrot.lane.b32.xlu0 %v4677, 120
      %v5200 = vpop.permute.xlu0 %5199
      %5201 = vrot.lane.b32.xlu0 %v4682, 120
      %v5202 = vpop.permute.xlu0 %5201
      %5203 = vrot.lane.b32.xlu0 %v4687, 120
      %v5204 = vpop.permute.xlu0 %5203
      %5205 = vrot.lane.b32.xlu0 %v4692, 120
      %v5206 = vpop.permute.xlu0 %5205
      %5207 = vrot.lane.b32.xlu0 %v4697, 120
      %v5208 = vpop.permute.xlu0 %5207
      %5209 = vrot.lane.b32.xlu0 %v4702, 120
      %v5210 = vpop.permute.xlu0 %5209
      %5211 = vrot.lane.b32.xlu0 %v4707, 120
      %v5212 = vpop.permute.xlu0 %5211
      %5213 = vrot.lane.b32.xlu0 %v4712, 120
      %v5214 = vpop.permute.xlu0 %5213
      %5215 = vrot.lane.b32.xlu0 %v4717, 120
      %v5216 = vpop.permute.xlu0 %5215
      %5217 = vrot.lane.b32.xlu0 %v4722, 120
      %v5218 = vpop.permute.xlu0 %5217
      %5219 = vrot.lane.b32.xlu0 %v4727, 120
      %v5220 = vpop.permute.xlu0 %5219
      %5221 = vrot.lane.b32.xlu0 %v4732, 120
      %v5222 = vpop.permute.xlu0 %5221
      %5223 = vrot.lane.b32.xlu0 %v4737, 120
      %v5224 = vpop.permute.xlu0 %5223
      %5225 = vrot.lane.b32.xlu0 %v4742, 120
      %v5226 = vpop.permute.xlu0 %5225
      %5227 = vrot.lane.b32.xlu0 %v4747, 120
      %v5228 = vpop.permute.xlu0 %5227
      %5229 = vrot.lane.b32.xlu0 %v4752, 120
      %v5230 = vpop.permute.xlu0 %5229
      %v5231 = vsel %vm1563, %v5166, 0
      %v5233 = vsel %vm1563, %v5168, 0
      %v5235 = vsel %vm1563, %v5170, 0
      %v5237 = vsel %vm1563, %v5172, 0
      %v5239 = vsel %vm1563, %v5174, 0
      %v5241 = vsel %vm1563, %v5176, 0
      %v5243 = vsel %vm1563, %v5178, 0
      %v5245 = vsel %vm1563, %v5180, 0
      %v5247 = vsel %vm1563, %v5182, 0
      %v5249 = vsel %vm1563, %v5184, 0
      %v5251 = vsel %vm1563, %v5186, 0
      %v5253 = vsel %vm1563, %v5188, 0
      %v5255 = vsel %vm1563, %v5190, 0
      %v5257 = vsel %vm1563, %v5192, 0
      %v5259 = vsel %vm1563, %v5194, 0
      %v5261 = vsel %vm1563, %v5196, 0
      %v5263 = vsel %vm1563, %v5198, 0
      %v5265 = vsel %vm1563, %v5200, 0
      %v5267 = vsel %vm1563, %v5202, 0
      %v5269 = vsel %vm1563, %v5204, 0
      %v5271 = vsel %vm1563, %v5206, 0
      %v5273 = vsel %vm1563, %v5208, 0
      %v5275 = vsel %vm1563, %v5210, 0
      %v5277 = vsel %vm1563, %v5212, 0
      %v5279 = vsel %vm1563, %v5214, 0
      %v5281 = vsel %vm1563, %v5216, 0
      %v5283 = vsel %vm1563, %v5218, 0
      %v5285 = vsel %vm1563, %v5220, 0
      %v5287 = vsel %vm1563, %v5222, 0
      %v5289 = vsel %vm1563, %v5224, 0
      %v5291 = vsel %vm1563, %v5226, 0
      %v5293 = vsel %vm1563, %v5228, 0
      %v5295 = vsel %vm1563, %v5230, 0
      %5297 = vmatprep.subr.mxu0 0.0
      %5298 = vmatpush1.xpose.msra.mxu0 %v5233
      %5299 = vmatprep.subr.mxu0 0.0
      %5300 = vmatpush1.xpose.msra.mxu0 %v5235
      %5301 = vmatprep.subr.mxu0 0.0
      %5302 = vmatpush1.xpose.msra.mxu0 %v5237
      %5303 = vmatprep.subr.mxu0 0.0
      %5304 = vmatpush1.xpose.msra.mxu0 %v5239
      %5305 = vmatprep.subr.mxu0 0.0
      %5306 = vmatpush1.xpose.msra.mxu0 %v5241
      %5307 = vmatprep.subr.mxu0 0.0
      %5308 = vmatpush1.xpose.msra.mxu0 %v5243
      %5309 = vmatprep.subr.mxu0 0.0
      %5310 = vmatpush1.xpose.msra.mxu0 %v5245
      %5311 = vmatprep.subr.mxu0 0.0
      %5312 = vmatpush1.xpose.msra.mxu0 %v5247
      %5313 = vmatprep.subr.mxu0 0.0
      %5314 = vmatpush1.xpose.msra.mxu0 %v5249
      %5315 = vmatprep.subr.mxu0 0.0
      %5316 = vmatpush1.xpose.msra.mxu0 %v5251
      %5317 = vmatprep.subr.mxu0 0.0
      %5318 = vmatpush1.xpose.msra.mxu0 %v5253
      %5319 = vmatprep.subr.mxu0 0.0
      %5320 = vmatpush1.xpose.msra.mxu0 %v5255
      %5321 = vmatprep.subr.mxu0 0.0
      %5322 = vmatpush1.xpose.msra.mxu0 %v5257
      %5323 = vmatprep.subr.mxu0 0.0
      %5324 = vmatpush1.xpose.msra.mxu0 %v5259
      %5325 = vmatprep.subr.mxu0 0.0
      %5326 = vmatpush1.xpose.msra.mxu0 %v5261
      %5327 = vmatprep.subr.mxu0 0.0
      %5328 = vmatpush1.xpose.msra.mxu0 %v5263
      %5329 = vmatprep.subr.mxu0 0.0
      %5330 = vmatpush1.xpose.msra.mxu0 %v5265
      %5331 = vmatprep.subr.mxu0 0.0
      %5332 = vmatpush1.xpose.msra.mxu0 %v5267
      %5333 = vmatprep.subr.mxu0 0.0
      %5334 = vmatpush1.xpose.msra.mxu0 %v5269
      %5335 = vmatprep.subr.mxu0 0.0
      %5336 = vmatpush1.xpose.msra.mxu0 %v5271
      %5337 = vmatprep.subr.mxu0 0.0
      %5338 = vmatpush1.xpose.msra.mxu0 %v5273
      %5339 = vmatprep.subr.mxu0 0.0
      %5340 = vmatpush1.xpose.msra.mxu0 %v5275
      %5341 = vmatprep.subr.mxu0 0.0
      %5342 = vmatpush1.xpose.msra.mxu0 %v5277
      %5343 = vmatprep.subr.mxu0 0.0
      %5344 = vmatpush1.xpose.msra.mxu0 %v5279
      %5345 = vmatprep.subr.mxu0 0.0
      %5346 = vmatpush1.xpose.msra.mxu0 %v5281
      %5347 = vmatprep.subr.mxu0 0.0
      %5348 = vmatpush1.xpose.msra.mxu0 %v5283
      %5349 = vmatprep.subr.mxu0 0.0
      %5350 = vmatpush1.xpose.msra.mxu0 %v5285
      %5351 = vmatprep.subr.mxu0 0.0
      %5352 = vmatpush1.xpose.msra.mxu0 %v5287
      %5353 = vmatprep.subr.mxu0 0.0
      %5354 = vmatpush1.xpose.msra.mxu0 %v5289
      %5355 = vmatprep.subr.mxu0 0.0
      %5356 = vmatpush1.xpose.msra.mxu0 %v5291
      %5357 = vmatprep.subr.mxu0 0.0
      %5358 = vmatpush1.xpose.msra.mxu0 %v5293
      %5359 = vmatprep.subr.mxu0 0.0
      %5360 = vmatpush1.xpose.msra.mxu0 %v5295
      %5361 = vmatprep.mubr.f32.mxu0 0.0
      %5362 = vmatmul.mubr.f32.gmra.mrb[0].mxu0 %v5231
      %v5363 = vpop.f32.mrb[0].mxu0
      %v5364 = vadd.f32 0.0, %v5363
      %v5365 = vpop.f32.mrb[0].mxu0
      %v5366 = vadd.f32 0.0, %v5365
      %5367 = vdwg.mxu0
      %5368 = vrot.lane.b32.xlu0 %v4514, 112
      %v5369 = vpop.permute.xlu0 %5368
      %5370 = vrot.lane.b32.xlu0 %v4597, 112
      %v5371 = vpop.permute.xlu0 %5370
      %5372 = vrot.lane.b32.xlu0 %v4602, 112
      %v5373 = vpop.permute.xlu0 %5372
      %5374 = vrot.lane.b32.xlu0 %v4607, 112
      %v5375 = vpop.permute.xlu0 %5374
      %5376 = vrot.lane.b32.xlu0 %v4612, 112
      %v5377 = vpop.permute.xlu0 %5376
      %5378 = vrot.lane.b32.xlu0 %v4617, 112
      %v5379 = vpop.permute.xlu0 %5378
      %5380 = vrot.lane.b32.xlu0 %v4622, 112
      %v5381 = vpop.permute.xlu0 %5380
      %5382 = vrot.lane.b32.xlu0 %v4627, 112
      %v5383 = vpop.permute.xlu0 %5382
      %5384 = vrot.lane.b32.xlu0 %v4632, 112
      %v5385 = vpop.permute.xlu0 %5384
      %5386 = vrot.lane.b32.xlu0 %v4637, 112
      %v5387 = vpop.permute.xlu0 %5386
      %5388 = vrot.lane.b32.xlu0 %v4642, 112
      %v5389 = vpop.permute.xlu0 %5388
      %5390 = vrot.lane.b32.xlu0 %v4647, 112
      %v5391 = vpop.permute.xlu0 %5390
      %5392 = vrot.lane.b32.xlu0 %v4652, 112
      %v5393 = vpop.permute.xlu0 %5392
      %5394 = vrot.lane.b32.xlu0 %v4657, 112
      %v5395 = vpop.permute.xlu0 %5394
      %5396 = vrot.lane.b32.xlu0 %v4662, 112
      %v5397 = vpop.permute.xlu0 %5396
      %5398 = vrot.lane.b32.xlu0 %v4667, 112
      %v5399 = vpop.permute.xlu0 %5398
      %5400 = vrot.lane.b32.xlu0 %v4672, 112
      %v5401 = vpop.permute.xlu0 %5400
      %5402 = vrot.lane.b32.xlu0 %v4677, 112
      %v5403 = vpop.permute.xlu0 %5402
      %5404 = vrot.lane.b32.xlu0 %v4682, 112
      %v5405 = vpop.permute.xlu0 %5404
      %5406 = vrot.lane.b32.xlu0 %v4687, 112
      %v5407 = vpop.permute.xlu0 %5406
      %5408 = vrot.lane.b32.xlu0 %v4692, 112
      %v5409 = vpop.permute.xlu0 %5408
      %5410 = vrot.lane.b32.xlu0 %v4697, 112
      %v5411 = vpop.permute.xlu0 %5410
      %5412 = vrot.lane.b32.xlu0 %v4702, 112
      %v5413 = vpop.permute.xlu0 %5412
      %5414 = vrot.lane.b32.xlu0 %v4707, 112
      %v5415 = vpop.permute.xlu0 %5414
      %5416 = vrot.lane.b32.xlu0 %v4712, 112
      %v5417 = vpop.permute.xlu0 %5416
      %5418 = vrot.lane.b32.xlu0 %v4717, 112
      %v5419 = vpop.permute.xlu0 %5418
      %5420 = vrot.lane.b32.xlu0 %v4722, 112
      %v5421 = vpop.permute.xlu0 %5420
      %5422 = vrot.lane.b32.xlu0 %v4727, 112
      %v5423 = vpop.permute.xlu0 %5422
      %5424 = vrot.lane.b32.xlu0 %v4732, 112
      %v5425 = vpop.permute.xlu0 %5424
      %5426 = vrot.lane.b32.xlu0 %v4737, 112
      %v5427 = vpop.permute.xlu0 %5426
      %5428 = vrot.lane.b32.xlu0 %v4742, 112
      %v5429 = vpop.permute.xlu0 %5428
      %5430 = vrot.lane.b32.xlu0 %v4747, 112
      %v5431 = vpop.permute.xlu0 %5430
      %5432 = vrot.lane.b32.xlu0 %v4752, 112
      %v5433 = vpop.permute.xlu0 %5432
      %v5434 = vsel %vm1563, %v5369, 0
      %v5436 = vsel %vm1563, %v5371, 0
      %v5438 = vsel %vm1563, %v5373, 0
      %v5440 = vsel %vm1563, %v5375, 0
      %v5442 = vsel %vm1563, %v5377, 0
      %v5444 = vsel %vm1563, %v5379, 0
      %v5446 = vsel %vm1563, %v5381, 0
      %v5448 = vsel %vm1563, %v5383, 0
      %v5450 = vsel %vm1563, %v5385, 0
      %v5452 = vsel %vm1563, %v5387, 0
      %v5454 = vsel %vm1563, %v5389, 0
      %v5456 = vsel %vm1563, %v5391, 0
      %v5458 = vsel %vm1563, %v5393, 0
      %v5460 = vsel %vm1563, %v5395, 0
      %v5462 = vsel %vm1563, %v5397, 0
      %v5464 = vsel %vm1563, %v5399, 0
      %v5466 = vsel %vm1563, %v5401, 0
      %v5468 = vsel %vm1563, %v5403, 0
      %v5470 = vsel %vm1563, %v5405, 0
      %v5472 = vsel %vm1563, %v5407, 0
      %v5474 = vsel %vm1563, %v5409, 0
      %v5476 = vsel %vm1563, %v5411, 0
      %v5478 = vsel %vm1563, %v5413, 0
      %v5480 = vsel %vm1563, %v5415, 0
      %v5482 = vsel %vm1563, %v5417, 0
      %v5484 = vsel %vm1563, %v5419, 0
      %v5486 = vsel %vm1563, %v5421, 0
      %v5488 = vsel %vm1563, %v5423, 0
      %v5490 = vsel %vm1563, %v5425, 0
      %v5492 = vsel %vm1563, %v5427, 0
      %v5494 = vsel %vm1563, %v5429, 0
      %v5496 = vsel %vm1563, %v5431, 0
      %v5498 = vsel %vm1563, %v5433, 0
      %5500 = vmatprep.subr.mxu0 0.0
      %5501 = vmatpush1.xpose.msra.mxu0 %v5436
      %5502 = vmatprep.subr.mxu0 0.0
      %5503 = vmatpush1.xpose.msra.mxu0 %v5438
      %5504 = vmatprep.subr.mxu0 0.0
      %5505 = vmatpush1.xpose.msra.mxu0 %v5440
      %5506 = vmatprep.subr.mxu0 0.0
      %5507 = vmatpush1.xpose.msra.mxu0 %v5442
      %5508 = vmatprep.subr.mxu0 0.0
      %5509 = vmatpush1.xpose.msra.mxu0 %v5444
      %5510 = vmatprep.subr.mxu0 0.0
      %5511 = vmatpush1.xpose.msra.mxu0 %v5446
      %5512 = vmatprep.subr.mxu0 0.0
      %5513 = vmatpush1.xpose.msra.mxu0 %v5448
      %5514 = vmatprep.subr.mxu0 0.0
      %5515 = vmatpush1.xpose.msra.mxu0 %v5450
      %5516 = vmatprep.subr.mxu0 0.0
      %5517 = vmatpush1.xpose.msra.mxu0 %v5452
      %5518 = vmatprep.subr.mxu0 0.0
      %5519 = vmatpush1.xpose.msra.mxu0 %v5454
      %5520 = vmatprep.subr.mxu0 0.0
      %5521 = vmatpush1.xpose.msra.mxu0 %v5456
      %5522 = vmatprep.subr.mxu0 0.0
      %5523 = vmatpush1.xpose.msra.mxu0 %v5458
      %5524 = vmatprep.subr.mxu0 0.0
      %5525 = vmatpush1.xpose.msra.mxu0 %v5460
      %5526 = vmatprep.subr.mxu0 0.0
      %5527 = vmatpush1.xpose.msra.mxu0 %v5462
      %5528 = vmatprep.subr.mxu0 0.0
      %5529 = vmatpush1.xpose.msra.mxu0 %v5464
      %5530 = vmatprep.subr.mxu0 0.0
      %5531 = vmatpush1.xpose.msra.mxu0 %v5466
      %5532 = vmatprep.subr.mxu0 0.0
      %5533 = vmatpush1.xpose.msra.mxu0 %v5468
      %5534 = vmatprep.subr.mxu0 0.0
      %5535 = vmatpush1.xpose.msra.mxu0 %v5470
      %5536 = vmatprep.subr.mxu0 0.0
      %5537 = vmatpush1.xpose.msra.mxu0 %v5472
      %5538 = vmatprep.subr.mxu0 0.0
      %5539 = vmatpush1.xpose.msra.mxu0 %v5474
      %5540 = vmatprep.subr.mxu0 0.0
      %5541 = vmatpush1.xpose.msra.mxu0 %v5476
      %5542 = vmatprep.subr.mxu0 0.0
      %5543 = vmatpush1.xpose.msra.mxu0 %v5478
      %5544 = vmatprep.subr.mxu0 0.0
      %5545 = vmatpush1.xpose.msra.mxu0 %v5480
      %5546 = vmatprep.subr.mxu0 0.0
      %5547 = vmatpush1.xpose.msra.mxu0 %v5482
      %5548 = vmatprep.subr.mxu0 0.0
      %5549 = vmatpush1.xpose.msra.mxu0 %v5484
      %5550 = vmatprep.subr.mxu0 0.0
      %5551 = vmatpush1.xpose.msra.mxu0 %v5486
      %5552 = vmatprep.subr.mxu0 0.0
      %5553 = vmatpush1.xpose.msra.mxu0 %v5488
      %5554 = vmatprep.subr.mxu0 0.0
      %5555 = vmatpush1.xpose.msra.mxu0 %v5490
      %5556 = vmatprep.subr.mxu0 0.0
      %5557 = vmatpush1.xpose.msra.mxu0 %v5492
      %5558 = vmatprep.subr.mxu0 0.0
      %5559 = vmatpush1.xpose.msra.mxu0 %v5494
      %5560 = vmatprep.subr.mxu0 0.0
      %5561 = vmatpush1.xpose.msra.mxu0 %v5496
      %5562 = vmatprep.subr.mxu0 0.0
      %5563 = vmatpush1.xpose.msra.mxu0 %v5498
      %5564 = vmatprep.mubr.f32.mxu0 0.0
      %5565 = vmatmul.mubr.f32.gmra.mrb[0].mxu0 %v5434
      %v5566 = vpop.f32.mrb[0].mxu0
      %v5567 = vadd.f32 0.0, %v5566
      %v5568 = vpop.f32.mrb[0].mxu0
      %v5569 = vadd.f32 0.0, %v5568
      %5570 = vdwg.mxu0
      %5571 = vrot.lane.b32.xlu0 %v4514, 104
      %v5572 = vpop.permute.xlu0 %5571
      %5573 = vrot.lane.b32.xlu0 %v4597, 104
      %v5574 = vpop.permute.xlu0 %5573
      %5575 = vrot.lane.b32.xlu0 %v4602, 104
      %v5576 = vpop.permute.xlu0 %5575
      %5577 = vrot.lane.b32.xlu0 %v4607, 104
      %v5578 = vpop.permute.xlu0 %5577
      %5579 = vrot.lane.b32.xlu0 %v4612, 104
      %v5580 = vpop.permute.xlu0 %5579
      %5581 = vrot.lane.b32.xlu0 %v4617, 104
      %v5582 = vpop.permute.xlu0 %5581
      %5583 = vrot.lane.b32.xlu0 %v4622, 104
      %v5584 = vpop.permute.xlu0 %5583
      %5585 = vrot.lane.b32.xlu0 %v4627, 104
      %v5586 = vpop.permute.xlu0 %5585
      %5587 = vrot.lane.b32.xlu0 %v4632, 104
      %v5588 = vpop.permute.xlu0 %5587
      %5589 = vrot.lane.b32.xlu0 %v4637, 104
      %v5590 = vpop.permute.xlu0 %5589
      %5591 = vrot.lane.b32.xlu0 %v4642, 104
      %v5592 = vpop.permute.xlu0 %5591
      %5593 = vrot.lane.b32.xlu0 %v4647, 104
      %v5594 = vpop.permute.xlu0 %5593
      %5595 = vrot.lane.b32.xlu0 %v4652, 104
      %v5596 = vpop.permute.xlu0 %5595
      %5597 = vrot.lane.b32.xlu0 %v4657, 104
      %v5598 = vpop.permute.xlu0 %5597
      %5599 = vrot.lane.b32.xlu0 %v4662, 104
      %v5600 = vpop.permute.xlu0 %5599
      %5601 = vrot.lane.b32.xlu0 %v4667, 104
      %v5602 = vpop.permute.xlu0 %5601
      %5603 = vrot.lane.b32.xlu0 %v4672, 104
      %v5604 = vpop.permute.xlu0 %5603
      %5605 = vrot.lane.b32.xlu0 %v4677, 104
      %v5606 = vpop.permute.xlu0 %5605
      %5607 = vrot.lane.b32.xlu0 %v4682, 104
      %v5608 = vpop.permute.xlu0 %5607
      %5609 = vrot.lane.b32.xlu0 %v4687, 104
      %v5610 = vpop.permute.xlu0 %5609
      %5611 = vrot.lane.b32.xlu0 %v4692, 104
      %v5612 = vpop.permute.xlu0 %5611
      %5613 = vrot.lane.b32.xlu0 %v4697, 104
      %v5614 = vpop.permute.xlu0 %5613
      %5615 = vrot.lane.b32.xlu0 %v4702, 104
      %v5616 = vpop.permute.xlu0 %5615
      %5617 = vrot.lane.b32.xlu0 %v4707, 104
      %v5618 = vpop.permute.xlu0 %5617
      %5619 = vrot.lane.b32.xlu0 %v4712, 104
      %v5620 = vpop.permute.xlu0 %5619
      %5621 = vrot.lane.b32.xlu0 %v4717, 104
      %v5622 = vpop.permute.xlu0 %5621
      %5623 = vrot.lane.b32.xlu0 %v4722, 104
      %v5624 = vpop.permute.xlu0 %5623
      %5625 = vrot.lane.b32.xlu0 %v4727, 104
      %v5626 = vpop.permute.xlu0 %5625
      %5627 = vrot.lane.b32.xlu0 %v4732, 104
      %v5628 = vpop.permute.xlu0 %5627
      %5629 = vrot.lane.b32.xlu0 %v4737, 104
      %v5630 = vpop.permute.xlu0 %5629
      %5631 = vrot.lane.b32.xlu0 %v4742, 104
      %v5632 = vpop.permute.xlu0 %5631
      %5633 = vrot.lane.b32.xlu0 %v4747, 104
      %v5634 = vpop.permute.xlu0 %5633
      %5635 = vrot.lane.b32.xlu0 %v4752, 104
      %v5636 = vpop.permute.xlu0 %5635
      %v5637 = vsel %vm1563, %v5572, 0
      %v5639 = vsel %vm1563, %v5574, 0
      %v5641 = vsel %vm1563, %v5576, 0
      %v5643 = vsel %vm1563, %v5578, 0
      %v5645 = vsel %vm1563, %v5580, 0
      %v5647 = vsel %vm1563, %v5582, 0
      %v5649 = vsel %vm1563, %v5584, 0
      %v5651 = vsel %vm1563, %v5586, 0
      %v5653 = vsel %vm1563, %v5588, 0
      %v5655 = vsel %vm1563, %v5590, 0
      %v5657 = vsel %vm1563, %v5592, 0
      %v5659 = vsel %vm1563, %v5594, 0
      %v5661 = vsel %vm1563, %v5596, 0
      %v5663 = vsel %vm1563, %v5598, 0
      %v5665 = vsel %vm1563, %v5600, 0
      %v5667 = vsel %vm1563, %v5602, 0
      %v5669 = vsel %vm1563, %v5604, 0
      %v5671 = vsel %vm1563, %v5606, 0
      %v5673 = vsel %vm1563, %v5608, 0
      %v5675 = vsel %vm1563, %v5610, 0
      %v5677 = vsel %vm1563, %v5612, 0
      %v5679 = vsel %vm1563, %v5614, 0
      %v5681 = vsel %vm1563, %v5616, 0
      %v5683 = vsel %vm1563, %v5618, 0
      %v5685 = vsel %vm1563, %v5620, 0
      %v5687 = vsel %vm1563, %v5622, 0
      %v5689 = vsel %vm1563, %v5624, 0
      %v5691 = vsel %vm1563, %v5626, 0
      %v5693 = vsel %vm1563, %v5628, 0
      %v5695 = vsel %vm1563, %v5630, 0
      %v5697 = vsel %vm1563, %v5632, 0
      %v5699 = vsel %vm1563, %v5634, 0
      %v5701 = vsel %vm1563, %v5636, 0
      %5703 = vmatprep.subr.mxu0 0.0
      %5704 = vmatpush1.xpose.msra.mxu0 %v5639
      %5705 = vmatprep.subr.mxu0 0.0
      %5706 = vmatpush1.xpose.msra.mxu0 %v5641
      %5707 = vmatprep.subr.mxu0 0.0
      %5708 = vmatpush1.xpose.msra.mxu0 %v5643
      %5709 = vmatprep.subr.mxu0 0.0
      %5710 = vmatpush1.xpose.msra.mxu0 %v5645
      %5711 = vmatprep.subr.mxu0 0.0
      %5712 = vmatpush1.xpose.msra.mxu0 %v5647
      %5713 = vmatprep.subr.mxu0 0.0
      %5714 = vmatpush1.xpose.msra.mxu0 %v5649
      %5715 = vmatprep.subr.mxu0 0.0
      %5716 = vmatpush1.xpose.msra.mxu0 %v5651
      %5717 = vmatprep.subr.mxu0 0.0
      %5718 = vmatpush1.xpose.msra.mxu0 %v5653
      %5719 = vmatprep.subr.mxu0 0.0
      %5720 = vmatpush1.xpose.msra.mxu0 %v5655
      %5721 = vmatprep.subr.mxu0 0.0
      %5722 = vmatpush1.xpose.msra.mxu0 %v5657
      %5723 = vmatprep.subr.mxu0 0.0
      %5724 = vmatpush1.xpose.msra.mxu0 %v5659
      %5725 = vmatprep.subr.mxu0 0.0
      %5726 = vmatpush1.xpose.msra.mxu0 %v5661
      %5727 = vmatprep.subr.mxu0 0.0
      %5728 = vmatpush1.xpose.msra.mxu0 %v5663
      %5729 = vmatprep.subr.mxu0 0.0
      %5730 = vmatpush1.xpose.msra.mxu0 %v5665
      %5731 = vmatprep.subr.mxu0 0.0
      %5732 = vmatpush1.xpose.msra.mxu0 %v5667
      %5733 = vmatprep.subr.mxu0 0.0
      %5734 = vmatpush1.xpose.msra.mxu0 %v5669
      %5735 = vmatprep.subr.mxu0 0.0
      %5736 = vmatpush1.xpose.msra.mxu0 %v5671
      %5737 = vmatprep.subr.mxu0 0.0
      %5738 = vmatpush1.xpose.msra.mxu0 %v5673
      %5739 = vmatprep.subr.mxu0 0.0
      %5740 = vmatpush1.xpose.msra.mxu0 %v5675
      %5741 = vmatprep.subr.mxu0 0.0
      %5742 = vmatpush1.xpose.msra.mxu0 %v5677
      %5743 = vmatprep.subr.mxu0 0.0
      %5744 = vmatpush1.xpose.msra.mxu0 %v5679
      %5745 = vmatprep.subr.mxu0 0.0
      %5746 = vmatpush1.xpose.msra.mxu0 %v5681
      %5747 = vmatprep.subr.mxu0 0.0
      %5748 = vmatpush1.xpose.msra.mxu0 %v5683
      %5749 = vmatprep.subr.mxu0 0.0
      %5750 = vmatpush1.xpose.msra.mxu0 %v5685
      %5751 = vmatprep.subr.mxu0 0.0
      %5752 = vmatpush1.xpose.msra.mxu0 %v5687
      %5753 = vmatprep.subr.mxu0 0.0
      %5754 = vmatpush1.xpose.msra.mxu0 %v5689
      %5755 = vmatprep.subr.mxu0 0.0
      %5756 = vmatpush1.xpose.msra.mxu0 %v5691
      %5757 = vmatprep.subr.mxu0 0.0
      %5758 = vmatpush1.xpose.msra.mxu0 %v5693
      %5759 = vmatprep.subr.mxu0 0.0
      %5760 = vmatpush1.xpose.msra.mxu0 %v5695
      %5761 = vmatprep.subr.mxu0 0.0
      %5762 = vmatpush1.xpose.msra.mxu0 %v5697
      %5763 = vmatprep.subr.mxu0 0.0
      %5764 = vmatpush1.xpose.msra.mxu0 %v5699
      %5765 = vmatprep.subr.mxu0 0.0
      %5766 = vmatpush1.xpose.msra.mxu0 %v5701
      %5767 = vmatprep.mubr.f32.mxu0 0.0
      %5768 = vmatmul.mubr.f32.gmra.mrb[0].mxu0 %v5637
      %v5769 = vpop.f32.mrb[0].mxu0
      %v5770 = vadd.f32 0.0, %v5769
      %v5771 = vpop.f32.mrb[0].mxu0
      %v5772 = vadd.f32 0.0, %v5771
      %5773 = vdwg.mxu0
      %v5774 = vmax.f32 %v5161, %v5163
      %5775 = vmax.xlane.f32.xlu0 %v5774
      %v5776 = vpop.xlane.xlu0 %5775
      %v5777 = vmax.f32 %v5364, %v5366
      %5778 = vmax.xlane.f32.xlu0 %v5777
      %v5779 = vpop.xlane.xlu0 %5778
      %v5780 = vmax.f32 %v5567, %v5569
      %5781 = vmax.xlane.f32.xlu0 %v5780
      %v5782 = vpop.xlane.xlu0 %5781
      %v5783 = vmax.f32 %v5770, %v5772
      %5784 = vmax.xlane.f32.xlu0 %v5783
      %v5785 = vpop.xlane.xlu0 %5784
      %v5786 = vsub.f32 %v5161, %v5776
      %v5787 = vsub.f32 %v5163, %v5776
      %v5788 = vsub.f32 %v5364, %v5779
      %v5789 = vsub.f32 %v5366, %v5779
      %v5790 = vsub.f32 %v5567, %v5782
      %v5791 = vsub.f32 %v5569, %v5782
      %v5792 = vsub.f32 %v5770, %v5785
      %v5793 = vsub.f32 %v5772, %v5785
      %v5794 = vmul.f32 %v5786, 1.442695
      %v5795 = vpow.pop %v5794
      %v5796 = vmul.f32 %v5787, 1.442695
      %v5797 = vpow.pop %v5796
      %v5798 = vmul.f32 %v5788, 1.442695
      %v5799 = vpow.pop %v5798
      %v5800 = vmul.f32 %v5789, 1.442695
      %v5801 = vpow.pop %v5800
      %v5802 = vmul.f32 %v5790, 1.442695
      %v5803 = vpow.pop %v5802
      %v5804 = vmul.f32 %v5791, 1.442695
      %v5805 = vpow.pop %v5804
      %v5806 = vmul.f32 %v5792, 1.442695
      %v5807 = vpow.pop %v5806
      %v5808 = vmul.f32 %v5793, 1.442695
      %v5809 = vpow.pop %v5808
      %v5810 = vadd.f32 %v5795, %v5797
      %5811 = vadd.xlane.f32.xlu0 %v5810
      %v5812 = vpop.xlane.xlu0 %5811
      %v5813 = vadd.f32 %v5799, %v5801
      %5814 = vadd.xlane.f32.xlu0 %v5813
      %v5815 = vpop.xlane.xlu0 %5814
      %v5816 = vadd.f32 %v5803, %v5805
      %5817 = vadd.xlane.f32.xlu0 %v5816
      %v5818 = vpop.xlane.xlu0 %5817
      %v5819 = vadd.f32 %v5807, %v5809
      %5820 = vadd.xlane.f32.xlu0 %v5819
      %v5821 = vpop.xlane.xlu0 %5820
      %v5822 = vrcp.pop %v5812
      %v5823 = vrcp.pop %v5815
      %v5824 = vrcp.pop %v5818
      %v5825 = vrcp.pop %v5821
      %v5826 = vmul.f32 %v5795, %v5822
      %v5827 = vmul.f32 %v5797, %v5822
      %v5828 = vmul.f32 %v5799, %v5823
      %v5829 = vmul.f32 %v5801, %v5823
      %v5830 = vmul.f32 %v5803, %v5824
      %v5831 = vmul.f32 %v5805, %v5824
      %v5832 = vmul.f32 %v5807, %v5825
      %v5833 = vmul.f32 %v5809, %v5825
      %5834 = vmatprep.subr.mxu0 0.0
      %5835 = vmatpush1.msra.mxu0 %v4837
      %5836 = vmatprep.subr.mxu0 0.0
      %5837 = vmatpush1.msra.mxu0 %v4842
      %5838 = vmatprep.subr.mxu0 0.0
      %5839 = vmatpush1.msra.mxu0 %v4847
      %5840 = vmatprep.subr.mxu0 0.0
      %5841 = vmatpush1.msra.mxu0 %v4852
      %5842 = vmatprep.subr.mxu0 0.0
      %5843 = vmatpush1.msra.mxu0 %v4857
      %5844 = vmatprep.subr.mxu0 0.0
      %5845 = vmatpush1.msra.mxu0 %v4862
      %5846 = vmatprep.subr.mxu0 0.0
      %5847 = vmatpush1.msra.mxu0 %v4867
      %5848 = vmatprep.subr.mxu0 0.0
      %5849 = vmatpush1.msra.mxu0 %v4872
      %5850 = vmatprep.subr.mxu0 0.0
      %5851 = vmatpush1.msra.mxu0 %v4877
      %5852 = vmatprep.subr.mxu0 0.0
      %5853 = vmatpush1.msra.mxu0 %v4882
      %5854 = vmatprep.subr.mxu0 0.0
      %5855 = vmatpush1.msra.mxu0 %v4887
      %5856 = vmatprep.subr.mxu0 0.0
      %5857 = vmatpush1.msra.mxu0 %v4892
      %5858 = vmatprep.subr.mxu0 0.0
      %5859 = vmatpush1.msra.mxu0 %v4897
      %5860 = vmatprep.subr.mxu0 0.0
      %5861 = vmatpush1.msra.mxu0 %v4902
      %5862 = vmatprep.subr.mxu0 0.0
      %5863 = vmatpush1.msra.mxu0 %v4907
      %5864 = vmatprep.subr.mxu0 0.0
      %5865 = vmatpush1.msra.mxu0 %v4912
      %5866 = vmatprep.subr.mxu0 0.0
      %5867 = vmatpush1.msra.mxu0 %v4917
      %5868 = vmatprep.subr.mxu0 0.0
      %5869 = vmatpush1.msra.mxu0 %v4922
      %5870 = vmatprep.subr.mxu0 0.0
      %5871 = vmatpush1.msra.mxu0 %v4927
      %5872 = vmatprep.subr.mxu0 0.0
      %5873 = vmatpush1.msra.mxu0 %v4932
      %5874 = vmatprep.subr.mxu0 0.0
      %5875 = vmatpush1.msra.mxu0 %v4937
      %5876 = vmatprep.subr.mxu0 0.0
      %5877 = vmatpush1.msra.mxu0 %v4942
      %5878 = vmatprep.subr.mxu0 0.0
      %5879 = vmatpush1.msra.mxu0 %v4947
      %5880 = vmatprep.subr.mxu0 0.0
      %5881 = vmatpush1.msra.mxu0 %v4952
      %5882 = vmatprep.subr.mxu0 0.0
      %5883 = vmatpush1.msra.mxu0 %v4957
      %5884 = vmatprep.subr.mxu0 0.0
      %5885 = vmatpush1.msra.mxu0 %v4962
      %5886 = vmatprep.subr.mxu0 0.0
      %5887 = vmatpush1.msra.mxu0 %v4967
      %5888 = vmatprep.subr.mxu0 0.0
      %5889 = vmatpush1.msra.mxu0 %v4972
      %5890 = vmatprep.subr.mxu0 0.0
      %5891 = vmatpush1.msra.mxu0 %v4977
      %5892 = vmatprep.subr.mxu0 0.0
      %5893 = vmatpush1.msra.mxu0 %v4982
      %5894 = vmatprep.subr.mxu0 0.0
      %5895 = vmatpush1.msra.mxu0 %v4987
      %5896 = vmatprep.subr.mxu0 0.0
      %5897 = vmatpush1.msra.mxu0 %v4992
      %5898 = vmatprep.mubr.f32.mxu0 %v5827
      %5899 = vmatmul.mubr.f32.gmra.mrb[0].mxu0 %v5826
      %v5900 = vpop.f32.mrb[0].mxu0
      %v5901 = vadd.f32 0.0, %v5900
      %v5902 = vpop.f32.mrb[0].mxu0
      %5903 = vdwg.mxu0
      %5936 = vrot.lane.b32.xlu0 %v4837, 120
      %v5937 = vpop.permute.xlu0 %5936
      %5938 = vrot.lane.b32.xlu0 %v4842, 120
      %v5939 = vpop.permute.xlu0 %5938
      %5940 = vrot.lane.b32.xlu0 %v4847, 120
      %v5941 = vpop.permute.xlu0 %5940
      %5942 = vrot.lane.b32.xlu0 %v4852, 120
      %v5943 = vpop.permute.xlu0 %5942
      %5944 = vrot.lane.b32.xlu0 %v4857, 120
      %v5945 = vpop.permute.xlu0 %5944
      %5946 = vrot.lane.b32.xlu0 %v4862, 120
      %v5947 = vpop.permute.xlu0 %5946
      %5948 = vrot.lane.b32.xlu0 %v4867, 120
      %v5949 = vpop.permute.xlu0 %5948
      %5950 = vrot.lane.b32.xlu0 %v4872, 120
      %v5951 = vpop.permute.xlu0 %5950
      %5952 = vrot.lane.b32.xlu0 %v4877, 120
      %v5953 = vpop.permute.xlu0 %5952
      %5954 = vrot.lane.b32.xlu0 %v4882, 120
      %v5955 = vpop.permute.xlu0 %5954
      %5956 = vrot.lane.b32.xlu0 %v4887, 120
      %v5957 = vpop.permute.xlu0 %5956
      %5958 = vrot.lane.b32.xlu0 %v4892, 120
      %v5959 = vpop.permute.xlu0 %5958
      %5960 = vrot.lane.b32.xlu0 %v4897, 120
      %v5961 = vpop.permute.xlu0 %5960
      %5962 = vrot.lane.b32.xlu0 %v4902, 120
      %v5963 = vpop.permute.xlu0 %5962
      %5964 = vrot.lane.b32.xlu0 %v4907, 120
      %v5965 = vpop.permute.xlu0 %5964
      %5966 = vrot.lane.b32.xlu0 %v4912, 120
      %v5967 = vpop.permute.xlu0 %5966
      %5968 = vrot.lane.b32.xlu0 %v4917, 120
      %v5969 = vpop.permute.xlu0 %5968
      %5970 = vrot.lane.b32.xlu0 %v4922, 120
      %v5971 = vpop.permute.xlu0 %5970
      %5972 = vrot.lane.b32.xlu0 %v4927, 120
      %v5973 = vpop.permute.xlu0 %5972
      %5974 = vrot.lane.b32.xlu0 %v4932, 120
      %v5975 = vpop.permute.xlu0 %5974
      %5976 = vrot.lane.b32.xlu0 %v4937, 120
      %v5977 = vpop.permute.xlu0 %5976
      %5978 = vrot.lane.b32.xlu0 %v4942, 120
      %v5979 = vpop.permute.xlu0 %5978
      %5980 = vrot.lane.b32.xlu0 %v4947, 120
      %v5981 = vpop.permute.xlu0 %5980
      %5982 = vrot.lane.b32.xlu0 %v4952, 120
      %v5983 = vpop.permute.xlu0 %5982
      %5984 = vrot.lane.b32.xlu0 %v4957, 120
      %v5985 = vpop.permute.xlu0 %5984
      %5986 = vrot.lane.b32.xlu0 %v4962, 120
      %v5987 = vpop.permute.xlu0 %5986
      %5988 = vrot.lane.b32.xlu0 %v4967, 120
      %v5989 = vpop.permute.xlu0 %5988
      %5990 = vrot.lane.b32.xlu0 %v4972, 120
      %v5991 = vpop.permute.xlu0 %5990
      %5992 = vrot.lane.b32.xlu0 %v4977, 120
      %v5993 = vpop.permute.xlu0 %5992
      %5994 = vrot.lane.b32.xlu0 %v4982, 120
      %v5995 = vpop.permute.xlu0 %5994
      %5996 = vrot.lane.b32.xlu0 %v4987, 120
      %v5997 = vpop.permute.xlu0 %5996
      %5998 = vrot.lane.b32.xlu0 %v4992, 120
      %v5999 = vpop.permute.xlu0 %5998
      %6032 = vmatprep.subr.mxu0 0.0
      %6033 = vmatpush1.msra.mxu0 %v5937
      %6034 = vmatprep.subr.mxu0 0.0
      %6035 = vmatpush1.msra.mxu0 %v5939
      %6036 = vmatprep.subr.mxu0 0.0
      %6037 = vmatpush1.msra.mxu0 %v5941
      %6038 = vmatprep.subr.mxu0 0.0
      %6039 = vmatpush1.msra.mxu0 %v5943
      %6040 = vmatprep.subr.mxu0 0.0
      %6041 = vmatpush1.msra.mxu0 %v5945
      %6042 = vmatprep.subr.mxu0 0.0
      %6043 = vmatpush1.msra.mxu0 %v5947
      %6044 = vmatprep.subr.mxu0 0.0
      %6045 = vmatpush1.msra.mxu0 %v5949
      %6046 = vmatprep.subr.mxu0 0.0
      %6047 = vmatpush1.msra.mxu0 %v5951
      %6048 = vmatprep.subr.mxu0 0.0
      %6049 = vmatpush1.msra.mxu0 %v5953
      %6050 = vmatprep.subr.mxu0 0.0
      %6051 = vmatpush1.msra.mxu0 %v5955
      %6052 = vmatprep.subr.mxu0 0.0
      %6053 = vmatpush1.msra.mxu0 %v5957
      %6054 = vmatprep.subr.mxu0 0.0
      %6055 = vmatpush1.msra.mxu0 %v5959
      %6056 = vmatprep.subr.mxu0 0.0
      %6057 = vmatpush1.msra.mxu0 %v5961
      %6058 = vmatprep.subr.mxu0 0.0
      %6059 = vmatpush1.msra.mxu0 %v5963
      %6060 = vmatprep.subr.mxu0 0.0
      %6061 = vmatpush1.msra.mxu0 %v5965
      %6062 = vmatprep.subr.mxu0 0.0
      %6063 = vmatpush1.msra.mxu0 %v5967
      %6064 = vmatprep.subr.mxu0 0.0
      %6065 = vmatpush1.msra.mxu0 %v5969
      %6066 = vmatprep.subr.mxu0 0.0
      %6067 = vmatpush1.msra.mxu0 %v5971
      %6068 = vmatprep.subr.mxu0 0.0
      %6069 = vmatpush1.msra.mxu0 %v5973
      %6070 = vmatprep.subr.mxu0 0.0
      %6071 = vmatpush1.msra.mxu0 %v5975
      %6072 = vmatprep.subr.mxu0 0.0
      %6073 = vmatpush1.msra.mxu0 %v5977
      %6074 = vmatprep.subr.mxu0 0.0
      %6075 = vmatpush1.msra.mxu0 %v5979
      %6076 = vmatprep.subr.mxu0 0.0
      %6077 = vmatpush1.msra.mxu0 %v5981
      %6078 = vmatprep.subr.mxu0 0.0
      %6079 = vmatpush1.msra.mxu0 %v5983
      %6080 = vmatprep.subr.mxu0 0.0
      %6081 = vmatpush1.msra.mxu0 %v5985
      %6082 = vmatprep.subr.mxu0 0.0
      %6083 = vmatpush1.msra.mxu0 %v5987
      %6084 = vmatprep.subr.mxu0 0.0
      %6085 = vmatpush1.msra.mxu0 %v5989
      %6086 = vmatprep.subr.mxu0 0.0
      %6087 = vmatpush1.msra.mxu0 %v5991
      %6088 = vmatprep.subr.mxu0 0.0
      %6089 = vmatpush1.msra.mxu0 %v5993
      %6090 = vmatprep.subr.mxu0 0.0
      %6091 = vmatpush1.msra.mxu0 %v5995
      %6092 = vmatprep.subr.mxu0 0.0
      %6093 = vmatpush1.msra.mxu0 %v5997
      %6094 = vmatprep.subr.mxu0 0.0
      %6095 = vmatpush1.msra.mxu0 %v5999
      %6096 = vmatprep.mubr.f32.mxu0 %v5829
      %6097 = vmatmul.mubr.f32.gmra.mrb[0].mxu0 %v5828
      %v6098 = vpop.f32.mrb[0].mxu0
      %v6099 = vadd.f32 0.0, %v6098
      %v6100 = vpop.f32.mrb[0].mxu0
      %6101 = vdwg.mxu0
      %6102 = vrot.lane.b32.xlu0 %v4837, 112
      %v6103 = vpop.permute.xlu0 %6102
      %6104 = vrot.lane.b32.xlu0 %v4842, 112
      %v6105 = vpop.permute.xlu0 %6104
      %6106 = vrot.lane.b32.xlu0 %v4847, 112
      %v6107 = vpop.permute.xlu0 %6106
      %6108 = vrot.lane.b32.xlu0 %v4852, 112
      %v6109 = vpop.permute.xlu0 %6108
      %6110 = vrot.lane.b32.xlu0 %v4857, 112
      %v6111 = vpop.permute.xlu0 %6110
      %6112 = vrot.lane.b32.xlu0 %v4862, 112
      %v6113 = vpop.permute.xlu0 %6112
      %6114 = vrot.lane.b32.xlu0 %v4867, 112
      %v6115 = vpop.permute.xlu0 %6114
      %6116 = vrot.lane.b32.xlu0 %v4872, 112
      %v6117 = vpop.permute.xlu0 %6116
      %6118 = vrot.lane.b32.xlu0 %v4877, 112
      %v6119 = vpop.permute.xlu0 %6118
      %6120 = vrot.lane.b32.xlu0 %v4882, 112
      %v6121 = vpop.permute.xlu0 %6120
      %6122 = vrot.lane.b32.xlu0 %v4887, 112
      %v6123 = vpop.permute.xlu0 %6122
      %6124 = vrot.lane.b32.xlu0 %v4892, 112
      %v6125 = vpop.permute.xlu0 %6124
      %6126 = vrot.lane.b32.xlu0 %v4897, 112
      %v6127 = vpop.permute.xlu0 %6126
      %6128 = vrot.lane.b32.xlu0 %v4902, 112
      %v6129 = vpop.permute.xlu0 %6128
      %6130 = vrot.lane.b32.xlu0 %v4907, 112
      %v6131 = vpop.permute.xlu0 %6130
      %6132 = vrot.lane.b32.xlu0 %v4912, 112
      %v6133 = vpop.permute.xlu0 %6132
      %6134 = vrot.lane.b32.xlu0 %v4917, 112
      %v6135 = vpop.permute.xlu0 %6134
      %6136 = vrot.lane.b32.xlu0 %v4922, 112
      %v6137 = vpop.permute.xlu0 %6136
      %6138 = vrot.lane.b32.xlu0 %v4927, 112
      %v6139 = vpop.permute.xlu0 %6138
      %6140 = vrot.lane.b32.xlu0 %v4932, 112
      %v6141 = vpop.permute.xlu0 %6140
      %6142 = vrot.lane.b32.xlu0 %v4937, 112
      %v6143 = vpop.permute.xlu0 %6142
      %6144 = vrot.lane.b32.xlu0 %v4942, 112
      %v6145 = vpop.permute.xlu0 %6144
      %6146 = vrot.lane.b32.xlu0 %v4947, 112
      %v6147 = vpop.permute.xlu0 %6146
      %6148 = vrot.lane.b32.xlu0 %v4952, 112
      %v6149 = vpop.permute.xlu0 %6148
      %6150 = vrot.lane.b32.xlu0 %v4957, 112
      %v6151 = vpop.permute.xlu0 %6150
      %6152 = vrot.lane.b32.xlu0 %v4962, 112
      %v6153 = vpop.permute.xlu0 %6152
      %6154 = vrot.lane.b32.xlu0 %v4967, 112
      %v6155 = vpop.permute.xlu0 %6154
      %6156 = vrot.lane.b32.xlu0 %v4972, 112
      %v6157 = vpop.permute.xlu0 %6156
      %6158 = vrot.lane.b32.xlu0 %v4977, 112
      %v6159 = vpop.permute.xlu0 %6158
      %6160 = vrot.lane.b32.xlu0 %v4982, 112
      %v6161 = vpop.permute.xlu0 %6160
      %6162 = vrot.lane.b32.xlu0 %v4987, 112
      %v6163 = vpop.permute.xlu0 %6162
      %6164 = vrot.lane.b32.xlu0 %v4992, 112
      %v6165 = vpop.permute.xlu0 %6164
      %6198 = vmatprep.subr.mxu0 0.0
      %6199 = vmatpush1.msra.mxu0 %v6103
      %6200 = vmatprep.subr.mxu0 0.0
      %6201 = vmatpush1.msra.mxu0 %v6105
      %6202 = vmatprep.subr.mxu0 0.0
      %6203 = vmatpush1.msra.mxu0 %v6107
      %6204 = vmatprep.subr.mxu0 0.0
      %6205 = vmatpush1.msra.mxu0 %v6109
      %6206 = vmatprep.subr.mxu0 0.0
      %6207 = vmatpush1.msra.mxu0 %v6111
      %6208 = vmatprep.subr.mxu0 0.0
      %6209 = vmatpush1.msra.mxu0 %v6113
      %6210 = vmatprep.subr.mxu0 0.0
      %6211 = vmatpush1.msra.mxu0 %v6115
      %6212 = vmatprep.subr.mxu0 0.0
      %6213 = vmatpush1.msra.mxu0 %v6117
      %6214 = vmatprep.subr.mxu0 0.0
      %6215 = vmatpush1.msra.mxu0 %v6119
      %6216 = vmatprep.subr.mxu0 0.0
      %6217 = vmatpush1.msra.mxu0 %v6121
      %6218 = vmatprep.subr.mxu0 0.0
      %6219 = vmatpush1.msra.mxu0 %v6123
      %6220 = vmatprep.subr.mxu0 0.0
      %6221 = vmatpush1.msra.mxu0 %v6125
      %6222 = vmatprep.subr.mxu0 0.0
      %6223 = vmatpush1.msra.mxu0 %v6127
      %6224 = vmatprep.subr.mxu0 0.0
      %6225 = vmatpush1.msra.mxu0 %v6129
      %6226 = vmatprep.subr.mxu0 0.0
      %6227 = vmatpush1.msra.mxu0 %v6131
      %6228 = vmatprep.subr.mxu0 0.0
      %6229 = vmatpush1.msra.mxu0 %v6133
      %6230 = vmatprep.subr.mxu0 0.0
      %6231 = vmatpush1.msra.mxu0 %v6135
      %6232 = vmatprep.subr.mxu0 0.0
      %6233 = vmatpush1.msra.mxu0 %v6137
      %6234 = vmatprep.subr.mxu0 0.0
      %6235 = vmatpush1.msra.mxu0 %v6139
      %6236 = vmatprep.subr.mxu0 0.0
      %6237 = vmatpush1.msra.mxu0 %v6141
      %6238 = vmatprep.subr.mxu0 0.0
      %6239 = vmatpush1.msra.mxu0 %v6143
      %6240 = vmatprep.subr.mxu0 0.0
      %6241 = vmatpush1.msra.mxu0 %v6145
      %6242 = vmatprep.subr.mxu0 0.0
      %6243 = vmatpush1.msra.mxu0 %v6147
      %6244 = vmatprep.subr.mxu0 0.0
      %6245 = vmatpush1.msra.mxu0 %v6149
      %6246 = vmatprep.subr.mxu0 0.0
      %6247 = vmatpush1.msra.mxu0 %v6151
      %6248 = vmatprep.subr.mxu0 0.0
      %6249 = vmatpush1.msra.mxu0 %v6153
      %6250 = vmatprep.subr.mxu0 0.0
      %6251 = vmatpush1.msra.mxu0 %v6155
      %6252 = vmatprep.subr.mxu0 0.0
      %6253 = vmatpush1.msra.mxu0 %v6157
      %6254 = vmatprep.subr.mxu0 0.0
      %6255 = vmatpush1.msra.mxu0 %v6159
      %6256 = vmatprep.subr.mxu0 0.0
      %6257 = vmatpush1.msra.mxu0 %v6161
      %6258 = vmatprep.subr.mxu0 0.0
      %6259 = vmatpush1.msra.mxu0 %v6163
      %6260 = vmatprep.subr.mxu0 0.0
      %6261 = vmatpush1.msra.mxu0 %v6165
      %6262 = vmatprep.mubr.f32.mxu0 %v5831
      %6263 = vmatmul.mubr.f32.gmra.mrb[0].mxu0 %v5830
      %v6264 = vpop.f32.mrb[0].mxu0
      %v6265 = vadd.f32 0.0, %v6264
      %v6266 = vpop.f32.mrb[0].mxu0
      %6267 = vdwg.mxu0
      %6268 = vrot.lane.b32.xlu0 %v4837, 104
      %v6269 = vpop.permute.xlu0 %6268
      %6270 = vrot.lane.b32.xlu0 %v4842, 104
      %v6271 = vpop.permute.xlu0 %6270
      %6272 = vrot.lane.b32.xlu0 %v4847, 104
      %v6273 = vpop.permute.xlu0 %6272
      %6274 = vrot.lane.b32.xlu0 %v4852, 104
      %v6275 = vpop.permute.xlu0 %6274
      %6276 = vrot.lane.b32.xlu0 %v4857, 104
      %v6277 = vpop.permute.xlu0 %6276
      %6278 = vrot.lane.b32.xlu0 %v4862, 104
      %v6279 = vpop.permute.xlu0 %6278
      %6280 = vrot.lane.b32.xlu0 %v4867, 104
      %v6281 = vpop.permute.xlu0 %6280
      %6282 = vrot.lane.b32.xlu0 %v4872, 104
      %v6283 = vpop.permute.xlu0 %6282
      %6284 = vrot.lane.b32.xlu0 %v4877, 104
      %v6285 = vpop.permute.xlu0 %6284
      %6286 = vrot.lane.b32.xlu0 %v4882, 104
      %v6287 = vpop.permute.xlu0 %6286
      %6288 = vrot.lane.b32.xlu0 %v4887, 104
      %v6289 = vpop.permute.xlu0 %6288
      %6290 = vrot.lane.b32.xlu0 %v4892, 104
      %v6291 = vpop.permute.xlu0 %6290
      %6292 = vrot.lane.b32.xlu0 %v4897, 104
      %v6293 = vpop.permute.xlu0 %6292
      %6294 = vrot.lane.b32.xlu0 %v4902, 104
      %v6295 = vpop.permute.xlu0 %6294
      %6296 = vrot.lane.b32.xlu0 %v4907, 104
      %v6297 = vpop.permute.xlu0 %6296
      %6298 = vrot.lane.b32.xlu0 %v4912, 104
      %v6299 = vpop.permute.xlu0 %6298
      %6300 = vrot.lane.b32.xlu0 %v4917, 104
      %v6301 = vpop.permute.xlu0 %6300
      %6302 = vrot.lane.b32.xlu0 %v4922, 104
      %v6303 = vpop.permute.xlu0 %6302
      %6304 = vrot.lane.b32.xlu0 %v4927, 104
      %v6305 = vpop.permute.xlu0 %6304
      %6306 = vrot.lane.b32.xlu0 %v4932, 104
      %v6307 = vpop.permute.xlu0 %6306
      %6308 = vrot.lane.b32.xlu0 %v4937, 104
      %v6309 = vpop.permute.xlu0 %6308
      %6310 = vrot.lane.b32.xlu0 %v4942, 104
      %v6311 = vpop.permute.xlu0 %6310
      %6312 = vrot.lane.b32.xlu0 %v4947, 104
      %v6313 = vpop.permute.xlu0 %6312
      %6314 = vrot.lane.b32.xlu0 %v4952, 104
      %v6315 = vpop.permute.xlu0 %6314
      %6316 = vrot.lane.b32.xlu0 %v4957, 104
      %v6317 = vpop.permute.xlu0 %6316
      %6318 = vrot.lane.b32.xlu0 %v4962, 104
      %v6319 = vpop.permute.xlu0 %6318
      %6320 = vrot.lane.b32.xlu0 %v4967, 104
      %v6321 = vpop.permute.xlu0 %6320
      %6322 = vrot.lane.b32.xlu0 %v4972, 104
      %v6323 = vpop.permute.xlu0 %6322
      %6324 = vrot.lane.b32.xlu0 %v4977, 104
      %v6325 = vpop.permute.xlu0 %6324
      %6326 = vrot.lane.b32.xlu0 %v4982, 104
      %v6327 = vpop.permute.xlu0 %6326
      %6328 = vrot.lane.b32.xlu0 %v4987, 104
      %v6329 = vpop.permute.xlu0 %6328
      %6330 = vrot.lane.b32.xlu0 %v4992, 104
      %v6331 = vpop.permute.xlu0 %6330
      %6364 = vmatprep.subr.mxu0 0.0
      %6365 = vmatpush1.msra.mxu0 %v6269
      %6366 = vmatprep.subr.mxu0 0.0
      %6367 = vmatpush1.msra.mxu0 %v6271
      %6368 = vmatprep.subr.mxu0 0.0
      %6369 = vmatpush1.msra.mxu0 %v6273
      %6370 = vmatprep.subr.mxu0 0.0
      %6371 = vmatpush1.msra.mxu0 %v6275
      %6372 = vmatprep.subr.mxu0 0.0
      %6373 = vmatpush1.msra.mxu0 %v6277
      %6374 = vmatprep.subr.mxu0 0.0
      %6375 = vmatpush1.msra.mxu0 %v6279
      %6376 = vmatprep.subr.mxu0 0.0
      %6377 = vmatpush1.msra.mxu0 %v6281
      %6378 = vmatprep.subr.mxu0 0.0
      %6379 = vmatpush1.msra.mxu0 %v6283
      %6380 = vmatprep.subr.mxu0 0.0
      %6381 = vmatpush1.msra.mxu0 %v6285
      %6382 = vmatprep.subr.mxu0 0.0
      %6383 = vmatpush1.msra.mxu0 %v6287
      %6384 = vmatprep.subr.mxu0 0.0
      %6385 = vmatpush1.msra.mxu0 %v6289
      %6386 = vmatprep.subr.mxu0 0.0
      %6387 = vmatpush1.msra.mxu0 %v6291
      %6388 = vmatprep.subr.mxu0 0.0
      %6389 = vmatpush1.msra.mxu0 %v6293
      %6390 = vmatprep.subr.mxu0 0.0
      %6391 = vmatpush1.msra.mxu0 %v6295
      %6392 = vmatprep.subr.mxu0 0.0
      %6393 = vmatpush1.msra.mxu0 %v6297
      %6394 = vmatprep.subr.mxu0 0.0
      %6395 = vmatpush1.msra.mxu0 %v6299
      %6396 = vmatprep.subr.mxu0 0.0
      %6397 = vmatpush1.msra.mxu0 %v6301
      %6398 = vmatprep.subr.mxu0 0.0
      %6399 = vmatpush1.msra.mxu0 %v6303
      %6400 = vmatprep.subr.mxu0 0.0
      %6401 = vmatpush1.msra.mxu0 %v6305
      %6402 = vmatprep.subr.mxu0 0.0
      %6403 = vmatpush1.msra.mxu0 %v6307
      %6404 = vmatprep.subr.mxu0 0.0
      %6405 = vmatpush1.msra.mxu0 %v6309
      %6406 = vmatprep.subr.mxu0 0.0
      %6407 = vmatpush1.msra.mxu0 %v6311
      %6408 = vmatprep.subr.mxu0 0.0
      %6409 = vmatpush1.msra.mxu0 %v6313
      %6410 = vmatprep.subr.mxu0 0.0
      %6411 = vmatpush1.msra.mxu0 %v6315
      %6412 = vmatprep.subr.mxu0 0.0
      %6413 = vmatpush1.msra.mxu0 %v6317
      %6414 = vmatprep.subr.mxu0 0.0
      %6415 = vmatpush1.msra.mxu0 %v6319
      %6416 = vmatprep.subr.mxu0 0.0
      %6417 = vmatpush1.msra.mxu0 %v6321
      %6418 = vmatprep.subr.mxu0 0.0
      %6419 = vmatpush1.msra.mxu0 %v6323
      %6420 = vmatprep.subr.mxu0 0.0
      %6421 = vmatpush1.msra.mxu0 %v6325
      %6422 = vmatprep.subr.mxu0 0.0
      %6423 = vmatpush1.msra.mxu0 %v6327
      %6424 = vmatprep.subr.mxu0 0.0
      %6425 = vmatpush1.msra.mxu0 %v6329
      %6426 = vmatprep.subr.mxu0 0.0
      %6427 = vmatpush1.msra.mxu0 %v6331
      %6428 = vmatprep.mubr.f32.mxu0 %v5833
      %6429 = vmatmul.mubr.f32.gmra.mrb[0].mxu0 %v5832
      %v6430 = vpop.f32.mrb[0].mxu0
      %v6431 = vadd.f32 0.0, %v6430
      %v6432 = vpop.f32.mrb[0].mxu0
      %6433 = vdwg.mxu0
      %6435 = vrot.lane.b32.xlu0 %v6099, 8
      %v6436 = vpop.permute.xlu0 %6435
      %6439 = vrot.lane.b32.xlu0 %v6265, 16
      %v6440 = vpop.permute.xlu0 %6439
      %6443 = vrot.lane.b32.xlu0 %v6431, 24
      %v6444 = vpop.permute.xlu0 %6443
      %v6446 = vsel %vm1563, %v5901, %v6436
      %v6447 = vsel %vm3016, %v6446, %v6440
      %v6448 = vsel %vm3018, %v6447, %v6444
      %v6450 = vlaneseq
      %v6451 = vshrl.u32 %v6450, 7
      %v6452 = vsub.s32 0, %v6451
      %v6453 = vrot.slane %v4422, %v6452
      %v6456 = vsel %vm656, %v6448, 0
      %v6459 = vsel %vm656, %v4417, 0
      %v6462 = vsel %vm656, %v4418, 0
      %v6465 = vsel %vm656, %v4419, 0
      %v6468 = vsel %vm656, %v4420, 0
      %6470 = vmatprep.subr.mxu0 0.0
      %6471 = vmatpush1.xpose.msra.mxu0 %v6459
      %6472 = vmatprep.subr.mxu0 0.0
      %6473 = vmatpush1.xpose.msra.mxu0 %v6462
      %6474 = vmatprep.subr.mxu0 0.0
      %6475 = vmatpush1.xpose.msra.mxu0 %v6465
      %6476 = vmatprep.subr.mxu0 0.0
      %6477 = vmatpush1.xpose.msra.mxu0 %v6468
      %6478 = vmatprep.subr.mxu0 0.0
      %6479 = vmatpush1.xpose.msra.mxu0 0.0
      %6480 = vmatprep.subr.mxu0 0.0
      %6481 = vmatpush1.xpose.msra.mxu0 0.0
      %6482 = vmatprep.subr.mxu0 0.0
      %6483 = vmatpush1.xpose.msra.mxu0 0.0
      %6484 = vmatprep.subr.mxu0 0.0
      %6485 = vmatpush1.xpose.msra.mxu0 0.0
      %6486 = vmatprep.subr.mxu0 0.0
      %6487 = vmatpush1.xpose.msra.mxu0 0.0
      %6488 = vmatprep.subr.mxu0 0.0
      %6489 = vmatpush1.xpose.msra.mxu0 0.0
      %6490 = vmatprep.subr.mxu0 0.0
      %6491 = vmatpush1.xpose.msra.mxu0 0.0
      %6492 = vmatprep.subr.mxu0 0.0
      %6493 = vmatpush1.xpose.msra.mxu0 0.0
      %6494 = vmatprep.subr.mxu0 0.0
      %6495 = vmatpush1.xpose.msra.mxu0 0.0
      %6496 = vmatprep.subr.mxu0 0.0
      %6497 = vmatpush1.xpose.msra.mxu0 0.0
      %6498 = vmatprep.subr.mxu0 0.0
      %6499 = vmatpush1.xpose.msra.mxu0 0.0
      %6500 = vmatprep.subr.mxu0 0.0
      %6501 = vmatpush1.xpose.msra.mxu0 0.0
      %6502 = vmatprep.subr.mxu0 0.0
      %6503 = vmatpush1.xpose.msra.mxu0 0.0
      %6504 = vmatprep.subr.mxu0 0.0
      %6505 = vmatpush1.xpose.msra.mxu0 0.0
      %6506 = vmatprep.subr.mxu0 0.0
      %6507 = vmatpush1.xpose.msra.mxu0 0.0
      %6508 = vmatprep.subr.mxu0 0.0
      %6509 = vmatpush1.xpose.msra.mxu0 0.0
      %6510 = vmatprep.subr.mxu0 0.0
      %6511 = vmatpush1.xpose.msra.mxu0 0.0
      %6512 = vmatprep.subr.mxu0 0.0
      %6513 = vmatpush1.xpose.msra.mxu0 0.0
      %6514 = vmatprep.subr.mxu0 0.0
      %6515 = vmatpush1.xpose.msra.mxu0 0.0
      %6516 = vmatprep.subr.mxu0 0.0
      %6517 = vmatpush1.xpose.msra.mxu0 0.0
      %6518 = vmatprep.subr.mxu0 0.0
      %6519 = vmatpush1.xpose.msra.mxu0 0.0
      %6520 = vmatprep.subr.mxu0 0.0
      %6521 = vmatpush1.xpose.msra.mxu0 0.0
      %6522 = vmatprep.subr.mxu0 0.0
      %6523 = vmatpush1.xpose.msra.mxu0 0.0
      %6524 = vmatprep.subr.mxu0 0.0
      %6525 = vmatpush1.xpose.msra.mxu0 0.0
      %6526 = vmatprep.subr.mxu0 0.0
      %6527 = vmatpush1.xpose.msra.mxu0 0.0
      %6528 = vmatprep.subr.mxu0 0.0
      %6529 = vmatpush1.xpose.msra.mxu0 0.0
      %6530 = vmatprep.subr.mxu0 0.0
      %6531 = vmatpush1.xpose.msra.mxu0 0.0
      %6532 = vmatprep.subr.mxu0 0.0
      %6533 = vmatpush1.xpose.msra.mxu0 0.0
      %6534 = vmatprep.mubr.f32.mxu0 0.0
      %6535 = vmatmul.mubr.f32.gmra.mrb[0].mxu0 %v6456
      %v6536 = vpop.f32.mrb[0].mxu0
      %v6537 = vadd.f32 %v6453, %v6536
      %v6538 = vpop.f32.mrb[0].mxu0
      %6539 = vdwg.mxu0
      %v6540 = vadd.f32 %v4399, %v6537
      %s6541 = scalar_lea.vmem %s12, 4
      %v6542 = vld [vmem:[%s6541] sm:$0x1]
      %s6543 = scalar_lea.vmem %s13, 4
      %v6544 = vld [vmem:[%s6543] sm:$0x1]
      %v6545 = vsel %vm656, %v6540, 0.0
      %6546 = vadd.xlane.f32.xlu0 %v6545
      %v6547 = vpop.xlane.xlu0 %6546
      %v6548 = vmul.f32 %v6547, %v751
      %v6549 = vsub.f32 %v6540, %v6548
      %v6550 = vmul.f32 %v6549, %v6549
      %v6551 = vsel %vm656, %v6550, 0.0
      %6552 = vadd.xlane.f32.xlu0 %v6551
      %v6553 = vpop.xlane.xlu0 %6552
      %v6554 = vmul.f32 %v6553, %v751
      %v6555 = vadd.f32 %v6554, 1e-05
      %v6556 = vrsqrt.pop %v6555
      %v6557 = vmul.f32 %v6549, %v6556
      %v6559 = vlaneseq
      %v6560 = vshrl.u32 %v6559, 7
      %v6561 = vsub.s32 0, %v6560
      %v6562 = vrot.slane %v6542, %v6561
      %v6564 = vmul.f32 %v6557, %v6562
      %v6566 = vlaneseq
      %v6567 = vshrl.u32 %v6566, 7
      %v6568 = vsub.s32 0, %v6567
      %v6569 = vrot.slane %v6544, %v6568
      %v6571 = vadd.f32 %v6564, %v6569
      %s6572 = scalar_lea.vmem %s8, 64
      %v6573 = vld [vmem:[%s6572] sm:$0xff]
      %v6574 = vld [vmem:[%s6572 + $0x8] sm:$0xff]
      %v6575 = vld [vmem:[%s6572 + $0x10] sm:$0xff]
      %v6576 = vld [vmem:[%s6572 + $0x18] sm:$0xff]
      %v6577 = vld [vmem:[%s6572 + $0x20] sm:$0xff]
      %v6578 = vld [vmem:[%s6572 + $0x28] sm:$0xff]
      %v6579 = vld [vmem:[%s6572 + $0x30] sm:$0xff]
      %v6580 = vld [vmem:[%s6572 + $0x38] sm:$0xff]
      %s6581 = scalar_lea.vmem %s9, 1
      %v6582 = vld [vmem:[%s6581] sm:$0x1]
      %v6584 = vlaneseq
      %v6585 = vshrl.u32 %v6584, 7
      %v6586 = vsub.s32 0, %v6585
      %v6587 = vrot.slane %v6582, %v6586
      %v6590 = vsel %vm656, %v6571, 0
      %v6593 = vsel %vm656, %v6573, 0
      %v6596 = vsel %vm656, %v6574, 0
      %v6599 = vsel %vm656, %v6575, 0
      %v6602 = vsel %vm656, %v6576, 0
      %v6605 = vsel %vm656, %v6577, 0
      %v6608 = vsel %vm656, %v6578, 0
      %v6611 = vsel %vm656, %v6579, 0
      %v6614 = vsel %vm656, %v6580, 0
      %6616 = vmatprep.subr.mxu0 0.0
      %6617 = vmatpush1.xpose.msra.mxu0 %v6593
      %6618 = vmatprep.subr.mxu0 0.0
      %6619 = vmatpush1.xpose.msra.mxu0 %v6596
      %6620 = vmatprep.subr.mxu0 0.0
      %6621 = vmatpush1.xpose.msra.mxu0 %v6599
      %6622 = vmatprep.subr.mxu0 0.0
      %6623 = vmatpush1.xpose.msra.mxu0 %v6602
      %6624 = vmatprep.subr.mxu0 0.0
      %6625 = vmatpush1.xpose.msra.mxu0 %v6605
      %6626 = vmatprep.subr.mxu0 0.0
      %6627 = vmatpush1.xpose.msra.mxu0 %v6608
      %6628 = vmatprep.subr.mxu0 0.0
      %6629 = vmatpush1.xpose.msra.mxu0 %v6611
      %6630 = vmatprep.subr.mxu0 0.0
      %6631 = vmatpush1.xpose.msra.mxu0 %v6614
      %6632 = vmatprep.subr.mxu0 0.0
      %6633 = vmatpush1.xpose.msra.mxu0 0.0
      %6634 = vmatprep.subr.mxu0 0.0
      %6635 = vmatpush1.xpose.msra.mxu0 0.0
      %6636 = vmatprep.subr.mxu0 0.0
      %6637 = vmatpush1.xpose.msra.mxu0 0.0
      %6638 = vmatprep.subr.mxu0 0.0
      %6639 = vmatpush1.xpose.msra.mxu0 0.0
      %6640 = vmatprep.subr.mxu0 0.0
      %6641 = vmatpush1.xpose.msra.mxu0 0.0
      %6642 = vmatprep.subr.mxu0 0.0
      %6643 = vmatpush1.xpose.msra.mxu0 0.0
      %6644 = vmatprep.subr.mxu0 0.0
      %6645 = vmatpush1.xpose.msra.mxu0 0.0
      %6646 = vmatprep.subr.mxu0 0.0
      %6647 = vmatpush1.xpose.msra.mxu0 0.0
      %6648 = vmatprep.subr.mxu0 0.0
      %6649 = vmatpush1.xpose.msra.mxu0 0.0
      %6650 = vmatprep.subr.mxu0 0.0
      %6651 = vmatpush1.xpose.msra.mxu0 0.0
      %6652 = vmatprep.subr.mxu0 0.0
      %6653 = vmatpush1.xpose.msra.mxu0 0.0
      %6654 = vmatprep.subr.mxu0 0.0
      %6655 = vmatpush1.xpose.msra.mxu0 0.0
      %6656 = vmatprep.subr.mxu0 0.0
      %6657 = vmatpush1.xpose.msra.mxu0 0.0
      %6658 = vmatprep.subr.mxu0 0.0
      %6659 = vmatpush1.xpose.msra.mxu0 0.0
      %6660 = vmatprep.subr.mxu0 0.0
      %6661 = vmatpush1.xpose.msra.mxu0 0.0
      %6662 = vmatprep.subr.mxu0 0.0
      %6663 = vmatpush1.xpose.msra.mxu0 0.0
      %6664 = vmatprep.subr.mxu0 0.0
      %6665 = vmatpush1.xpose.msra.mxu0 0.0
      %6666 = vmatprep.subr.mxu0 0.0
      %6667 = vmatpush1.xpose.msra.mxu0 0.0
      %6668 = vmatprep.subr.mxu0 0.0
      %6669 = vmatpush1.xpose.msra.mxu0 0.0
      %6670 = vmatprep.subr.mxu0 0.0
      %6671 = vmatpush1.xpose.msra.mxu0 0.0
      %6672 = vmatprep.subr.mxu0 0.0
      %6673 = vmatpush1.xpose.msra.mxu0 0.0
      %6674 = vmatprep.subr.mxu0 0.0
      %6675 = vmatpush1.xpose.msra.mxu0 0.0
      %6676 = vmatprep.subr.mxu0 0.0
      %6677 = vmatpush1.xpose.msra.mxu0 0.0
      %6678 = vmatprep.subr.mxu0 0.0
      %6679 = vmatpush1.xpose.msra.mxu0 0.0
      %6680 = vmatprep.mubr.f32.mxu0 0.0
      %6681 = vmatmul.mubr.f32.gmra.mrb[0].mxu0 %v6590
      %v6682 = vpop.f32.mrb[0].mxu0
      %v6683 = vadd.f32 %v6587, %v6682
      %v6684 = vpop.f32.mrb[0].mxu0
      %6685 = vdwg.mxu0
      %v6686 = vmax.f32 %v6683, 0.0
      %s6687 = scalar_lea.vmem %s10, 32
      %v6688 = vld [vmem:[%s6687] sm:$0xff]
      %v6689 = vld [vmem:[%s6687 + $0x8] sm:$0xff]
      %v6690 = vld [vmem:[%s6687 + $0x10] sm:$0xff]
      %v6691 = vld [vmem:[%s6687 + $0x18] sm:$0xff]
      %s6692 = scalar_lea.vmem %s11, 1
      %v6693 = vld [vmem:[%s6692] sm:$0x1]
      %v6695 = vlaneseq
      %v6696 = vshrl.u32 %v6695, 7
      %v6697 = vsub.s32 0, %v6696
      %v6698 = vrot.slane %v6693, %v6697
      %v6701 = vsel %vm3267, %v6686, 0
      %v6704 = vsel %vm3267, %v6688, 0
      %v6707 = vsel %vm3267, %v6689, 0
      %v6710 = vsel %vm3267, %v6690, 0
      %v6713 = vsel %vm3267, %v6691, 0
      %6715 = vmatprep.subr.mxu0 0.0
      %6716 = vmatpush1.xpose.msra.mxu0 %v6704
      %6717 = vmatprep.subr.mxu0 0.0
      %6718 = vmatpush1.xpose.msra.mxu0 %v6707
      %6719 = vmatprep.subr.mxu0 0.0
      %6720 = vmatpush1.xpose.msra.mxu0 %v6710
      %6721 = vmatprep.subr.mxu0 0.0
      %6722 = vmatpush1.xpose.msra.mxu0 %v6713
      %6723 = vmatprep.subr.mxu0 0.0
      %6724 = vmatpush1.xpose.msra.mxu0 0.0
      %6725 = vmatprep.subr.mxu0 0.0
      %6726 = vmatpush1.xpose.msra.mxu0 0.0
      %6727 = vmatprep.subr.mxu0 0.0
      %6728 = vmatpush1.xpose.msra.mxu0 0.0
      %6729 = vmatprep.subr.mxu0 0.0
      %6730 = vmatpush1.xpose.msra.mxu0 0.0
      %6731 = vmatprep.subr.mxu0 0.0
      %6732 = vmatpush1.xpose.msra.mxu0 0.0
      %6733 = vmatprep.subr.mxu0 0.0
      %6734 = vmatpush1.xpose.msra.mxu0 0.0
      %6735 = vmatprep.subr.mxu0 0.0
      %6736 = vmatpush1.xpose.msra.mxu0 0.0
      %6737 = vmatprep.subr.mxu0 0.0
      %6738 = vmatpush1.xpose.msra.mxu0 0.0
      %6739 = vmatprep.subr.mxu0 0.0
      %6740 = vmatpush1.xpose.msra.mxu0 0.0
      %6741 = vmatprep.subr.mxu0 0.0
      %6742 = vmatpush1.xpose.msra.mxu0 0.0
      %6743 = vmatprep.subr.mxu0 0.0
      %6744 = vmatpush1.xpose.msra.mxu0 0.0
      %6745 = vmatprep.subr.mxu0 0.0
      %6746 = vmatpush1.xpose.msra.mxu0 0.0
      %6747 = vmatprep.subr.mxu0 0.0
      %6748 = vmatpush1.xpose.msra.mxu0 0.0
      %6749 = vmatprep.subr.mxu0 0.0
      %6750 = vmatpush1.xpose.msra.mxu0 0.0
      %6751 = vmatprep.subr.mxu0 0.0
      %6752 = vmatpush1.xpose.msra.mxu0 0.0
      %6753 = vmatprep.subr.mxu0 0.0
      %6754 = vmatpush1.xpose.msra.mxu0 0.0
      %6755 = vmatprep.subr.mxu0 0.0
      %6756 = vmatpush1.xpose.msra.mxu0 0.0
      %6757 = vmatprep.subr.mxu0 0.0
      %6758 = vmatpush1.xpose.msra.mxu0 0.0
      %6759 = vmatprep.subr.mxu0 0.0
      %6760 = vmatpush1.xpose.msra.mxu0 0.0
      %6761 = vmatprep.subr.mxu0 0.0
      %6762 = vmatpush1.xpose.msra.mxu0 0.0
      %6763 = vmatprep.subr.mxu0 0.0
      %6764 = vmatpush1.xpose.msra.mxu0 0.0
      %6765 = vmatprep.subr.mxu0 0.0
      %6766 = vmatpush1.xpose.msra.mxu0 0.0
      %6767 = vmatprep.subr.mxu0 0.0
      %6768 = vmatpush1.xpose.msra.mxu0 0.0
      %6769 = vmatprep.subr.mxu0 0.0
      %6770 = vmatpush1.xpose.msra.mxu0 0.0
      %6771 = vmatprep.subr.mxu0 0.0
      %6772 = vmatpush1.xpose.msra.mxu0 0.0
      %6773 = vmatprep.subr.mxu0 0.0
      %6774 = vmatpush1.xpose.msra.mxu0 0.0
      %6775 = vmatprep.subr.mxu0 0.0
      %6776 = vmatpush1.xpose.msra.mxu0 0.0
      %6777 = vmatprep.subr.mxu0 0.0
      %6778 = vmatpush1.xpose.msra.mxu0 0.0
      %6779 = vmatprep.mubr.f32.mxu0 0.0
      %6780 = vmatmul.mubr.f32.gmra.mrb[0].mxu0 %v6701
      %v6781 = vpop.f32.mrb[0].mxu0
      %v6782 = vadd.f32 %v6698, %v6781
      %v6783 = vpop.f32.mrb[0].mxu0
      %6784 = vdwg.mxu0
      %v6785 = vadd.f32 %v6571, %v6782
      %s6786 = scalar_lea.vmem %s12, 5
      %v6787 = vld [vmem:[%s6786] sm:$0x1]
      %s6788 = scalar_lea.vmem %s13, 5
      %v6789 = vld [vmem:[%s6788] sm:$0x1]
      %v6790 = vsel %vm656, %v6785, 0.0
      %6791 = vadd.xlane.f32.xlu0 %v6790
      %v6792 = vpop.xlane.xlu0 %6791
      %v6793 = vmul.f32 %v6792, %v751
      %v6794 = vsub.f32 %v6785, %v6793
      %v6795 = vmul.f32 %v6794, %v6794
      %v6796 = vsel %vm656, %v6795, 0.0
      %6797 = vadd.xlane.f32.xlu0 %v6796
      %v6798 = vpop.xlane.xlu0 %6797
      %v6799 = vmul.f32 %v6798, %v751
      %v6800 = vadd.f32 %v6799, 1e-05
      %v6801 = vrsqrt.pop %v6800
      %v6802 = vmul.f32 %v6794, %v6801
      %v6804 = vlaneseq
      %v6805 = vshrl.u32 %v6804, 7
      %v6806 = vsub.s32 0, %v6805
      %v6807 = vrot.slane %v6787, %v6806
      %v6809 = vmul.f32 %v6802, %v6807
      %v6811 = vlaneseq
      %v6812 = vshrl.u32 %v6811, 7
      %v6813 = vsub.s32 0, %v6812
      %v6814 = vrot.slane %v6789, %v6813
      %v6816 = vadd.f32 %v6809, %v6814
      %v6817 = vld [vmem:[%s15] sm:$0x1]
      %s6818 = scalar_lea.vmem %s15, 1
      %v6819 = vld [vmem:[%s6818] sm:$0x1]
      %v6820 = vsel %vm656, %v6816, 0.0
      %6821 = vadd.xlane.f32.xlu0 %v6820
      %v6822 = vpop.xlane.xlu0 %6821
      %v6823 = vmul.f32 %v6822, %v751
      %v6824 = vsub.f32 %v6816, %v6823
      %v6825 = vmul.f32 %v6824, %v6824
      %v6826 = vsel %vm656, %v6825, 0.0
      %6827 = vadd.xlane.f32.xlu0 %v6826
      %v6828 = vpop.xlane.xlu0 %6827
      %v6829 = vmul.f32 %v6828, %v751
      %v6830 = vadd.f32 %v6829, 1e-05
      %v6831 = vrsqrt.pop %v6830
      %v6832 = vmul.f32 %v6824, %v6831
      %v6834 = vlaneseq
      %v6835 = vshrl.u32 %v6834, 7
      %v6836 = vsub.s32 0, %v6835
      %v6837 = vrot.slane %v6817, %v6836
      %v6839 = vmul.f32 %v6832, %v6837
      %v6841 = vlaneseq
      %v6842 = vshrl.u32 %v6841, 7
      %v6843 = vsub.s32 0, %v6842
      %v6844 = vrot.slane %v6819, %v6843
      %v6846 = vadd.f32 %v6839, %v6844
      %v6847 = vld [vmem:[%s14] sm:$0xff]
      %v6848 = vld [vmem:[%s14 + $0x8] sm:$0xff]
      %v6849 = vld [vmem:[%s14 + $0x10] sm:$0xff]
      %v6850 = vld [vmem:[%s14 + $0x18] sm:$0xff]
      %s6851 = scalar_lea.vmem %s15, 2
      %v6852 = vld [vmem:[%s6851] sm:$0x1]
      %v6854 = vlaneseq
      %v6855 = vshrl.u32 %v6854, 7
      %v6856 = vsub.s32 0, %v6855
      %v6857 = vrot.slane %v6852, %v6856
      %v6860 = vsel %vm656, %v6846, 0
      %v6863 = vsel %vm656, %v6847, 0
      %v6866 = vsel %vm656, %v6848, 0
      %v6869 = vsel %vm656, %v6849, 0
      %v6872 = vsel %vm656, %v6850, 0
      %6874 = vmatprep.subr.mxu0 0.0
      %6875 = vmatpush1.xpose.msra.mxu0 %v6863
      %6876 = vmatprep.subr.mxu0 0.0
      %6877 = vmatpush1.xpose.msra.mxu0 %v6866
      %6878 = vmatprep.subr.mxu0 0.0
      %6879 = vmatpush1.xpose.msra.mxu0 %v6869
      %6880 = vmatprep.subr.mxu0 0.0
      %6881 = vmatpush1.xpose.msra.mxu0 %v6872
      %6882 = vmatprep.subr.mxu0 0.0
      %6883 = vmatpush1.xpose.msra.mxu0 0.0
      %6884 = vmatprep.subr.mxu0 0.0
      %6885 = vmatpush1.xpose.msra.mxu0 0.0
      %6886 = vmatprep.subr.mxu0 0.0
      %6887 = vmatpush1.xpose.msra.mxu0 0.0
      %6888 = vmatprep.subr.mxu0 0.0
      %6889 = vmatpush1.xpose.msra.mxu0 0.0
      %6890 = vmatprep.subr.mxu0 0.0
      %6891 = vmatpush1.xpose.msra.mxu0 0.0
      %6892 = vmatprep.subr.mxu0 0.0
      %6893 = vmatpush1.xpose.msra.mxu0 0.0
      %6894 = vmatprep.subr.mxu0 0.0
      %6895 = vmatpush1.xpose.msra.mxu0 0.0
      %6896 = vmatprep.subr.mxu0 0.0
      %6897 = vmatpush1.xpose.msra.mxu0 0.0
      %6898 = vmatprep.subr.mxu0 0.0
      %6899 = vmatpush1.xpose.msra.mxu0 0.0
      %6900 = vmatprep.subr.mxu0 0.0
      %6901 = vmatpush1.xpose.msra.mxu0 0.0
      %6902 = vmatprep.subr.mxu0 0.0
      %6903 = vmatpush1.xpose.msra.mxu0 0.0
      %6904 = vmatprep.subr.mxu0 0.0
      %6905 = vmatpush1.xpose.msra.mxu0 0.0
      %6906 = vmatprep.subr.mxu0 0.0
      %6907 = vmatpush1.xpose.msra.mxu0 0.0
      %6908 = vmatprep.subr.mxu0 0.0
      %6909 = vmatpush1.xpose.msra.mxu0 0.0
      %6910 = vmatprep.subr.mxu0 0.0
      %6911 = vmatpush1.xpose.msra.mxu0 0.0
      %6912 = vmatprep.subr.mxu0 0.0
      %6913 = vmatpush1.xpose.msra.mxu0 0.0
      %6914 = vmatprep.subr.mxu0 0.0
      %6915 = vmatpush1.xpose.msra.mxu0 0.0
      %6916 = vmatprep.subr.mxu0 0.0
      %6917 = vmatpush1.xpose.msra.mxu0 0.0
      %6918 = vmatprep.subr.mxu0 0.0
      %6919 = vmatpush1.xpose.msra.mxu0 0.0
      %6920 = vmatprep.subr.mxu0 0.0
      %6921 = vmatpush1.xpose.msra.mxu0 0.0
      %6922 = vmatprep.subr.mxu0 0.0
      %6923 = vmatpush1.xpose.msra.mxu0 0.0
      %6924 = vmatprep.subr.mxu0 0.0
      %6925 = vmatpush1.xpose.msra.mxu0 0.0
      %6926 = vmatprep.subr.mxu0 0.0
      %6927 = vmatpush1.xpose.msra.mxu0 0.0
      %6928 = vmatprep.subr.mxu0 0.0
      %6929 = vmatpush1.xpose.msra.mxu0 0.0
      %6930 = vmatprep.subr.mxu0 0.0
      %6931 = vmatpush1.xpose.msra.mxu0 0.0
      %6932 = vmatprep.subr.mxu0 0.0
      %6933 = vmatpush1.xpose.msra.mxu0 0.0
      %6934 = vmatprep.subr.mxu0 0.0
      %6935 = vmatpush1.xpose.msra.mxu0 0.0
      %6936 = vmatprep.subr.mxu0 0.0
      %6937 = vmatpush1.xpose.msra.mxu0 0.0
      %6938 = vmatprep.mubr.f32.mxu0 0.0
      %6939 = vmatmul.mubr.f32.gmra.mrb[0].mxu0 %v6860
      %v6940 = vpop.f32.mrb[0].mxu0
      %v6941 = vadd.f32 %v6857, %v6940
      %v6942 = vpop.f32.mrb[0].mxu0
      %6943 = vdwg.mxu0
      %v6944 = vmax.f32 %v6941, 0.0
      %s6945 = scalar_lea.vmem %s14, 32
      %v6946 = vld [vmem:[%s6945] sm:$0xff]
      %v6947 = vld [vmem:[%s6945 + $0x8] sm:$0xff]
      %v6948 = vld [vmem:[%s6945 + $0x10] sm:$0xff]
      %v6949 = vld [vmem:[%s6945 + $0x18] sm:$0xff]
      %s6950 = scalar_lea.vmem %s15, 3
      %v6951 = vld [vmem:[%s6950] sm:$0x1]
      %v6953 = vlaneseq
      %v6954 = vshrl.u32 %v6953, 7
      %v6955 = vsub.s32 0, %v6954
      %v6956 = vrot.slane %v6951, %v6955
      %v6959 = vsel %vm656, %v6944, 0
      %v6962 = vsel %vm656, %v6946, 0
      %v6965 = vsel %vm656, %v6947, 0
      %v6968 = vsel %vm656, %v6948, 0
      %v6971 = vsel %vm656, %v6949, 0
      %6973 = vmatprep.subr.mxu0 0.0
      %6974 = vmatpush1.xpose.msra.mxu0 %v6962
      %6975 = vmatprep.subr.mxu0 0.0
      %6976 = vmatpush1.xpose.msra.mxu0 %v6965
      %6977 = vmatprep.subr.mxu0 0.0
      %6978 = vmatpush1.xpose.msra.mxu0 %v6968
      %6979 = vmatprep.subr.mxu0 0.0
      %6980 = vmatpush1.xpose.msra.mxu0 %v6971
      %6981 = vmatprep.subr.mxu0 0.0
      %6982 = vmatpush1.xpose.msra.mxu0 0.0
      %6983 = vmatprep.subr.mxu0 0.0
      %6984 = vmatpush1.xpose.msra.mxu0 0.0
      %6985 = vmatprep.subr.mxu0 0.0
      %6986 = vmatpush1.xpose.msra.mxu0 0.0
      %6987 = vmatprep.subr.mxu0 0.0
      %6988 = vmatpush1.xpose.msra.mxu0 0.0
      %6989 = vmatprep.subr.mxu0 0.0
      %6990 = vmatpush1.xpose.msra.mxu0 0.0
      %6991 = vmatprep.subr.mxu0 0.0
      %6992 = vmatpush1.xpose.msra.mxu0 0.0
      %6993 = vmatprep.subr.mxu0 0.0
      %6994 = vmatpush1.xpose.msra.mxu0 0.0
      %6995 = vmatprep.subr.mxu0 0.0
      %6996 = vmatpush1.xpose.msra.mxu0 0.0
      %6997 = vmatprep.subr.mxu0 0.0
      %6998 = vmatpush1.xpose.msra.mxu0 0.0
      %6999 = vmatprep.subr.mxu0 0.0
      %7000 = vmatpush1.xpose.msra.mxu0 0.0
      %7001 = vmatprep.subr.mxu0 0.0
      %7002 = vmatpush1.xpose.msra.mxu0 0.0
      %7003 = vmatprep.subr.mxu0 0.0
      %7004 = vmatpush1.xpose.msra.mxu0 0.0
      %7005 = vmatprep.subr.mxu0 0.0
      %7006 = vmatpush1.xpose.msra.mxu0 0.0
      %7007 = vmatprep.subr.mxu0 0.0
      %7008 = vmatpush1.xpose.msra.mxu0 0.0
      %7009 = vmatprep.subr.mxu0 0.0
      %7010 = vmatpush1.xpose.msra.mxu0 0.0
      %7011 = vmatprep.subr.mxu0 0.0
      %7012 = vmatpush1.xpose.msra.mxu0 0.0
      %7013 = vmatprep.subr.mxu0 0.0
      %7014 = vmatpush1.xpose.msra.mxu0 0.0
      %7015 = vmatprep.subr.mxu0 0.0
      %7016 = vmatpush1.xpose.msra.mxu0 0.0
      %7017 = vmatprep.subr.mxu0 0.0
      %7018 = vmatpush1.xpose.msra.mxu0 0.0
      %7019 = vmatprep.subr.mxu0 0.0
      %7020 = vmatpush1.xpose.msra.mxu0 0.0
      %7021 = vmatprep.subr.mxu0 0.0
      %7022 = vmatpush1.xpose.msra.mxu0 0.0
      %7023 = vmatprep.subr.mxu0 0.0
      %7024 = vmatpush1.xpose.msra.mxu0 0.0
      %7025 = vmatprep.subr.mxu0 0.0
      %7026 = vmatpush1.xpose.msra.mxu0 0.0
      %7027 = vmatprep.subr.mxu0 0.0
      %7028 = vmatpush1.xpose.msra.mxu0 0.0
      %7029 = vmatprep.subr.mxu0 0.0
      %7030 = vmatpush1.xpose.msra.mxu0 0.0
      %7031 = vmatprep.subr.mxu0 0.0
      %7032 = vmatpush1.xpose.msra.mxu0 0.0
      %7033 = vmatprep.subr.mxu0 0.0
      %7034 = vmatpush1.xpose.msra.mxu0 0.0
      %7035 = vmatprep.subr.mxu0 0.0
      %7036 = vmatpush1.xpose.msra.mxu0 0.0
      %7037 = vmatprep.mubr.f32.mxu0 0.0
      %7038 = vmatmul.mubr.f32.gmra.mrb[0].mxu0 %v6959
      %v7039 = vpop.f32.mrb[0].mxu0
      %v7040 = vadd.f32 %v6956, %v7039
      %v7041 = vpop.f32.mrb[0].mxu0
      %7042 = vdwg.mxu0
      %v7043 = vmax.f32 %v7040, 0.0
      %s7044 = scalar_lea.vmem %s14, 64
      %v7045 = vld [vmem:[%s7044] sm:$0xff]
      %v7046 = vld [vmem:[%s7044 + $0x8] sm:$0xff]
      %v7047 = vld [vmem:[%s7044 + $0x10] sm:$0xff]
      %v7048 = vld [vmem:[%s7044 + $0x18] sm:$0xff]
      %s7049 = scalar_lea.vmem %s15, 4
      %v7050 = vld [vmem:[%s7049] sm:$0x1]
      %v7052 = vlaneseq
      %v7053 = vshrl.u32 %v7052, 7
      %v7054 = vsub.s32 0, %v7053
      %v7055 = vrot.slane %v7050, %v7054
      %v7058 = vsel %vm656, %v7043, 0
      %v7061 = vsel %vm656, %v7045, 0
      %v7064 = vsel %vm656, %v7046, 0
      %v7067 = vsel %vm656, %v7047, 0
      %v7070 = vsel %vm656, %v7048, 0
      %7072 = vmatprep.subr.mxu0 0.0
      %7073 = vmatpush1.xpose.msra.mxu0 %v7061
      %7074 = vmatprep.subr.mxu0 0.0
      %7075 = vmatpush1.xpose.msra.mxu0 %v7064
      %7076 = vmatprep.subr.mxu0 0.0
      %7077 = vmatpush1.xpose.msra.mxu0 %v7067
      %7078 = vmatprep.subr.mxu0 0.0
      %7079 = vmatpush1.xpose.msra.mxu0 %v7070
      %7080 = vmatprep.subr.mxu0 0.0
      %7081 = vmatpush1.xpose.msra.mxu0 0.0
      %7082 = vmatprep.subr.mxu0 0.0
      %7083 = vmatpush1.xpose.msra.mxu0 0.0
      %7084 = vmatprep.subr.mxu0 0.0
      %7085 = vmatpush1.xpose.msra.mxu0 0.0
      %7086 = vmatprep.subr.mxu0 0.0
      %7087 = vmatpush1.xpose.msra.mxu0 0.0
      %7088 = vmatprep.subr.mxu0 0.0
      %7089 = vmatpush1.xpose.msra.mxu0 0.0
      %7090 = vmatprep.subr.mxu0 0.0
      %7091 = vmatpush1.xpose.msra.mxu0 0.0
      %7092 = vmatprep.subr.mxu0 0.0
      %7093 = vmatpush1.xpose.msra.mxu0 0.0
      %7094 = vmatprep.subr.mxu0 0.0
      %7095 = vmatpush1.xpose.msra.mxu0 0.0
      %7096 = vmatprep.subr.mxu0 0.0
      %7097 = vmatpush1.xpose.msra.mxu0 0.0
      %7098 = vmatprep.subr.mxu0 0.0
      %7099 = vmatpush1.xpose.msra.mxu0 0.0
      %7100 = vmatprep.subr.mxu0 0.0
      %7101 = vmatpush1.xpose.msra.mxu0 0.0
      %7102 = vmatprep.subr.mxu0 0.0
      %7103 = vmatpush1.xpose.msra.mxu0 0.0
      %7104 = vmatprep.subr.mxu0 0.0
      %7105 = vmatpush1.xpose.msra.mxu0 0.0
      %7106 = vmatprep.subr.mxu0 0.0
      %7107 = vmatpush1.xpose.msra.mxu0 0.0
      %7108 = vmatprep.subr.mxu0 0.0
      %7109 = vmatpush1.xpose.msra.mxu0 0.0
      %7110 = vmatprep.subr.mxu0 0.0
      %7111 = vmatpush1.xpose.msra.mxu0 0.0
      %7112 = vmatprep.subr.mxu0 0.0
      %7113 = vmatpush1.xpose.msra.mxu0 0.0
      %7114 = vmatprep.subr.mxu0 0.0
      %7115 = vmatpush1.xpose.msra.mxu0 0.0
      %7116 = vmatprep.subr.mxu0 0.0
      %7117 = vmatpush1.xpose.msra.mxu0 0.0
      %7118 = vmatprep.subr.mxu0 0.0
      %7119 = vmatpush1.xpose.msra.mxu0 0.0
      %7120 = vmatprep.subr.mxu0 0.0
      %7121 = vmatpush1.xpose.msra.mxu0 0.0
      %7122 = vmatprep.subr.mxu0 0.0
      %7123 = vmatpush1.xpose.msra.mxu0 0.0
      %7124 = vmatprep.subr.mxu0 0.0
      %7125 = vmatpush1.xpose.msra.mxu0 0.0
      %7126 = vmatprep.subr.mxu0 0.0
      %7127 = vmatpush1.xpose.msra.mxu0 0.0
      %7128 = vmatprep.subr.mxu0 0.0
      %7129 = vmatpush1.xpose.msra.mxu0 0.0
      %7130 = vmatprep.subr.mxu0 0.0
      %7131 = vmatpush1.xpose.msra.mxu0 0.0
      %7132 = vmatprep.subr.mxu0 0.0
      %7133 = vmatpush1.xpose.msra.mxu0 0.0
      %7134 = vmatprep.subr.mxu0 0.0
      %7135 = vmatpush1.xpose.msra.mxu0 0.0
      %7136 = vmatprep.mubr.f32.mxu0 0.0
      %7137 = vmatmul.mubr.f32.gmra.mrb[0].mxu0 %v7058
      %v7138 = vpop.f32.mrb[0].mxu0
      %v7139 = vadd.f32 %v7055, %v7138
      %v7140 = vpop.f32.mrb[0].mxu0
      %7141 = vdwg.mxu0
      %v7142 = vld [vmem:[%s536] sm:$0xff]
      %v7143 = vld [vmem:[%s536 + $0x8] sm:$0xff]
      %v7144 = vld [vmem:[%s536 + $0x10] sm:$0xff]
      %v7145 = vld [vmem:[%s536 + $0x18] sm:$0xff]
      %v7146 = vld [vmem:[%s536 + $0x20] sm:$0xff]
      %v7147 = vld [vmem:[%s536 + $0x28] sm:$0xff]
      %v7148 = vld [vmem:[%s536 + $0x30] sm:$0xff]
      %v7149 = vld [vmem:[%s536 + $0x38] sm:$0xff]
      %v7151 = vsel %vm656, %v7139, 0
      %7153 = vmatprep.subr.mxu0 %v7143
      %7154 = vmatpush1.msra.mxu0 %v7142
      %7155 = vmatprep.subr.mxu0 %v7145
      %7156 = vmatpush1.msra.mxu0 %v7144
      %7157 = vmatprep.subr.mxu0 %v7147
      %7158 = vmatpush1.msra.mxu0 %v7146
      %7159 = vmatprep.subr.mxu0 %v7149
      %7160 = vmatpush1.msra.mxu0 %v7148
      %7161 = vmatprep.subr.mxu0 0.0
      %7162 = vmatpush1.msra.mxu0 0.0
      %7163 = vmatprep.subr.mxu0 0.0
      %7164 = vmatpush1.msra.mxu0 0.0
      %7165 = vmatprep.subr.mxu0 0.0
      %7166 = vmatpush1.msra.mxu0 0.0
      %7167 = vmatprep.subr.mxu0 0.0
      %7168 = vmatpush1.msra.mxu0 0.0
      %7169 = vmatprep.subr.mxu0 0.0
      %7170 = vmatpush1.msra.mxu0 0.0
      %7171 = vmatprep.subr.mxu0 0.0
      %7172 = vmatpush1.msra.mxu0 0.0
      %7173 = vmatprep.subr.mxu0 0.0
      %7174 = vmatpush1.msra.mxu0 0.0
      %7175 = vmatprep.subr.mxu0 0.0
      %7176 = vmatpush1.msra.mxu0 0.0
      %7177 = vmatprep.subr.mxu0 0.0
      %7178 = vmatpush1.msra.mxu0 0.0
      %7179 = vmatprep.subr.mxu0 0.0
      %7180 = vmatpush1.msra.mxu0 0.0
      %7181 = vmatprep.subr.mxu0 0.0
      %7182 = vmatpush1.msra.mxu0 0.0
      %7183 = vmatprep.subr.mxu0 0.0
      %7184 = vmatpush1.msra.mxu0 0.0
      %7185 = vmatprep.subr.mxu0 0.0
      %7186 = vmatpush1.msra.mxu0 0.0
      %7187 = vmatprep.subr.mxu0 0.0
      %7188 = vmatpush1.msra.mxu0 0.0
      %7189 = vmatprep.subr.mxu0 0.0
      %7190 = vmatpush1.msra.mxu0 0.0
      %7191 = vmatprep.subr.mxu0 0.0
      %7192 = vmatpush1.msra.mxu0 0.0
      %7193 = vmatprep.subr.mxu0 0.0
      %7194 = vmatpush1.msra.mxu0 0.0
      %7195 = vmatprep.subr.mxu0 0.0
      %7196 = vmatpush1.msra.mxu0 0.0
      %7197 = vmatprep.subr.mxu0 0.0
      %7198 = vmatpush1.msra.mxu0 0.0
      %7199 = vmatprep.subr.mxu0 0.0
      %7200 = vmatpush1.msra.mxu0 0.0
      %7201 = vmatprep.subr.mxu0 0.0
      %7202 = vmatpush1.msra.mxu0 0.0
      %7203 = vmatprep.subr.mxu0 0.0
      %7204 = vmatpush1.msra.mxu0 0.0
      %7205 = vmatprep.subr.mxu0 0.0
      %7206 = vmatpush1.msra.mxu0 0.0
      %7207 = vmatprep.subr.mxu0 0.0
      %7208 = vmatpush1.msra.mxu0 0.0
      %7209 = vmatprep.subr.mxu0 0.0
      %7210 = vmatpush1.msra.mxu0 0.0
      %7211 = vmatprep.subr.mxu0 0.0
      %7212 = vmatpush1.msra.mxu0 0.0
      %7213 = vmatprep.subr.mxu0 0.0
      %7214 = vmatpush1.msra.mxu0 0.0
      %7215 = vmatprep.subr.mxu0 0.0
      %7216 = vmatpush1.msra.mxu0 0.0
      %7217 = vmatprep.mubr.f32.mxu0 0.0
      %7218 = vmatmul.mubr.f32.gmra.mrb[0].mxu0 %v7151
      %v7219 = vpop.f32.mrb[0].mxu0
      %v7220 = vadd.f32 0.0, %v7219
      %v7221 = vpop.f32.mrb[0].mxu0
      %v7222 = vadd.f32 0.0, %v7221
      %7223 = vdwg.mxu0
      %7224 = vst [vmem:[%s541] sm:$0xff] %v7220
      %7225 = vst [vmem:[%s541 + $0x8] sm:$0xff] %v7222
      %p7226 = scmp.lt.s32.totalorder %s27, 1
      %s7227 = scalar_select %p7226, %s27, 1
      %s7228 = smul.addr %s7227, 2
      %s7229 = smul.addr %s7228, 8
      %s7230 = scalar_lea.vmem %s16, %s7229
      // Predicated region
      $region85: #{transformer_predictor.1} parent=83 // pred_check
        %p7231 = pneg %p391
      $region86: #{transformer_predictor.1} parent=83 // pred_check_branch
        %7233 = sbr.rel (%p7231) target = $region88
      $region87: #{transformer_predictor.1} parent=83 // pred_region
        _
      $region88: #{transformer_predictor.1} parent=83 // pred_fallthru
        _
    $region84: #{transformer_predictor.1} parent=5 // pred_fallthru
      _
    %p7234 = scmp.le.s32.totalorder 2, %s22
    // Predicated region
    $region89: #{transformer_predictor.1} parent=5 // pred_check
      %p7235 = pneg %p7234
    $region90: #{transformer_predictor.1} parent=5 // pred_check_branch
      %7237 = sbr.rel (%p7235) target = $region92
    $region91: #{transformer_predictor.1} parent=5 // pred_region
      %s7238 = ssub.s32 %s22, 2
      // Predicated region
      $region93: #{transformer_predictor.1} parent=91 // pred_check
        %p7239 = pneg %p397
      $region94: #{transformer_predictor.1} parent=91 // pred_check_branch
        %7241 = sbr.rel (%p7239) target = $region96
      $region95: #{transformer_predictor.1} parent=91 // pred_region
        %p7242 = scmp.lt.s32.totalorder %s28, 1
        %s7243 = scalar_select %p7242, %s28, 1
        %s7244 = smul.addr %s7243, 2
        %s7245 = smul.addr %s7244, 8
        %s7246 = scalar_lea.vmem %s16, %s7245
      $region96: #{transformer_predictor.1} parent=91 // pred_fallthru
        _
    $region92: #{transformer_predictor.1} parent=5 // pred_fallthru
      _
  $region6: #{transformer_predictor.1} parent=0 // loop_footer
    %s26 = sadd.s32 1, %s22
  $region7: #{transformer_predictor.1} parent=0 // loop_footer_branch
    %21 = sbr.rel target = $region3
  $region8: #{transformer_predictor.1} parent=0 // loop_exit
    _

</llo_original>
